<compile_context>
chip_gen: v7x
topology: tpu7x:2x2x1
jax: 0.10.0
libtpu: 0.0.40
codegen_flags: <defaults>
</compile_context>

<pallas_src>
import jax
import jax.numpy as jnp
from jax import lax
from jax.experimental import pallas as pl
from jax.experimental.pallas import tpu as pltpu


def _round_up(x, m):
    return (x + m - 1) // m * m


def _physical_vmem_bytes():
    """Physical VMEM per TensorCore; conservative fallback if the query fails."""
    try:
        info = pltpu.get_tpu_info()
        cap = getattr(info, "vmem_capacity_bytes", None)
        if cap:
            return int(cap)
    except Exception:
        pass
    return 64 * 2 ** 20  # v7x per-TC size: safe lower bound for all chips


def _make_kernel(n_layers, num_dir, T, Bp, Hg, n_inputs):
    """Build the Pallas kernel body for a fixed (static) configuration."""
    G = 3 * Hg  # lane-padded per-direction gate block (r|z|n)

    def kernel(*refs):
        # ---- unpack refs (inputs..., output, scratch...) --------------------
        idx = 0
        emb_ref = refs[idx]; idx += 1                        # (T*Bp, E) bf16
        layers = []
        for l in range(n_layers):
            w_in = refs[idx]; idx += 1                       # (D_in, num_dir*G) bf16
            b_gi = refs[idx]; idx += 1                       # (1, num_dir*G)  f32
            w_hh = refs[idx:idx + num_dir]; idx += num_dir   # (Hg, G) bf16 each
            b_hn = refs[idx:idx + num_dir]; idx += num_dir   # (1, Hg) f32 each
            layers.append((w_in, b_gi, w_hh, b_hn))
        out_w = refs[idx:idx + num_dir]; idx += num_dir      # (Hg, O) bf16 each
        out_b_ref = refs[idx]; idx += 1                      # (1, O) f32
        assert idx == n_inputs
        o_ref = refs[idx]; idx += 1                          # (Bp, O) f32
        scratch = refs[idx:]
        gi_buf = scratch[0]                                  # (T*Bp, num_dir*G) f32
        seq_buf = scratch[1] if n_layers > 1 else None       # (T*Bp, num_dir*Hg) f32

        def run_layer(w_in, b_gi, w_hh, b_hn, first, store_outputs):
            # ---- hoisted input projection: ONE bf16 matmul per layer, stored
            # directly into the combined gi scratch (no per-direction copy) ---
            if first:
                src = emb_ref[...]                           # already bf16
            else:
                src = seq_buf[...].astype(jnp.bfloat16)      # one cast per layer
            gi_all = jnp.dot(src, w_in[...], preferred_element_type=jnp.float32)
            gi_buf[...] = gi_all + b_gi[...]                 # b_ih (+ b_hh for r,z)

            # hoisted per-direction constants (one vreg each)
            bhn = [jnp.broadcast_to(b_hn[d][...], (Bp, Hg)) for d in range(num_dir)]

            def cell(gi_t, h, d):
                # TODO(synk): pin w_hh on the MXU across the time loop
                # (pltpu.matmul_push_rhs / matmul_acc_lhs / matmul_pop) so the
                # (Hg,3Hg) weights are not re-streamed every serial step.
                gh = jnp.dot(h.astype(jnp.bfloat16), w_hh[d][...],
                             preferred_element_type=jnp.float32)
                r = jax.nn.sigmoid(gi_t[:, :Hg] + gh[:, :Hg])
                z = jax.nn.sigmoid(gi_t[:, Hg:2 * Hg] + gh[:, Hg:2 * Hg])
                n = jnp.tanh(gi_t[:, 2 * Hg:] + r * (gh[:, 2 * Hg:] + bhn[d]))
                return (1.0 - z) * n + z * h

            def body(i, carry):
                hs = list(carry)
                # forward (t = i) and backward (t = T-1-i) chains interleaved in
                # the same step so their MXU/EUP latencies hide each other.
                # TODO(synk): on v7x run one direction per TensorCore instead.
                for d in range(num_dir):
                    t = i if d == 0 else T - 1 - i
                    row = pl.multiple_of(t * Bp, Bp)
                    gi_t = gi_buf[pl.ds(row, Bp), d * G:(d + 1) * G]
                    h_new = cell(gi_t, hs[d], d)
                    if store_outputs:
                        seq_buf[pl.ds(row, Bp), d * Hg:(d + 1) * Hg] = h_new
                    hs[d] = h_new
                return tuple(hs)

            h0 = tuple(jnp.zeros((Bp, Hg), jnp.float32) for _ in range(num_dir))
            # full unroll for short sequences, partial (8) for long ones
            return lax.fori_loop(0, T, body, h0,
                                 unroll=(True if T <= 32 else 8))

        final_h = None
        for l in range(n_layers):
            w_in, b_gi, w_hh, b_hn = layers[l]
            final_h = run_layer(w_in, b_gi, w_hh, b_hn,
                                first=(l == 0),
                                store_outputs=(l < n_layers - 1))

        # ---- output Linear: per-direction matmuls summed (no concat) --------
        acc = jnp.dot(final_h[0].astype(jnp.bfloat16), out_w[0][...],
                      preferred_element_type=jnp.float32)
        for d in range(1, num_dir):
            acc = acc + jnp.dot(final_h[d].astype(jnp.bfloat16), out_w[d][...],
                                preferred_element_type=jnp.float32)
        # TODO(synk): nn.Dropout is identity in eval mode; stochastic dropout not implemented.
        o_ref[...] = (acc + out_b_ref[...]).astype(o_ref.dtype)

    return kernel


def bert_gru_sentiment(embedded, gru_params, out_w, out_b, *,
                       hidden_dim, n_layers, bidirectional):
    """embedded: (B, T, E) float32 — output of the frozen BERT (eval-mode dropout = id)."""
    B, T, E = embedded.shape
    H = hidden_dim
    num_dir = 2 if bidirectional else 1
    O = out_b.shape[-1]
    Bp = _round_up(B, 8)        # sublane-dense batch
    Hg = _round_up(H, 128)      # lane-aligned per-gate width
    # TODO(synk): for small deployment H (e.g. 32) pack the 3H gates into a
    # single 128-lane block instead of padding every gate to 128 lanes.
    G = 3 * Hg

    # time-major, sublane-pad batch, flatten to (T*Bp, E); bf16 for the MXU
    emb = jnp.transpose(embedded, (1, 0, 2)).astype(jnp.float32)
    emb = jnp.pad(emb, ((0, 0), (0, Bp - B), (0, 0))).reshape(T * Bp, E)
    emb = emb.astype(jnp.bfloat16)
    # TODO(synk): at production T (512) stream `emb` from HBM (pl.ANY +
    # pltpu.emit_pipeline time chunks) instead of keeping it VMEM resident.

    def gate_pad_cols(w_t):     # (D, 3H) -> (D, 3Hg): pad each gate to Hg lanes
        return jnp.concatenate(
            [jnp.pad(w_t[:, g * H:(g + 1) * H], ((0, 0), (0, Hg - H)))
             for g in range(3)], axis=1)

    flat = [emb]
    for l in range(n_layers):
        # fused input-projection weights: both directions along the output dim,
        # and (for l>0) both SOURCE directions stacked along the contraction dim
        if l == 0:
            w_fused = jnp.concatenate(
                [gate_pad_cols(gru_params[(l, d)][0].T) for d in range(num_dir)],
                axis=1)                                           # (E, num_dir*G)
        else:
            rows = []
            for src in range(num_dir):
                blocks = []
                for d in range(num_dir):
                    w_t = gru_params[(l, d)][0].T                 # (num_dir*H, 3H)
                    blocks.append(gate_pad_cols(w_t[src * H:(src + 1) * H, :]))
                rows.append(jnp.pad(jnp.concatenate(blocks, axis=1),
                                    ((0, Hg - H), (0, 0))))       # (Hg, num_dir*G)
            w_fused = jnp.concatenate(rows, axis=0)               # (num_dir*Hg, num_dir*G)
        flat.append(w_fused.astype(jnp.bfloat16))
        # fused input bias: b_ih everywhere, + b_hh for r,z (n keeps b_hn separate)
        b_parts = []
        for d in range(num_dir):
            b_ih, b_hh = gru_params[(l, d)][2], gru_params[(l, d)][3]
            for g in range(3):
                b = b_ih[g * H:(g + 1) * H]
                if g < 2:
                    b = b + b_hh[g * H:(g + 1) * H]
                b_parts.append(jnp.pad(b, (0, Hg - H)))
        flat.append(jnp.concatenate(b_parts).reshape(1, num_dir * G)
                    .astype(jnp.float32))
        # recurrent weights / b_hn per direction
        for d in range(num_dir):
            w_hh_t = gate_pad_cols(gru_params[(l, d)][1].T)       # (H, G)
            flat.append(jnp.pad(w_hh_t, ((0, Hg - H), (0, 0)))
                        .astype(jnp.bfloat16))                    # (Hg, G)
        for d in range(num_dir):
            b_hh = gru_params[(l, d)][3]
            flat.append(jnp.pad(b_hh[2 * H:], (0, Hg - H)).reshape(1, Hg)
                        .astype(jnp.float32))

    # output Linear split per direction (hidden[-2]=fwd half, hidden[-1]=bwd half)
    w_out_t = out_w.T                                             # (num_dir*H, O)
    for d in range(num_dir):
        flat.append(jnp.pad(w_out_t[d * H:(d + 1) * H, :], ((0, Hg - H), (0, 0)))
                    .astype(jnp.bfloat16))
    flat.append(out_b.reshape(1, O).astype(jnp.float32))

    n_inputs = len(flat)
    kernel = _make_kernel(n_layers, num_dir, T, Bp, Hg, n_inputs)

    vmem = pl.BlockSpec(memory_space=pltpu.MemorySpace.VMEM)
    # Combined scratch slabs: ONE gi buffer (all directions, lane-blocked) and
    # ONE inter-layer sequence buffer (all directions).  f32 keeps the per-step
    # dynamic 8-row sublane slices native-tile aligned; bf16 slabs are a
    # production-shape TODO (see header).
    scratch = [pltpu.VMEM((T * Bp, num_dir * G), jnp.float32)]
    if n_layers > 1:
        scratch.append(pltpu.VMEM((T * Bp, num_dir * Hg), jnp.float32))

    weight_bytes = sum(int(x.size) * x.dtype.itemsize for x in flat)
    scratch_bytes = 4 * T * Bp * num_dir * G
    if n_layers > 1:
        scratch_bytes += 4 * T * Bp * num_dir * Hg
    need = weight_bytes + scratch_bytes + 4 * Bp * O
    cap = int(0.9 * _physical_vmem_bytes())       # ~10% headroom below physical
    vmem_limit = min(cap, max(32 * 2 ** 20, int(1.5 * need)))

    out = pl.pallas_call(
        kernel,
        out_shape=jax.ShapeDtypeStruct((Bp, O), jnp.float32),
        in_specs=[vmem] * n_inputs,
        out_specs=vmem,
        scratch_shapes=scratch,
        compiler_params=pltpu.CompilerParams(vmem_limit_bytes=vmem_limit),
    )(*flat)
    return out[:B]


def _reference(embedded, gru_params, out_w, out_b, hidden_dim, n_layers, bidirectional):
    """Pure-JAX f32 reference of the GRU + Linear (PyTorch semantics)."""
    num_dir = 2 if bidirectional else 1
    H = hidden_dim
    x = embedded
    B, T, _ = x.shape
    finals = None
    for l in range(n_layers):
        outs, finals = [], []
        for d in range(num_dir):
            w_ih, w_hh, b_ih, b_hh = gru_params[(l, d)]
            h = jnp.zeros((B, H), jnp.float32)
            out_seq = [None] * T
            order = range(T - 1, -1, -1) if d == 1 else range(T)
            for t in order:
                x_t = x[:, t, :]
                gi = x_t @ w_ih.T + b_ih
                gh = h @ w_hh.T + b_hh
                r = jax.nn.sigmoid(gi[:, :H] + gh[:, :H])
                z = jax.nn.sigmoid(gi[:, H:2 * H] + gh[:, H:2 * H])
                n = jnp.tanh(gi[:, 2 * H:] + r * gh[:, 2 * H:])
                h = (1.0 - z) * n + z * h
                out_seq[t] = h
            outs.append(jnp.stack(out_seq, axis=1))
            finals.append(h)
        x = jnp.concatenate(outs, axis=-1)
    hidden = jnp.concatenate(finals, axis=-1) if num_dir == 2 else finals[0]
    return hidden @ out_w.T + out_b


if __name__ == "__main__":
    B, T = 2, 8                      # batch, sequence length
    E, H, O = 32, 32, 2              # bert hidden_size, hidden_dim, output_dim
    n_layers, bidirectional = 2, True
    num_dir = 2 if bidirectional else 1
    vocab = 100

    keys = iter(jax.random.split(jax.random.PRNGKey(0), 64))

    # --- frozen BERT stand-in -------------------------------------------------
    # TODO(synk): the full BERT encoder has no compact Pallas equivalent here; it is
    # replaced by a deterministic embedding-lookup stand-in producing bert(ids, mask)[0].
    ids = jax.random.randint(next(keys), (B, T), 0, vocab)
    mask = jnp.ones((B, T), jnp.float32)
    emb_table = 0.1 * jax.random.normal(next(keys), (vocab, E), jnp.float32)
    embedded = emb_table[ids] * mask[..., None]        # (B, T, E); dropout = identity (eval)

    # --- deterministic GRU / Linear parameters (PyTorch init ranges) ---------
    def uniform(k, shape, bound):
        return jax.random.uniform(k, shape, jnp.float32, -bound, bound)

    gru_bound = 1.0 / (H ** 0.5)
    gru_params = {}
    for l in range(n_layers):
        d_in = E if l == 0 else num_dir * H
        for d in range(num_dir):
            gru_params[(l, d)] = (
                uniform(next(keys), (3 * H, d_in), gru_bound),   # weight_ih_l{l}{_reverse}
                uniform(next(keys), (3 * H, H), gru_bound),      # weight_hh_l{l}{_reverse}
                uniform(next(keys), (3 * H,), gru_bound),        # bias_ih
                uniform(next(keys), (3 * H,), gru_bound),        # bias_hh
            )
    lin_bound = 1.0 / ((num_dir * H) ** 0.5)
    out_w = uniform(next(keys), (O, num_dir * H), lin_bound)     # nn.Linear weight
    out_b = uniform(next(keys), (O,), lin_bound)                 # nn.Linear bias

    # --- run the Pallas kernel ------------------------------------------------
    out = bert_gru_sentiment(embedded, gru_params, out_w, out_b,
                             hidden_dim=H, n_layers=n_layers,
                             bidirectional=bidirectional)
    out = jax.block_until_ready(out)

    ref = _reference(embedded, gru_params, out_w, out_b, H, n_layers, bidirectional)
    assert out.shape == (B, O)
    # Tolerance reflects bf16 weights/embedding (f32 accumulation + f32 h carry).
    assert jnp.allclose(out, ref, atol=3e-2, rtol=3e-2), (out, ref)
    print("KERNEL_OK")
</pallas_src>

<mosaic_0001>
module attributes {stable_mosaic.version = 11 : i64} {
  func.func @kernel(%arg0: memref<64x32xbf16, #tpu.memory_space<vmem>>, %arg1: memref<32x768xbf16, #tpu.memory_space<vmem>>, %arg2: memref<1x768xf32, #tpu.memory_space<vmem>>, %arg3: memref<128x384xbf16, #tpu.memory_space<vmem>>, %arg4: memref<128x384xbf16, #tpu.memory_space<vmem>>, %arg5: memref<1x128xf32, #tpu.memory_space<vmem>>, %arg6: memref<1x128xf32, #tpu.memory_space<vmem>>, %arg7: memref<256x768xbf16, #tpu.memory_space<vmem>>, %arg8: memref<1x768xf32, #tpu.memory_space<vmem>>, %arg9: memref<128x384xbf16, #tpu.memory_space<vmem>>, %arg10: memref<128x384xbf16, #tpu.memory_space<vmem>>, %arg11: memref<1x128xf32, #tpu.memory_space<vmem>>, %arg12: memref<1x128xf32, #tpu.memory_space<vmem>>, %arg13: memref<128x2xbf16, #tpu.memory_space<vmem>>, %arg14: memref<128x2xbf16, #tpu.memory_space<vmem>>, %arg15: memref<1x2xf32, #tpu.memory_space<vmem>>, %arg16: memref<8x2xf32, #tpu.memory_space<vmem>>, %arg17: memref<64x768xf32, #tpu.memory_space<vmem>>, %arg18: memref<64x256xf32, #tpu.memory_space<vmem>>) attributes {dimension_semantics = [], scalar_prefetch = 0 : i64, scratch_operands = 2 : i64, tpu.core_type = #tpu.core_type<tc>} {
    %c0 = arith.constant 0 : index
    %c0_0 = arith.constant 0 : index
    %0 = vector.load %arg0[%c0, %c0_0] : memref<64x32xbf16, #tpu.memory_space<vmem>>, vector<64x32xbf16>
    %c0_1 = arith.constant 0 : index
    %c0_2 = arith.constant 0 : index
    %1 = vector.load %arg1[%c0_1, %c0_2] : memref<32x768xbf16, #tpu.memory_space<vmem>>, vector<32x768xbf16>
    %cst = arith.constant dense<0.000000e+00> : vector<64x768xf32>
    %2 = tpu.matmul %0, %1, %cst {dimension_numbers = #tpu.dot_dimension_numbers<[1], [0], [0], [1], [0, 0, 1, 1], [], []>} : vector<64x32xbf16>, vector<32x768xbf16>, vector<64x768xf32> -> vector<64x768xf32>
    %c0_3 = arith.constant 0 : index
    %c0_4 = arith.constant 0 : index
    %3 = vector.load %arg2[%c0_3, %c0_4] : memref<1x768xf32, #tpu.memory_space<vmem>>, vector<1x768xf32>
    %4 = vector.broadcast %3 : vector<1x768xf32> to vector<64x768xf32>
    %5 = arith.addf %2, %4 : vector<64x768xf32>
    %c0_5 = arith.constant 0 : index
    %c0_6 = arith.constant 0 : index
    %6 = vector.load %arg17[%c0_5, %c0_6] : memref<64x768xf32, #tpu.memory_space<vmem>>, vector<64x768xf32>
    tpu.vector_store %arg17[%c0_5, %c0_6], %5 {strides = array<i32>} : memref<64x768xf32, #tpu.memory_space<vmem>>, vector<64x768xf32>,
    %c0_7 = arith.constant 0 : index
    %c0_8 = arith.constant 0 : index
    %7 = vector.load %arg5[%c0_7, %c0_8] : memref<1x128xf32, #tpu.memory_space<vmem>>, vector<1x128xf32>
    %8 = vector.shape_cast %7 : vector<1x128xf32> to vector<1x128xf32>
    %9 = vector.broadcast %8 : vector<1x128xf32> to vector<8x128xf32>
    %c0_9 = arith.constant 0 : index
    %c0_10 = arith.constant 0 : index
    %10 = vector.load %arg6[%c0_9, %c0_10] : memref<1x128xf32, #tpu.memory_space<vmem>>, vector<1x128xf32>
    %11 = vector.shape_cast %10 : vector<1x128xf32> to vector<1x128xf32>
    %12 = vector.broadcast %11 : vector<1x128xf32> to vector<8x128xf32>
    %cst_11 = arith.constant 0.000000e+00 : f32
    %13 = vector.broadcast %cst_11 : f32 to vector<8x128xf32>
    %cst_12 = arith.constant 0.000000e+00 : f32
    %14 = vector.broadcast %cst_12 : f32 to vector<8x128xf32>
    %c0_i32 = arith.constant 0 : i32
    %c8_i32 = arith.constant 8 : i32
    %15 = arith.muli %c0_i32, %c8_i32 : i32
    %16 = tpu.assume_multiple %15, 8 : i32
    %17 = arith.index_cast %16 : i32 to index
    %c0_13 = arith.constant 0 : index
    %18 = vector.load %arg17[%17, %c0_13] : memref<64x768xf32, #tpu.memory_space<vmem>>, vector<8x384xf32>
    %19 = arith.truncf %13 : vector<8x128xf32> to vector<8x128xbf16>
    %c0_14 = arith.constant 0 : index
    %c0_15 = arith.constant 0 : index
    %20 = vector.load %arg3[%c0_14, %c0_15] : memref<128x384xbf16, #tpu.memory_space<vmem>>, vector<128x384xbf16>
    %cst_16 = arith.constant dense<0.000000e+00> : vector<8x384xf32>
    %21 = tpu.matmul %19, %20, %cst_16 {dimension_numbers = #tpu.dot_dimension_numbers<[1], [0], [0], [1], [0, 0, 1, 1], [], []>} : vector<8x128xbf16>, vector<128x384xbf16>, vector<8x384xf32> -> vector<8x384xf32>
    %22 = vector.extract_strided_slice %18 {offsets = [0, 0], sizes = [8, 128], strides = [1, 1]} : vector<8x384xf32> to vector<8x128xf32>
    %23 = vector.extract_strided_slice %21 {offsets = [0, 0], sizes = [8, 128], strides = [1, 1]} : vector<8x384xf32> to vector<8x128xf32>
    %24 = arith.addf %22, %23 : vector<8x128xf32>
    %25 = arith.negf %24 : vector<8x128xf32>
    %26 = math.exp %25 : vector<8x128xf32>
    %cst_17 = arith.constant 1.000000e+00 : f32
    %27 = vector.broadcast %cst_17 : f32 to vector<8x128xf32>
    %28 = arith.addf %27, %26 : vector<8x128xf32>
    %29 = arith.divf %27, %28 : vector<8x128xf32>
    %30 = vector.extract_strided_slice %18 {offsets = [0, 128], sizes = [8, 128], strides = [1, 1]} : vector<8x384xf32> to vector<8x128xf32>
    %31 = vector.extract_strided_slice %21 {offsets = [0, 128], sizes = [8, 128], strides = [1, 1]} : vector<8x384xf32> to vector<8x128xf32>
    %32 = arith.addf %30, %31 : vector<8x128xf32>
    %33 = arith.negf %32 : vector<8x128xf32>
    %34 = math.exp %33 : vector<8x128xf32>
    %cst_18 = arith.constant 1.000000e+00 : f32
    %35 = vector.broadcast %cst_18 : f32 to vector<8x128xf32>
    %36 = arith.addf %35, %34 : vector<8x128xf32>
    %37 = arith.divf %35, %36 : vector<8x128xf32>
    %38 = vector.extract_strided_slice %18 {offsets = [0, 256], sizes = [8, 128], strides = [1, 1]} : vector<8x384xf32> to vector<8x128xf32>
    %39 = vector.extract_strided_slice %21 {offsets = [0, 256], sizes = [8, 128], strides = [1, 1]} : vector<8x384xf32> to vector<8x128xf32>
    %40 = arith.addf %39, %9 : vector<8x128xf32>
    %41 = arith.mulf %29, %40 : vector<8x128xf32>
    %42 = arith.addf %38, %41 : vector<8x128xf32>
    %43 = math.tanh %42 : vector<8x128xf32>
    %cst_19 = arith.constant 1.000000e+00 : f32
    %44 = vector.broadcast %cst_19 : f32 to vector<8x128xf32>
    %45 = arith.subf %44, %37 : vector<8x128xf32>
    %46 = arith.mulf %45, %43 : vector<8x128xf32>
    %47 = arith.mulf %37, %13 : vector<8x128xf32>
    %48 = arith.addf %46, %47 : vector<8x128xf32>
    %49 = arith.index_cast %16 : i32 to index
    %c0_20 = arith.constant 0 : index
    %50 = vector.load %arg18[%49, %c0_20] : memref<64x256xf32, #tpu.memory_space<vmem>>, vector<8x128xf32>
    tpu.vector_store %arg18[%49, %c0_20], %48 {strides = array<i32>} : memref<64x256xf32, #tpu.memory_space<vmem>>, vector<8x128xf32>,
    %c7_i32 = arith.constant 7 : i32
    %51 = arith.subi %c7_i32, %c0_i32 : i32
    %c8_i32_21 = arith.constant 8 : i32
    %52 = arith.muli %51, %c8_i32_21 : i32
    %53 = tpu.assume_multiple %52, 8 : i32
    %54 = arith.index_cast %53 : i32 to index
    %c384 = arith.constant 384 : index
    %55 = vector.load %arg17[%54, %c384] : memref<64x768xf32, #tpu.memory_space<vmem>>, vector<8x384xf32>
    %56 = arith.truncf %14 : vector<8x128xf32> to vector<8x128xbf16>
    %c0_22 = arith.constant 0 : index
    %c0_23 = arith.constant 0 : index
    %57 = vector.load %arg4[%c0_22, %c0_23] : memref<128x384xbf16, #tpu.memory_space<vmem>>, vector<128x384xbf16>
    %cst_24 = arith.constant dense<0.000000e+00> : vector<8x384xf32>
    %58 = tpu.matmul %56, %57, %cst_24 {dimension_numbers = #tpu.dot_dimension_numbers<[1], [0], [0], [1], [0, 0, 1, 1], [], []>} : vector<8x128xbf16>, vector<128x384xbf16>, vector<8x384xf32> -> vector<8x384xf32>
    %59 = vector.extract_strided_slice %55 {offsets = [0, 0], sizes = [8, 128], strides = [1, 1]} : vector<8x384xf32> to vector<8x128xf32>
    %60 = vector.extract_strided_slice %58 {offsets = [0, 0], sizes = [8, 128], strides = [1, 1]} : vector<8x384xf32> to vector<8x128xf32>
    %61 = arith.addf %59, %60 : vector<8x128xf32>
    %62 = arith.negf %61 : vector<8x128xf32>
    %63 = math.exp %62 : vector<8x128xf32>
    %cst_25 = arith.constant 1.000000e+00 : f32
    %64 = vector.broadcast %cst_25 : f32 to vector<8x128xf32>
    %65 = arith.addf %64, %63 : vector<8x128xf32>
    %66 = arith.divf %64, %65 : vector<8x128xf32>
    %67 = vector.extract_strided_slice %55 {offsets = [0, 128], sizes = [8, 128], strides = [1, 1]} : vector<8x384xf32> to vector<8x128xf32>
    %68 = vector.extract_strided_slice %58 {offsets = [0, 128], sizes = [8, 128], strides = [1, 1]} : vector<8x384xf32> to vector<8x128xf32>
    %69 = arith.addf %67, %68 : vector<8x128xf32>
    %70 = arith.negf %69 : vector<8x128xf32>
    %71 = math.exp %70 : vector<8x128xf32>
    %cst_26 = arith.constant 1.000000e+00 : f32
    %72 = vector.broadcast %cst_26 : f32 to vector<8x128xf32>
    %73 = arith.addf %72, %71 : vector<8x128xf32>
    %74 = arith.divf %72, %73 : vector<8x128xf32>
    %75 = vector.extract_strided_slice %55 {offsets = [0, 256], sizes = [8, 128], strides = [1, 1]} : vector<8x384xf32> to vector<8x128xf32>
    %76 = vector.extract_strided_slice %58 {offsets = [0, 256], sizes = [8, 128], strides = [1, 1]} : vector<8x384xf32> to vector<8x128xf32>
    %77 = arith.addf %76, %12 : vector<8x128xf32>
    %78 = arith.mulf %66, %77 : vector<8x128xf32>
    %79 = arith.addf %75, %78 : vector<8x128xf32>
    %80 = math.tanh %79 : vector<8x128xf32>
    %cst_27 = arith.constant 1.000000e+00 : f32
    %81 = vector.broadcast %cst_27 : f32 to vector<8x128xf32>
    %82 = arith.subf %81, %74 : vector<8x128xf32>
    %83 = arith.mulf %82, %80 : vector<8x128xf32>
    %84 = arith.mulf %74, %14 : vector<8x128xf32>
    %85 = arith.addf %83, %84 : vector<8x128xf32>
    %86 = arith.index_cast %53 : i32 to index
    %c128 = arith.constant 128 : index
    %87 = vector.load %arg18[%86, %c128] : memref<64x256xf32, #tpu.memory_space<vmem>>, vector<8x128xf32>
    tpu.vector_store %arg18[%86, %c128], %85 {strides = array<i32>} : memref<64x256xf32, #tpu.memory_space<vmem>>, vector<8x128xf32>,
    %c1_i32 = arith.constant 1 : i32
    %c8_i32_28 = arith.constant 8 : i32
    %88 = arith.muli %c1_i32, %c8_i32_28 : i32
    %89 = tpu.assume_multiple %88, 8 : i32
    %90 = arith.index_cast %89 : i32 to index
    %c0_29 = arith.constant 0 : index
    %91 = vector.load %arg17[%90, %c0_29] : memref<64x768xf32, #tpu.memory_space<vmem>>, vector<8x384xf32>
    %92 = arith.truncf %48 : vector<8x128xf32> to vector<8x128xbf16>
    %c0_30 = arith.constant 0 : index
    %c0_31 = arith.constant 0 : index
    %93 = vector.load %arg3[%c0_30, %c0_31] : memref<128x384xbf16, #tpu.memory_space<vmem>>, vector<128x384xbf16>
    %cst_32 = arith.constant dense<0.000000e+00> : vector<8x384xf32>
    %94 = tpu.matmul %92, %93, %cst_32 {dimension_numbers = #tpu.dot_dimension_numbers<[1], [0], [0], [1], [0, 0, 1, 1], [], []>} : vector<8x128xbf16>, vector<128x384xbf16>, vector<8x384xf32> -> vector<8x384xf32>
    %95 = vector.extract_strided_slice %91 {offsets = [0, 0], sizes = [8, 128], strides = [1, 1]} : vector<8x384xf32> to vector<8x128xf32>
    %96 = vector.extract_strided_slice %94 {offsets = [0, 0], sizes = [8, 128], strides = [1, 1]} : vector<8x384xf32> to vector<8x128xf32>
    %97 = arith.addf %95, %96 : vector<8x128xf32>
    %98 = arith.negf %97 : vector<8x128xf32>
    %99 = math.exp %98 : vector<8x128xf32>
    %cst_33 = arith.constant 1.000000e+00 : f32
    %100 = vector.broadcast %cst_33 : f32 to vector<8x128xf32>
    %101 = arith.addf %100, %99 : vector<8x128xf32>
    %102 = arith.divf %100, %101 : vector<8x128xf32>
    %103 = vector.extract_strided_slice %91 {offsets = [0, 128], sizes = [8, 128], strides = [1, 1]} : vector<8x384xf32> to vector<8x128xf32>
    %104 = vector.extract_strided_slice %94 {offsets = [0, 128], sizes = [8, 128], strides = [1, 1]} : vector<8x384xf32> to vector<8x128xf32>
    %105 = arith.addf %103, %104 : vector<8x128xf32>
    %106 = arith.negf %105 : vector<8x128xf32>
    %107 = math.exp %106 : vector<8x128xf32>
    %cst_34 = arith.constant 1.000000e+00 : f32
    %108 = vector.broadcast %cst_34 : f32 to vector<8x128xf32>
    %109 = arith.addf %108, %107 : vector<8x128xf32>
    %110 = arith.divf %108, %109 : vector<8x128xf32>
    %111 = vector.extract_strided_slice %91 {offsets = [0, 256], sizes = [8, 128], strides = [1, 1]} : vector<8x384xf32> to vector<8x128xf32>
    %112 = vector.extract_strided_slice %94 {offsets = [0, 256], sizes = [8, 128], strides = [1, 1]} : vector<8x384xf32> to vector<8x128xf32>
    %113 = arith.addf %112, %9 : vector<8x128xf32>
    %114 = arith.mulf %102, %113 : vector<8x128xf32>
    %115 = arith.addf %111, %114 : vector<8x128xf32>
    %116 = math.tanh %115 : vector<8x128xf32>
    %cst_35 = arith.constant 1.000000e+00 : f32
    %117 = vector.broadcast %cst_35 : f32 to vector<8x128xf32>
    %118 = arith.subf %117, %110 : vector<8x128xf32>
    %119 = arith.mulf %118, %116 : vector<8x128xf32>
    %120 = arith.mulf %110, %48 : vector<8x128xf32>
    %121 = arith.addf %119, %120 : vector<8x128xf32>
    %122 = arith.index_cast %89 : i32 to index
    %c0_36 = arith.constant 0 : index
    %123 = vector.load %arg18[%122, %c0_36] : memref<64x256xf32, #tpu.memory_space<vmem>>, vector<8x128xf32>
    tpu.vector_store %arg18[%122, %c0_36], %121 {strides = array<i32>} : memref<64x256xf32, #tpu.memory_space<vmem>>, vector<8x128xf32>,
    %c7_i32_37 = arith.constant 7 : i32
    %124 = arith.subi %c7_i32_37, %c1_i32 : i32
    %c8_i32_38 = arith.constant 8 : i32
    %125 = arith.muli %124, %c8_i32_38 : i32
    %126 = tpu.assume_multiple %125, 8 : i32
    %127 = arith.index_cast %126 : i32 to index
    %c384_39 = arith.constant 384 : index
    %128 = vector.load %arg17[%127, %c384_39] : memref<64x768xf32, #tpu.memory_space<vmem>>, vector<8x384xf32>
    %129 = arith.truncf %85 : vector<8x128xf32> to vector<8x128xbf16>
    %c0_40 = arith.constant 0 : index
    %c0_41 = arith.constant 0 : index
    %130 = vector.load %arg4[%c0_40, %c0_41] : memref<128x384xbf16, #tpu.memory_space<vmem>>, vector<128x384xbf16>
    %cst_42 = arith.constant dense<0.000000e+00> : vector<8x384xf32>
    %131 = tpu.matmul %129, %130, %cst_42 {dimension_numbers = #tpu.dot_dimension_numbers<[1], [0], [0], [1], [0, 0, 1, 1], [], []>} : vector<8x128xbf16>, vector<128x384xbf16>, vector<8x384xf32> -> vector<8x384xf32>
    %132 = vector.extract_strided_slice %128 {offsets = [0, 0], sizes = [8, 128], strides = [1, 1]} : vector<8x384xf32> to vector<8x128xf32>
    %133 = vector.extract_strided_slice %131 {offsets = [0, 0], sizes = [8, 128], strides = [1, 1]} : vector<8x384xf32> to vector<8x128xf32>
    %134 = arith.addf %132, %133 : vector<8x128xf32>
    %135 = arith.negf %134 : vector<8x128xf32>
    %136 = math.exp %135 : vector<8x128xf32>
    %cst_43 = arith.constant 1.000000e+00 : f32
    %137 = vector.broadcast %cst_43 : f32 to vector<8x128xf32>
    %138 = arith.addf %137, %136 : vector<8x128xf32>
    %139 = arith.divf %137, %138 : vector<8x128xf32>
    %140 = vector.extract_strided_slice %128 {offsets = [0, 128], sizes = [8, 128], strides = [1, 1]} : vector<8x384xf32> to vector<8x128xf32>
    %141 = vector.extract_strided_slice %131 {offsets = [0, 128], sizes = [8, 128], strides = [1, 1]} : vector<8x384xf32> to vector<8x128xf32>
    %142 = arith.addf %140, %141 : vector<8x128xf32>
    %143 = arith.negf %142 : vector<8x128xf32>
    %144 = math.exp %143 : vector<8x128xf32>
    %cst_44 = arith.constant 1.000000e+00 : f32
    %145 = vector.broadcast %cst_44 : f32 to vector<8x128xf32>
    %146 = arith.addf %145, %144 : vector<8x128xf32>
    %147 = arith.divf %145, %146 : vector<8x128xf32>
    %148 = vector.extract_strided_slice %128 {offsets = [0, 256], sizes = [8, 128], strides = [1, 1]} : vector<8x384xf32> to vector<8x128xf32>
    %149 = vector.extract_strided_slice %131 {offsets = [0, 256], sizes = [8, 128], strides = [1, 1]} : vector<8x384xf32> to vector<8x128xf32>
    %150 = arith.addf %149, %12 : vector<8x128xf32>
    %151 = arith.mulf %139, %150 : vector<8x128xf32>
    %152 = arith.addf %148, %151 : vector<8x128xf32>
    %153 = math.tanh %152 : vector<8x128xf32>
    %cst_45 = arith.constant 1.000000e+00 : f32
    %154 = vector.broadcast %cst_45 : f32 to vector<8x128xf32>
    %155 = arith.subf %154, %147 : vector<8x128xf32>
    %156 = arith.mulf %155, %153 : vector<8x128xf32>
    %157 = arith.mulf %147, %85 : vector<8x128xf32>
    %158 = arith.addf %156, %157 : vector<8x128xf32>
    %159 = arith.index_cast %126 : i32 to index
    %c128_46 = arith.constant 128 : index
    %160 = vector.load %arg18[%159, %c128_46] : memref<64x256xf32, #tpu.memory_space<vmem>>, vector<8x128xf32>
    tpu.vector_store %arg18[%159, %c128_46], %158 {strides = array<i32>} : memref<64x256xf32, #tpu.memory_space<vmem>>, vector<8x128xf32>,
    %c2_i32 = arith.constant 2 : i32
    %c8_i32_47 = arith.constant 8 : i32
    %161 = arith.muli %c2_i32, %c8_i32_47 : i32
    %162 = tpu.assume_multiple %161, 8 : i32
    %163 = arith.index_cast %162 : i32 to index
    %c0_48 = arith.constant 0 : index
    %164 = vector.load %arg17[%163, %c0_48] : memref<64x768xf32, #tpu.memory_space<vmem>>, vector<8x384xf32>
    %165 = arith.truncf %121 : vector<8x128xf32> to vector<8x128xbf16>
    %c0_49 = arith.constant 0 : index
    %c0_50 = arith.constant 0 : index
    %166 = vector.load %arg3[%c0_49, %c0_50] : memref<128x384xbf16, #tpu.memory_space<vmem>>, vector<128x384xbf16>
    %cst_51 = arith.constant dense<0.000000e+00> : vector<8x384xf32>
    %167 = tpu.matmul %165, %166, %cst_51 {dimension_numbers = #tpu.dot_dimension_numbers<[1], [0], [0], [1], [0, 0, 1, 1], [], []>} : vector<8x128xbf16>, vector<128x384xbf16>, vector<8x384xf32> -> vector<8x384xf32>
    %168 = vector.extract_strided_slice %164 {offsets = [0, 0], sizes = [8, 128], strides = [1, 1]} : vector<8x384xf32> to vector<8x128xf32>
    %169 = vector.extract_strided_slice %167 {offsets = [0, 0], sizes = [8, 128], strides = [1, 1]} : vector<8x384xf32> to vector<8x128xf32>
    %170 = arith.addf %168, %169 : vector<8x128xf32>
    %171 = arith.negf %170 : vector<8x128xf32>
    %172 = math.exp %171 : vector<8x128xf32>
    %cst_52 = arith.constant 1.000000e+00 : f32
    %173 = vector.broadcast %cst_52 : f32 to vector<8x128xf32>
    %174 = arith.addf %173, %172 : vector<8x128xf32>
    %175 = arith.divf %173, %174 : vector<8x128xf32>
    %176 = vector.extract_strided_slice %164 {offsets = [0, 128], sizes = [8, 128], strides = [1, 1]} : vector<8x384xf32> to vector<8x128xf32>
    %177 = vector.extract_strided_slice %167 {offsets = [0, 128], sizes = [8, 128], strides = [1, 1]} : vector<8x384xf32> to vector<8x128xf32>
    %178 = arith.addf %176, %177 : vector<8x128xf32>
    %179 = arith.negf %178 : vector<8x128xf32>
    %180 = math.exp %179 : vector<8x128xf32>
    %cst_53 = arith.constant 1.000000e+00 : f32
    %181 = vector.broadcast %cst_53 : f32 to vector<8x128xf32>
    %182 = arith.addf %181, %180 : vector<8x128xf32>
    %183 = arith.divf %181, %182 : vector<8x128xf32>
    %184 = vector.extract_strided_slice %164 {offsets = [0, 256], sizes = [8, 128], strides = [1, 1]} : vector<8x384xf32> to vector<8x128xf32>
    %185 = vector.extract_strided_slice %167 {offsets = [0, 256], sizes = [8, 128], strides = [1, 1]} : vector<8x384xf32> to vector<8x128xf32>
    %186 = arith.addf %185, %9 : vector<8x128xf32>
    %187 = arith.mulf %175, %186 : vector<8x128xf32>
    %188 = arith.addf %184, %187 : vector<8x128xf32>
    %189 = math.tanh %188 : vector<8x128xf32>
    %cst_54 = arith.constant 1.000000e+00 : f32
    %190 = vector.broadcast %cst_54 : f32 to vector<8x128xf32>
    %191 = arith.subf %190, %183 : vector<8x128xf32>
    %192 = arith.mulf %191, %189 : vector<8x128xf32>
    %193 = arith.mulf %183, %121 : vector<8x128xf32>
    %194 = arith.addf %192, %193 : vector<8x128xf32>
    %195 = arith.index_cast %162 : i32 to index
    %c0_55 = arith.constant 0 : index
    %196 = vector.load %arg18[%195, %c0_55] : memref<64x256xf32, #tpu.memory_space<vmem>>, vector<8x128xf32>
    tpu.vector_store %arg18[%195, %c0_55], %194 {strides = array<i32>} : memref<64x256xf32, #tpu.memory_space<vmem>>, vector<8x128xf32>,
    %c7_i32_56 = arith.constant 7 : i32
    %197 = arith.subi %c7_i32_56, %c2_i32 : i32
    %c8_i32_57 = arith.constant 8 : i32
    %198 = arith.muli %197, %c8_i32_57 : i32
    %199 = tpu.assume_multiple %198, 8 : i32
    %200 = arith.index_cast %199 : i32 to index
    %c384_58 = arith.constant 384 : index
    %201 = vector.load %arg17[%200, %c384_58] : memref<64x768xf32, #tpu.memory_space<vmem>>, vector<8x384xf32>
    %202 = arith.truncf %158 : vector<8x128xf32> to vector<8x128xbf16>
    %c0_59 = arith.constant 0 : index
    %c0_60 = arith.constant 0 : index
    %203 = vector.load %arg4[%c0_59, %c0_60] : memref<128x384xbf16, #tpu.memory_space<vmem>>, vector<128x384xbf16>
    %cst_61 = arith.constant dense<0.000000e+00> : vector<8x384xf32>
    %204 = tpu.matmul %202, %203, %cst_61 {dimension_numbers = #tpu.dot_dimension_numbers<[1], [0], [0], [1], [0, 0, 1, 1], [], []>} : vector<8x128xbf16>, vector<128x384xbf16>, vector<8x384xf32> -> vector<8x384xf32>
    %205 = vector.extract_strided_slice %201 {offsets = [0, 0], sizes = [8, 128], strides = [1, 1]} : vector<8x384xf32> to vector<8x128xf32>
    %206 = vector.extract_strided_slice %204 {offsets = [0, 0], sizes = [8, 128], strides = [1, 1]} : vector<8x384xf32> to vector<8x128xf32>
    %207 = arith.addf %205, %206 : vector<8x128xf32>
    %208 = arith.negf %207 : vector<8x128xf32>
    %209 = math.exp %208 : vector<8x128xf32>
    %cst_62 = arith.constant 1.000000e+00 : f32
    %210 = vector.broadcast %cst_62 : f32 to vector<8x128xf32>
    %211 = arith.addf %210, %209 : vector<8x128xf32>
    %212 = arith.divf %210, %211 : vector<8x128xf32>
    %213 = vector.extract_strided_slice %201 {offsets = [0, 128], sizes = [8, 128], strides = [1, 1]} : vector<8x384xf32> to vector<8x128xf32>
    %214 = vector.extract_strided_slice %204 {offsets = [0, 128], sizes = [8, 128], strides = [1, 1]} : vector<8x384xf32> to vector<8x128xf32>
    %215 = arith.addf %213, %214 : vector<8x128xf32>
    %216 = arith.negf %215 : vector<8x128xf32>
    %217 = math.exp %216 : vector<8x128xf32>
    %cst_63 = arith.constant 1.000000e+00 : f32
    %218 = vector.broadcast %cst_63 : f32 to vector<8x128xf32>
    %219 = arith.addf %218, %217 : vector<8x128xf32>
    %220 = arith.divf %218, %219 : vector<8x128xf32>
    %221 = vector.extract_strided_slice %201 {offsets = [0, 256], sizes = [8, 128], strides = [1, 1]} : vector<8x384xf32> to vector<8x128xf32>
    %222 = vector.extract_strided_slice %204 {offsets = [0, 256], sizes = [8, 128], strides = [1, 1]} : vector<8x384xf32> to vector<8x128xf32>
    %223 = arith.addf %222, %12 : vector<8x128xf32>
    %224 = arith.mulf %212, %223 : vector<8x128xf32>
    %225 = arith.addf %221, %224 : vector<8x128xf32>
    %226 = math.tanh %225 : vector<8x128xf32>
    %cst_64 = arith.constant 1.000000e+00 : f32
    %227 = vector.broadcast %cst_64 : f32 to vector<8x128xf32>
    %228 = arith.subf %227, %220 : vector<8x128xf32>
    %229 = arith.mulf %228, %226 : vector<8x128xf32>
    %230 = arith.mulf %220, %158 : vector<8x128xf32>
    %231 = arith.addf %229, %230 : vector<8x128xf32>
    %232 = arith.index_cast %199 : i32 to index
    %c128_65 = arith.constant 128 : index
    %233 = vector.load %arg18[%232, %c128_65] : memref<64x256xf32, #tpu.memory_space<vmem>>, vector<8x128xf32>
    tpu.vector_store %arg18[%232, %c128_65], %231 {strides = array<i32>} : memref<64x256xf32, #tpu.memory_space<vmem>>, vector<8x128xf32>,
    %c3_i32 = arith.constant 3 : i32
    %c8_i32_66 = arith.constant 8 : i32
    %234 = arith.muli %c3_i32, %c8_i32_66 : i32
    %235 = tpu.assume_multiple %234, 8 : i32
    %236 = arith.index_cast %235 : i32 to index
    %c0_67 = arith.constant 0 : index
    %237 = vector.load %arg17[%236, %c0_67] : memref<64x768xf32, #tpu.memory_space<vmem>>, vector<8x384xf32>
    %238 = arith.truncf %194 : vector<8x128xf32> to vector<8x128xbf16>
    %c0_68 = arith.constant 0 : index
    %c0_69 = arith.constant 0 : index
    %239 = vector.load %arg3[%c0_68, %c0_69] : memref<128x384xbf16, #tpu.memory_space<vmem>>, vector<128x384xbf16>
    %cst_70 = arith.constant dense<0.000000e+00> : vector<8x384xf32>
    %240 = tpu.matmul %238, %239, %cst_70 {dimension_numbers = #tpu.dot_dimension_numbers<[1], [0], [0], [1], [0, 0, 1, 1], [], []>} : vector<8x128xbf16>, vector<128x384xbf16>, vector<8x384xf32> -> vector<8x384xf32>
    %241 = vector.extract_strided_slice %237 {offsets = [0, 0], sizes = [8, 128], strides = [1, 1]} : vector<8x384xf32> to vector<8x128xf32>
    %242 = vector.extract_strided_slice %240 {offsets = [0, 0], sizes = [8, 128], strides = [1, 1]} : vector<8x384xf32> to vector<8x128xf32>
    %243 = arith.addf %241, %242 : vector<8x128xf32>
    %244 = arith.negf %243 : vector<8x128xf32>
    %245 = math.exp %244 : vector<8x128xf32>
    %cst_71 = arith.constant 1.000000e+00 : f32
    %246 = vector.broadcast %cst_71 : f32 to vector<8x128xf32>
    %247 = arith.addf %246, %245 : vector<8x128xf32>
    %248 = arith.divf %246, %247 : vector<8x128xf32>
    %249 = vector.extract_strided_slice %237 {offsets = [0, 128], sizes = [8, 128], strides = [1, 1]} : vector<8x384xf32> to vector<8x128xf32>
    %250 = vector.extract_strided_slice %240 {offsets = [0, 128], sizes = [8, 128], strides = [1, 1]} : vector<8x384xf32> to vector<8x128xf32>
    %251 = arith.addf %249, %250 : vector<8x128xf32>
    %252 = arith.negf %251 : vector<8x128xf32>
    %253 = math.exp %252 : vector<8x128xf32>
    %cst_72 = arith.constant 1.000000e+00 : f32
    %254 = vector.broadcast %cst_72 : f32 to vector<8x128xf32>
    %255 = arith.addf %254, %253 : vector<8x128xf32>
    %256 = arith.divf %254, %255 : vector<8x128xf32>
    %257 = vector.extract_strided_slice %237 {offsets = [0, 256], sizes = [8, 128], strides = [1, 1]} : vector<8x384xf32> to vector<8x128xf32>
    %258 = vector.extract_strided_slice %240 {offsets = [0, 256], sizes = [8, 128], strides = [1, 1]} : vector<8x384xf32> to vector<8x128xf32>
    %259 = arith.addf %258, %9 : vector<8x128xf32>
    %260 = arith.mulf %248, %259 : vector<8x128xf32>
    %261 = arith.addf %257, %260 : vector<8x128xf32>
    %262 = math.tanh %261 : vector<8x128xf32>
    %cst_73 = arith.constant 1.000000e+00 : f32
    %263 = vector.broadcast %cst_73 : f32 to vector<8x128xf32>
    %264 = arith.subf %263, %256 : vector<8x128xf32>
    %265 = arith.mulf %264, %262 : vector<8x128xf32>
    %266 = arith.mulf %256, %194 : vector<8x128xf32>
    %267 = arith.addf %265, %266 : vector<8x128xf32>
    %268 = arith.index_cast %235 : i32 to index
    %c0_74 = arith.constant 0 : index
    %269 = vector.load %arg18[%268, %c0_74] : memref<64x256xf32, #tpu.memory_space<vmem>>, vector<8x128xf32>
    tpu.vector_store %arg18[%268, %c0_74], %267 {strides = array<i32>} : memref<64x256xf32, #tpu.memory_space<vmem>>, vector<8x128xf32>,
    %c7_i32_75 = arith.constant 7 : i32
    %270 = arith.subi %c7_i32_75, %c3_i32 : i32
    %c8_i32_76 = arith.constant 8 : i32
    %271 = arith.muli %270, %c8_i32_76 : i32
    %272 = tpu.assume_multiple %271, 8 : i32
    %273 = arith.index_cast %272 : i32 to index
    %c384_77 = arith.constant 384 : index
    %274 = vector.load %arg17[%273, %c384_77] : memref<64x768xf32, #tpu.memory_space<vmem>>, vector<8x384xf32>
    %275 = arith.truncf %231 : vector<8x128xf32> to vector<8x128xbf16>
    %c0_78 = arith.constant 0 : index
    %c0_79 = arith.constant 0 : index
    %276 = vector.load %arg4[%c0_78, %c0_79] : memref<128x384xbf16, #tpu.memory_space<vmem>>, vector<128x384xbf16>
    %cst_80 = arith.constant dense<0.000000e+00> : vector<8x384xf32>
    %277 = tpu.matmul %275, %276, %cst_80 {dimension_numbers = #tpu.dot_dimension_numbers<[1], [0], [0], [1], [0, 0, 1, 1], [], []>} : vector<8x128xbf16>, vector<128x384xbf16>, vector<8x384xf32> -> vector<8x384xf32>
    %278 = vector.extract_strided_slice %274 {offsets = [0, 0], sizes = [8, 128], strides = [1, 1]} : vector<8x384xf32> to vector<8x128xf32>
    %279 = vector.extract_strided_slice %277 {offsets = [0, 0], sizes = [8, 128], strides = [1, 1]} : vector<8x384xf32> to vector<8x128xf32>
    %280 = arith.addf %278, %279 : vector<8x128xf32>
    %281 = arith.negf %280 : vector<8x128xf32>
    %282 = math.exp %281 : vector<8x128xf32>
    %cst_81 = arith.constant 1.000000e+00 : f32
    %283 = vector.broadcast %cst_81 : f32 to vector<8x128xf32>
    %284 = arith.addf %283, %282 : vector<8x128xf32>
    %285 = arith.divf %283, %284 : vector<8x128xf32>
    %286 = vector.extract_strided_slice %274 {offsets = [0, 128], sizes = [8, 128], strides = [1, 1]} : vector<8x384xf32> to vector<8x128xf32>
    %287 = vector.extract_strided_slice %277 {offsets = [0, 128], sizes = [8, 128], strides = [1, 1]} : vector<8x384xf32> to vector<8x128xf32>
    %288 = arith.addf %286, %287 : vector<8x128xf32>
    %289 = arith.negf %288 : vector<8x128xf32>
    %290 = math.exp %289 : vector<8x128xf32>
    %cst_82 = arith.constant 1.000000e+00 : f32
    %291 = vector.broadcast %cst_82 : f32 to vector<8x128xf32>
    %292 = arith.addf %291, %290 : vector<8x128xf32>
    %293 = arith.divf %291, %292 : vector<8x128xf32>
    %294 = vector.extract_strided_slice %274 {offsets = [0, 256], sizes = [8, 128], strides = [1, 1]} : vector<8x384xf32> to vector<8x128xf32>
    %295 = vector.extract_strided_slice %277 {offsets = [0, 256], sizes = [8, 128], strides = [1, 1]} : vector<8x384xf32> to vector<8x128xf32>
    %296 = arith.addf %295, %12 : vector<8x128xf32>
    %297 = arith.mulf %285, %296 : vector<8x128xf32>
    %298 = arith.addf %294, %297 : vector<8x128xf32>
    %299 = math.tanh %298 : vector<8x128xf32>
    %cst_83 = arith.constant 1.000000e+00 : f32
    %300 = vector.broadcast %cst_83 : f32 to vector<8x128xf32>
    %301 = arith.subf %300, %293 : vector<8x128xf32>
    %302 = arith.mulf %301, %299 : vector<8x128xf32>
    %303 = arith.mulf %293, %231 : vector<8x128xf32>
    %304 = arith.addf %302, %303 : vector<8x128xf32>
    %305 = arith.index_cast %272 : i32 to index
    %c128_84 = arith.constant 128 : index
    %306 = vector.load %arg18[%305, %c128_84] : memref<64x256xf32, #tpu.memory_space<vmem>>, vector<8x128xf32>
    tpu.vector_store %arg18[%305, %c128_84], %304 {strides = array<i32>} : memref<64x256xf32, #tpu.memory_space<vmem>>, vector<8x128xf32>,
    %c4_i32 = arith.constant 4 : i32
    %c8_i32_85 = arith.constant 8 : i32
    %307 = arith.muli %c4_i32, %c8_i32_85 : i32
    %308 = tpu.assume_multiple %307, 8 : i32
    %309 = arith.index_cast %308 : i32 to index
    %c0_86 = arith.constant 0 : index
    %310 = vector.load %arg17[%309, %c0_86] : memref<64x768xf32, #tpu.memory_space<vmem>>, vector<8x384xf32>
    %311 = arith.truncf %267 : vector<8x128xf32> to vector<8x128xbf16>
    %c0_87 = arith.constant 0 : index
    %c0_88 = arith.constant 0 : index
    %312 = vector.load %arg3[%c0_87, %c0_88] : memref<128x384xbf16, #tpu.memory_space<vmem>>, vector<128x384xbf16>
    %cst_89 = arith.constant dense<0.000000e+00> : vector<8x384xf32>
    %313 = tpu.matmul %311, %312, %cst_89 {dimension_numbers = #tpu.dot_dimension_numbers<[1], [0], [0], [1], [0, 0, 1, 1], [], []>} : vector<8x128xbf16>, vector<128x384xbf16>, vector<8x384xf32> -> vector<8x384xf32>
    %314 = vector.extract_strided_slice %310 {offsets = [0, 0], sizes = [8, 128], strides = [1, 1]} : vector<8x384xf32> to vector<8x128xf32>
    %315 = vector.extract_strided_slice %313 {offsets = [0, 0], sizes = [8, 128], strides = [1, 1]} : vector<8x384xf32> to vector<8x128xf32>
    %316 = arith.addf %314, %315 : vector<8x128xf32>
    %317 = arith.negf %316 : vector<8x128xf32>
    %318 = math.exp %317 : vector<8x128xf32>
    %cst_90 = arith.constant 1.000000e+00 : f32
    %319 = vector.broadcast %cst_90 : f32 to vector<8x128xf32>
    %320 = arith.addf %319, %318 : vector<8x128xf32>
    %321 = arith.divf %319, %320 : vector<8x128xf32>
    %322 = vector.extract_strided_slice %310 {offsets = [0, 128], sizes = [8, 128], strides = [1, 1]} : vector<8x384xf32> to vector<8x128xf32>
    %323 = vector.extract_strided_slice %313 {offsets = [0, 128], sizes = [8, 128], strides = [1, 1]} : vector<8x384xf32> to vector<8x128xf32>
    %324 = arith.addf %322, %323 : vector<8x128xf32>
    %325 = arith.negf %324 : vector<8x128xf32>
    %326 = math.exp %325 : vector<8x128xf32>
    %cst_91 = arith.constant 1.000000e+00 : f32
    %327 = vector.broadcast %cst_91 : f32 to vector<8x128xf32>
    %328 = arith.addf %327, %326 : vector<8x128xf32>
    %329 = arith.divf %327, %328 : vector<8x128xf32>
    %330 = vector.extract_strided_slice %310 {offsets = [0, 256], sizes = [8, 128], strides = [1, 1]} : vector<8x384xf32> to vector<8x128xf32>
    %331 = vector.extract_strided_slice %313 {offsets = [0, 256], sizes = [8, 128], strides = [1, 1]} : vector<8x384xf32> to vector<8x128xf32>
    %332 = arith.addf %331, %9 : vector<8x128xf32>
    %333 = arith.mulf %321, %332 : vector<8x128xf32>
    %334 = arith.addf %330, %333 : vector<8x128xf32>
    %335 = math.tanh %334 : vector<8x128xf32>
    %cst_92 = arith.constant 1.000000e+00 : f32
    %336 = vector.broadcast %cst_92 : f32 to vector<8x128xf32>
    %337 = arith.subf %336, %329 : vector<8x128xf32>
    %338 = arith.mulf %337, %335 : vector<8x128xf32>
    %339 = arith.mulf %329, %267 : vector<8x128xf32>
    %340 = arith.addf %338, %339 : vector<8x128xf32>
    %341 = arith.index_cast %308 : i32 to index
    %c0_93 = arith.constant 0 : index
    %342 = vector.load %arg18[%341, %c0_93] : memref<64x256xf32, #tpu.memory_space<vmem>>, vector<8x128xf32>
    tpu.vector_store %arg18[%341, %c0_93], %340 {strides = array<i32>} : memref<64x256xf32, #tpu.memory_space<vmem>>, vector<8x128xf32>,
    %c7_i32_94 = arith.constant 7 : i32
    %343 = arith.subi %c7_i32_94, %c4_i32 : i32
    %c8_i32_95 = arith.constant 8 : i32
    %344 = arith.muli %343, %c8_i32_95 : i32
    %345 = tpu.assume_multiple %344, 8 : i32
    %346 = arith.index_cast %345 : i32 to index
    %c384_96 = arith.constant 384 : index
    %347 = vector.load %arg17[%346, %c384_96] : memref<64x768xf32, #tpu.memory_space<vmem>>, vector<8x384xf32>
    %348 = arith.truncf %304 : vector<8x128xf32> to vector<8x128xbf16>
    %c0_97 = arith.constant 0 : index
    %c0_98 = arith.constant 0 : index
    %349 = vector.load %arg4[%c0_97, %c0_98] : memref<128x384xbf16, #tpu.memory_space<vmem>>, vector<128x384xbf16>
    %cst_99 = arith.constant dense<0.000000e+00> : vector<8x384xf32>
    %350 = tpu.matmul %348, %349, %cst_99 {dimension_numbers = #tpu.dot_dimension_numbers<[1], [0], [0], [1], [0, 0, 1, 1], [], []>} : vector<8x128xbf16>, vector<128x384xbf16>, vector<8x384xf32> -> vector<8x384xf32>
    %351 = vector.extract_strided_slice %347 {offsets = [0, 0], sizes = [8, 128], strides = [1, 1]} : vector<8x384xf32> to vector<8x128xf32>
    %352 = vector.extract_strided_slice %350 {offsets = [0, 0], sizes = [8, 128], strides = [1, 1]} : vector<8x384xf32> to vector<8x128xf32>
    %353 = arith.addf %351, %352 : vector<8x128xf32>
    %354 = arith.negf %353 : vector<8x128xf32>
    %355 = math.exp %354 : vector<8x128xf32>
    %cst_100 = arith.constant 1.000000e+00 : f32
    %356 = vector.broadcast %cst_100 : f32 to vector<8x128xf32>
    %357 = arith.addf %356, %355 : vector<8x128xf32>
    %358 = arith.divf %356, %357 : vector<8x128xf32>
    %359 = vector.extract_strided_slice %347 {offsets = [0, 128], sizes = [8, 128], strides = [1, 1]} : vector<8x384xf32> to vector<8x128xf32>
    %360 = vector.extract_strided_slice %350 {offsets = [0, 128], sizes = [8, 128], strides = [1, 1]} : vector<8x384xf32> to vector<8x128xf32>
    %361 = arith.addf %359, %360 : vector<8x128xf32>
    %362 = arith.negf %361 : vector<8x128xf32>
    %363 = math.exp %362 : vector<8x128xf32>
    %cst_101 = arith.constant 1.000000e+00 : f32
    %364 = vector.broadcast %cst_101 : f32 to vector<8x128xf32>
    %365 = arith.addf %364, %363 : vector<8x128xf32>
    %366 = arith.divf %364, %365 : vector<8x128xf32>
    %367 = vector.extract_strided_slice %347 {offsets = [0, 256], sizes = [8, 128], strides = [1, 1]} : vector<8x384xf32> to vector<8x128xf32>
    %368 = vector.extract_strided_slice %350 {offsets = [0, 256], sizes = [8, 128], strides = [1, 1]} : vector<8x384xf32> to vector<8x128xf32>
    %369 = arith.addf %368, %12 : vector<8x128xf32>
    %370 = arith.mulf %358, %369 : vector<8x128xf32>
    %371 = arith.addf %367, %370 : vector<8x128xf32>
    %372 = math.tanh %371 : vector<8x128xf32>
    %cst_102 = arith.constant 1.000000e+00 : f32
    %373 = vector.broadcast %cst_102 : f32 to vector<8x128xf32>
    %374 = arith.subf %373, %366 : vector<8x128xf32>
    %375 = arith.mulf %374, %372 : vector<8x128xf32>
    %376 = arith.mulf %366, %304 : vector<8x128xf32>
    %377 = arith.addf %375, %376 : vector<8x128xf32>
    %378 = arith.index_cast %345 : i32 to index
    %c128_103 = arith.constant 128 : index
    %379 = vector.load %arg18[%378, %c128_103] : memref<64x256xf32, #tpu.memory_space<vmem>>, vector<8x128xf32>
    tpu.vector_store %arg18[%378, %c128_103], %377 {strides = array<i32>} : memref<64x256xf32, #tpu.memory_space<vmem>>, vector<8x128xf32>,
    %c5_i32 = arith.constant 5 : i32
    %c8_i32_104 = arith.constant 8 : i32
    %380 = arith.muli %c5_i32, %c8_i32_104 : i32
    %381 = tpu.assume_multiple %380, 8 : i32
    %382 = arith.index_cast %381 : i32 to index
    %c0_105 = arith.constant 0 : index
    %383 = vector.load %arg17[%382, %c0_105] : memref<64x768xf32, #tpu.memory_space<vmem>>, vector<8x384xf32>
    %384 = arith.truncf %340 : vector<8x128xf32> to vector<8x128xbf16>
    %c0_106 = arith.constant 0 : index
    %c0_107 = arith.constant 0 : index
    %385 = vector.load %arg3[%c0_106, %c0_107] : memref<128x384xbf16, #tpu.memory_space<vmem>>, vector<128x384xbf16>
    %cst_108 = arith.constant dense<0.000000e+00> : vector<8x384xf32>
    %386 = tpu.matmul %384, %385, %cst_108 {dimension_numbers = #tpu.dot_dimension_numbers<[1], [0], [0], [1], [0, 0, 1, 1], [], []>} : vector<8x128xbf16>, vector<128x384xbf16>, vector<8x384xf32> -> vector<8x384xf32>
    %387 = vector.extract_strided_slice %383 {offsets = [0, 0], sizes = [8, 128], strides = [1, 1]} : vector<8x384xf32> to vector<8x128xf32>
    %388 = vector.extract_strided_slice %386 {offsets = [0, 0], sizes = [8, 128], strides = [1, 1]} : vector<8x384xf32> to vector<8x128xf32>
    %389 = arith.addf %387, %388 : vector<8x128xf32>
    %390 = arith.negf %389 : vector<8x128xf32>
    %391 = math.exp %390 : vector<8x128xf32>
    %cst_109 = arith.constant 1.000000e+00 : f32
    %392 = vector.broadcast %cst_109 : f32 to vector<8x128xf32>
    %393 = arith.addf %392, %391 : vector<8x128xf32>
    %394 = arith.divf %392, %393 : vector<8x128xf32>
    %395 = vector.extract_strided_slice %383 {offsets = [0, 128], sizes = [8, 128], strides = [1, 1]} : vector<8x384xf32> to vector<8x128xf32>
    %396 = vector.extract_strided_slice %386 {offsets = [0, 128], sizes = [8, 128], strides = [1, 1]} : vector<8x384xf32> to vector<8x128xf32>
    %397 = arith.addf %395, %396 : vector<8x128xf32>
    %398 = arith.negf %397 : vector<8x128xf32>
    %399 = math.exp %398 : vector<8x128xf32>
    %cst_110 = arith.constant 1.000000e+00 : f32
    %400 = vector.broadcast %cst_110 : f32 to vector<8x128xf32>
    %401 = arith.addf %400, %399 : vector<8x128xf32>
    %402 = arith.divf %400, %401 : vector<8x128xf32>
    %403 = vector.extract_strided_slice %383 {offsets = [0, 256], sizes = [8, 128], strides = [1, 1]} : vector<8x384xf32> to vector<8x128xf32>
    %404 = vector.extract_strided_slice %386 {offsets = [0, 256], sizes = [8, 128], strides = [1, 1]} : vector<8x384xf32> to vector<8x128xf32>
    %405 = arith.addf %404, %9 : vector<8x128xf32>
    %406 = arith.mulf %394, %405 : vector<8x128xf32>
    %407 = arith.addf %403, %406 : vector<8x128xf32>
    %408 = math.tanh %407 : vector<8x128xf32>
    %cst_111 = arith.constant 1.000000e+00 : f32
    %409 = vector.broadcast %cst_111 : f32 to vector<8x128xf32>
    %410 = arith.subf %409, %402 : vector<8x128xf32>
    %411 = arith.mulf %410, %408 : vector<8x128xf32>
    %412 = arith.mulf %402, %340 : vector<8x128xf32>
    %413 = arith.addf %411, %412 : vector<8x128xf32>
    %414 = arith.index_cast %381 : i32 to index
    %c0_112 = arith.constant 0 : index
    %415 = vector.load %arg18[%414, %c0_112] : memref<64x256xf32, #tpu.memory_space<vmem>>, vector<8x128xf32>
    tpu.vector_store %arg18[%414, %c0_112], %413 {strides = array<i32>} : memref<64x256xf32, #tpu.memory_space<vmem>>, vector<8x128xf32>,
    %c7_i32_113 = arith.constant 7 : i32
    %416 = arith.subi %c7_i32_113, %c5_i32 : i32
    %c8_i32_114 = arith.constant 8 : i32
    %417 = arith.muli %416, %c8_i32_114 : i32
    %418 = tpu.assume_multiple %417, 8 : i32
    %419 = arith.index_cast %418 : i32 to index
    %c384_115 = arith.constant 384 : index
    %420 = vector.load %arg17[%419, %c384_115] : memref<64x768xf32, #tpu.memory_space<vmem>>, vector<8x384xf32>
    %421 = arith.truncf %377 : vector<8x128xf32> to vector<8x128xbf16>
    %c0_116 = arith.constant 0 : index
    %c0_117 = arith.constant 0 : index
    %422 = vector.load %arg4[%c0_116, %c0_117] : memref<128x384xbf16, #tpu.memory_space<vmem>>, vector<128x384xbf16>
    %cst_118 = arith.constant dense<0.000000e+00> : vector<8x384xf32>
    %423 = tpu.matmul %421, %422, %cst_118 {dimension_numbers = #tpu.dot_dimension_numbers<[1], [0], [0], [1], [0, 0, 1, 1], [], []>} : vector<8x128xbf16>, vector<128x384xbf16>, vector<8x384xf32> -> vector<8x384xf32>
    %424 = vector.extract_strided_slice %420 {offsets = [0, 0], sizes = [8, 128], strides = [1, 1]} : vector<8x384xf32> to vector<8x128xf32>
    %425 = vector.extract_strided_slice %423 {offsets = [0, 0], sizes = [8, 128], strides = [1, 1]} : vector<8x384xf32> to vector<8x128xf32>
    %426 = arith.addf %424, %425 : vector<8x128xf32>
    %427 = arith.negf %426 : vector<8x128xf32>
    %428 = math.exp %427 : vector<8x128xf32>
    %cst_119 = arith.constant 1.000000e+00 : f32
    %429 = vector.broadcast %cst_119 : f32 to vector<8x128xf32>
    %430 = arith.addf %429, %428 : vector<8x128xf32>
    %431 = arith.divf %429, %430 : vector<8x128xf32>
    %432 = vector.extract_strided_slice %420 {offsets = [0, 128], sizes = [8, 128], strides = [1, 1]} : vector<8x384xf32> to vector<8x128xf32>
    %433 = vector.extract_strided_slice %423 {offsets = [0, 128], sizes = [8, 128], strides = [1, 1]} : vector<8x384xf32> to vector<8x128xf32>
    %434 = arith.addf %432, %433 : vector<8x128xf32>
    %435 = arith.negf %434 : vector<8x128xf32>
    %436 = math.exp %435 : vector<8x128xf32>
    %cst_120 = arith.constant 1.000000e+00 : f32
    %437 = vector.broadcast %cst_120 : f32 to vector<8x128xf32>
    %438 = arith.addf %437, %436 : vector<8x128xf32>
    %439 = arith.divf %437, %438 : vector<8x128xf32>
    %440 = vector.extract_strided_slice %420 {offsets = [0, 256], sizes = [8, 128], strides = [1, 1]} : vector<8x384xf32> to vector<8x128xf32>
    %441 = vector.extract_strided_slice %423 {offsets = [0, 256], sizes = [8, 128], strides = [1, 1]} : vector<8x384xf32> to vector<8x128xf32>
    %442 = arith.addf %441, %12 : vector<8x128xf32>
    %443 = arith.mulf %431, %442 : vector<8x128xf32>
    %444 = arith.addf %440, %443 : vector<8x128xf32>
    %445 = math.tanh %444 : vector<8x128xf32>
    %cst_121 = arith.constant 1.000000e+00 : f32
    %446 = vector.broadcast %cst_121 : f32 to vector<8x128xf32>
    %447 = arith.subf %446, %439 : vector<8x128xf32>
    %448 = arith.mulf %447, %445 : vector<8x128xf32>
    %449 = arith.mulf %439, %377 : vector<8x128xf32>
    %450 = arith.addf %448, %449 : vector<8x128xf32>
    %451 = arith.index_cast %418 : i32 to index
    %c128_122 = arith.constant 128 : index
    %452 = vector.load %arg18[%451, %c128_122] : memref<64x256xf32, #tpu.memory_space<vmem>>, vector<8x128xf32>
    tpu.vector_store %arg18[%451, %c128_122], %450 {strides = array<i32>} : memref<64x256xf32, #tpu.memory_space<vmem>>, vector<8x128xf32>,
    %c6_i32 = arith.constant 6 : i32
    %c8_i32_123 = arith.constant 8 : i32
    %453 = arith.muli %c6_i32, %c8_i32_123 : i32
    %454 = tpu.assume_multiple %453, 8 : i32
    %455 = arith.index_cast %454 : i32 to index
    %c0_124 = arith.constant 0 : index
    %456 = vector.load %arg17[%455, %c0_124] : memref<64x768xf32, #tpu.memory_space<vmem>>, vector<8x384xf32>
    %457 = arith.truncf %413 : vector<8x128xf32> to vector<8x128xbf16>
    %c0_125 = arith.constant 0 : index
    %c0_126 = arith.constant 0 : index
    %458 = vector.load %arg3[%c0_125, %c0_126] : memref<128x384xbf16, #tpu.memory_space<vmem>>, vector<128x384xbf16>
    %cst_127 = arith.constant dense<0.000000e+00> : vector<8x384xf32>
    %459 = tpu.matmul %457, %458, %cst_127 {dimension_numbers = #tpu.dot_dimension_numbers<[1], [0], [0], [1], [0, 0, 1, 1], [], []>} : vector<8x128xbf16>, vector<128x384xbf16>, vector<8x384xf32> -> vector<8x384xf32>
    %460 = vector.extract_strided_slice %456 {offsets = [0, 0], sizes = [8, 128], strides = [1, 1]} : vector<8x384xf32> to vector<8x128xf32>
    %461 = vector.extract_strided_slice %459 {offsets = [0, 0], sizes = [8, 128], strides = [1, 1]} : vector<8x384xf32> to vector<8x128xf32>
    %462 = arith.addf %460, %461 : vector<8x128xf32>
    %463 = arith.negf %462 : vector<8x128xf32>
    %464 = math.exp %463 : vector<8x128xf32>
    %cst_128 = arith.constant 1.000000e+00 : f32
    %465 = vector.broadcast %cst_128 : f32 to vector<8x128xf32>
    %466 = arith.addf %465, %464 : vector<8x128xf32>
    %467 = arith.divf %465, %466 : vector<8x128xf32>
    %468 = vector.extract_strided_slice %456 {offsets = [0, 128], sizes = [8, 128], strides = [1, 1]} : vector<8x384xf32> to vector<8x128xf32>
    %469 = vector.extract_strided_slice %459 {offsets = [0, 128], sizes = [8, 128], strides = [1, 1]} : vector<8x384xf32> to vector<8x128xf32>
    %470 = arith.addf %468, %469 : vector<8x128xf32>
    %471 = arith.negf %470 : vector<8x128xf32>
    %472 = math.exp %471 : vector<8x128xf32>
    %cst_129 = arith.constant 1.000000e+00 : f32
    %473 = vector.broadcast %cst_129 : f32 to vector<8x128xf32>
    %474 = arith.addf %473, %472 : vector<8x128xf32>
    %475 = arith.divf %473, %474 : vector<8x128xf32>
    %476 = vector.extract_strided_slice %456 {offsets = [0, 256], sizes = [8, 128], strides = [1, 1]} : vector<8x384xf32> to vector<8x128xf32>
    %477 = vector.extract_strided_slice %459 {offsets = [0, 256], sizes = [8, 128], strides = [1, 1]} : vector<8x384xf32> to vector<8x128xf32>
    %478 = arith.addf %477, %9 : vector<8x128xf32>
    %479 = arith.mulf %467, %478 : vector<8x128xf32>
    %480 = arith.addf %476, %479 : vector<8x128xf32>
    %481 = math.tanh %480 : vector<8x128xf32>
    %cst_130 = arith.constant 1.000000e+00 : f32
    %482 = vector.broadcast %cst_130 : f32 to vector<8x128xf32>
    %483 = arith.subf %482, %475 : vector<8x128xf32>
    %484 = arith.mulf %483, %481 : vector<8x128xf32>
    %485 = arith.mulf %475, %413 : vector<8x128xf32>
    %486 = arith.addf %484, %485 : vector<8x128xf32>
    %487 = arith.index_cast %454 : i32 to index
    %c0_131 = arith.constant 0 : index
    %488 = vector.load %arg18[%487, %c0_131] : memref<64x256xf32, #tpu.memory_space<vmem>>, vector<8x128xf32>
    tpu.vector_store %arg18[%487, %c0_131], %486 {strides = array<i32>} : memref<64x256xf32, #tpu.memory_space<vmem>>, vector<8x128xf32>,
    %c7_i32_132 = arith.constant 7 : i32
    %489 = arith.subi %c7_i32_132, %c6_i32 : i32
    %c8_i32_133 = arith.constant 8 : i32
    %490 = arith.muli %489, %c8_i32_133 : i32
    %491 = tpu.assume_multiple %490, 8 : i32
    %492 = arith.index_cast %491 : i32 to index
    %c384_134 = arith.constant 384 : index
    %493 = vector.load %arg17[%492, %c384_134] : memref<64x768xf32, #tpu.memory_space<vmem>>, vector<8x384xf32>
    %494 = arith.truncf %450 : vector<8x128xf32> to vector<8x128xbf16>
    %c0_135 = arith.constant 0 : index
    %c0_136 = arith.constant 0 : index
    %495 = vector.load %arg4[%c0_135, %c0_136] : memref<128x384xbf16, #tpu.memory_space<vmem>>, vector<128x384xbf16>
    %cst_137 = arith.constant dense<0.000000e+00> : vector<8x384xf32>
    %496 = tpu.matmul %494, %495, %cst_137 {dimension_numbers = #tpu.dot_dimension_numbers<[1], [0], [0], [1], [0, 0, 1, 1], [], []>} : vector<8x128xbf16>, vector<128x384xbf16>, vector<8x384xf32> -> vector<8x384xf32>
    %497 = vector.extract_strided_slice %493 {offsets = [0, 0], sizes = [8, 128], strides = [1, 1]} : vector<8x384xf32> to vector<8x128xf32>
    %498 = vector.extract_strided_slice %496 {offsets = [0, 0], sizes = [8, 128], strides = [1, 1]} : vector<8x384xf32> to vector<8x128xf32>
    %499 = arith.addf %497, %498 : vector<8x128xf32>
    %500 = arith.negf %499 : vector<8x128xf32>
    %501 = math.exp %500 : vector<8x128xf32>
    %cst_138 = arith.constant 1.000000e+00 : f32
    %502 = vector.broadcast %cst_138 : f32 to vector<8x128xf32>
    %503 = arith.addf %502, %501 : vector<8x128xf32>
    %504 = arith.divf %502, %503 : vector<8x128xf32>
    %505 = vector.extract_strided_slice %493 {offsets = [0, 128], sizes = [8, 128], strides = [1, 1]} : vector<8x384xf32> to vector<8x128xf32>
    %506 = vector.extract_strided_slice %496 {offsets = [0, 128], sizes = [8, 128], strides = [1, 1]} : vector<8x384xf32> to vector<8x128xf32>
    %507 = arith.addf %505, %506 : vector<8x128xf32>
    %508 = arith.negf %507 : vector<8x128xf32>
    %509 = math.exp %508 : vector<8x128xf32>
    %cst_139 = arith.constant 1.000000e+00 : f32
    %510 = vector.broadcast %cst_139 : f32 to vector<8x128xf32>
    %511 = arith.addf %510, %509 : vector<8x128xf32>
    %512 = arith.divf %510, %511 : vector<8x128xf32>
    %513 = vector.extract_strided_slice %493 {offsets = [0, 256], sizes = [8, 128], strides = [1, 1]} : vector<8x384xf32> to vector<8x128xf32>
    %514 = vector.extract_strided_slice %496 {offsets = [0, 256], sizes = [8, 128], strides = [1, 1]} : vector<8x384xf32> to vector<8x128xf32>
    %515 = arith.addf %514, %12 : vector<8x128xf32>
    %516 = arith.mulf %504, %515 : vector<8x128xf32>
    %517 = arith.addf %513, %516 : vector<8x128xf32>
    %518 = math.tanh %517 : vector<8x128xf32>
    %cst_140 = arith.constant 1.000000e+00 : f32
    %519 = vector.broadcast %cst_140 : f32 to vector<8x128xf32>
    %520 = arith.subf %519, %512 : vector<8x128xf32>
    %521 = arith.mulf %520, %518 : vector<8x128xf32>
    %522 = arith.mulf %512, %450 : vector<8x128xf32>
    %523 = arith.addf %521, %522 : vector<8x128xf32>
    %524 = arith.index_cast %491 : i32 to index
    %c128_141 = arith.constant 128 : index
    %525 = vector.load %arg18[%524, %c128_141] : memref<64x256xf32, #tpu.memory_space<vmem>>, vector<8x128xf32>
    tpu.vector_store %arg18[%524, %c128_141], %523 {strides = array<i32>} : memref<64x256xf32, #tpu.memory_space<vmem>>, vector<8x128xf32>,
    %c7_i32_142 = arith.constant 7 : i32
    %c8_i32_143 = arith.constant 8 : i32
    %526 = arith.muli %c7_i32_142, %c8_i32_143 : i32
    %527 = tpu.assume_multiple %526, 8 : i32
    %528 = arith.index_cast %527 : i32 to index
    %c0_144 = arith.constant 0 : index
    %529 = vector.load %arg17[%528, %c0_144] : memref<64x768xf32, #tpu.memory_space<vmem>>, vector<8x384xf32>
    %530 = arith.truncf %486 : vector<8x128xf32> to vector<8x128xbf16>
    %c0_145 = arith.constant 0 : index
    %c0_146 = arith.constant 0 : index
    %531 = vector.load %arg3[%c0_145, %c0_146] : memref<128x384xbf16, #tpu.memory_space<vmem>>, vector<128x384xbf16>
    %cst_147 = arith.constant dense<0.000000e+00> : vector<8x384xf32>
    %532 = tpu.matmul %530, %531, %cst_147 {dimension_numbers = #tpu.dot_dimension_numbers<[1], [0], [0], [1], [0, 0, 1, 1], [], []>} : vector<8x128xbf16>, vector<128x384xbf16>, vector<8x384xf32> -> vector<8x384xf32>
    %533 = vector.extract_strided_slice %529 {offsets = [0, 0], sizes = [8, 128], strides = [1, 1]} : vector<8x384xf32> to vector<8x128xf32>
    %534 = vector.extract_strided_slice %532 {offsets = [0, 0], sizes = [8, 128], strides = [1, 1]} : vector<8x384xf32> to vector<8x128xf32>
    %535 = arith.addf %533, %534 : vector<8x128xf32>
    %536 = arith.negf %535 : vector<8x128xf32>
    %537 = math.exp %536 : vector<8x128xf32>
    %cst_148 = arith.constant 1.000000e+00 : f32
    %538 = vector.broadcast %cst_148 : f32 to vector<8x128xf32>
    %539 = arith.addf %538, %537 : vector<8x128xf32>
    %540 = arith.divf %538, %539 : vector<8x128xf32>
    %541 = vector.extract_strided_slice %529 {offsets = [0, 128], sizes = [8, 128], strides = [1, 1]} : vector<8x384xf32> to vector<8x128xf32>
    %542 = vector.extract_strided_slice %532 {offsets = [0, 128], sizes = [8, 128], strides = [1, 1]} : vector<8x384xf32> to vector<8x128xf32>
    %543 = arith.addf %541, %542 : vector<8x128xf32>
    %544 = arith.negf %543 : vector<8x128xf32>
    %545 = math.exp %544 : vector<8x128xf32>
    %cst_149 = arith.constant 1.000000e+00 : f32
    %546 = vector.broadcast %cst_149 : f32 to vector<8x128xf32>
    %547 = arith.addf %546, %545 : vector<8x128xf32>
    %548 = arith.divf %546, %547 : vector<8x128xf32>
    %549 = vector.extract_strided_slice %529 {offsets = [0, 256], sizes = [8, 128], strides = [1, 1]} : vector<8x384xf32> to vector<8x128xf32>
    %550 = vector.extract_strided_slice %532 {offsets = [0, 256], sizes = [8, 128], strides = [1, 1]} : vector<8x384xf32> to vector<8x128xf32>
    %551 = arith.addf %550, %9 : vector<8x128xf32>
    %552 = arith.mulf %540, %551 : vector<8x128xf32>
    %553 = arith.addf %549, %552 : vector<8x128xf32>
    %554 = math.tanh %553 : vector<8x128xf32>
    %cst_150 = arith.constant 1.000000e+00 : f32
    %555 = vector.broadcast %cst_150 : f32 to vector<8x128xf32>
    %556 = arith.subf %555, %548 : vector<8x128xf32>
    %557 = arith.mulf %556, %554 : vector<8x128xf32>
    %558 = arith.mulf %548, %486 : vector<8x128xf32>
    %559 = arith.addf %557, %558 : vector<8x128xf32>
    %560 = arith.index_cast %527 : i32 to index
    %c0_151 = arith.constant 0 : index
    %561 = vector.load %arg18[%560, %c0_151] : memref<64x256xf32, #tpu.memory_space<vmem>>, vector<8x128xf32>
    tpu.vector_store %arg18[%560, %c0_151], %559 {strides = array<i32>} : memref<64x256xf32, #tpu.memory_space<vmem>>, vector<8x128xf32>,
    %c7_i32_152 = arith.constant 7 : i32
    %562 = arith.subi %c7_i32_152, %c7_i32_142 : i32
    %c8_i32_153 = arith.constant 8 : i32
    %563 = arith.muli %562, %c8_i32_153 : i32
    %564 = tpu.assume_multiple %563, 8 : i32
    %565 = arith.index_cast %564 : i32 to index
    %c384_154 = arith.constant 384 : index
    %566 = vector.load %arg17[%565, %c384_154] : memref<64x768xf32, #tpu.memory_space<vmem>>, vector<8x384xf32>
    %567 = arith.truncf %523 : vector<8x128xf32> to vector<8x128xbf16>
    %c0_155 = arith.constant 0 : index
    %c0_156 = arith.constant 0 : index
    %568 = vector.load %arg4[%c0_155, %c0_156] : memref<128x384xbf16, #tpu.memory_space<vmem>>, vector<128x384xbf16>
    %cst_157 = arith.constant dense<0.000000e+00> : vector<8x384xf32>
    %569 = tpu.matmul %567, %568, %cst_157 {dimension_numbers = #tpu.dot_dimension_numbers<[1], [0], [0], [1], [0, 0, 1, 1], [], []>} : vector<8x128xbf16>, vector<128x384xbf16>, vector<8x384xf32> -> vector<8x384xf32>
    %570 = vector.extract_strided_slice %566 {offsets = [0, 0], sizes = [8, 128], strides = [1, 1]} : vector<8x384xf32> to vector<8x128xf32>
    %571 = vector.extract_strided_slice %569 {offsets = [0, 0], sizes = [8, 128], strides = [1, 1]} : vector<8x384xf32> to vector<8x128xf32>
    %572 = arith.addf %570, %571 : vector<8x128xf32>
    %573 = arith.negf %572 : vector<8x128xf32>
    %574 = math.exp %573 : vector<8x128xf32>
    %cst_158 = arith.constant 1.000000e+00 : f32
    %575 = vector.broadcast %cst_158 : f32 to vector<8x128xf32>
    %576 = arith.addf %575, %574 : vector<8x128xf32>
    %577 = arith.divf %575, %576 : vector<8x128xf32>
    %578 = vector.extract_strided_slice %566 {offsets = [0, 128], sizes = [8, 128], strides = [1, 1]} : vector<8x384xf32> to vector<8x128xf32>
    %579 = vector.extract_strided_slice %569 {offsets = [0, 128], sizes = [8, 128], strides = [1, 1]} : vector<8x384xf32> to vector<8x128xf32>
    %580 = arith.addf %578, %579 : vector<8x128xf32>
    %581 = arith.negf %580 : vector<8x128xf32>
    %582 = math.exp %581 : vector<8x128xf32>
    %cst_159 = arith.constant 1.000000e+00 : f32
    %583 = vector.broadcast %cst_159 : f32 to vector<8x128xf32>
    %584 = arith.addf %583, %582 : vector<8x128xf32>
    %585 = arith.divf %583, %584 : vector<8x128xf32>
    %586 = vector.extract_strided_slice %566 {offsets = [0, 256], sizes = [8, 128], strides = [1, 1]} : vector<8x384xf32> to vector<8x128xf32>
    %587 = vector.extract_strided_slice %569 {offsets = [0, 256], sizes = [8, 128], strides = [1, 1]} : vector<8x384xf32> to vector<8x128xf32>
    %588 = arith.addf %587, %12 : vector<8x128xf32>
    %589 = arith.mulf %577, %588 : vector<8x128xf32>
    %590 = arith.addf %586, %589 : vector<8x128xf32>
    %591 = math.tanh %590 : vector<8x128xf32>
    %cst_160 = arith.constant 1.000000e+00 : f32
    %592 = vector.broadcast %cst_160 : f32 to vector<8x128xf32>
    %593 = arith.subf %592, %585 : vector<8x128xf32>
    %594 = arith.mulf %593, %591 : vector<8x128xf32>
    %595 = arith.mulf %585, %523 : vector<8x128xf32>
    %596 = arith.addf %594, %595 : vector<8x128xf32>
    %597 = arith.index_cast %564 : i32 to index
    %c128_161 = arith.constant 128 : index
    %598 = vector.load %arg18[%597, %c128_161] : memref<64x256xf32, #tpu.memory_space<vmem>>, vector<8x128xf32>
    tpu.vector_store %arg18[%597, %c128_161], %596 {strides = array<i32>} : memref<64x256xf32, #tpu.memory_space<vmem>>, vector<8x128xf32>,
    %c8_i32_162 = arith.constant 8 : i32
    %c0_163 = arith.constant 0 : index
    %c0_164 = arith.constant 0 : index
    %599 = vector.load %arg18[%c0_163, %c0_164] : memref<64x256xf32, #tpu.memory_space<vmem>>, vector<64x256xf32>
    %600 = arith.truncf %599 : vector<64x256xf32> to vector<64x256xbf16>
    %c0_165 = arith.constant 0 : index
    %c0_166 = arith.constant 0 : index
    %601 = vector.load %arg7[%c0_165, %c0_166] : memref<256x768xbf16, #tpu.memory_space<vmem>>, vector<256x768xbf16>
    %cst_167 = arith.constant dense<0.000000e+00> : vector<64x768xf32>
    %602 = tpu.matmul %600, %601, %cst_167 {dimension_numbers = #tpu.dot_dimension_numbers<[1], [0], [0], [1], [0, 0, 1, 1], [], []>} : vector<64x256xbf16>, vector<256x768xbf16>, vector<64x768xf32> -> vector<64x768xf32>
    %c0_168 = arith.constant 0 : index
    %c0_169 = arith.constant 0 : index
    %603 = vector.load %arg8[%c0_168, %c0_169] : memref<1x768xf32, #tpu.memory_space<vmem>>, vector<1x768xf32>
    %604 = vector.broadcast %603 : vector<1x768xf32> to vector<64x768xf32>
    %605 = arith.addf %602, %604 : vector<64x768xf32>
    %c0_170 = arith.constant 0 : index
    %c0_171 = arith.constant 0 : index
    %606 = vector.load %arg17[%c0_170, %c0_171] : memref<64x768xf32, #tpu.memory_space<vmem>>, vector<64x768xf32>
    tpu.vector_store %arg17[%c0_170, %c0_171], %605 {strides = array<i32>} : memref<64x768xf32, #tpu.memory_space<vmem>>, vector<64x768xf32>,
    %c0_172 = arith.constant 0 : index
    %c0_173 = arith.constant 0 : index
    %607 = vector.load %arg11[%c0_172, %c0_173] : memref<1x128xf32, #tpu.memory_space<vmem>>, vector<1x128xf32>
    %608 = vector.shape_cast %607 : vector<1x128xf32> to vector<1x128xf32>
    %609 = vector.broadcast %608 : vector<1x128xf32> to vector<8x128xf32>
    %c0_174 = arith.constant 0 : index
    %c0_175 = arith.constant 0 : index
    %610 = vector.load %arg12[%c0_174, %c0_175] : memref<1x128xf32, #tpu.memory_space<vmem>>, vector<1x128xf32>
    %611 = vector.shape_cast %610 : vector<1x128xf32> to vector<1x128xf32>
    %612 = vector.broadcast %611 : vector<1x128xf32> to vector<8x128xf32>
    %cst_176 = arith.constant 0.000000e+00 : f32
    %613 = vector.broadcast %cst_176 : f32 to vector<8x128xf32>
    %cst_177 = arith.constant 0.000000e+00 : f32
    %614 = vector.broadcast %cst_177 : f32 to vector<8x128xf32>
    %c0_i32_178 = arith.constant 0 : i32
    %c8_i32_179 = arith.constant 8 : i32
    %615 = arith.muli %c0_i32_178, %c8_i32_179 : i32
    %616 = tpu.assume_multiple %615, 8 : i32
    %617 = arith.index_cast %616 : i32 to index
    %c0_180 = arith.constant 0 : index
    %618 = vector.load %arg17[%617, %c0_180] : memref<64x768xf32, #tpu.memory_space<vmem>>, vector<8x384xf32>
    %619 = arith.truncf %613 : vector<8x128xf32> to vector<8x128xbf16>
    %c0_181 = arith.constant 0 : index
    %c0_182 = arith.constant 0 : index
    %620 = vector.load %arg9[%c0_181, %c0_182] : memref<128x384xbf16, #tpu.memory_space<vmem>>, vector<128x384xbf16>
    %cst_183 = arith.constant dense<0.000000e+00> : vector<8x384xf32>
    %621 = tpu.matmul %619, %620, %cst_183 {dimension_numbers = #tpu.dot_dimension_numbers<[1], [0], [0], [1], [0, 0, 1, 1], [], []>} : vector<8x128xbf16>, vector<128x384xbf16>, vector<8x384xf32> -> vector<8x384xf32>
    %622 = vector.extract_strided_slice %618 {offsets = [0, 0], sizes = [8, 128], strides = [1, 1]} : vector<8x384xf32> to vector<8x128xf32>
    %623 = vector.extract_strided_slice %621 {offsets = [0, 0], sizes = [8, 128], strides = [1, 1]} : vector<8x384xf32> to vector<8x128xf32>
    %624 = arith.addf %622, %623 : vector<8x128xf32>
    %625 = arith.negf %624 : vector<8x128xf32>
    %626 = math.exp %625 : vector<8x128xf32>
    %cst_184 = arith.constant 1.000000e+00 : f32
    %627 = vector.broadcast %cst_184 : f32 to vector<8x128xf32>
    %628 = arith.addf %627, %626 : vector<8x128xf32>
    %629 = arith.divf %627, %628 : vector<8x128xf32>
    %630 = vector.extract_strided_slice %618 {offsets = [0, 128], sizes = [8, 128], strides = [1, 1]} : vector<8x384xf32> to vector<8x128xf32>
    %631 = vector.extract_strided_slice %621 {offsets = [0, 128], sizes = [8, 128], strides = [1, 1]} : vector<8x384xf32> to vector<8x128xf32>
    %632 = arith.addf %630, %631 : vector<8x128xf32>
    %633 = arith.negf %632 : vector<8x128xf32>
    %634 = math.exp %633 : vector<8x128xf32>
    %cst_185 = arith.constant 1.000000e+00 : f32
    %635 = vector.broadcast %cst_185 : f32 to vector<8x128xf32>
    %636 = arith.addf %635, %634 : vector<8x128xf32>
    %637 = arith.divf %635, %636 : vector<8x128xf32>
    %638 = vector.extract_strided_slice %618 {offsets = [0, 256], sizes = [8, 128], strides = [1, 1]} : vector<8x384xf32> to vector<8x128xf32>
    %639 = vector.extract_strided_slice %621 {offsets = [0, 256], sizes = [8, 128], strides = [1, 1]} : vector<8x384xf32> to vector<8x128xf32>
    %640 = arith.addf %639, %609 : vector<8x128xf32>
    %641 = arith.mulf %629, %640 : vector<8x128xf32>
    %642 = arith.addf %638, %641 : vector<8x128xf32>
    %643 = math.tanh %642 : vector<8x128xf32>
    %cst_186 = arith.constant 1.000000e+00 : f32
    %644 = vector.broadcast %cst_186 : f32 to vector<8x128xf32>
    %645 = arith.subf %644, %637 : vector<8x128xf32>
    %646 = arith.mulf %645, %643 : vector<8x128xf32>
    %647 = arith.mulf %637, %613 : vector<8x128xf32>
    %648 = arith.addf %646, %647 : vector<8x128xf32>
    %c7_i32_187 = arith.constant 7 : i32
    %649 = arith.subi %c7_i32_187, %c0_i32_178 : i32
    %c8_i32_188 = arith.constant 8 : i32
    %650 = arith.muli %649, %c8_i32_188 : i32
    %651 = tpu.assume_multiple %650, 8 : i32
    %652 = arith.index_cast %651 : i32 to index
    %c384_189 = arith.constant 384 : index
    %653 = vector.load %arg17[%652, %c384_189] : memref<64x768xf32, #tpu.memory_space<vmem>>, vector<8x384xf32>
    %654 = arith.truncf %614 : vector<8x128xf32> to vector<8x128xbf16>
    %c0_190 = arith.constant 0 : index
    %c0_191 = arith.constant 0 : index
    %655 = vector.load %arg10[%c0_190, %c0_191] : memref<128x384xbf16, #tpu.memory_space<vmem>>, vector<128x384xbf16>
    %cst_192 = arith.constant dense<0.000000e+00> : vector<8x384xf32>
    %656 = tpu.matmul %654, %655, %cst_192 {dimension_numbers = #tpu.dot_dimension_numbers<[1], [0], [0], [1], [0, 0, 1, 1], [], []>} : vector<8x128xbf16>, vector<128x384xbf16>, vector<8x384xf32> -> vector<8x384xf32>
    %657 = vector.extract_strided_slice %653 {offsets = [0, 0], sizes = [8, 128], strides = [1, 1]} : vector<8x384xf32> to vector<8x128xf32>
    %658 = vector.extract_strided_slice %656 {offsets = [0, 0], sizes = [8, 128], strides = [1, 1]} : vector<8x384xf32> to vector<8x128xf32>
    %659 = arith.addf %657, %658 : vector<8x128xf32>
    %660 = arith.negf %659 : vector<8x128xf32>
    %661 = math.exp %660 : vector<8x128xf32>
    %cst_193 = arith.constant 1.000000e+00 : f32
    %662 = vector.broadcast %cst_193 : f32 to vector<8x128xf32>
    %663 = arith.addf %662, %661 : vector<8x128xf32>
    %664 = arith.divf %662, %663 : vector<8x128xf32>
    %665 = vector.extract_strided_slice %653 {offsets = [0, 128], sizes = [8, 128], strides = [1, 1]} : vector<8x384xf32> to vector<8x128xf32>
    %666 = vector.extract_strided_slice %656 {offsets = [0, 128], sizes = [8, 128], strides = [1, 1]} : vector<8x384xf32> to vector<8x128xf32>
    %667 = arith.addf %665, %666 : vector<8x128xf32>
    %668 = arith.negf %667 : vector<8x128xf32>
    %669 = math.exp %668 : vector<8x128xf32>
    %cst_194 = arith.constant 1.000000e+00 : f32
    %670 = vector.broadcast %cst_194 : f32 to vector<8x128xf32>
    %671 = arith.addf %670, %669 : vector<8x128xf32>
    %672 = arith.divf %670, %671 : vector<8x128xf32>
    %673 = vector.extract_strided_slice %653 {offsets = [0, 256], sizes = [8, 128], strides = [1, 1]} : vector<8x384xf32> to vector<8x128xf32>
    %674 = vector.extract_strided_slice %656 {offsets = [0, 256], sizes = [8, 128], strides = [1, 1]} : vector<8x384xf32> to vector<8x128xf32>
    %675 = arith.addf %674, %612 : vector<8x128xf32>
    %676 = arith.mulf %664, %675 : vector<8x128xf32>
    %677 = arith.addf %673, %676 : vector<8x128xf32>
    %678 = math.tanh %677 : vector<8x128xf32>
    %cst_195 = arith.constant 1.000000e+00 : f32
    %679 = vector.broadcast %cst_195 : f32 to vector<8x128xf32>
    %680 = arith.subf %679, %672 : vector<8x128xf32>
    %681 = arith.mulf %680, %678 : vector<8x128xf32>
    %682 = arith.mulf %672, %614 : vector<8x128xf32>
    %683 = arith.addf %681, %682 : vector<8x128xf32>
    %c1_i32_196 = arith.constant 1 : i32
    %c8_i32_197 = arith.constant 8 : i32
    %684 = arith.muli %c1_i32_196, %c8_i32_197 : i32
    %685 = tpu.assume_multiple %684, 8 : i32
    %686 = arith.index_cast %685 : i32 to index
    %c0_198 = arith.constant 0 : index
    %687 = vector.load %arg17[%686, %c0_198] : memref<64x768xf32, #tpu.memory_space<vmem>>, vector<8x384xf32>
    %688 = arith.truncf %648 : vector<8x128xf32> to vector<8x128xbf16>
    %c0_199 = arith.constant 0 : index
    %c0_200 = arith.constant 0 : index
    %689 = vector.load %arg9[%c0_199, %c0_200] : memref<128x384xbf16, #tpu.memory_space<vmem>>, vector<128x384xbf16>
    %cst_201 = arith.constant dense<0.000000e+00> : vector<8x384xf32>
    %690 = tpu.matmul %688, %689, %cst_201 {dimension_numbers = #tpu.dot_dimension_numbers<[1], [0], [0], [1], [0, 0, 1, 1], [], []>} : vector<8x128xbf16>, vector<128x384xbf16>, vector<8x384xf32> -> vector<8x384xf32>
    %691 = vector.extract_strided_slice %687 {offsets = [0, 0], sizes = [8, 128], strides = [1, 1]} : vector<8x384xf32> to vector<8x128xf32>
    %692 = vector.extract_strided_slice %690 {offsets = [0, 0], sizes = [8, 128], strides = [1, 1]} : vector<8x384xf32> to vector<8x128xf32>
    %693 = arith.addf %691, %692 : vector<8x128xf32>
    %694 = arith.negf %693 : vector<8x128xf32>
    %695 = math.exp %694 : vector<8x128xf32>
    %cst_202 = arith.constant 1.000000e+00 : f32
    %696 = vector.broadcast %cst_202 : f32 to vector<8x128xf32>
    %697 = arith.addf %696, %695 : vector<8x128xf32>
    %698 = arith.divf %696, %697 : vector<8x128xf32>
    %699 = vector.extract_strided_slice %687 {offsets = [0, 128], sizes = [8, 128], strides = [1, 1]} : vector<8x384xf32> to vector<8x128xf32>
    %700 = vector.extract_strided_slice %690 {offsets = [0, 128], sizes = [8, 128], strides = [1, 1]} : vector<8x384xf32> to vector<8x128xf32>
    %701 = arith.addf %699, %700 : vector<8x128xf32>
    %702 = arith.negf %701 : vector<8x128xf32>
    %703 = math.exp %702 : vector<8x128xf32>
    %cst_203 = arith.constant 1.000000e+00 : f32
    %704 = vector.broadcast %cst_203 : f32 to vector<8x128xf32>
    %705 = arith.addf %704, %703 : vector<8x128xf32>
    %706 = arith.divf %704, %705 : vector<8x128xf32>
    %707 = vector.extract_strided_slice %687 {offsets = [0, 256], sizes = [8, 128], strides = [1, 1]} : vector<8x384xf32> to vector<8x128xf32>
    %708 = vector.extract_strided_slice %690 {offsets = [0, 256], sizes = [8, 128], strides = [1, 1]} : vector<8x384xf32> to vector<8x128xf32>
    %709 = arith.addf %708, %609 : vector<8x128xf32>
    %710 = arith.mulf %698, %709 : vector<8x128xf32>
    %711 = arith.addf %707, %710 : vector<8x128xf32>
    %712 = math.tanh %711 : vector<8x128xf32>
    %cst_204 = arith.constant 1.000000e+00 : f32
    %713 = vector.broadcast %cst_204 : f32 to vector<8x128xf32>
    %714 = arith.subf %713, %706 : vector<8x128xf32>
    %715 = arith.mulf %714, %712 : vector<8x128xf32>
    %716 = arith.mulf %706, %648 : vector<8x128xf32>
    %717 = arith.addf %715, %716 : vector<8x128xf32>
    %c7_i32_205 = arith.constant 7 : i32
    %718 = arith.subi %c7_i32_205, %c1_i32_196 : i32
    %c8_i32_206 = arith.constant 8 : i32
    %719 = arith.muli %718, %c8_i32_206 : i32
    %720 = tpu.assume_multiple %719, 8 : i32
    %721 = arith.index_cast %720 : i32 to index
    %c384_207 = arith.constant 384 : index
    %722 = vector.load %arg17[%721, %c384_207] : memref<64x768xf32, #tpu.memory_space<vmem>>, vector<8x384xf32>
    %723 = arith.truncf %683 : vector<8x128xf32> to vector<8x128xbf16>
    %c0_208 = arith.constant 0 : index
    %c0_209 = arith.constant 0 : index
    %724 = vector.load %arg10[%c0_208, %c0_209] : memref<128x384xbf16, #tpu.memory_space<vmem>>, vector<128x384xbf16>
    %cst_210 = arith.constant dense<0.000000e+00> : vector<8x384xf32>
    %725 = tpu.matmul %723, %724, %cst_210 {dimension_numbers = #tpu.dot_dimension_numbers<[1], [0], [0], [1], [0, 0, 1, 1], [], []>} : vector<8x128xbf16>, vector<128x384xbf16>, vector<8x384xf32> -> vector<8x384xf32>
    %726 = vector.extract_strided_slice %722 {offsets = [0, 0], sizes = [8, 128], strides = [1, 1]} : vector<8x384xf32> to vector<8x128xf32>
    %727 = vector.extract_strided_slice %725 {offsets = [0, 0], sizes = [8, 128], strides = [1, 1]} : vector<8x384xf32> to vector<8x128xf32>
    %728 = arith.addf %726, %727 : vector<8x128xf32>
    %729 = arith.negf %728 : vector<8x128xf32>
    %730 = math.exp %729 : vector<8x128xf32>
    %cst_211 = arith.constant 1.000000e+00 : f32
    %731 = vector.broadcast %cst_211 : f32 to vector<8x128xf32>
    %732 = arith.addf %731, %730 : vector<8x128xf32>
    %733 = arith.divf %731, %732 : vector<8x128xf32>
    %734 = vector.extract_strided_slice %722 {offsets = [0, 128], sizes = [8, 128], strides = [1, 1]} : vector<8x384xf32> to vector<8x128xf32>
    %735 = vector.extract_strided_slice %725 {offsets = [0, 128], sizes = [8, 128], strides = [1, 1]} : vector<8x384xf32> to vector<8x128xf32>
    %736 = arith.addf %734, %735 : vector<8x128xf32>
    %737 = arith.negf %736 : vector<8x128xf32>
    %738 = math.exp %737 : vector<8x128xf32>
    %cst_212 = arith.constant 1.000000e+00 : f32
    %739 = vector.broadcast %cst_212 : f32 to vector<8x128xf32>
    %740 = arith.addf %739, %738 : vector<8x128xf32>
    %741 = arith.divf %739, %740 : vector<8x128xf32>
    %742 = vector.extract_strided_slice %722 {offsets = [0, 256], sizes = [8, 128], strides = [1, 1]} : vector<8x384xf32> to vector<8x128xf32>
    %743 = vector.extract_strided_slice %725 {offsets = [0, 256], sizes = [8, 128], strides = [1, 1]} : vector<8x384xf32> to vector<8x128xf32>
    %744 = arith.addf %743, %612 : vector<8x128xf32>
    %745 = arith.mulf %733, %744 : vector<8x128xf32>
    %746 = arith.addf %742, %745 : vector<8x128xf32>
    %747 = math.tanh %746 : vector<8x128xf32>
    %cst_213 = arith.constant 1.000000e+00 : f32
    %748 = vector.broadcast %cst_213 : f32 to vector<8x128xf32>
    %749 = arith.subf %748, %741 : vector<8x128xf32>
    %750 = arith.mulf %749, %747 : vector<8x128xf32>
    %751 = arith.mulf %741, %683 : vector<8x128xf32>
    %752 = arith.addf %750, %751 : vector<8x128xf32>
    %c2_i32_214 = arith.constant 2 : i32
    %c8_i32_215 = arith.constant 8 : i32
    %753 = arith.muli %c2_i32_214, %c8_i32_215 : i32
    %754 = tpu.assume_multiple %753, 8 : i32
    %755 = arith.index_cast %754 : i32 to index
    %c0_216 = arith.constant 0 : index
    %756 = vector.load %arg17[%755, %c0_216] : memref<64x768xf32, #tpu.memory_space<vmem>>, vector<8x384xf32>
    %757 = arith.truncf %717 : vector<8x128xf32> to vector<8x128xbf16>
    %c0_217 = arith.constant 0 : index
    %c0_218 = arith.constant 0 : index
    %758 = vector.load %arg9[%c0_217, %c0_218] : memref<128x384xbf16, #tpu.memory_space<vmem>>, vector<128x384xbf16>
    %cst_219 = arith.constant dense<0.000000e+00> : vector<8x384xf32>
    %759 = tpu.matmul %757, %758, %cst_219 {dimension_numbers = #tpu.dot_dimension_numbers<[1], [0], [0], [1], [0, 0, 1, 1], [], []>} : vector<8x128xbf16>, vector<128x384xbf16>, vector<8x384xf32> -> vector<8x384xf32>
    %760 = vector.extract_strided_slice %756 {offsets = [0, 0], sizes = [8, 128], strides = [1, 1]} : vector<8x384xf32> to vector<8x128xf32>
    %761 = vector.extract_strided_slice %759 {offsets = [0, 0], sizes = [8, 128], strides = [1, 1]} : vector<8x384xf32> to vector<8x128xf32>
    %762 = arith.addf %760, %761 : vector<8x128xf32>
    %763 = arith.negf %762 : vector<8x128xf32>
    %764 = math.exp %763 : vector<8x128xf32>
    %cst_220 = arith.constant 1.000000e+00 : f32
    %765 = vector.broadcast %cst_220 : f32 to vector<8x128xf32>
    %766 = arith.addf %765, %764 : vector<8x128xf32>
    %767 = arith.divf %765, %766 : vector<8x128xf32>
    %768 = vector.extract_strided_slice %756 {offsets = [0, 128], sizes = [8, 128], strides = [1, 1]} : vector<8x384xf32> to vector<8x128xf32>
    %769 = vector.extract_strided_slice %759 {offsets = [0, 128], sizes = [8, 128], strides = [1, 1]} : vector<8x384xf32> to vector<8x128xf32>
    %770 = arith.addf %768, %769 : vector<8x128xf32>
    %771 = arith.negf %770 : vector<8x128xf32>
    %772 = math.exp %771 : vector<8x128xf32>
    %cst_221 = arith.constant 1.000000e+00 : f32
    %773 = vector.broadcast %cst_221 : f32 to vector<8x128xf32>
    %774 = arith.addf %773, %772 : vector<8x128xf32>
    %775 = arith.divf %773, %774 : vector<8x128xf32>
    %776 = vector.extract_strided_slice %756 {offsets = [0, 256], sizes = [8, 128], strides = [1, 1]} : vector<8x384xf32> to vector<8x128xf32>
    %777 = vector.extract_strided_slice %759 {offsets = [0, 256], sizes = [8, 128], strides = [1, 1]} : vector<8x384xf32> to vector<8x128xf32>
    %778 = arith.addf %777, %609 : vector<8x128xf32>
    %779 = arith.mulf %767, %778 : vector<8x128xf32>
    %780 = arith.addf %776, %779 : vector<8x128xf32>
    %781 = math.tanh %780 : vector<8x128xf32>
    %cst_222 = arith.constant 1.000000e+00 : f32
    %782 = vector.broadcast %cst_222 : f32 to vector<8x128xf32>
    %783 = arith.subf %782, %775 : vector<8x128xf32>
    %784 = arith.mulf %783, %781 : vector<8x128xf32>
    %785 = arith.mulf %775, %717 : vector<8x128xf32>
    %786 = arith.addf %784, %785 : vector<8x128xf32>
    %c7_i32_223 = arith.constant 7 : i32
    %787 = arith.subi %c7_i32_223, %c2_i32_214 : i32
    %c8_i32_224 = arith.constant 8 : i32
    %788 = arith.muli %787, %c8_i32_224 : i32
    %789 = tpu.assume_multiple %788, 8 : i32
    %790 = arith.index_cast %789 : i32 to index
    %c384_225 = arith.constant 384 : index
    %791 = vector.load %arg17[%790, %c384_225] : memref<64x768xf32, #tpu.memory_space<vmem>>, vector<8x384xf32>
    %792 = arith.truncf %752 : vector<8x128xf32> to vector<8x128xbf16>
    %c0_226 = arith.constant 0 : index
    %c0_227 = arith.constant 0 : index
    %793 = vector.load %arg10[%c0_226, %c0_227] : memref<128x384xbf16, #tpu.memory_space<vmem>>, vector<128x384xbf16>
    %cst_228 = arith.constant dense<0.000000e+00> : vector<8x384xf32>
    %794 = tpu.matmul %792, %793, %cst_228 {dimension_numbers = #tpu.dot_dimension_numbers<[1], [0], [0], [1], [0, 0, 1, 1], [], []>} : vector<8x128xbf16>, vector<128x384xbf16>, vector<8x384xf32> -> vector<8x384xf32>
    %795 = vector.extract_strided_slice %791 {offsets = [0, 0], sizes = [8, 128], strides = [1, 1]} : vector<8x384xf32> to vector<8x128xf32>
    %796 = vector.extract_strided_slice %794 {offsets = [0, 0], sizes = [8, 128], strides = [1, 1]} : vector<8x384xf32> to vector<8x128xf32>
    %797 = arith.addf %795, %796 : vector<8x128xf32>
    %798 = arith.negf %797 : vector<8x128xf32>
    %799 = math.exp %798 : vector<8x128xf32>
    %cst_229 = arith.constant 1.000000e+00 : f32
    %800 = vector.broadcast %cst_229 : f32 to vector<8x128xf32>
    %801 = arith.addf %800, %799 : vector<8x128xf32>
    %802 = arith.divf %800, %801 : vector<8x128xf32>
    %803 = vector.extract_strided_slice %791 {offsets = [0, 128], sizes = [8, 128], strides = [1, 1]} : vector<8x384xf32> to vector<8x128xf32>
    %804 = vector.extract_strided_slice %794 {offsets = [0, 128], sizes = [8, 128], strides = [1, 1]} : vector<8x384xf32> to vector<8x128xf32>
    %805 = arith.addf %803, %804 : vector<8x128xf32>
    %806 = arith.negf %805 : vector<8x128xf32>
    %807 = math.exp %806 : vector<8x128xf32>
    %cst_230 = arith.constant 1.000000e+00 : f32
    %808 = vector.broadcast %cst_230 : f32 to vector<8x128xf32>
    %809 = arith.addf %808, %807 : vector<8x128xf32>
    %810 = arith.divf %808, %809 : vector<8x128xf32>
    %811 = vector.extract_strided_slice %791 {offsets = [0, 256], sizes = [8, 128], strides = [1, 1]} : vector<8x384xf32> to vector<8x128xf32>
    %812 = vector.extract_strided_slice %794 {offsets = [0, 256], sizes = [8, 128], strides = [1, 1]} : vector<8x384xf32> to vector<8x128xf32>
    %813 = arith.addf %812, %612 : vector<8x128xf32>
    %814 = arith.mulf %802, %813 : vector<8x128xf32>
    %815 = arith.addf %811, %814 : vector<8x128xf32>
    %816 = math.tanh %815 : vector<8x128xf32>
    %cst_231 = arith.constant 1.000000e+00 : f32
    %817 = vector.broadcast %cst_231 : f32 to vector<8x128xf32>
    %818 = arith.subf %817, %810 : vector<8x128xf32>
    %819 = arith.mulf %818, %816 : vector<8x128xf32>
    %820 = arith.mulf %810, %752 : vector<8x128xf32>
    %821 = arith.addf %819, %820 : vector<8x128xf32>
    %c3_i32_232 = arith.constant 3 : i32
    %c8_i32_233 = arith.constant 8 : i32
    %822 = arith.muli %c3_i32_232, %c8_i32_233 : i32
    %823 = tpu.assume_multiple %822, 8 : i32
    %824 = arith.index_cast %823 : i32 to index
    %c0_234 = arith.constant 0 : index
    %825 = vector.load %arg17[%824, %c0_234] : memref<64x768xf32, #tpu.memory_space<vmem>>, vector<8x384xf32>
    %826 = arith.truncf %786 : vector<8x128xf32> to vector<8x128xbf16>
    %c0_235 = arith.constant 0 : index
    %c0_236 = arith.constant 0 : index
    %827 = vector.load %arg9[%c0_235, %c0_236] : memref<128x384xbf16, #tpu.memory_space<vmem>>, vector<128x384xbf16>
    %cst_237 = arith.constant dense<0.000000e+00> : vector<8x384xf32>
    %828 = tpu.matmul %826, %827, %cst_237 {dimension_numbers = #tpu.dot_dimension_numbers<[1], [0], [0], [1], [0, 0, 1, 1], [], []>} : vector<8x128xbf16>, vector<128x384xbf16>, vector<8x384xf32> -> vector<8x384xf32>
    %829 = vector.extract_strided_slice %825 {offsets = [0, 0], sizes = [8, 128], strides = [1, 1]} : vector<8x384xf32> to vector<8x128xf32>
    %830 = vector.extract_strided_slice %828 {offsets = [0, 0], sizes = [8, 128], strides = [1, 1]} : vector<8x384xf32> to vector<8x128xf32>
    %831 = arith.addf %829, %830 : vector<8x128xf32>
    %832 = arith.negf %831 : vector<8x128xf32>
    %833 = math.exp %832 : vector<8x128xf32>
    %cst_238 = arith.constant 1.000000e+00 : f32
    %834 = vector.broadcast %cst_238 : f32 to vector<8x128xf32>
    %835 = arith.addf %834, %833 : vector<8x128xf32>
    %836 = arith.divf %834, %835 : vector<8x128xf32>
    %837 = vector.extract_strided_slice %825 {offsets = [0, 128], sizes = [8, 128], strides = [1, 1]} : vector<8x384xf32> to vector<8x128xf32>
    %838 = vector.extract_strided_slice %828 {offsets = [0, 128], sizes = [8, 128], strides = [1, 1]} : vector<8x384xf32> to vector<8x128xf32>
    %839 = arith.addf %837, %838 : vector<8x128xf32>
    %840 = arith.negf %839 : vector<8x128xf32>
    %841 = math.exp %840 : vector<8x128xf32>
    %cst_239 = arith.constant 1.000000e+00 : f32
    %842 = vector.broadcast %cst_239 : f32 to vector<8x128xf32>
    %843 = arith.addf %842, %841 : vector<8x128xf32>
    %844 = arith.divf %842, %843 : vector<8x128xf32>
    %845 = vector.extract_strided_slice %825 {offsets = [0, 256], sizes = [8, 128], strides = [1, 1]} : vector<8x384xf32> to vector<8x128xf32>
    %846 = vector.extract_strided_slice %828 {offsets = [0, 256], sizes = [8, 128], strides = [1, 1]} : vector<8x384xf32> to vector<8x128xf32>
    %847 = arith.addf %846, %609 : vector<8x128xf32>
    %848 = arith.mulf %836, %847 : vector<8x128xf32>
    %849 = arith.addf %845, %848 : vector<8x128xf32>
    %850 = math.tanh %849 : vector<8x128xf32>
    %cst_240 = arith.constant 1.000000e+00 : f32
    %851 = vector.broadcast %cst_240 : f32 to vector<8x128xf32>
    %852 = arith.subf %851, %844 : vector<8x128xf32>
    %853 = arith.mulf %852, %850 : vector<8x128xf32>
    %854 = arith.mulf %844, %786 : vector<8x128xf32>
    %855 = arith.addf %853, %854 : vector<8x128xf32>
    %c7_i32_241 = arith.constant 7 : i32
    %856 = arith.subi %c7_i32_241, %c3_i32_232 : i32
    %c8_i32_242 = arith.constant 8 : i32
    %857 = arith.muli %856, %c8_i32_242 : i32
    %858 = tpu.assume_multiple %857, 8 : i32
    %859 = arith.index_cast %858 : i32 to index
    %c384_243 = arith.constant 384 : index
    %860 = vector.load %arg17[%859, %c384_243] : memref<64x768xf32, #tpu.memory_space<vmem>>, vector<8x384xf32>
    %861 = arith.truncf %821 : vector<8x128xf32> to vector<8x128xbf16>
    %c0_244 = arith.constant 0 : index
    %c0_245 = arith.constant 0 : index
    %862 = vector.load %arg10[%c0_244, %c0_245] : memref<128x384xbf16, #tpu.memory_space<vmem>>, vector<128x384xbf16>
    %cst_246 = arith.constant dense<0.000000e+00> : vector<8x384xf32>
    %863 = tpu.matmul %861, %862, %cst_246 {dimension_numbers = #tpu.dot_dimension_numbers<[1], [0], [0], [1], [0, 0, 1, 1], [], []>} : vector<8x128xbf16>, vector<128x384xbf16>, vector<8x384xf32> -> vector<8x384xf32>
    %864 = vector.extract_strided_slice %860 {offsets = [0, 0], sizes = [8, 128], strides = [1, 1]} : vector<8x384xf32> to vector<8x128xf32>
    %865 = vector.extract_strided_slice %863 {offsets = [0, 0], sizes = [8, 128], strides = [1, 1]} : vector<8x384xf32> to vector<8x128xf32>
    %866 = arith.addf %864, %865 : vector<8x128xf32>
    %867 = arith.negf %866 : vector<8x128xf32>
    %868 = math.exp %867 : vector<8x128xf32>
    %cst_247 = arith.constant 1.000000e+00 : f32
    %869 = vector.broadcast %cst_247 : f32 to vector<8x128xf32>
    %870 = arith.addf %869, %868 : vector<8x128xf32>
    %871 = arith.divf %869, %870 : vector<8x128xf32>
    %872 = vector.extract_strided_slice %860 {offsets = [0, 128], sizes = [8, 128], strides = [1, 1]} : vector<8x384xf32> to vector<8x128xf32>
    %873 = vector.extract_strided_slice %863 {offsets = [0, 128], sizes = [8, 128], strides = [1, 1]} : vector<8x384xf32> to vector<8x128xf32>
    %874 = arith.addf %872, %873 : vector<8x128xf32>
    %875 = arith.negf %874 : vector<8x128xf32>
    %876 = math.exp %875 : vector<8x128xf32>
    %cst_248 = arith.constant 1.000000e+00 : f32
    %877 = vector.broadcast %cst_248 : f32 to vector<8x128xf32>
    %878 = arith.addf %877, %876 : vector<8x128xf32>
    %879 = arith.divf %877, %878 : vector<8x128xf32>
    %880 = vector.extract_strided_slice %860 {offsets = [0, 256], sizes = [8, 128], strides = [1, 1]} : vector<8x384xf32> to vector<8x128xf32>
    %881 = vector.extract_strided_slice %863 {offsets = [0, 256], sizes = [8, 128], strides = [1, 1]} : vector<8x384xf32> to vector<8x128xf32>
    %882 = arith.addf %881, %612 : vector<8x128xf32>
    %883 = arith.mulf %871, %882 : vector<8x128xf32>
    %884 = arith.addf %880, %883 : vector<8x128xf32>
    %885 = math.tanh %884 : vector<8x128xf32>
    %cst_249 = arith.constant 1.000000e+00 : f32
    %886 = vector.broadcast %cst_249 : f32 to vector<8x128xf32>
    %887 = arith.subf %886, %879 : vector<8x128xf32>
    %888 = arith.mulf %887, %885 : vector<8x128xf32>
    %889 = arith.mulf %879, %821 : vector<8x128xf32>
    %890 = arith.addf %888, %889 : vector<8x128xf32>
    %c4_i32_250 = arith.constant 4 : i32
    %c8_i32_251 = arith.constant 8 : i32
    %891 = arith.muli %c4_i32_250, %c8_i32_251 : i32
    %892 = tpu.assume_multiple %891, 8 : i32
    %893 = arith.index_cast %892 : i32 to index
    %c0_252 = arith.constant 0 : index
    %894 = vector.load %arg17[%893, %c0_252] : memref<64x768xf32, #tpu.memory_space<vmem>>, vector<8x384xf32>
    %895 = arith.truncf %855 : vector<8x128xf32> to vector<8x128xbf16>
    %c0_253 = arith.constant 0 : index
    %c0_254 = arith.constant 0 : index
    %896 = vector.load %arg9[%c0_253, %c0_254] : memref<128x384xbf16, #tpu.memory_space<vmem>>, vector<128x384xbf16>
    %cst_255 = arith.constant dense<0.000000e+00> : vector<8x384xf32>
    %897 = tpu.matmul %895, %896, %cst_255 {dimension_numbers = #tpu.dot_dimension_numbers<[1], [0], [0], [1], [0, 0, 1, 1], [], []>} : vector<8x128xbf16>, vector<128x384xbf16>, vector<8x384xf32> -> vector<8x384xf32>
    %898 = vector.extract_strided_slice %894 {offsets = [0, 0], sizes = [8, 128], strides = [1, 1]} : vector<8x384xf32> to vector<8x128xf32>
    %899 = vector.extract_strided_slice %897 {offsets = [0, 0], sizes = [8, 128], strides = [1, 1]} : vector<8x384xf32> to vector<8x128xf32>
    %900 = arith.addf %898, %899 : vector<8x128xf32>
    %901 = arith.negf %900 : vector<8x128xf32>
    %902 = math.exp %901 : vector<8x128xf32>
    %cst_256 = arith.constant 1.000000e+00 : f32
    %903 = vector.broadcast %cst_256 : f32 to vector<8x128xf32>
    %904 = arith.addf %903, %902 : vector<8x128xf32>
    %905 = arith.divf %903, %904 : vector<8x128xf32>
    %906 = vector.extract_strided_slice %894 {offsets = [0, 128], sizes = [8, 128], strides = [1, 1]} : vector<8x384xf32> to vector<8x128xf32>
    %907 = vector.extract_strided_slice %897 {offsets = [0, 128], sizes = [8, 128], strides = [1, 1]} : vector<8x384xf32> to vector<8x128xf32>
    %908 = arith.addf %906, %907 : vector<8x128xf32>
    %909 = arith.negf %908 : vector<8x128xf32>
    %910 = math.exp %909 : vector<8x128xf32>
    %cst_257 = arith.constant 1.000000e+00 : f32
    %911 = vector.broadcast %cst_257 : f32 to vector<8x128xf32>
    %912 = arith.addf %911, %910 : vector<8x128xf32>
    %913 = arith.divf %911, %912 : vector<8x128xf32>
    %914 = vector.extract_strided_slice %894 {offsets = [0, 256], sizes = [8, 128], strides = [1, 1]} : vector<8x384xf32> to vector<8x128xf32>
    %915 = vector.extract_strided_slice %897 {offsets = [0, 256], sizes = [8, 128], strides = [1, 1]} : vector<8x384xf32> to vector<8x128xf32>
    %916 = arith.addf %915, %609 : vector<8x128xf32>
    %917 = arith.mulf %905, %916 : vector<8x128xf32>
    %918 = arith.addf %914, %917 : vector<8x128xf32>
    %919 = math.tanh %918 : vector<8x128xf32>
    %cst_258 = arith.constant 1.000000e+00 : f32
    %920 = vector.broadcast %cst_258 : f32 to vector<8x128xf32>
    %921 = arith.subf %920, %913 : vector<8x128xf32>
    %922 = arith.mulf %921, %919 : vector<8x128xf32>
    %923 = arith.mulf %913, %855 : vector<8x128xf32>
    %924 = arith.addf %922, %923 : vector<8x128xf32>
    %c7_i32_259 = arith.constant 7 : i32
    %925 = arith.subi %c7_i32_259, %c4_i32_250 : i32
    %c8_i32_260 = arith.constant 8 : i32
    %926 = arith.muli %925, %c8_i32_260 : i32
    %927 = tpu.assume_multiple %926, 8 : i32
    %928 = arith.index_cast %927 : i32 to index
    %c384_261 = arith.constant 384 : index
    %929 = vector.load %arg17[%928, %c384_261] : memref<64x768xf32, #tpu.memory_space<vmem>>, vector<8x384xf32>
    %930 = arith.truncf %890 : vector<8x128xf32> to vector<8x128xbf16>
    %c0_262 = arith.constant 0 : index
    %c0_263 = arith.constant 0 : index
    %931 = vector.load %arg10[%c0_262, %c0_263] : memref<128x384xbf16, #tpu.memory_space<vmem>>, vector<128x384xbf16>
    %cst_264 = arith.constant dense<0.000000e+00> : vector<8x384xf32>
    %932 = tpu.matmul %930, %931, %cst_264 {dimension_numbers = #tpu.dot_dimension_numbers<[1], [0], [0], [1], [0, 0, 1, 1], [], []>} : vector<8x128xbf16>, vector<128x384xbf16>, vector<8x384xf32> -> vector<8x384xf32>
    %933 = vector.extract_strided_slice %929 {offsets = [0, 0], sizes = [8, 128], strides = [1, 1]} : vector<8x384xf32> to vector<8x128xf32>
    %934 = vector.extract_strided_slice %932 {offsets = [0, 0], sizes = [8, 128], strides = [1, 1]} : vector<8x384xf32> to vector<8x128xf32>
    %935 = arith.addf %933, %934 : vector<8x128xf32>
    %936 = arith.negf %935 : vector<8x128xf32>
    %937 = math.exp %936 : vector<8x128xf32>
    %cst_265 = arith.constant 1.000000e+00 : f32
    %938 = vector.broadcast %cst_265 : f32 to vector<8x128xf32>
    %939 = arith.addf %938, %937 : vector<8x128xf32>
    %940 = arith.divf %938, %939 : vector<8x128xf32>
    %941 = vector.extract_strided_slice %929 {offsets = [0, 128], sizes = [8, 128], strides = [1, 1]} : vector<8x384xf32> to vector<8x128xf32>
    %942 = vector.extract_strided_slice %932 {offsets = [0, 128], sizes = [8, 128], strides = [1, 1]} : vector<8x384xf32> to vector<8x128xf32>
    %943 = arith.addf %941, %942 : vector<8x128xf32>
    %944 = arith.negf %943 : vector<8x128xf32>
    %945 = math.exp %944 : vector<8x128xf32>
    %cst_266 = arith.constant 1.000000e+00 : f32
    %946 = vector.broadcast %cst_266 : f32 to vector<8x128xf32>
    %947 = arith.addf %946, %945 : vector<8x128xf32>
    %948 = arith.divf %946, %947 : vector<8x128xf32>
    %949 = vector.extract_strided_slice %929 {offsets = [0, 256], sizes = [8, 128], strides = [1, 1]} : vector<8x384xf32> to vector<8x128xf32>
    %950 = vector.extract_strided_slice %932 {offsets = [0, 256], sizes = [8, 128], strides = [1, 1]} : vector<8x384xf32> to vector<8x128xf32>
    %951 = arith.addf %950, %612 : vector<8x128xf32>
    %952 = arith.mulf %940, %951 : vector<8x128xf32>
    %953 = arith.addf %949, %952 : vector<8x128xf32>
    %954 = math.tanh %953 : vector<8x128xf32>
    %cst_267 = arith.constant 1.000000e+00 : f32
    %955 = vector.broadcast %cst_267 : f32 to vector<8x128xf32>
    %956 = arith.subf %955, %948 : vector<8x128xf32>
    %957 = arith.mulf %956, %954 : vector<8x128xf32>
    %958 = arith.mulf %948, %890 : vector<8x128xf32>
    %959 = arith.addf %957, %958 : vector<8x128xf32>
    %c5_i32_268 = arith.constant 5 : i32
    %c8_i32_269 = arith.constant 8 : i32
    %960 = arith.muli %c5_i32_268, %c8_i32_269 : i32
    %961 = tpu.assume_multiple %960, 8 : i32
    %962 = arith.index_cast %961 : i32 to index
    %c0_270 = arith.constant 0 : index
    %963 = vector.load %arg17[%962, %c0_270] : memref<64x768xf32, #tpu.memory_space<vmem>>, vector<8x384xf32>
    %964 = arith.truncf %924 : vector<8x128xf32> to vector<8x128xbf16>
    %c0_271 = arith.constant 0 : index
    %c0_272 = arith.constant 0 : index
    %965 = vector.load %arg9[%c0_271, %c0_272] : memref<128x384xbf16, #tpu.memory_space<vmem>>, vector<128x384xbf16>
    %cst_273 = arith.constant dense<0.000000e+00> : vector<8x384xf32>
    %966 = tpu.matmul %964, %965, %cst_273 {dimension_numbers = #tpu.dot_dimension_numbers<[1], [0], [0], [1], [0, 0, 1, 1], [], []>} : vector<8x128xbf16>, vector<128x384xbf16>, vector<8x384xf32> -> vector<8x384xf32>
    %967 = vector.extract_strided_slice %963 {offsets = [0, 0], sizes = [8, 128], strides = [1, 1]} : vector<8x384xf32> to vector<8x128xf32>
    %968 = vector.extract_strided_slice %966 {offsets = [0, 0], sizes = [8, 128], strides = [1, 1]} : vector<8x384xf32> to vector<8x128xf32>
    %969 = arith.addf %967, %968 : vector<8x128xf32>
    %970 = arith.negf %969 : vector<8x128xf32>
    %971 = math.exp %970 : vector<8x128xf32>
    %cst_274 = arith.constant 1.000000e+00 : f32
    %972 = vector.broadcast %cst_274 : f32 to vector<8x128xf32>
    %973 = arith.addf %972, %971 : vector<8x128xf32>
    %974 = arith.divf %972, %973 : vector<8x128xf32>
    %975 = vector.extract_strided_slice %963 {offsets = [0, 128], sizes = [8, 128], strides = [1, 1]} : vector<8x384xf32> to vector<8x128xf32>
    %976 = vector.extract_strided_slice %966 {offsets = [0, 128], sizes = [8, 128], strides = [1, 1]} : vector<8x384xf32> to vector<8x128xf32>
    %977 = arith.addf %975, %976 : vector<8x128xf32>
    %978 = arith.negf %977 : vector<8x128xf32>
    %979 = math.exp %978 : vector<8x128xf32>
    %cst_275 = arith.constant 1.000000e+00 : f32
    %980 = vector.broadcast %cst_275 : f32 to vector<8x128xf32>
    %981 = arith.addf %980, %979 : vector<8x128xf32>
    %982 = arith.divf %980, %981 : vector<8x128xf32>
    %983 = vector.extract_strided_slice %963 {offsets = [0, 256], sizes = [8, 128], strides = [1, 1]} : vector<8x384xf32> to vector<8x128xf32>
    %984 = vector.extract_strided_slice %966 {offsets = [0, 256], sizes = [8, 128], strides = [1, 1]} : vector<8x384xf32> to vector<8x128xf32>
    %985 = arith.addf %984, %609 : vector<8x128xf32>
    %986 = arith.mulf %974, %985 : vector<8x128xf32>
    %987 = arith.addf %983, %986 : vector<8x128xf32>
    %988 = math.tanh %987 : vector<8x128xf32>
    %cst_276 = arith.constant 1.000000e+00 : f32
    %989 = vector.broadcast %cst_276 : f32 to vector<8x128xf32>
    %990 = arith.subf %989, %982 : vector<8x128xf32>
    %991 = arith.mulf %990, %988 : vector<8x128xf32>
    %992 = arith.mulf %982, %924 : vector<8x128xf32>
    %993 = arith.addf %991, %992 : vector<8x128xf32>
    %c7_i32_277 = arith.constant 7 : i32
    %994 = arith.subi %c7_i32_277, %c5_i32_268 : i32
    %c8_i32_278 = arith.constant 8 : i32
    %995 = arith.muli %994, %c8_i32_278 : i32
    %996 = tpu.assume_multiple %995, 8 : i32
    %997 = arith.index_cast %996 : i32 to index
    %c384_279 = arith.constant 384 : index
    %998 = vector.load %arg17[%997, %c384_279] : memref<64x768xf32, #tpu.memory_space<vmem>>, vector<8x384xf32>
    %999 = arith.truncf %959 : vector<8x128xf32> to vector<8x128xbf16>
    %c0_280 = arith.constant 0 : index
    %c0_281 = arith.constant 0 : index
    %1000 = vector.load %arg10[%c0_280, %c0_281] : memref<128x384xbf16, #tpu.memory_space<vmem>>, vector<128x384xbf16>
    %cst_282 = arith.constant dense<0.000000e+00> : vector<8x384xf32>
    %1001 = tpu.matmul %999, %1000, %cst_282 {dimension_numbers = #tpu.dot_dimension_numbers<[1], [0], [0], [1], [0, 0, 1, 1], [], []>} : vector<8x128xbf16>, vector<128x384xbf16>, vector<8x384xf32> -> vector<8x384xf32>
    %1002 = vector.extract_strided_slice %998 {offsets = [0, 0], sizes = [8, 128], strides = [1, 1]} : vector<8x384xf32> to vector<8x128xf32>
    %1003 = vector.extract_strided_slice %1001 {offsets = [0, 0], sizes = [8, 128], strides = [1, 1]} : vector<8x384xf32> to vector<8x128xf32>
    %1004 = arith.addf %1002, %1003 : vector<8x128xf32>
    %1005 = arith.negf %1004 : vector<8x128xf32>
    %1006 = math.exp %1005 : vector<8x128xf32>
    %cst_283 = arith.constant 1.000000e+00 : f32
    %1007 = vector.broadcast %cst_283 : f32 to vector<8x128xf32>
    %1008 = arith.addf %1007, %1006 : vector<8x128xf32>
    %1009 = arith.divf %1007, %1008 : vector<8x128xf32>
    %1010 = vector.extract_strided_slice %998 {offsets = [0, 128], sizes = [8, 128], strides = [1, 1]} : vector<8x384xf32> to vector<8x128xf32>
    %1011 = vector.extract_strided_slice %1001 {offsets = [0, 128], sizes = [8, 128], strides = [1, 1]} : vector<8x384xf32> to vector<8x128xf32>
    %1012 = arith.addf %1010, %1011 : vector<8x128xf32>
    %1013 = arith.negf %1012 : vector<8x128xf32>
    %1014 = math.exp %1013 : vector<8x128xf32>
    %cst_284 = arith.constant 1.000000e+00 : f32
    %1015 = vector.broadcast %cst_284 : f32 to vector<8x128xf32>
    %1016 = arith.addf %1015, %1014 : vector<8x128xf32>
    %1017 = arith.divf %1015, %1016 : vector<8x128xf32>
    %1018 = vector.extract_strided_slice %998 {offsets = [0, 256], sizes = [8, 128], strides = [1, 1]} : vector<8x384xf32> to vector<8x128xf32>
    %1019 = vector.extract_strided_slice %1001 {offsets = [0, 256], sizes = [8, 128], strides = [1, 1]} : vector<8x384xf32> to vector<8x128xf32>
    %1020 = arith.addf %1019, %612 : vector<8x128xf32>
    %1021 = arith.mulf %1009, %1020 : vector<8x128xf32>
    %1022 = arith.addf %1018, %1021 : vector<8x128xf32>
    %1023 = math.tanh %1022 : vector<8x128xf32>
    %cst_285 = arith.constant 1.000000e+00 : f32
    %1024 = vector.broadcast %cst_285 : f32 to vector<8x128xf32>
    %1025 = arith.subf %1024, %1017 : vector<8x128xf32>
    %1026 = arith.mulf %1025, %1023 : vector<8x128xf32>
    %1027 = arith.mulf %1017, %959 : vector<8x128xf32>
    %1028 = arith.addf %1026, %1027 : vector<8x128xf32>
    %c6_i32_286 = arith.constant 6 : i32
    %c8_i32_287 = arith.constant 8 : i32
    %1029 = arith.muli %c6_i32_286, %c8_i32_287 : i32
    %1030 = tpu.assume_multiple %1029, 8 : i32
    %1031 = arith.index_cast %1030 : i32 to index
    %c0_288 = arith.constant 0 : index
    %1032 = vector.load %arg17[%1031, %c0_288] : memref<64x768xf32, #tpu.memory_space<vmem>>, vector<8x384xf32>
    %1033 = arith.truncf %993 : vector<8x128xf32> to vector<8x128xbf16>
    %c0_289 = arith.constant 0 : index
    %c0_290 = arith.constant 0 : index
    %1034 = vector.load %arg9[%c0_289, %c0_290] : memref<128x384xbf16, #tpu.memory_space<vmem>>, vector<128x384xbf16>
    %cst_291 = arith.constant dense<0.000000e+00> : vector<8x384xf32>
    %1035 = tpu.matmul %1033, %1034, %cst_291 {dimension_numbers = #tpu.dot_dimension_numbers<[1], [0], [0], [1], [0, 0, 1, 1], [], []>} : vector<8x128xbf16>, vector<128x384xbf16>, vector<8x384xf32> -> vector<8x384xf32>
    %1036 = vector.extract_strided_slice %1032 {offsets = [0, 0], sizes = [8, 128], strides = [1, 1]} : vector<8x384xf32> to vector<8x128xf32>
    %1037 = vector.extract_strided_slice %1035 {offsets = [0, 0], sizes = [8, 128], strides = [1, 1]} : vector<8x384xf32> to vector<8x128xf32>
    %1038 = arith.addf %1036, %1037 : vector<8x128xf32>
    %1039 = arith.negf %1038 : vector<8x128xf32>
    %1040 = math.exp %1039 : vector<8x128xf32>
    %cst_292 = arith.constant 1.000000e+00 : f32
    %1041 = vector.broadcast %cst_292 : f32 to vector<8x128xf32>
    %1042 = arith.addf %1041, %1040 : vector<8x128xf32>
    %1043 = arith.divf %1041, %1042 : vector<8x128xf32>
    %1044 = vector.extract_strided_slice %1032 {offsets = [0, 128], sizes = [8, 128], strides = [1, 1]} : vector<8x384xf32> to vector<8x128xf32>
    %1045 = vector.extract_strided_slice %1035 {offsets = [0, 128], sizes = [8, 128], strides = [1, 1]} : vector<8x384xf32> to vector<8x128xf32>
    %1046 = arith.addf %1044, %1045 : vector<8x128xf32>
    %1047 = arith.negf %1046 : vector<8x128xf32>
    %1048 = math.exp %1047 : vector<8x128xf32>
    %cst_293 = arith.constant 1.000000e+00 : f32
    %1049 = vector.broadcast %cst_293 : f32 to vector<8x128xf32>
    %1050 = arith.addf %1049, %1048 : vector<8x128xf32>
    %1051 = arith.divf %1049, %1050 : vector<8x128xf32>
    %1052 = vector.extract_strided_slice %1032 {offsets = [0, 256], sizes = [8, 128], strides = [1, 1]} : vector<8x384xf32> to vector<8x128xf32>
    %1053 = vector.extract_strided_slice %1035 {offsets = [0, 256], sizes = [8, 128], strides = [1, 1]} : vector<8x384xf32> to vector<8x128xf32>
    %1054 = arith.addf %1053, %609 : vector<8x128xf32>
    %1055 = arith.mulf %1043, %1054 : vector<8x128xf32>
    %1056 = arith.addf %1052, %1055 : vector<8x128xf32>
    %1057 = math.tanh %1056 : vector<8x128xf32>
    %cst_294 = arith.constant 1.000000e+00 : f32
    %1058 = vector.broadcast %cst_294 : f32 to vector<8x128xf32>
    %1059 = arith.subf %1058, %1051 : vector<8x128xf32>
    %1060 = arith.mulf %1059, %1057 : vector<8x128xf32>
    %1061 = arith.mulf %1051, %993 : vector<8x128xf32>
    %1062 = arith.addf %1060, %1061 : vector<8x128xf32>
    %c7_i32_295 = arith.constant 7 : i32
    %1063 = arith.subi %c7_i32_295, %c6_i32_286 : i32
    %c8_i32_296 = arith.constant 8 : i32
    %1064 = arith.muli %1063, %c8_i32_296 : i32
    %1065 = tpu.assume_multiple %1064, 8 : i32
    %1066 = arith.index_cast %1065 : i32 to index
    %c384_297 = arith.constant 384 : index
    %1067 = vector.load %arg17[%1066, %c384_297] : memref<64x768xf32, #tpu.memory_space<vmem>>, vector<8x384xf32>
    %1068 = arith.truncf %1028 : vector<8x128xf32> to vector<8x128xbf16>
    %c0_298 = arith.constant 0 : index
    %c0_299 = arith.constant 0 : index
    %1069 = vector.load %arg10[%c0_298, %c0_299] : memref<128x384xbf16, #tpu.memory_space<vmem>>, vector<128x384xbf16>
    %cst_300 = arith.constant dense<0.000000e+00> : vector<8x384xf32>
    %1070 = tpu.matmul %1068, %1069, %cst_300 {dimension_numbers = #tpu.dot_dimension_numbers<[1], [0], [0], [1], [0, 0, 1, 1], [], []>} : vector<8x128xbf16>, vector<128x384xbf16>, vector<8x384xf32> -> vector<8x384xf32>
    %1071 = vector.extract_strided_slice %1067 {offsets = [0, 0], sizes = [8, 128], strides = [1, 1]} : vector<8x384xf32> to vector<8x128xf32>
    %1072 = vector.extract_strided_slice %1070 {offsets = [0, 0], sizes = [8, 128], strides = [1, 1]} : vector<8x384xf32> to vector<8x128xf32>
    %1073 = arith.addf %1071, %1072 : vector<8x128xf32>
    %1074 = arith.negf %1073 : vector<8x128xf32>
    %1075 = math.exp %1074 : vector<8x128xf32>
    %cst_301 = arith.constant 1.000000e+00 : f32
    %1076 = vector.broadcast %cst_301 : f32 to vector<8x128xf32>
    %1077 = arith.addf %1076, %1075 : vector<8x128xf32>
    %1078 = arith.divf %1076, %1077 : vector<8x128xf32>
    %1079 = vector.extract_strided_slice %1067 {offsets = [0, 128], sizes = [8, 128], strides = [1, 1]} : vector<8x384xf32> to vector<8x128xf32>
    %1080 = vector.extract_strided_slice %1070 {offsets = [0, 128], sizes = [8, 128], strides = [1, 1]} : vector<8x384xf32> to vector<8x128xf32>
    %1081 = arith.addf %1079, %1080 : vector<8x128xf32>
    %1082 = arith.negf %1081 : vector<8x128xf32>
    %1083 = math.exp %1082 : vector<8x128xf32>
    %cst_302 = arith.constant 1.000000e+00 : f32
    %1084 = vector.broadcast %cst_302 : f32 to vector<8x128xf32>
    %1085 = arith.addf %1084, %1083 : vector<8x128xf32>
    %1086 = arith.divf %1084, %1085 : vector<8x128xf32>
    %1087 = vector.extract_strided_slice %1067 {offsets = [0, 256], sizes = [8, 128], strides = [1, 1]} : vector<8x384xf32> to vector<8x128xf32>
    %1088 = vector.extract_strided_slice %1070 {offsets = [0, 256], sizes = [8, 128], strides = [1, 1]} : vector<8x384xf32> to vector<8x128xf32>
    %1089 = arith.addf %1088, %612 : vector<8x128xf32>
    %1090 = arith.mulf %1078, %1089 : vector<8x128xf32>
    %1091 = arith.addf %1087, %1090 : vector<8x128xf32>
    %1092 = math.tanh %1091 : vector<8x128xf32>
    %cst_303 = arith.constant 1.000000e+00 : f32
    %1093 = vector.broadcast %cst_303 : f32 to vector<8x128xf32>
    %1094 = arith.subf %1093, %1086 : vector<8x128xf32>
    %1095 = arith.mulf %1094, %1092 : vector<8x128xf32>
    %1096 = arith.mulf %1086, %1028 : vector<8x128xf32>
    %1097 = arith.addf %1095, %1096 : vector<8x128xf32>
    %c7_i32_304 = arith.constant 7 : i32
    %c8_i32_305 = arith.constant 8 : i32
    %1098 = arith.muli %c7_i32_304, %c8_i32_305 : i32
    %1099 = tpu.assume_multiple %1098, 8 : i32
    %1100 = arith.index_cast %1099 : i32 to index
    %c0_306 = arith.constant 0 : index
    %1101 = vector.load %arg17[%1100, %c0_306] : memref<64x768xf32, #tpu.memory_space<vmem>>, vector<8x384xf32>
    %1102 = arith.truncf %1062 : vector<8x128xf32> to vector<8x128xbf16>
    %c0_307 = arith.constant 0 : index
    %c0_308 = arith.constant 0 : index
    %1103 = vector.load %arg9[%c0_307, %c0_308] : memref<128x384xbf16, #tpu.memory_space<vmem>>, vector<128x384xbf16>
    %cst_309 = arith.constant dense<0.000000e+00> : vector<8x384xf32>
    %1104 = tpu.matmul %1102, %1103, %cst_309 {dimension_numbers = #tpu.dot_dimension_numbers<[1], [0], [0], [1], [0, 0, 1, 1], [], []>} : vector<8x128xbf16>, vector<128x384xbf16>, vector<8x384xf32> -> vector<8x384xf32>
    %1105 = vector.extract_strided_slice %1101 {offsets = [0, 0], sizes = [8, 128], strides = [1, 1]} : vector<8x384xf32> to vector<8x128xf32>
    %1106 = vector.extract_strided_slice %1104 {offsets = [0, 0], sizes = [8, 128], strides = [1, 1]} : vector<8x384xf32> to vector<8x128xf32>
    %1107 = arith.addf %1105, %1106 : vector<8x128xf32>
    %1108 = arith.negf %1107 : vector<8x128xf32>
    %1109 = math.exp %1108 : vector<8x128xf32>
    %cst_310 = arith.constant 1.000000e+00 : f32
    %1110 = vector.broadcast %cst_310 : f32 to vector<8x128xf32>
    %1111 = arith.addf %1110, %1109 : vector<8x128xf32>
    %1112 = arith.divf %1110, %1111 : vector<8x128xf32>
    %1113 = vector.extract_strided_slice %1101 {offsets = [0, 128], sizes = [8, 128], strides = [1, 1]} : vector<8x384xf32> to vector<8x128xf32>
    %1114 = vector.extract_strided_slice %1104 {offsets = [0, 128], sizes = [8, 128], strides = [1, 1]} : vector<8x384xf32> to vector<8x128xf32>
    %1115 = arith.addf %1113, %1114 : vector<8x128xf32>
    %1116 = arith.negf %1115 : vector<8x128xf32>
    %1117 = math.exp %1116 : vector<8x128xf32>
    %cst_311 = arith.constant 1.000000e+00 : f32
    %1118 = vector.broadcast %cst_311 : f32 to vector<8x128xf32>
    %1119 = arith.addf %1118, %1117 : vector<8x128xf32>
    %1120 = arith.divf %1118, %1119 : vector<8x128xf32>
    %1121 = vector.extract_strided_slice %1101 {offsets = [0, 256], sizes = [8, 128], strides = [1, 1]} : vector<8x384xf32> to vector<8x128xf32>
    %1122 = vector.extract_strided_slice %1104 {offsets = [0, 256], sizes = [8, 128], strides = [1, 1]} : vector<8x384xf32> to vector<8x128xf32>
    %1123 = arith.addf %1122, %609 : vector<8x128xf32>
    %1124 = arith.mulf %1112, %1123 : vector<8x128xf32>
    %1125 = arith.addf %1121, %1124 : vector<8x128xf32>
    %1126 = math.tanh %1125 : vector<8x128xf32>
    %cst_312 = arith.constant 1.000000e+00 : f32
    %1127 = vector.broadcast %cst_312 : f32 to vector<8x128xf32>
    %1128 = arith.subf %1127, %1120 : vector<8x128xf32>
    %1129 = arith.mulf %1128, %1126 : vector<8x128xf32>
    %1130 = arith.mulf %1120, %1062 : vector<8x128xf32>
    %1131 = arith.addf %1129, %1130 : vector<8x128xf32>
    %c7_i32_313 = arith.constant 7 : i32
    %1132 = arith.subi %c7_i32_313, %c7_i32_304 : i32
    %c8_i32_314 = arith.constant 8 : i32
    %1133 = arith.muli %1132, %c8_i32_314 : i32
    %1134 = tpu.assume_multiple %1133, 8 : i32
    %1135 = arith.index_cast %1134 : i32 to index
    %c384_315 = arith.constant 384 : index
    %1136 = vector.load %arg17[%1135, %c384_315] : memref<64x768xf32, #tpu.memory_space<vmem>>, vector<8x384xf32>
    %1137 = arith.truncf %1097 : vector<8x128xf32> to vector<8x128xbf16>
    %c0_316 = arith.constant 0 : index
    %c0_317 = arith.constant 0 : index
    %1138 = vector.load %arg10[%c0_316, %c0_317] : memref<128x384xbf16, #tpu.memory_space<vmem>>, vector<128x384xbf16>
    %cst_318 = arith.constant dense<0.000000e+00> : vector<8x384xf32>
    %1139 = tpu.matmul %1137, %1138, %cst_318 {dimension_numbers = #tpu.dot_dimension_numbers<[1], [0], [0], [1], [0, 0, 1, 1], [], []>} : vector<8x128xbf16>, vector<128x384xbf16>, vector<8x384xf32> -> vector<8x384xf32>
    %1140 = vector.extract_strided_slice %1136 {offsets = [0, 0], sizes = [8, 128], strides = [1, 1]} : vector<8x384xf32> to vector<8x128xf32>
    %1141 = vector.extract_strided_slice %1139 {offsets = [0, 0], sizes = [8, 128], strides = [1, 1]} : vector<8x384xf32> to vector<8x128xf32>
    %1142 = arith.addf %1140, %1141 : vector<8x128xf32>
    %1143 = arith.negf %1142 : vector<8x128xf32>
    %1144 = math.exp %1143 : vector<8x128xf32>
    %cst_319 = arith.constant 1.000000e+00 : f32
    %1145 = vector.broadcast %cst_319 : f32 to vector<8x128xf32>
    %1146 = arith.addf %1145, %1144 : vector<8x128xf32>
    %1147 = arith.divf %1145, %1146 : vector<8x128xf32>
    %1148 = vector.extract_strided_slice %1136 {offsets = [0, 128], sizes = [8, 128], strides = [1, 1]} : vector<8x384xf32> to vector<8x128xf32>
    %1149 = vector.extract_strided_slice %1139 {offsets = [0, 128], sizes = [8, 128], strides = [1, 1]} : vector<8x384xf32> to vector<8x128xf32>
    %1150 = arith.addf %1148, %1149 : vector<8x128xf32>
    %1151 = arith.negf %1150 : vector<8x128xf32>
    %1152 = math.exp %1151 : vector<8x128xf32>
    %cst_320 = arith.constant 1.000000e+00 : f32
    %1153 = vector.broadcast %cst_320 : f32 to vector<8x128xf32>
    %1154 = arith.addf %1153, %1152 : vector<8x128xf32>
    %1155 = arith.divf %1153, %1154 : vector<8x128xf32>
    %1156 = vector.extract_strided_slice %1136 {offsets = [0, 256], sizes = [8, 128], strides = [1, 1]} : vector<8x384xf32> to vector<8x128xf32>
    %1157 = vector.extract_strided_slice %1139 {offsets = [0, 256], sizes = [8, 128], strides = [1, 1]} : vector<8x384xf32> to vector<8x128xf32>
    %1158 = arith.addf %1157, %612 : vector<8x128xf32>
    %1159 = arith.mulf %1147, %1158 : vector<8x128xf32>
    %1160 = arith.addf %1156, %1159 : vector<8x128xf32>
    %1161 = math.tanh %1160 : vector<8x128xf32>
    %cst_321 = arith.constant 1.000000e+00 : f32
    %1162 = vector.broadcast %cst_321 : f32 to vector<8x128xf32>
    %1163 = arith.subf %1162, %1155 : vector<8x128xf32>
    %1164 = arith.mulf %1163, %1161 : vector<8x128xf32>
    %1165 = arith.mulf %1155, %1097 : vector<8x128xf32>
    %1166 = arith.addf %1164, %1165 : vector<8x128xf32>
    %c8_i32_322 = arith.constant 8 : i32
    %1167 = arith.truncf %1131 : vector<8x128xf32> to vector<8x128xbf16>
    %c0_323 = arith.constant 0 : index
    %c0_324 = arith.constant 0 : index
    %1168 = vector.load %arg13[%c0_323, %c0_324] : memref<128x2xbf16, #tpu.memory_space<vmem>>, vector<128x2xbf16>
    %cst_325 = arith.constant dense<0.000000e+00> : vector<8x2xf32>
    %1169 = tpu.matmul %1167, %1168, %cst_325 {dimension_numbers = #tpu.dot_dimension_numbers<[1], [0], [0], [1], [0, 0, 1, 1], [], []>} : vector<8x128xbf16>, vector<128x2xbf16>, vector<8x2xf32> -> vector<8x2xf32>
    %1170 = arith.truncf %1166 : vector<8x128xf32> to vector<8x128xbf16>
    %c0_326 = arith.constant 0 : index
    %c0_327 = arith.constant 0 : index
    %1171 = vector.load %arg14[%c0_326, %c0_327] : memref<128x2xbf16, #tpu.memory_space<vmem>>, vector<128x2xbf16>
    %cst_328 = arith.constant dense<0.000000e+00> : vector<8x2xf32>
    %1172 = tpu.matmul %1170, %1171, %cst_328 {dimension_numbers = #tpu.dot_dimension_numbers<[1], [0], [0], [1], [0, 0, 1, 1], [], []>} : vector<8x128xbf16>, vector<128x2xbf16>, vector<8x2xf32> -> vector<8x2xf32>
    %1173 = arith.addf %1169, %1172 : vector<8x2xf32>
    %c0_329 = arith.constant 0 : index
    %c0_330 = arith.constant 0 : index
    %1174 = vector.load %arg15[%c0_329, %c0_330] : memref<1x2xf32, #tpu.memory_space<vmem>>, vector<1x2xf32>
    %1175 = vector.broadcast %1174 : vector<1x2xf32> to vector<8x2xf32>
    %1176 = arith.addf %1173, %1175 : vector<8x2xf32>
    %c0_331 = arith.constant 0 : index
    %c0_332 = arith.constant 0 : index
    %1177 = vector.load %arg16[%c0_331, %c0_332] : memref<8x2xf32, #tpu.memory_space<vmem>>, vector<8x2xf32>
    tpu.vector_store %arg16[%c0_331, %c0_332], %1176 {strides = array<i32>} : memref<8x2xf32, #tpu.memory_space<vmem>>, vector<8x2xf32>,
    return
  }
}

</mosaic_0001>

<llo_original>
// kernel: tpu_custom_call.1
$region0: #{tpu_custom_call.1}
  #allocation0 [shape = 'u32[]', space=smem, size = 0x4, offset = 0x4, fixed_abs, tag = 'smem constant byte address 0x4 - core index']
  #allocation1 [shape = 'u32[144,128]{1,0:T(1,128)}', space=vmem, size = 0x12000, scoped, tag = 'internal scratch']
  #allocation2 [shape = 'f32[64,768]{1,0:T(8,128)}', space=vmem, size = 0x30000, scoped, tag = 'scratch operand']
  #allocation3 [shape = 'f32[64,256]{1,0:T(8,128)}', space=vmem, size = 0x10000, scoped, tag = 'scratch operand']
  %s0 = inlined_call_operand.vmem [shape: bf16[64,32], index: 0, kind: input, shape index: {}]
  %s1 = inlined_call_operand.hbm [shape: bf16[32,768], index: 1, kind: input, shape index: {}]
  %s2 = inlined_call_operand.hbm [shape: f32[1,768], index: 2, kind: input, shape index: {}]
  %s3 = inlined_call_operand.hbm [shape: bf16[128,384], index: 3, kind: input, shape index: {}]
  %s4 = inlined_call_operand.vmem [shape: bf16[128,384], index: 4, kind: input, shape index: {}]
  %s5 = inlined_call_operand.hbm [shape: f32[1,128], index: 5, kind: input, shape index: {}]
  %s6 = inlined_call_operand.hbm [shape: f32[1,128], index: 6, kind: input, shape index: {}]
  %s7 = inlined_call_operand.hbm [shape: bf16[256,768], index: 7, kind: input, shape index: {}]
  %s8 = inlined_call_operand.vmem [shape: f32[1,768], index: 8, kind: input, shape index: {}]
  %s9 = inlined_call_operand.hbm [shape: bf16[128,384], index: 9, kind: input, shape index: {}]
  %s10 = inlined_call_operand.hbm [shape: bf16[128,384], index: 10, kind: input, shape index: {}]
  %s11 = inlined_call_operand.vmem [shape: f32[1,128], index: 11, kind: input, shape index: {}]
  %s12 = inlined_call_operand.vmem [shape: f32[1,128], index: 12, kind: input, shape index: {}]
  %s13 = inlined_call_operand.vmem [shape: bf16[128,2], index: 13, kind: input, shape index: {}]
  %s14 = inlined_call_operand.vmem [shape: bf16[128,2], index: 14, kind: input, shape index: {}]
  %s15 = inlined_call_operand.vmem [shape: f32[1,2], index: 15, kind: input, shape index: {}]
  %s16 = inlined_call_operand.vmem [shape: f32[8,2], index: 16, kind: output, shape index: {}]
  %s17 = sld [smem:[#allocation0]]
  $region106: #{tpu_custom_call.1} parent=0
    _
  %s19 = ssub.s32 1, %s17
  %s20 = scalar_select 0, %s19, %s17
  $region1: #{tpu_custom_call.1} parent=0
    #allocation4 [shape = 'u8[49152]{0}', space=vmem, size = 0xc000, scoped, tag = 'input window, operand 1, single buffered']
    #allocation5 [shape = 's32[1]{0}', space=sflag, size = 0x4, scoped, tag = 'scoped memory for tpu_custom_call.1']
    #allocation6 [shape = 'u8[3072]{0}', space=vmem, size = 0xc00, scoped, tag = 'input window, operand 2, single buffered']
    #allocation7 [shape = 's32[1]{0}', space=sflag, size = 0x4, scoped, tag = 'scoped memory for tpu_custom_call.1']
    #allocation8 [shape = 'u8[98304]{0}', space=vmem, size = 0x18000, scoped, tag = 'input window, operand 3, single buffered']
    #allocation9 [shape = 'u8[512]{0}', space=vmem, size = 0x400, scoped, tag = 'input window, operand 5, single buffered']
    #allocation10 [shape = 's32[1]{0}', space=sflag, size = 0x4, scoped, tag = 'scoped memory for tpu_custom_call.1']
    #allocation11 [shape = 'u8[512]{0}', space=vmem, size = 0x400, scoped, tag = 'input window, operand 6, single buffered']
    #allocation12 [shape = 'u8[393216]{0}', space=vmem, size = 0x60000, scoped, tag = 'input window, operand 7, single buffered']
    #allocation13 [shape = 's32[1]{0}', space=sflag, size = 0x4, scoped, tag = 'scoped memory for tpu_custom_call.1']
    #allocation14 [shape = 'u8[98304]{0}', space=vmem, size = 0x18000, scoped, tag = 'input window, operand 9, single buffered']
    #allocation15 [shape = 'u8[98304]{0}', space=vmem, size = 0x18000, scoped, tag = 'input window, operand 10, single buffered']
    #allocation16 [shape = 's32[1]{0}', space=sflag, size = 0x4, scoped, tag = 'scoped memory for tpu_custom_call.1']
    %21 = vsyncpa [#allocation5], 0
    %22 = vsyncpa [#allocation7], 0
    %23 = vsyncpa [#allocation10], 0
    %24 = vsyncpa [#allocation13], 0
    %25 = vsyncpa [#allocation16], 0
    // Predicated region
    $region2: #{tpu_custom_call.1} parent=1 // pred_check
      _
    $region3: #{tpu_custom_call.1} parent=1 // pred_check_branch
      %27 = sbr.rel (0) target = $region5
    $region4: #{tpu_custom_call.1} parent=1 // pred_region
      _
    $region5: #{tpu_custom_call.1} parent=1 // pred_fallthru
      _
    // Predicated region
    $region6: #{tpu_custom_call.1} parent=1 // pred_check
      _
    $region7: #{tpu_custom_call.1} parent=1 // pred_check_branch
      %29 = sbr.rel (0) target = $region9
    $region8: #{tpu_custom_call.1} parent=1 // pred_region
      %s31 = ssub.s32 1536, 1536
      %32 = vsyncadd [#allocation5], %s31
      %s33 = sshll.u32 [#allocation4], 4
      %s34 = int_to_ptr.vmem [resolvable:$true] %s33
      %39 = dma.hbm_to_vmem [thread:$0]  %s1, 1536, %s34, [#allocation5], 384, 384, 24
    $region9: #{tpu_custom_call.1} parent=1 // pred_fallthru
      _
    // Predicated region
    $region10: #{tpu_custom_call.1} parent=1 // pred_check
      _
    $region11: #{tpu_custom_call.1} parent=1 // pred_check_branch
      %41 = sbr.rel (0) target = $region13
    $region12: #{tpu_custom_call.1} parent=1 // pred_region
      %s43 = ssub.s32 96, 96
      %44 = vsyncadd [#allocation7], %s43
      %s46 = sshll.u32 [#allocation6], 4
      %s47 = int_to_ptr.vmem [resolvable:$true] %s46
      %49 = dma.hbm_to_vmem [thread:$0]  %s2, 96, %s47, [#allocation7]
    $region13: #{tpu_custom_call.1} parent=1 // pred_fallthru
      _
    // Predicated region
    $region14: #{tpu_custom_call.1} parent=1 // pred_check
      _
    $region15: #{tpu_custom_call.1} parent=1 // pred_check_branch
      %51 = sbr.rel (0) target = $region17
    $region16: #{tpu_custom_call.1} parent=1 // pred_region
      %s53 = ssub.s32 3072, 3072
      %54 = vsyncadd [#allocation7], %s53
      %s55 = sshll.u32 [#allocation8], 4
      %s56 = int_to_ptr.vmem [resolvable:$true] %s55
      %61 = dma.hbm_to_vmem [thread:$0]  %s3, 3072, %s56, [#allocation7], 192, 192, 12
    $region17: #{tpu_custom_call.1} parent=1 // pred_fallthru
      _
    // Predicated region
    $region18: #{tpu_custom_call.1} parent=1 // pred_check
      _
    $region19: #{tpu_custom_call.1} parent=1 // pred_check_branch
      %63 = sbr.rel (0) target = $region21
    $region20: #{tpu_custom_call.1} parent=1 // pred_region
      _
    $region21: #{tpu_custom_call.1} parent=1 // pred_fallthru
      _
    // Predicated region
    $region22: #{tpu_custom_call.1} parent=1 // pred_check
      _
    $region23: #{tpu_custom_call.1} parent=1 // pred_check_branch
      %65 = sbr.rel (0) target = $region25
    $region24: #{tpu_custom_call.1} parent=1 // pred_region
      %s67 = ssub.s32 16, 16
      %68 = vsyncadd [#allocation10], %s67
      %s70 = sshll.u32 [#allocation9], 4
      %s71 = int_to_ptr.vmem [resolvable:$true] %s70
      %73 = dma.hbm_to_vmem [thread:$0]  %s5, 16, %s71, [#allocation10]
    $region25: #{tpu_custom_call.1} parent=1 // pred_fallthru
      _
    // Predicated region
    $region26: #{tpu_custom_call.1} parent=1 // pred_check
      _
    $region27: #{tpu_custom_call.1} parent=1 // pred_check_branch
      %75 = sbr.rel (0) target = $region29
    $region28: #{tpu_custom_call.1} parent=1 // pred_region
      %s77 = ssub.s32 16, 16
      %78 = vsyncadd [#allocation10], %s77
      %s80 = sshll.u32 [#allocation11], 4
      %s81 = int_to_ptr.vmem [resolvable:$true] %s80
      %83 = dma.hbm_to_vmem [thread:$0]  %s6, 16, %s81, [#allocation10]
    $region29: #{tpu_custom_call.1} parent=1 // pred_fallthru
      _
    // Predicated region
    $region30: #{tpu_custom_call.1} parent=1 // pred_check
      _
    $region31: #{tpu_custom_call.1} parent=1 // pred_check_branch
      %85 = sbr.rel (0) target = $region33
    $region32: #{tpu_custom_call.1} parent=1 // pred_region
      %s87 = ssub.s32 12288, 12288
      %88 = vsyncadd [#allocation13], %s87
      %s89 = sshll.u32 [#allocation12], 4
      %s90 = int_to_ptr.vmem [resolvable:$true] %s89
      %95 = dma.hbm_to_vmem [thread:$0]  %s7, 12288, %s90, [#allocation13], 384, 384, 24
    $region33: #{tpu_custom_call.1} parent=1 // pred_fallthru
      _
    // Predicated region
    $region34: #{tpu_custom_call.1} parent=1 // pred_check
      _
    $region35: #{tpu_custom_call.1} parent=1 // pred_check_branch
      %97 = sbr.rel (0) target = $region37
    $region36: #{tpu_custom_call.1} parent=1 // pred_region
      _
    $region37: #{tpu_custom_call.1} parent=1 // pred_fallthru
      _
    // Predicated region
    $region38: #{tpu_custom_call.1} parent=1 // pred_check
      _
    $region39: #{tpu_custom_call.1} parent=1 // pred_check_branch
      %99 = sbr.rel (0) target = $region41
    $region40: #{tpu_custom_call.1} parent=1 // pred_region
      %s101 = ssub.s32 3072, 3072
      %102 = vsyncadd [#allocation13], %s101
      %s103 = sshll.u32 [#allocation14], 4
      %s104 = int_to_ptr.vmem [resolvable:$true] %s103
      %109 = dma.hbm_to_vmem [thread:$0]  %s9, 3072, %s104, [#allocation13], 192, 192, 12
    $region41: #{tpu_custom_call.1} parent=1 // pred_fallthru
      _
    // Predicated region
    $region42: #{tpu_custom_call.1} parent=1 // pred_check
      _
    $region43: #{tpu_custom_call.1} parent=1 // pred_check_branch
      %111 = sbr.rel (0) target = $region45
    $region44: #{tpu_custom_call.1} parent=1 // pred_region
      %s113 = ssub.s32 3072, 3072
      %114 = vsyncadd [#allocation16], %s113
      %s115 = sshll.u32 [#allocation15], 4
      %s116 = int_to_ptr.vmem [resolvable:$true] %s115
      %121 = dma.hbm_to_vmem [thread:$0]  %s10, 3072, %s116, [#allocation16], 192, 192, 12
    $region45: #{tpu_custom_call.1} parent=1 // pred_fallthru
      _
    // Predicated region
    $region46: #{tpu_custom_call.1} parent=1 // pred_check
      _
    $region47: #{tpu_custom_call.1} parent=1 // pred_check_branch
      %123 = sbr.rel (0) target = $region49
    $region48: #{tpu_custom_call.1} parent=1 // pred_region
      _
    $region49: #{tpu_custom_call.1} parent=1 // pred_fallthru
      _
    // Predicated region
    $region50: #{tpu_custom_call.1} parent=1 // pred_check
      _
    $region51: #{tpu_custom_call.1} parent=1 // pred_check_branch
      %125 = sbr.rel (0) target = $region53
    $region52: #{tpu_custom_call.1} parent=1 // pred_region
      _
    $region53: #{tpu_custom_call.1} parent=1 // pred_fallthru
      _
    // Predicated region
    $region54: #{tpu_custom_call.1} parent=1 // pred_check
      _
    $region55: #{tpu_custom_call.1} parent=1 // pred_check_branch
      %127 = sbr.rel (0) target = $region57
    $region56: #{tpu_custom_call.1} parent=1 // pred_region
      _
    $region57: #{tpu_custom_call.1} parent=1 // pred_fallthru
      _
    // Predicated region
    $region58: #{tpu_custom_call.1} parent=1 // pred_check
      _
    $region59: #{tpu_custom_call.1} parent=1 // pred_check_branch
      %129 = sbr.rel (0) target = $region61
    $region60: #{tpu_custom_call.1} parent=1 // pred_region
      _
    $region61: #{tpu_custom_call.1} parent=1 // pred_fallthru
      _
    // Predicated region
    $region62: #{tpu_custom_call.1} parent=1 // pred_check
      _
    $region63: #{tpu_custom_call.1} parent=1 // pred_check_branch
      %131 = sbr.rel (0) target = $region65
    $region64: #{tpu_custom_call.1} parent=1 // pred_region
      _
    $region65: #{tpu_custom_call.1} parent=1 // pred_fallthru
      _
    // Predicated region
    $region66: #{tpu_custom_call.1} parent=1 // pred_check
      _
    $region67: #{tpu_custom_call.1} parent=1 // pred_check_branch
      %133 = sbr.rel (0) target = $region69
    $region68: #{tpu_custom_call.1} parent=1 // pred_region
      %134 = dma.done [#allocation5], 1536
    $region69: #{tpu_custom_call.1} parent=1 // pred_fallthru
      _
    // Predicated region
    $region70: #{tpu_custom_call.1} parent=1 // pred_check
      _
    $region71: #{tpu_custom_call.1} parent=1 // pred_check_branch
      %136 = sbr.rel (0) target = $region73
    $region72: #{tpu_custom_call.1} parent=1 // pred_region
      %137 = dma.done [#allocation7], 96
    $region73: #{tpu_custom_call.1} parent=1 // pred_fallthru
      _
    // Predicated region
    $region74: #{tpu_custom_call.1} parent=1 // pred_check
      _
    $region75: #{tpu_custom_call.1} parent=1 // pred_check_branch
      %139 = sbr.rel (0) target = $region77
    $region76: #{tpu_custom_call.1} parent=1 // pred_region
      %140 = dma.done [#allocation7], 3072
    $region77: #{tpu_custom_call.1} parent=1 // pred_fallthru
      _
    // Predicated region
    $region78: #{tpu_custom_call.1} parent=1 // pred_check
      _
    $region79: #{tpu_custom_call.1} parent=1 // pred_check_branch
      %142 = sbr.rel (0) target = $region81
    $region80: #{tpu_custom_call.1} parent=1 // pred_region
      %143 = dma.done [#allocation10], 16
    $region81: #{tpu_custom_call.1} parent=1 // pred_fallthru
      _
    // Predicated region
    $region82: #{tpu_custom_call.1} parent=1 // pred_check
      _
    $region83: #{tpu_custom_call.1} parent=1 // pred_check_branch
      %145 = sbr.rel (0) target = $region85
    $region84: #{tpu_custom_call.1} parent=1 // pred_region
      %146 = dma.done [#allocation10], 16
    $region85: #{tpu_custom_call.1} parent=1 // pred_fallthru
      _
    // Predicated region
    $region86: #{tpu_custom_call.1} parent=1 // pred_check
      _
    $region87: #{tpu_custom_call.1} parent=1 // pred_check_branch
      %148 = sbr.rel (0) target = $region89
    $region88: #{tpu_custom_call.1} parent=1 // pred_region
      %149 = dma.done [#allocation13], 12288
    $region89: #{tpu_custom_call.1} parent=1 // pred_fallthru
      _
    // Predicated region
    $region90: #{tpu_custom_call.1} parent=1 // pred_check
      _
    $region91: #{tpu_custom_call.1} parent=1 // pred_check_branch
      %151 = sbr.rel (0) target = $region93
    $region92: #{tpu_custom_call.1} parent=1 // pred_region
      %152 = dma.done [#allocation13], 3072
    $region93: #{tpu_custom_call.1} parent=1 // pred_fallthru
      _
    // Predicated region
    $region94: #{tpu_custom_call.1} parent=1 // pred_check
      _
    $region95: #{tpu_custom_call.1} parent=1 // pred_check_branch
      %154 = sbr.rel (0) target = $region97
    $region96: #{tpu_custom_call.1} parent=1 // pred_region
      %155 = dma.done [#allocation16], 3072
    $region97: #{tpu_custom_call.1} parent=1 // pred_fallthru
      _
    %v157 = vld [vmem:[%s0] sm:$0xf]
    %v158 = vld [vmem:[%s0 + $0x4] sm:$0xf]
    %v159 = vld [vmem:[%s0 + $0x8] sm:$0xf]
    %v160 = vld [vmem:[%s0 + $0xc] sm:$0xf]
    %v161 = vld [vmem:[%s0 + $0x10] sm:$0xf]
    %v162 = vld [vmem:[%s0 + $0x14] sm:$0xf]
    %v163 = vld [vmem:[%s0 + $0x18] sm:$0xf]
    %v164 = vld [vmem:[%s0 + $0x1c] sm:$0xf]
    %v165 = vld [vmem:[#allocation4] sm:$0xff]
    %v166 = vld [vmem:[#allocation4 + $0x8] sm:$0xff]
    %v167 = vld [vmem:[#allocation4 + $0x10] sm:$0xff]
    %v168 = vld [vmem:[#allocation4 + $0x18] sm:$0xff]
    %v169 = vld [vmem:[#allocation4 + $0x20] sm:$0xff]
    %v170 = vld [vmem:[#allocation4 + $0x28] sm:$0xff]
    %v171 = vld [vmem:[#allocation4 + $0x30] sm:$0xff]
    %v172 = vld [vmem:[#allocation4 + $0x38] sm:$0xff]
    %v173 = vld [vmem:[#allocation4 + $0x40] sm:$0xff]
    %v174 = vld [vmem:[#allocation4 + $0x48] sm:$0xff]
    %v175 = vld [vmem:[#allocation4 + $0x50] sm:$0xff]
    %v176 = vld [vmem:[#allocation4 + $0x58] sm:$0xff]
    %v177 = vld [vmem:[#allocation6] sm:$0x3f]
    %v179 = vlaneseq
    %v180 = vshrl.u32 %v179, 7
    %v181 = vsub.s32 0, %v180
    %v182 = vrot.slane %v177, %v181
    %v183 = vlaneseq
    %v184 = vshrl.u32 %v183, 7
    %v185 = vsub.s32 1, %v184
    %v186 = vrot.slane %v177, %v185
    %v187 = vlaneseq
    %v188 = vshrl.u32 %v187, 7
    %v189 = vsub.s32 2, %v188
    %v190 = vrot.slane %v177, %v189
    %v191 = vlaneseq
    %v192 = vshrl.u32 %v191, 7
    %v193 = vsub.s32 3, %v192
    %v194 = vrot.slane %v177, %v193
    %v195 = vlaneseq
    %v196 = vshrl.u32 %v195, 7
    %v197 = vsub.s32 4, %v196
    %v198 = vrot.slane %v177, %v197
    %v199 = vlaneseq
    %v200 = vshrl.u32 %v199, 7
    %v201 = vsub.s32 5, %v200
    %v202 = vrot.slane %v177, %v201
    %v217 = vunpack.c.l.b16 %v157
    %v218 = vunpack.c.l.b16 %v158
    %v219 = vunpack.c.l.b16 %v159
    %v220 = vunpack.c.l.b16 %v160
    %v221 = vunpack.c.l.b16 %v161
    %v222 = vunpack.c.l.b16 %v162
    %v223 = vunpack.c.l.b16 %v163
    %v224 = vunpack.c.l.b16 %v164
    %v225 = vpack.c.b16 %v218, %v217
    %v226 = vpack.c.b16 %v220, %v219
    %v227 = vpack.c.b16 %v222, %v221
    %v228 = vpack.c.b16 %v224, %v223
    %v241 = vunpack.c.l.b16 %v165
    %v242 = vunpack.c.h.b16 %v165
    %v243 = vunpack.c.l.b16 %v166
    %v244 = vunpack.c.h.b16 %v166
    %v245 = vunpack.c.l.b16 %v167
    %v246 = vunpack.c.h.b16 %v167
    %v247 = vunpack.c.l.b16 %v168
    %v248 = vunpack.c.h.b16 %v168
    %v249 = vunpack.c.l.b16 %v169
    %v250 = vunpack.c.h.b16 %v169
    %v251 = vunpack.c.l.b16 %v170
    %v252 = vunpack.c.h.b16 %v170
    %v253 = vunpack.c.l.b16 %v171
    %v254 = vunpack.c.h.b16 %v171
    %v255 = vunpack.c.l.b16 %v172
    %v256 = vunpack.c.h.b16 %v172
    %v257 = vunpack.c.l.b16 %v173
    %v258 = vunpack.c.h.b16 %v173
    %v259 = vunpack.c.l.b16 %v174
    %v260 = vunpack.c.h.b16 %v174
    %v261 = vunpack.c.l.b16 %v175
    %v262 = vunpack.c.h.b16 %v175
    %v263 = vunpack.c.l.b16 %v176
    %v264 = vunpack.c.h.b16 %v176
    %v265 = vpack.c.b16 %v247, %v241
    %v266 = vpack.c.b16 %v248, %v242
    %v267 = vpack.c.b16 %v249, %v243
    %v268 = vpack.c.b16 %v250, %v244
    %v269 = vpack.c.b16 %v251, %v245
    %v270 = vpack.c.b16 %v252, %v246
    %v271 = vpack.c.b16 %v259, %v253
    %v272 = vpack.c.b16 %v260, %v254
    %v273 = vpack.c.b16 %v261, %v255
    %v274 = vpack.c.b16 %v262, %v256
    %v275 = vpack.c.b16 %v263, %v257
    %v276 = vpack.c.b16 %v264, %v258
    %vm289 = vcmask 261120
    %v291 = vsel %vm289, %v225, 0
    %v294 = vsel %vm289, %v226, 0
    %v297 = vsel %vm289, %v227, 0
    %v300 = vsel %vm289, %v228, 0
    %302 = vmatprep.subr.bf16.mxu0 %v266
    %303 = vmatpush1.bf16.msra.mxu0 %v265
    %304 = vmatprep.subr.bf16.mxu0 %v272
    %305 = vmatpush1.bf16.msra.mxu0 %v271
    %306 = vmatprep.subr.bf16.mxu0 0
    %307 = vmatpush1.bf16.msra.mxu0 0
    %308 = vmatprep.subr.bf16.mxu0 0
    %309 = vmatpush1.bf16.msra.mxu0 0
    %310 = vmatprep.subr.bf16.mxu0 0
    %311 = vmatpush1.bf16.msra.mxu0 0
    %312 = vmatprep.subr.bf16.mxu0 0
    %313 = vmatpush1.bf16.msra.mxu0 0
    %314 = vmatprep.subr.bf16.mxu0 0
    %315 = vmatpush1.bf16.msra.mxu0 0
    %316 = vmatprep.subr.bf16.mxu0 0
    %317 = vmatpush1.bf16.msra.mxu0 0
    %318 = vmatprep.subr.bf16.mxu0 0
    %319 = vmatpush1.bf16.msra.mxu0 0
    %320 = vmatprep.subr.bf16.mxu0 0
    %321 = vmatpush1.bf16.msra.mxu0 0
    %322 = vmatprep.subr.bf16.mxu0 0
    %323 = vmatpush1.bf16.msra.mxu0 0
    %324 = vmatprep.subr.bf16.mxu0 0
    %325 = vmatpush1.bf16.msra.mxu0 0
    %326 = vmatprep.subr.bf16.mxu0 0
    %327 = vmatpush1.bf16.msra.mxu0 0
    %328 = vmatprep.subr.bf16.mxu0 0
    %329 = vmatpush1.bf16.msra.mxu0 0
    %330 = vmatprep.subr.bf16.mxu0 0
    %331 = vmatpush1.bf16.msra.mxu0 0
    %332 = vmatprep.subr.bf16.mxu0 0
    %333 = vmatpush1.bf16.msra.mxu0 0
    %334 = vmatprep.mubr.bf16.mxu0 0
    %335 = vmatmul.mubr.bf16.gmra.mrb[0].mxu0 %v291
    %v336 = vpop.f32.mrb[0].mxu0
    %v337 = vadd.f32 %v182, %v336
    %v338 = vpop.f32.mrb[0].mxu0
    %v339 = vadd.f32 %v186, %v338
    %v340 = vpop.f32.mrb[0].mxu0
    %v341 = vadd.f32 %v182, %v340
    %v342 = vpop.f32.mrb[0].mxu0
    %v343 = vadd.f32 %v186, %v342
    %344 = vmatprep.mubr.bf16.mxu0 0
    %345 = vmatmul.mubr.bf16.gmra.mrb[0].mxu0 %v294
    %v346 = vpop.f32.mrb[0].mxu0
    %v347 = vadd.f32 %v182, %v346
    %v348 = vpop.f32.mrb[0].mxu0
    %v349 = vadd.f32 %v186, %v348
    %v350 = vpop.f32.mrb[0].mxu0
    %v351 = vadd.f32 %v182, %v350
    %v352 = vpop.f32.mrb[0].mxu0
    %v353 = vadd.f32 %v186, %v352
    %354 = vmatprep.mubr.bf16.mxu0 0
    %355 = vmatmul.mubr.bf16.gmra.mrb[0].mxu0 %v297
    %v356 = vpop.f32.mrb[0].mxu0
    %v357 = vadd.f32 %v182, %v356
    %v358 = vpop.f32.mrb[0].mxu0
    %v359 = vadd.f32 %v186, %v358
    %v360 = vpop.f32.mrb[0].mxu0
    %v361 = vadd.f32 %v182, %v360
    %v362 = vpop.f32.mrb[0].mxu0
    %v363 = vadd.f32 %v186, %v362
    %364 = vmatprep.mubr.bf16.mxu0 0
    %365 = vmatmul.mubr.bf16.gmra.mrb[0].mxu0 %v300
    %v366 = vpop.f32.mrb[0].mxu0
    %v367 = vadd.f32 %v182, %v366
    %v368 = vpop.f32.mrb[0].mxu0
    %v369 = vadd.f32 %v186, %v368
    %v370 = vpop.f32.mrb[0].mxu0
    %v371 = vadd.f32 %v182, %v370
    %v372 = vpop.f32.mrb[0].mxu0
    %v373 = vadd.f32 %v186, %v372
    %374 = vdwg.mxu0
    %375 = vmatprep.subr.bf16.mxu0 %v268
    %376 = vmatpush1.bf16.msra.mxu0 %v267
    %377 = vmatprep.subr.bf16.mxu0 %v274
    %378 = vmatpush1.bf16.msra.mxu0 %v273
    %379 = vmatprep.subr.bf16.mxu0 0
    %380 = vmatpush1.bf16.msra.mxu0 0
    %381 = vmatprep.subr.bf16.mxu0 0
    %382 = vmatpush1.bf16.msra.mxu0 0
    %383 = vmatprep.subr.bf16.mxu0 0
    %384 = vmatpush1.bf16.msra.mxu0 0
    %385 = vmatprep.subr.bf16.mxu0 0
    %386 = vmatpush1.bf16.msra.mxu0 0
    %387 = vmatprep.subr.bf16.mxu0 0
    %388 = vmatpush1.bf16.msra.mxu0 0
    %389 = vmatprep.subr.bf16.mxu0 0
    %390 = vmatpush1.bf16.msra.mxu0 0
    %391 = vmatprep.subr.bf16.mxu0 0
    %392 = vmatpush1.bf16.msra.mxu0 0
    %393 = vmatprep.subr.bf16.mxu0 0
    %394 = vmatpush1.bf16.msra.mxu0 0
    %395 = vmatprep.subr.bf16.mxu0 0
    %396 = vmatpush1.bf16.msra.mxu0 0
    %397 = vmatprep.subr.bf16.mxu0 0
    %398 = vmatpush1.bf16.msra.mxu0 0
    %399 = vmatprep.subr.bf16.mxu0 0
    %400 = vmatpush1.bf16.msra.mxu0 0
    %401 = vmatprep.subr.bf16.mxu0 0
    %402 = vmatpush1.bf16.msra.mxu0 0
    %403 = vmatprep.subr.bf16.mxu0 0
    %404 = vmatpush1.bf16.msra.mxu0 0
    %405 = vmatprep.subr.bf16.mxu0 0
    %406 = vmatpush1.bf16.msra.mxu0 0
    %407 = vmatprep.mubr.bf16.mxu0 0
    %408 = vmatmul.mubr.bf16.gmra.mrb[0].mxu0 %v291
    %v409 = vpop.f32.mrb[0].mxu0
    %v410 = vadd.f32 %v190, %v409
    %v411 = vpop.f32.mrb[0].mxu0
    %v412 = vadd.f32 %v194, %v411
    %v413 = vpop.f32.mrb[0].mxu0
    %v414 = vadd.f32 %v190, %v413
    %v415 = vpop.f32.mrb[0].mxu0
    %v416 = vadd.f32 %v194, %v415
    %417 = vmatprep.mubr.bf16.mxu0 0
    %418 = vmatmul.mubr.bf16.gmra.mrb[0].mxu0 %v294
    %v419 = vpop.f32.mrb[0].mxu0
    %v420 = vadd.f32 %v190, %v419
    %v421 = vpop.f32.mrb[0].mxu0
    %v422 = vadd.f32 %v194, %v421
    %v423 = vpop.f32.mrb[0].mxu0
    %v424 = vadd.f32 %v190, %v423
    %v425 = vpop.f32.mrb[0].mxu0
    %v426 = vadd.f32 %v194, %v425
    %427 = vmatprep.mubr.bf16.mxu0 0
    %428 = vmatmul.mubr.bf16.gmra.mrb[0].mxu0 %v297
    %v429 = vpop.f32.mrb[0].mxu0
    %v430 = vadd.f32 %v190, %v429
    %v431 = vpop.f32.mrb[0].mxu0
    %v432 = vadd.f32 %v194, %v431
    %v433 = vpop.f32.mrb[0].mxu0
    %v434 = vadd.f32 %v190, %v433
    %v435 = vpop.f32.mrb[0].mxu0
    %v436 = vadd.f32 %v194, %v435
    %437 = vmatprep.mubr.bf16.mxu0 0
    %438 = vmatmul.mubr.bf16.gmra.mrb[0].mxu0 %v300
    %v439 = vpop.f32.mrb[0].mxu0
    %v440 = vadd.f32 %v190, %v439
    %v441 = vpop.f32.mrb[0].mxu0
    %v442 = vadd.f32 %v194, %v441
    %v443 = vpop.f32.mrb[0].mxu0
    %v444 = vadd.f32 %v190, %v443
    %v445 = vpop.f32.mrb[0].mxu0
    %v446 = vadd.f32 %v194, %v445
    %447 = vdwg.mxu0
    %448 = vmatprep.subr.bf16.mxu0 %v270
    %449 = vmatpush1.bf16.msra.mxu0 %v269
    %450 = vmatprep.subr.bf16.mxu0 %v276
    %451 = vmatpush1.bf16.msra.mxu0 %v275
    %452 = vmatprep.subr.bf16.mxu0 0
    %453 = vmatpush1.bf16.msra.mxu0 0
    %454 = vmatprep.subr.bf16.mxu0 0
    %455 = vmatpush1.bf16.msra.mxu0 0
    %456 = vmatprep.subr.bf16.mxu0 0
    %457 = vmatpush1.bf16.msra.mxu0 0
    %458 = vmatprep.subr.bf16.mxu0 0
    %459 = vmatpush1.bf16.msra.mxu0 0
    %460 = vmatprep.subr.bf16.mxu0 0
    %461 = vmatpush1.bf16.msra.mxu0 0
    %462 = vmatprep.subr.bf16.mxu0 0
    %463 = vmatpush1.bf16.msra.mxu0 0
    %464 = vmatprep.subr.bf16.mxu0 0
    %465 = vmatpush1.bf16.msra.mxu0 0
    %466 = vmatprep.subr.bf16.mxu0 0
    %467 = vmatpush1.bf16.msra.mxu0 0
    %468 = vmatprep.subr.bf16.mxu0 0
    %469 = vmatpush1.bf16.msra.mxu0 0
    %470 = vmatprep.subr.bf16.mxu0 0
    %471 = vmatpush1.bf16.msra.mxu0 0
    %472 = vmatprep.subr.bf16.mxu0 0
    %473 = vmatpush1.bf16.msra.mxu0 0
    %474 = vmatprep.subr.bf16.mxu0 0
    %475 = vmatpush1.bf16.msra.mxu0 0
    %476 = vmatprep.subr.bf16.mxu0 0
    %477 = vmatpush1.bf16.msra.mxu0 0
    %478 = vmatprep.subr.bf16.mxu0 0
    %479 = vmatpush1.bf16.msra.mxu0 0
    %480 = vmatprep.mubr.bf16.mxu0 0
    %481 = vmatmul.mubr.bf16.gmra.mrb[0].mxu0 %v291
    %v482 = vpop.f32.mrb[0].mxu0
    %v483 = vadd.f32 %v198, %v482
    %v484 = vpop.f32.mrb[0].mxu0
    %v485 = vadd.f32 %v202, %v484
    %v486 = vpop.f32.mrb[0].mxu0
    %v487 = vadd.f32 %v198, %v486
    %v488 = vpop.f32.mrb[0].mxu0
    %v489 = vadd.f32 %v202, %v488
    %490 = vmatprep.mubr.bf16.mxu0 0
    %491 = vmatmul.mubr.bf16.gmra.mrb[0].mxu0 %v294
    %v492 = vpop.f32.mrb[0].mxu0
    %v493 = vadd.f32 %v198, %v492
    %v494 = vpop.f32.mrb[0].mxu0
    %v495 = vadd.f32 %v202, %v494
    %v496 = vpop.f32.mrb[0].mxu0
    %v497 = vadd.f32 %v198, %v496
    %v498 = vpop.f32.mrb[0].mxu0
    %v499 = vadd.f32 %v202, %v498
    %500 = vmatprep.mubr.bf16.mxu0 0
    %501 = vmatmul.mubr.bf16.gmra.mrb[0].mxu0 %v297
    %v502 = vpop.f32.mrb[0].mxu0
    %v503 = vadd.f32 %v198, %v502
    %v504 = vpop.f32.mrb[0].mxu0
    %v505 = vadd.f32 %v202, %v504
    %v506 = vpop.f32.mrb[0].mxu0
    %v507 = vadd.f32 %v198, %v506
    %v508 = vpop.f32.mrb[0].mxu0
    %v509 = vadd.f32 %v202, %v508
    %510 = vmatprep.mubr.bf16.mxu0 0
    %511 = vmatmul.mubr.bf16.gmra.mrb[0].mxu0 %v300
    %v512 = vpop.f32.mrb[0].mxu0
    %v513 = vadd.f32 %v198, %v512
    %v514 = vpop.f32.mrb[0].mxu0
    %v515 = vadd.f32 %v202, %v514
    %v516 = vpop.f32.mrb[0].mxu0
    %v517 = vadd.f32 %v198, %v516
    %v518 = vpop.f32.mrb[0].mxu0
    %v519 = vadd.f32 %v202, %v518
    %520 = vdwg.mxu0
    %521 = vst [vmem:[#allocation2] sm:$0xff] %v337
    %522 = vst [vmem:[#allocation2 + $0x8] sm:$0xff] %v339
    %523 = vst [vmem:[#allocation2 + $0x10] sm:$0xff] %v410
    %524 = vst [vmem:[#allocation2 + $0x18] sm:$0xff] %v412
    %525 = vst [vmem:[#allocation2 + $0x20] sm:$0xff] %v483
    %526 = vst [vmem:[#allocation2 + $0x28] sm:$0xff] %v485
    %527 = vst [vmem:[#allocation2 + $0x30] sm:$0xff] %v341
    %528 = vst [vmem:[#allocation2 + $0x38] sm:$0xff] %v343
    %529 = vst [vmem:[#allocation2 + $0x40] sm:$0xff] %v414
    %530 = vst [vmem:[#allocation2 + $0x48] sm:$0xff] %v416
    %531 = vst [vmem:[#allocation2 + $0x50] sm:$0xff] %v487
    %532 = vst [vmem:[#allocation2 + $0x58] sm:$0xff] %v489
    %533 = vst [vmem:[#allocation2 + $0x60] sm:$0xff] %v347
    %534 = vst [vmem:[#allocation2 + $0x68] sm:$0xff] %v349
    %535 = vst [vmem:[#allocation2 + $0x70] sm:$0xff] %v420
    %536 = vst [vmem:[#allocation2 + $0x78] sm:$0xff] %v422
    %537 = vst [vmem:[#allocation2 + $0x80] sm:$0xff] %v493
    %538 = vst [vmem:[#allocation2 + $0x88] sm:$0xff] %v495
    %539 = vst [vmem:[#allocation2 + $0x90] sm:$0xff] %v351
    %540 = vst [vmem:[#allocation2 + $0x98] sm:$0xff] %v353
    %541 = vst [vmem:[#allocation2 + $0xa0] sm:$0xff] %v424
    %542 = vst [vmem:[#allocation2 + $0xa8] sm:$0xff] %v426
    %543 = vst [vmem:[#allocation2 + $0xb0] sm:$0xff] %v497
    %544 = vst [vmem:[#allocation2 + $0xb8] sm:$0xff] %v499
    %545 = vst [vmem:[#allocation2 + $0xc0] sm:$0xff] %v357
    %546 = vst [vmem:[#allocation2 + $0xc8] sm:$0xff] %v359
    %547 = vst [vmem:[#allocation2 + $0xd0] sm:$0xff] %v430
    %548 = vst [vmem:[#allocation2 + $0xd8] sm:$0xff] %v432
    %549 = vst [vmem:[#allocation2 + $0xe0] sm:$0xff] %v503
    %550 = vst [vmem:[#allocation2 + $0xe8] sm:$0xff] %v505
    %551 = vst [vmem:[#allocation2 + $0xf0] sm:$0xff] %v361
    %552 = vst [vmem:[#allocation2 + $0xf8] sm:$0xff] %v363
    %553 = vst [vmem:[#allocation2 + $0x100] sm:$0xff] %v434
    %554 = vst [vmem:[#allocation2 + $0x108] sm:$0xff] %v436
    %555 = vst [vmem:[#allocation2 + $0x110] sm:$0xff] %v507
    %556 = vst [vmem:[#allocation2 + $0x118] sm:$0xff] %v509
    %557 = vst [vmem:[#allocation2 + $0x120] sm:$0xff] %v367
    %558 = vst [vmem:[#allocation2 + $0x128] sm:$0xff] %v369
    %559 = vst [vmem:[#allocation2 + $0x130] sm:$0xff] %v440
    %560 = vst [vmem:[#allocation2 + $0x138] sm:$0xff] %v442
    %561 = vst [vmem:[#allocation2 + $0x140] sm:$0xff] %v513
    %562 = vst [vmem:[#allocation2 + $0x148] sm:$0xff] %v515
    %563 = vst [vmem:[#allocation2 + $0x150] sm:$0xff] %v371
    %564 = vst [vmem:[#allocation2 + $0x158] sm:$0xff] %v373
    %565 = vst [vmem:[#allocation2 + $0x160] sm:$0xff] %v444
    %566 = vst [vmem:[#allocation2 + $0x168] sm:$0xff] %v446
    %567 = vst [vmem:[#allocation2 + $0x170] sm:$0xff] %v517
    %568 = vst [vmem:[#allocation2 + $0x178] sm:$0xff] %v519
    %v569 = vld [vmem:[#allocation9] sm:$0x1]
    %v571 = vlaneseq
    %v572 = vshrl.u32 %v571, 7
    %v573 = vsub.s32 0, %v572
    %v574 = vrot.slane %v569, %v573
    %v576 = vld [vmem:[#allocation11] sm:$0x1]
    %v578 = vlaneseq
    %v579 = vshrl.u32 %v578, 7
    %v580 = vsub.s32 0, %v579
    %v581 = vrot.slane %v576, %v580
    %s583 = smul.u32 0, 6
    %s584 = smul.addr %s583, 8
    %s585 = scalar_lea.vmem [#allocation2], %s584
    %v586 = vld [vmem:[%s585] sm:$0xff]
    %v587 = vld [vmem:[%s585 + $0x8] sm:$0xff]
    %v588 = vld [vmem:[%s585 + $0x10] sm:$0xff]
    %v589 = vld [vmem:[#allocation8] sm:$0xff]
    %v590 = vld [vmem:[#allocation8 + $0x8] sm:$0xf]
    %v591 = vld [vmem:[#allocation8 + $0xc] sm:$0xff]
    %v592 = vld [vmem:[#allocation8 + $0x14] sm:$0xf]
    %v593 = vld [vmem:[#allocation8 + $0x18] sm:$0xff]
    %v594 = vld [vmem:[#allocation8 + $0x20] sm:$0xf]
    %v595 = vld [vmem:[#allocation8 + $0x24] sm:$0xff]
    %v596 = vld [vmem:[#allocation8 + $0x2c] sm:$0xf]
    %v597 = vld [vmem:[#allocation8 + $0x30] sm:$0xff]
    %v598 = vld [vmem:[#allocation8 + $0x38] sm:$0xf]
    %v599 = vld [vmem:[#allocation8 + $0x3c] sm:$0xff]
    %v600 = vld [vmem:[#allocation8 + $0x44] sm:$0xf]
    %v601 = vld [vmem:[#allocation8 + $0x48] sm:$0xff]
    %v602 = vld [vmem:[#allocation8 + $0x50] sm:$0xf]
    %v603 = vld [vmem:[#allocation8 + $0x54] sm:$0xff]
    %v604 = vld [vmem:[#allocation8 + $0x5c] sm:$0xf]
    %v605 = vld [vmem:[#allocation8 + $0x60] sm:$0xff]
    %v606 = vld [vmem:[#allocation8 + $0x68] sm:$0xf]
    %v607 = vld [vmem:[#allocation8 + $0x6c] sm:$0xff]
    %v608 = vld [vmem:[#allocation8 + $0x74] sm:$0xf]
    %v609 = vld [vmem:[#allocation8 + $0x78] sm:$0xff]
    %v610 = vld [vmem:[#allocation8 + $0x80] sm:$0xf]
    %v611 = vld [vmem:[#allocation8 + $0x84] sm:$0xff]
    %v612 = vld [vmem:[#allocation8 + $0x8c] sm:$0xf]
    %v613 = vld [vmem:[#allocation8 + $0x90] sm:$0xff]
    %v614 = vld [vmem:[#allocation8 + $0x98] sm:$0xf]
    %v615 = vld [vmem:[#allocation8 + $0x9c] sm:$0xff]
    %v616 = vld [vmem:[#allocation8 + $0xa4] sm:$0xf]
    %v617 = vld [vmem:[#allocation8 + $0xa8] sm:$0xff]
    %v618 = vld [vmem:[#allocation8 + $0xb0] sm:$0xf]
    %v619 = vld [vmem:[#allocation8 + $0xb4] sm:$0xff]
    %v620 = vld [vmem:[#allocation8 + $0xbc] sm:$0xf]
    %v653 = vunpack.c.l.b16 %v589
    %v654 = vunpack.c.h.b16 %v589
    %v655 = vunpack.c.l.b16 %v590
    %v656 = vunpack.c.l.b16 %v591
    %v657 = vunpack.c.h.b16 %v591
    %v658 = vunpack.c.l.b16 %v592
    %v659 = vunpack.c.l.b16 %v593
    %v660 = vunpack.c.h.b16 %v593
    %v661 = vunpack.c.l.b16 %v594
    %v662 = vunpack.c.l.b16 %v595
    %v663 = vunpack.c.h.b16 %v595
    %v664 = vunpack.c.l.b16 %v596
    %v665 = vunpack.c.l.b16 %v597
    %v666 = vunpack.c.h.b16 %v597
    %v667 = vunpack.c.l.b16 %v598
    %v668 = vunpack.c.l.b16 %v599
    %v669 = vunpack.c.h.b16 %v599
    %v670 = vunpack.c.l.b16 %v600
    %v671 = vunpack.c.l.b16 %v601
    %v672 = vunpack.c.h.b16 %v601
    %v673 = vunpack.c.l.b16 %v602
    %v674 = vunpack.c.l.b16 %v603
    %v675 = vunpack.c.h.b16 %v603
    %v676 = vunpack.c.l.b16 %v604
    %v677 = vunpack.c.l.b16 %v605
    %v678 = vunpack.c.h.b16 %v605
    %v679 = vunpack.c.l.b16 %v606
    %v680 = vunpack.c.l.b16 %v607
    %v681 = vunpack.c.h.b16 %v607
    %v682 = vunpack.c.l.b16 %v608
    %v683 = vunpack.c.l.b16 %v609
    %v684 = vunpack.c.h.b16 %v609
    %v685 = vunpack.c.l.b16 %v610
    %v686 = vunpack.c.l.b16 %v611
    %v687 = vunpack.c.h.b16 %v611
    %v688 = vunpack.c.l.b16 %v612
    %v689 = vunpack.c.l.b16 %v613
    %v690 = vunpack.c.h.b16 %v613
    %v691 = vunpack.c.l.b16 %v614
    %v692 = vunpack.c.l.b16 %v615
    %v693 = vunpack.c.h.b16 %v615
    %v694 = vunpack.c.l.b16 %v616
    %v695 = vunpack.c.l.b16 %v617
    %v696 = vunpack.c.h.b16 %v617
    %v697 = vunpack.c.l.b16 %v618
    %v698 = vunpack.c.l.b16 %v619
    %v699 = vunpack.c.h.b16 %v619
    %v700 = vunpack.c.l.b16 %v620
    %v701 = vpack.c.b16 %v656, %v653
    %v702 = vpack.c.b16 %v657, %v654
    %v703 = vpack.c.b16 %v658, %v655
    %v704 = vpack.c.b16 %v662, %v659
    %v705 = vpack.c.b16 %v663, %v660
    %v706 = vpack.c.b16 %v664, %v661
    %v707 = vpack.c.b16 %v668, %v665
    %v708 = vpack.c.b16 %v669, %v666
    %v709 = vpack.c.b16 %v670, %v667
    %v710 = vpack.c.b16 %v674, %v671
    %v711 = vpack.c.b16 %v675, %v672
    %v712 = vpack.c.b16 %v676, %v673
    %v713 = vpack.c.b16 %v680, %v677
    %v714 = vpack.c.b16 %v681, %v678
    %v715 = vpack.c.b16 %v682, %v679
    %v716 = vpack.c.b16 %v686, %v683
    %v717 = vpack.c.b16 %v687, %v684
    %v718 = vpack.c.b16 %v688, %v685
    %v719 = vpack.c.b16 %v692, %v689
    %v720 = vpack.c.b16 %v693, %v690
    %v721 = vpack.c.b16 %v694, %v691
    %v722 = vpack.c.b16 %v698, %v695
    %v723 = vpack.c.b16 %v699, %v696
    %v724 = vpack.c.b16 %v700, %v697
    %749 = vmatprep.subr.bf16.mxu0 %v702
    %750 = vmatpush1.bf16.msra.mxu0 %v701
    %751 = vmatprep.subr.bf16.mxu0 %v705
    %752 = vmatpush1.bf16.msra.mxu0 %v704
    %753 = vmatprep.subr.bf16.mxu0 %v708
    %754 = vmatpush1.bf16.msra.mxu0 %v707
    %755 = vmatprep.subr.bf16.mxu0 %v711
    %756 = vmatpush1.bf16.msra.mxu0 %v710
    %757 = vmatprep.subr.bf16.mxu0 %v714
    %758 = vmatpush1.bf16.msra.mxu0 %v713
    %759 = vmatprep.subr.bf16.mxu0 %v717
    %760 = vmatpush1.bf16.msra.mxu0 %v716
    %761 = vmatprep.subr.bf16.mxu0 %v720
    %762 = vmatpush1.bf16.msra.mxu0 %v719
    %763 = vmatprep.subr.bf16.mxu0 %v723
    %764 = vmatpush1.bf16.msra.mxu0 %v722
    %765 = vmatprep.subr.bf16.mxu0 0
    %766 = vmatpush1.bf16.msra.mxu0 0
    %767 = vmatprep.subr.bf16.mxu0 0
    %768 = vmatpush1.bf16.msra.mxu0 0
    %769 = vmatprep.subr.bf16.mxu0 0
    %770 = vmatpush1.bf16.msra.mxu0 0
    %771 = vmatprep.subr.bf16.mxu0 0
    %772 = vmatpush1.bf16.msra.mxu0 0
    %773 = vmatprep.subr.bf16.mxu0 0
    %774 = vmatpush1.bf16.msra.mxu0 0
    %775 = vmatprep.subr.bf16.mxu0 0
    %776 = vmatpush1.bf16.msra.mxu0 0
    %777 = vmatprep.subr.bf16.mxu0 0
    %778 = vmatpush1.bf16.msra.mxu0 0
    %779 = vmatprep.subr.bf16.mxu0 0
    %780 = vmatpush1.bf16.msra.mxu0 0
    %781 = vmatprep.mubr.bf16.mxu0 0
    %782 = vmatmul.mubr.bf16.gmra.mrb[0].mxu0 0
    %v783 = vpop.f32.mrb[0].mxu0
    %v784 = vadd.f32 0.0, %v783
    %v785 = vpop.f32.mrb[0].mxu0
    %v786 = vadd.f32 0.0, %v785
    %v787 = vpop.f32.mrb[0].mxu0
    %v788 = vpop.f32.mrb[0].mxu0
    %789 = vdwg.mxu0
    %790 = vmatprep.subr.bf16.mxu0 0
    %791 = vmatpush1.bf16.msra.mxu0 %v703
    %792 = vmatprep.subr.bf16.mxu0 0
    %793 = vmatpush1.bf16.msra.mxu0 %v706
    %794 = vmatprep.subr.bf16.mxu0 0
    %795 = vmatpush1.bf16.msra.mxu0 %v709
    %796 = vmatprep.subr.bf16.mxu0 0
    %797 = vmatpush1.bf16.msra.mxu0 %v712
    %798 = vmatprep.subr.bf16.mxu0 0
    %799 = vmatpush1.bf16.msra.mxu0 %v715
    %800 = vmatprep.subr.bf16.mxu0 0
    %801 = vmatpush1.bf16.msra.mxu0 %v718
    %802 = vmatprep.subr.bf16.mxu0 0
    %803 = vmatpush1.bf16.msra.mxu0 %v721
    %804 = vmatprep.subr.bf16.mxu0 0
    %805 = vmatpush1.bf16.msra.mxu0 %v724
    %806 = vmatprep.subr.bf16.mxu0 0
    %807 = vmatpush1.bf16.msra.mxu0 0
    %808 = vmatprep.subr.bf16.mxu0 0
    %809 = vmatpush1.bf16.msra.mxu0 0
    %810 = vmatprep.subr.bf16.mxu0 0
    %811 = vmatpush1.bf16.msra.mxu0 0
    %812 = vmatprep.subr.bf16.mxu0 0
    %813 = vmatpush1.bf16.msra.mxu0 0
    %814 = vmatprep.subr.bf16.mxu0 0
    %815 = vmatpush1.bf16.msra.mxu0 0
    %816 = vmatprep.subr.bf16.mxu0 0
    %817 = vmatpush1.bf16.msra.mxu0 0
    %818 = vmatprep.subr.bf16.mxu0 0
    %819 = vmatpush1.bf16.msra.mxu0 0
    %820 = vmatprep.subr.bf16.mxu0 0
    %821 = vmatpush1.bf16.msra.mxu0 0
    %822 = vmatprep.mubr.bf16.mxu0 0
    %823 = vmatmul.mubr.bf16.gmra.mrb[0].mxu0 0
    %v824 = vpop.f32.mrb[0].mxu0
    %v825 = vadd.f32 0.0, %v824
    %v826 = vpop.f32.mrb[0].mxu0
    %v827 = vpop.f32.mrb[0].mxu0
    %v828 = vpop.f32.mrb[0].mxu0
    %829 = vdwg.mxu0
    %v830 = vadd.f32 %v586, %v784
    %v831 = vxor.u32 %v830, 2147483648
    %v832 = vmul.f32 %v831, 1.442695
    %v833 = vpow.pop %v832
    %v834 = vadd.f32 %v833, 1.0
    %v835 = vrcp.pop %v834
    %v836 = vmul.f32 1.0, %v835
    %v837 = vadd.f32 %v587, %v786
    %v838 = vxor.u32 %v837, 2147483648
    %v839 = vmul.f32 %v838, 1.442695
    %v840 = vpow.pop %v839
    %v841 = vadd.f32 %v840, 1.0
    %v842 = vrcp.pop %v841
    %v843 = vmul.f32 1.0, %v842
    %v844 = vadd.f32 %v825, %v574
    %v845 = vmul.f32 %v836, %v844
    %v846 = vadd.f32 %v588, %v845
    %v847 = vtanh.pop %v846
    %v848 = vsub.f32 1.0, %v843
    %v849 = vmul.f32 %v848, %v847
    %v850 = vmul.f32 %v843, 0.0
    %v851 = vadd.f32 %v849, %v850
    %s852 = smul.u32 0, 2
    %s853 = smul.addr %s852, 8
    %s854 = scalar_lea.vmem [#allocation3], %s853
    %855 = vst [vmem:[%s854] sm:$0xff] %v851
    %s856 = smul.u32 7, 6
    %s857 = smul.addr %s856, 8
    %s858 = scalar_lea.vmem [#allocation2], %s857
    %v859 = vld [vmem:[%s858 + $0x18] sm:$0xff]
    %v860 = vld [vmem:[%s858 + $0x20] sm:$0xff]
    %v861 = vld [vmem:[%s858 + $0x28] sm:$0xff]
    %v862 = vld [vmem:[%s4] sm:$0xff]
    %v863 = vld [vmem:[%s4 + $0x8] sm:$0xf]
    %v864 = vld [vmem:[%s4 + $0xc] sm:$0xff]
    %v865 = vld [vmem:[%s4 + $0x14] sm:$0xf]
    %v866 = vld [vmem:[%s4 + $0x18] sm:$0xff]
    %v867 = vld [vmem:[%s4 + $0x20] sm:$0xf]
    %v868 = vld [vmem:[%s4 + $0x24] sm:$0xff]
    %v869 = vld [vmem:[%s4 + $0x2c] sm:$0xf]
    %v870 = vld [vmem:[%s4 + $0x30] sm:$0xff]
    %v871 = vld [vmem:[%s4 + $0x38] sm:$0xf]
    %v872 = vld [vmem:[%s4 + $0x3c] sm:$0xff]
    %v873 = vld [vmem:[%s4 + $0x44] sm:$0xf]
    %v874 = vld [vmem:[%s4 + $0x48] sm:$0xff]
    %v875 = vld [vmem:[%s4 + $0x50] sm:$0xf]
    %v876 = vld [vmem:[%s4 + $0x54] sm:$0xff]
    %v877 = vld [vmem:[%s4 + $0x5c] sm:$0xf]
    %v878 = vld [vmem:[%s4 + $0x60] sm:$0xff]
    %v879 = vld [vmem:[%s4 + $0x68] sm:$0xf]
    %v880 = vld [vmem:[%s4 + $0x6c] sm:$0xff]
    %v881 = vld [vmem:[%s4 + $0x74] sm:$0xf]
    %v882 = vld [vmem:[%s4 + $0x78] sm:$0xff]
    %v883 = vld [vmem:[%s4 + $0x80] sm:$0xf]
    %v884 = vld [vmem:[%s4 + $0x84] sm:$0xff]
    %v885 = vld [vmem:[%s4 + $0x8c] sm:$0xf]
    %v886 = vld [vmem:[%s4 + $0x90] sm:$0xff]
    %v887 = vld [vmem:[%s4 + $0x98] sm:$0xf]
    %v888 = vld [vmem:[%s4 + $0x9c] sm:$0xff]
    %v889 = vld [vmem:[%s4 + $0xa4] sm:$0xf]
    %v890 = vld [vmem:[%s4 + $0xa8] sm:$0xff]
    %v891 = vld [vmem:[%s4 + $0xb0] sm:$0xf]
    %v892 = vld [vmem:[%s4 + $0xb4] sm:$0xff]
    %v893 = vld [vmem:[%s4 + $0xbc] sm:$0xf]
    %v926 = vunpack.c.l.b16 %v862
    %v927 = vunpack.c.h.b16 %v862
    %v928 = vunpack.c.l.b16 %v863
    %v929 = vunpack.c.l.b16 %v864
    %v930 = vunpack.c.h.b16 %v864
    %v931 = vunpack.c.l.b16 %v865
    %v932 = vunpack.c.l.b16 %v866
    %v933 = vunpack.c.h.b16 %v866
    %v934 = vunpack.c.l.b16 %v867
    %v935 = vunpack.c.l.b16 %v868
    %v936 = vunpack.c.h.b16 %v868
    %v937 = vunpack.c.l.b16 %v869
    %v938 = vunpack.c.l.b16 %v870
    %v939 = vunpack.c.h.b16 %v870
    %v940 = vunpack.c.l.b16 %v871
    %v941 = vunpack.c.l.b16 %v872
    %v942 = vunpack.c.h.b16 %v872
    %v943 = vunpack.c.l.b16 %v873
    %v944 = vunpack.c.l.b16 %v874
    %v945 = vunpack.c.h.b16 %v874
    %v946 = vunpack.c.l.b16 %v875
    %v947 = vunpack.c.l.b16 %v876
    %v948 = vunpack.c.h.b16 %v876
    %v949 = vunpack.c.l.b16 %v877
    %v950 = vunpack.c.l.b16 %v878
    %v951 = vunpack.c.h.b16 %v878
    %v952 = vunpack.c.l.b16 %v879
    %v953 = vunpack.c.l.b16 %v880
    %v954 = vunpack.c.h.b16 %v880
    %v955 = vunpack.c.l.b16 %v881
    %v956 = vunpack.c.l.b16 %v882
    %v957 = vunpack.c.h.b16 %v882
    %v958 = vunpack.c.l.b16 %v883
    %v959 = vunpack.c.l.b16 %v884
    %v960 = vunpack.c.h.b16 %v884
    %v961 = vunpack.c.l.b16 %v885
    %v962 = vunpack.c.l.b16 %v886
    %v963 = vunpack.c.h.b16 %v886
    %v964 = vunpack.c.l.b16 %v887
    %v965 = vunpack.c.l.b16 %v888
    %v966 = vunpack.c.h.b16 %v888
    %v967 = vunpack.c.l.b16 %v889
    %v968 = vunpack.c.l.b16 %v890
    %v969 = vunpack.c.h.b16 %v890
    %v970 = vunpack.c.l.b16 %v891
    %v971 = vunpack.c.l.b16 %v892
    %v972 = vunpack.c.h.b16 %v892
    %v973 = vunpack.c.l.b16 %v893
    %v974 = vpack.c.b16 %v929, %v926
    %v975 = vpack.c.b16 %v930, %v927
    %v976 = vpack.c.b16 %v931, %v928
    %v977 = vpack.c.b16 %v935, %v932
    %v978 = vpack.c.b16 %v936, %v933
    %v979 = vpack.c.b16 %v937, %v934
    %v980 = vpack.c.b16 %v941, %v938
    %v981 = vpack.c.b16 %v942, %v939
    %v982 = vpack.c.b16 %v943, %v940
    %v983 = vpack.c.b16 %v947, %v944
    %v984 = vpack.c.b16 %v948, %v945
    %v985 = vpack.c.b16 %v949, %v946
    %v986 = vpack.c.b16 %v953, %v950
    %v987 = vpack.c.b16 %v954, %v951
    %v988 = vpack.c.b16 %v955, %v952
    %v989 = vpack.c.b16 %v959, %v956
    %v990 = vpack.c.b16 %v960, %v957
    %v991 = vpack.c.b16 %v961, %v958
    %v992 = vpack.c.b16 %v965, %v962
    %v993 = vpack.c.b16 %v966, %v963
    %v994 = vpack.c.b16 %v967, %v964
    %v995 = vpack.c.b16 %v971, %v968
    %v996 = vpack.c.b16 %v972, %v969
    %v997 = vpack.c.b16 %v973, %v970
    %1022 = vmatprep.subr.bf16.mxu0 %v975
    %1023 = vmatpush1.bf16.msra.mxu0 %v974
    %1024 = vmatprep.subr.bf16.mxu0 %v978
    %1025 = vmatpush1.bf16.msra.mxu0 %v977
    %1026 = vmatprep.subr.bf16.mxu0 %v981
    %1027 = vmatpush1.bf16.msra.mxu0 %v980
    %1028 = vmatprep.subr.bf16.mxu0 %v984
    %1029 = vmatpush1.bf16.msra.mxu0 %v983
    %1030 = vmatprep.subr.bf16.mxu0 %v987
    %1031 = vmatpush1.bf16.msra.mxu0 %v986
    %1032 = vmatprep.subr.bf16.mxu0 %v990
    %1033 = vmatpush1.bf16.msra.mxu0 %v989
    %1034 = vmatprep.subr.bf16.mxu0 %v993
    %1035 = vmatpush1.bf16.msra.mxu0 %v992
    %1036 = vmatprep.subr.bf16.mxu0 %v996
    %1037 = vmatpush1.bf16.msra.mxu0 %v995
    %1038 = vmatprep.subr.bf16.mxu0 0
    %1039 = vmatpush1.bf16.msra.mxu0 0
    %1040 = vmatprep.subr.bf16.mxu0 0
    %1041 = vmatpush1.bf16.msra.mxu0 0
    %1042 = vmatprep.subr.bf16.mxu0 0
    %1043 = vmatpush1.bf16.msra.mxu0 0
    %1044 = vmatprep.subr.bf16.mxu0 0
    %1045 = vmatpush1.bf16.msra.mxu0 0
    %1046 = vmatprep.subr.bf16.mxu0 0
    %1047 = vmatpush1.bf16.msra.mxu0 0
    %1048 = vmatprep.subr.bf16.mxu0 0
    %1049 = vmatpush1.bf16.msra.mxu0 0
    %1050 = vmatprep.subr.bf16.mxu0 0
    %1051 = vmatpush1.bf16.msra.mxu0 0
    %1052 = vmatprep.subr.bf16.mxu0 0
    %1053 = vmatpush1.bf16.msra.mxu0 0
    %1054 = vmatprep.mubr.bf16.mxu0 0
    %1055 = vmatmul.mubr.bf16.gmra.mrb[0].mxu0 0
    %v1056 = vpop.f32.mrb[0].mxu0
    %v1057 = vadd.f32 0.0, %v1056
    %v1058 = vpop.f32.mrb[0].mxu0
    %v1059 = vadd.f32 0.0, %v1058
    %v1060 = vpop.f32.mrb[0].mxu0
    %v1061 = vpop.f32.mrb[0].mxu0
    %1062 = vdwg.mxu0
    %1063 = vmatprep.subr.bf16.mxu0 0
    %1064 = vmatpush1.bf16.msra.mxu0 %v976
    %1065 = vmatprep.subr.bf16.mxu0 0
    %1066 = vmatpush1.bf16.msra.mxu0 %v979
    %1067 = vmatprep.subr.bf16.mxu0 0
    %1068 = vmatpush1.bf16.msra.mxu0 %v982
    %1069 = vmatprep.subr.bf16.mxu0 0
    %1070 = vmatpush1.bf16.msra.mxu0 %v985
    %1071 = vmatprep.subr.bf16.mxu0 0
    %1072 = vmatpush1.bf16.msra.mxu0 %v988
    %1073 = vmatprep.subr.bf16.mxu0 0
    %1074 = vmatpush1.bf16.msra.mxu0 %v991
    %1075 = vmatprep.subr.bf16.mxu0 0
    %1076 = vmatpush1.bf16.msra.mxu0 %v994
    %1077 = vmatprep.subr.bf16.mxu0 0
    %1078 = vmatpush1.bf16.msra.mxu0 %v997
    %1079 = vmatprep.subr.bf16.mxu0 0
    %1080 = vmatpush1.bf16.msra.mxu0 0
    %1081 = vmatprep.subr.bf16.mxu0 0
    %1082 = vmatpush1.bf16.msra.mxu0 0
    %1083 = vmatprep.subr.bf16.mxu0 0
    %1084 = vmatpush1.bf16.msra.mxu0 0
    %1085 = vmatprep.subr.bf16.mxu0 0
    %1086 = vmatpush1.bf16.msra.mxu0 0
    %1087 = vmatprep.subr.bf16.mxu0 0
    %1088 = vmatpush1.bf16.msra.mxu0 0
    %1089 = vmatprep.subr.bf16.mxu0 0
    %1090 = vmatpush1.bf16.msra.mxu0 0
    %1091 = vmatprep.subr.bf16.mxu0 0
    %1092 = vmatpush1.bf16.msra.mxu0 0
    %1093 = vmatprep.subr.bf16.mxu0 0
    %1094 = vmatpush1.bf16.msra.mxu0 0
    %1095 = vmatprep.mubr.bf16.mxu0 0
    %1096 = vmatmul.mubr.bf16.gmra.mrb[0].mxu0 0
    %v1097 = vpop.f32.mrb[0].mxu0
    %v1098 = vadd.f32 0.0, %v1097
    %v1099 = vpop.f32.mrb[0].mxu0
    %v1100 = vpop.f32.mrb[0].mxu0
    %v1101 = vpop.f32.mrb[0].mxu0
    %1102 = vdwg.mxu0
    %v1103 = vadd.f32 %v859, %v1057
    %v1104 = vxor.u32 %v1103, 2147483648
    %v1105 = vmul.f32 %v1104, 1.442695
    %v1106 = vpow.pop %v1105
    %v1107 = vadd.f32 %v1106, 1.0
    %v1108 = vrcp.pop %v1107
    %v1109 = vmul.f32 1.0, %v1108
    %v1110 = vadd.f32 %v860, %v1059
    %v1111 = vxor.u32 %v1110, 2147483648
    %v1112 = vmul.f32 %v1111, 1.442695
    %v1113 = vpow.pop %v1112
    %v1114 = vadd.f32 %v1113, 1.0
    %v1115 = vrcp.pop %v1114
    %v1116 = vmul.f32 1.0, %v1115
    %v1117 = vadd.f32 %v1098, %v581
    %v1118 = vmul.f32 %v1109, %v1117
    %v1119 = vadd.f32 %v861, %v1118
    %v1120 = vtanh.pop %v1119
    %v1121 = vsub.f32 1.0, %v1116
    %v1122 = vmul.f32 %v1121, %v1120
    %v1123 = vmul.f32 %v1116, 0.0
    %v1124 = vadd.f32 %v1122, %v1123
    %s1125 = smul.u32 7, 2
    %s1126 = smul.addr %s1125, 8
    %s1127 = scalar_lea.vmem [#allocation3], %s1126
    %1128 = vst [vmem:[%s1127 + $0x8] sm:$0xff] %v1124
    %s1129 = smul.u32 1, 6
    %s1130 = smul.addr %s1129, 8
    %s1131 = scalar_lea.vmem [#allocation2], %s1130
    %v1132 = vld [vmem:[%s1131] sm:$0xff]
    %v1133 = vld [vmem:[%s1131 + $0x8] sm:$0xff]
    %v1134 = vld [vmem:[%s1131 + $0x10] sm:$0xff]
    %v1135 = vpack.c.bf16 %v851, %v851
    %v1136 = vld [vmem:[#allocation8] sm:$0xff]
    %v1137 = vld [vmem:[#allocation8 + $0x8] sm:$0xf]
    %v1138 = vld [vmem:[#allocation8 + $0xc] sm:$0xff]
    %v1139 = vld [vmem:[#allocation8 + $0x14] sm:$0xf]
    %v1140 = vld [vmem:[#allocation8 + $0x18] sm:$0xff]
    %v1141 = vld [vmem:[#allocation8 + $0x20] sm:$0xf]
    %v1142 = vld [vmem:[#allocation8 + $0x24] sm:$0xff]
    %v1143 = vld [vmem:[#allocation8 + $0x2c] sm:$0xf]
    %v1144 = vld [vmem:[#allocation8 + $0x30] sm:$0xff]
    %v1145 = vld [vmem:[#allocation8 + $0x38] sm:$0xf]
    %v1146 = vld [vmem:[#allocation8 + $0x3c] sm:$0xff]
    %v1147 = vld [vmem:[#allocation8 + $0x44] sm:$0xf]
    %v1148 = vld [vmem:[#allocation8 + $0x48] sm:$0xff]
    %v1149 = vld [vmem:[#allocation8 + $0x50] sm:$0xf]
    %v1150 = vld [vmem:[#allocation8 + $0x54] sm:$0xff]
    %v1151 = vld [vmem:[#allocation8 + $0x5c] sm:$0xf]
    %v1152 = vld [vmem:[#allocation8 + $0x60] sm:$0xff]
    %v1153 = vld [vmem:[#allocation8 + $0x68] sm:$0xf]
    %v1154 = vld [vmem:[#allocation8 + $0x6c] sm:$0xff]
    %v1155 = vld [vmem:[#allocation8 + $0x74] sm:$0xf]
    %v1156 = vld [vmem:[#allocation8 + $0x78] sm:$0xff]
    %v1157 = vld [vmem:[#allocation8 + $0x80] sm:$0xf]
    %v1158 = vld [vmem:[#allocation8 + $0x84] sm:$0xff]
    %v1159 = vld [vmem:[#allocation8 + $0x8c] sm:$0xf]
    %v1160 = vld [vmem:[#allocation8 + $0x90] sm:$0xff]
    %v1161 = vld [vmem:[#allocation8 + $0x98] sm:$0xf]
    %v1162 = vld [vmem:[#allocation8 + $0x9c] sm:$0xff]
    %v1163 = vld [vmem:[#allocation8 + $0xa4] sm:$0xf]
    %v1164 = vld [vmem:[#allocation8 + $0xa8] sm:$0xff]
    %v1165 = vld [vmem:[#allocation8 + $0xb0] sm:$0xf]
    %v1166 = vld [vmem:[#allocation8 + $0xb4] sm:$0xff]
    %v1167 = vld [vmem:[#allocation8 + $0xbc] sm:$0xf]
    %v1200 = vunpack.c.l.b16 %v1136
    %v1201 = vunpack.c.h.b16 %v1136
    %v1202 = vunpack.c.l.b16 %v1137
    %v1203 = vunpack.c.l.b16 %v1138
    %v1204 = vunpack.c.h.b16 %v1138
    %v1205 = vunpack.c.l.b16 %v1139
    %v1206 = vunpack.c.l.b16 %v1140
    %v1207 = vunpack.c.h.b16 %v1140
    %v1208 = vunpack.c.l.b16 %v1141
    %v1209 = vunpack.c.l.b16 %v1142
    %v1210 = vunpack.c.h.b16 %v1142
    %v1211 = vunpack.c.l.b16 %v1143
    %v1212 = vunpack.c.l.b16 %v1144
    %v1213 = vunpack.c.h.b16 %v1144
    %v1214 = vunpack.c.l.b16 %v1145
    %v1215 = vunpack.c.l.b16 %v1146
    %v1216 = vunpack.c.h.b16 %v1146
    %v1217 = vunpack.c.l.b16 %v1147
    %v1218 = vunpack.c.l.b16 %v1148
    %v1219 = vunpack.c.h.b16 %v1148
    %v1220 = vunpack.c.l.b16 %v1149
    %v1221 = vunpack.c.l.b16 %v1150
    %v1222 = vunpack.c.h.b16 %v1150
    %v1223 = vunpack.c.l.b16 %v1151
    %v1224 = vunpack.c.l.b16 %v1152
    %v1225 = vunpack.c.h.b16 %v1152
    %v1226 = vunpack.c.l.b16 %v1153
    %v1227 = vunpack.c.l.b16 %v1154
    %v1228 = vunpack.c.h.b16 %v1154
    %v1229 = vunpack.c.l.b16 %v1155
    %v1230 = vunpack.c.l.b16 %v1156
    %v1231 = vunpack.c.h.b16 %v1156
    %v1232 = vunpack.c.l.b16 %v1157
    %v1233 = vunpack.c.l.b16 %v1158
    %v1234 = vunpack.c.h.b16 %v1158
    %v1235 = vunpack.c.l.b16 %v1159
    %v1236 = vunpack.c.l.b16 %v1160
    %v1237 = vunpack.c.h.b16 %v1160
    %v1238 = vunpack.c.l.b16 %v1161
    %v1239 = vunpack.c.l.b16 %v1162
    %v1240 = vunpack.c.h.b16 %v1162
    %v1241 = vunpack.c.l.b16 %v1163
    %v1242 = vunpack.c.l.b16 %v1164
    %v1243 = vunpack.c.h.b16 %v1164
    %v1244 = vunpack.c.l.b16 %v1165
    %v1245 = vunpack.c.l.b16 %v1166
    %v1246 = vunpack.c.h.b16 %v1166
    %v1247 = vunpack.c.l.b16 %v1167
    %v1248 = vpack.c.b16 %v1203, %v1200
    %v1249 = vpack.c.b16 %v1204, %v1201
    %v1250 = vpack.c.b16 %v1205, %v1202
    %v1251 = vpack.c.b16 %v1209, %v1206
    %v1252 = vpack.c.b16 %v1210, %v1207
    %v1253 = vpack.c.b16 %v1211, %v1208
    %v1254 = vpack.c.b16 %v1215, %v1212
    %v1255 = vpack.c.b16 %v1216, %v1213
    %v1256 = vpack.c.b16 %v1217, %v1214
    %v1257 = vpack.c.b16 %v1221, %v1218
    %v1258 = vpack.c.b16 %v1222, %v1219
    %v1259 = vpack.c.b16 %v1223, %v1220
    %v1260 = vpack.c.b16 %v1227, %v1224
    %v1261 = vpack.c.b16 %v1228, %v1225
    %v1262 = vpack.c.b16 %v1229, %v1226
    %v1263 = vpack.c.b16 %v1233, %v1230
    %v1264 = vpack.c.b16 %v1234, %v1231
    %v1265 = vpack.c.b16 %v1235, %v1232
    %v1266 = vpack.c.b16 %v1239, %v1236
    %v1267 = vpack.c.b16 %v1240, %v1237
    %v1268 = vpack.c.b16 %v1241, %v1238
    %v1269 = vpack.c.b16 %v1245, %v1242
    %v1270 = vpack.c.b16 %v1246, %v1243
    %v1271 = vpack.c.b16 %v1247, %v1244
    %1296 = vmatprep.subr.bf16.mxu0 %v1249
    %1297 = vmatpush1.bf16.msra.mxu0 %v1248
    %1298 = vmatprep.subr.bf16.mxu0 %v1252
    %1299 = vmatpush1.bf16.msra.mxu0 %v1251
    %1300 = vmatprep.subr.bf16.mxu0 %v1255
    %1301 = vmatpush1.bf16.msra.mxu0 %v1254
    %1302 = vmatprep.subr.bf16.mxu0 %v1258
    %1303 = vmatpush1.bf16.msra.mxu0 %v1257
    %1304 = vmatprep.subr.bf16.mxu0 %v1261
    %1305 = vmatpush1.bf16.msra.mxu0 %v1260
    %1306 = vmatprep.subr.bf16.mxu0 %v1264
    %1307 = vmatpush1.bf16.msra.mxu0 %v1263
    %1308 = vmatprep.subr.bf16.mxu0 %v1267
    %1309 = vmatpush1.bf16.msra.mxu0 %v1266
    %1310 = vmatprep.subr.bf16.mxu0 %v1270
    %1311 = vmatpush1.bf16.msra.mxu0 %v1269
    %1312 = vmatprep.subr.bf16.mxu0 0
    %1313 = vmatpush1.bf16.msra.mxu0 0
    %1314 = vmatprep.subr.bf16.mxu0 0
    %1315 = vmatpush1.bf16.msra.mxu0 0
    %1316 = vmatprep.subr.bf16.mxu0 0
    %1317 = vmatpush1.bf16.msra.mxu0 0
    %1318 = vmatprep.subr.bf16.mxu0 0
    %1319 = vmatpush1.bf16.msra.mxu0 0
    %1320 = vmatprep.subr.bf16.mxu0 0
    %1321 = vmatpush1.bf16.msra.mxu0 0
    %1322 = vmatprep.subr.bf16.mxu0 0
    %1323 = vmatpush1.bf16.msra.mxu0 0
    %1324 = vmatprep.subr.bf16.mxu0 0
    %1325 = vmatpush1.bf16.msra.mxu0 0
    %1326 = vmatprep.subr.bf16.mxu0 0
    %1327 = vmatpush1.bf16.msra.mxu0 0
    %1328 = vmatprep.mubr.bf16.mxu0 0
    %1329 = vmatmul.mubr.bf16.gmra.mrb[0].mxu0 %v1135
    %v1330 = vpop.f32.mrb[0].mxu0
    %v1331 = vadd.f32 0.0, %v1330
    %v1332 = vpop.f32.mrb[0].mxu0
    %v1333 = vadd.f32 0.0, %v1332
    %v1334 = vpop.f32.mrb[0].mxu0
    %v1335 = vpop.f32.mrb[0].mxu0
    %1336 = vdwg.mxu0
    %1337 = vmatprep.subr.bf16.mxu0 0
    %1338 = vmatpush1.bf16.msra.mxu0 %v1250
    %1339 = vmatprep.subr.bf16.mxu0 0
    %1340 = vmatpush1.bf16.msra.mxu0 %v1253
    %1341 = vmatprep.subr.bf16.mxu0 0
    %1342 = vmatpush1.bf16.msra.mxu0 %v1256
    %1343 = vmatprep.subr.bf16.mxu0 0
    %1344 = vmatpush1.bf16.msra.mxu0 %v1259
    %1345 = vmatprep.subr.bf16.mxu0 0
    %1346 = vmatpush1.bf16.msra.mxu0 %v1262
    %1347 = vmatprep.subr.bf16.mxu0 0
    %1348 = vmatpush1.bf16.msra.mxu0 %v1265
    %1349 = vmatprep.subr.bf16.mxu0 0
    %1350 = vmatpush1.bf16.msra.mxu0 %v1268
    %1351 = vmatprep.subr.bf16.mxu0 0
    %1352 = vmatpush1.bf16.msra.mxu0 %v1271
    %1353 = vmatprep.subr.bf16.mxu0 0
    %1354 = vmatpush1.bf16.msra.mxu0 0
    %1355 = vmatprep.subr.bf16.mxu0 0
    %1356 = vmatpush1.bf16.msra.mxu0 0
    %1357 = vmatprep.subr.bf16.mxu0 0
    %1358 = vmatpush1.bf16.msra.mxu0 0
    %1359 = vmatprep.subr.bf16.mxu0 0
    %1360 = vmatpush1.bf16.msra.mxu0 0
    %1361 = vmatprep.subr.bf16.mxu0 0
    %1362 = vmatpush1.bf16.msra.mxu0 0
    %1363 = vmatprep.subr.bf16.mxu0 0
    %1364 = vmatpush1.bf16.msra.mxu0 0
    %1365 = vmatprep.subr.bf16.mxu0 0
    %1366 = vmatpush1.bf16.msra.mxu0 0
    %1367 = vmatprep.subr.bf16.mxu0 0
    %1368 = vmatpush1.bf16.msra.mxu0 0
    %1369 = vmatprep.mubr.bf16.mxu0 0
    %1370 = vmatmul.mubr.bf16.gmra.mrb[0].mxu0 %v1135
    %v1371 = vpop.f32.mrb[0].mxu0
    %v1372 = vadd.f32 0.0, %v1371
    %v1373 = vpop.f32.mrb[0].mxu0
    %v1374 = vpop.f32.mrb[0].mxu0
    %v1375 = vpop.f32.mrb[0].mxu0
    %1376 = vdwg.mxu0
    %v1377 = vadd.f32 %v1132, %v1331
    %v1378 = vxor.u32 %v1377, 2147483648
    %v1379 = vmul.f32 %v1378, 1.442695
    %v1380 = vpow.pop %v1379
    %v1381 = vadd.f32 %v1380, 1.0
    %v1382 = vrcp.pop %v1381
    %v1383 = vmul.f32 1.0, %v1382
    %v1384 = vadd.f32 %v1133, %v1333
    %v1385 = vxor.u32 %v1384, 2147483648
    %v1386 = vmul.f32 %v1385, 1.442695
    %v1387 = vpow.pop %v1386
    %v1388 = vadd.f32 %v1387, 1.0
    %v1389 = vrcp.pop %v1388
    %v1390 = vmul.f32 1.0, %v1389
    %v1391 = vadd.f32 %v1372, %v574
    %v1392 = vmul.f32 %v1383, %v1391
    %v1393 = vadd.f32 %v1134, %v1392
    %v1394 = vtanh.pop %v1393
    %v1395 = vsub.f32 1.0, %v1390
    %v1396 = vmul.f32 %v1395, %v1394
    %v1397 = vmul.f32 %v1390, %v851
    %v1398 = vadd.f32 %v1396, %v1397
    %s1399 = smul.u32 1, 2
    %s1400 = smul.addr %s1399, 8
    %s1401 = scalar_lea.vmem [#allocation3], %s1400
    %1402 = vst [vmem:[%s1401] sm:$0xff] %v1398
    %s1403 = smul.u32 6, 6
    %s1404 = smul.addr %s1403, 8
    %s1405 = scalar_lea.vmem [#allocation2], %s1404
    %v1406 = vld [vmem:[%s1405 + $0x18] sm:$0xff]
    %v1407 = vld [vmem:[%s1405 + $0x20] sm:$0xff]
    %v1408 = vld [vmem:[%s1405 + $0x28] sm:$0xff]
    %v1409 = vpack.c.bf16 %v1124, %v1124
    %v1410 = vld [vmem:[%s4] sm:$0xff]
    %v1411 = vld [vmem:[%s4 + $0x8] sm:$0xf]
    %v1412 = vld [vmem:[%s4 + $0xc] sm:$0xff]
    %v1413 = vld [vmem:[%s4 + $0x14] sm:$0xf]
    %v1414 = vld [vmem:[%s4 + $0x18] sm:$0xff]
    %v1415 = vld [vmem:[%s4 + $0x20] sm:$0xf]
    %v1416 = vld [vmem:[%s4 + $0x24] sm:$0xff]
    %v1417 = vld [vmem:[%s4 + $0x2c] sm:$0xf]
    %v1418 = vld [vmem:[%s4 + $0x30] sm:$0xff]
    %v1419 = vld [vmem:[%s4 + $0x38] sm:$0xf]
    %v1420 = vld [vmem:[%s4 + $0x3c] sm:$0xff]
    %v1421 = vld [vmem:[%s4 + $0x44] sm:$0xf]
    %v1422 = vld [vmem:[%s4 + $0x48] sm:$0xff]
    %v1423 = vld [vmem:[%s4 + $0x50] sm:$0xf]
    %v1424 = vld [vmem:[%s4 + $0x54] sm:$0xff]
    %v1425 = vld [vmem:[%s4 + $0x5c] sm:$0xf]
    %v1426 = vld [vmem:[%s4 + $0x60] sm:$0xff]
    %v1427 = vld [vmem:[%s4 + $0x68] sm:$0xf]
    %v1428 = vld [vmem:[%s4 + $0x6c] sm:$0xff]
    %v1429 = vld [vmem:[%s4 + $0x74] sm:$0xf]
    %v1430 = vld [vmem:[%s4 + $0x78] sm:$0xff]
    %v1431 = vld [vmem:[%s4 + $0x80] sm:$0xf]
    %v1432 = vld [vmem:[%s4 + $0x84] sm:$0xff]
    %v1433 = vld [vmem:[%s4 + $0x8c] sm:$0xf]
    %v1434 = vld [vmem:[%s4 + $0x90] sm:$0xff]
    %v1435 = vld [vmem:[%s4 + $0x98] sm:$0xf]
    %v1436 = vld [vmem:[%s4 + $0x9c] sm:$0xff]
    %v1437 = vld [vmem:[%s4 + $0xa4] sm:$0xf]
    %v1438 = vld [vmem:[%s4 + $0xa8] sm:$0xff]
    %v1439 = vld [vmem:[%s4 + $0xb0] sm:$0xf]
    %v1440 = vld [vmem:[%s4 + $0xb4] sm:$0xff]
    %v1441 = vld [vmem:[%s4 + $0xbc] sm:$0xf]
    %v1474 = vunpack.c.l.b16 %v1410
    %v1475 = vunpack.c.h.b16 %v1410
    %v1476 = vunpack.c.l.b16 %v1411
    %v1477 = vunpack.c.l.b16 %v1412
    %v1478 = vunpack.c.h.b16 %v1412
    %v1479 = vunpack.c.l.b16 %v1413
    %v1480 = vunpack.c.l.b16 %v1414
    %v1481 = vunpack.c.h.b16 %v1414
    %v1482 = vunpack.c.l.b16 %v1415
    %v1483 = vunpack.c.l.b16 %v1416
    %v1484 = vunpack.c.h.b16 %v1416
    %v1485 = vunpack.c.l.b16 %v1417
    %v1486 = vunpack.c.l.b16 %v1418
    %v1487 = vunpack.c.h.b16 %v1418
    %v1488 = vunpack.c.l.b16 %v1419
    %v1489 = vunpack.c.l.b16 %v1420
    %v1490 = vunpack.c.h.b16 %v1420
    %v1491 = vunpack.c.l.b16 %v1421
    %v1492 = vunpack.c.l.b16 %v1422
    %v1493 = vunpack.c.h.b16 %v1422
    %v1494 = vunpack.c.l.b16 %v1423
    %v1495 = vunpack.c.l.b16 %v1424
    %v1496 = vunpack.c.h.b16 %v1424
    %v1497 = vunpack.c.l.b16 %v1425
    %v1498 = vunpack.c.l.b16 %v1426
    %v1499 = vunpack.c.h.b16 %v1426
    %v1500 = vunpack.c.l.b16 %v1427
    %v1501 = vunpack.c.l.b16 %v1428
    %v1502 = vunpack.c.h.b16 %v1428
    %v1503 = vunpack.c.l.b16 %v1429
    %v1504 = vunpack.c.l.b16 %v1430
    %v1505 = vunpack.c.h.b16 %v1430
    %v1506 = vunpack.c.l.b16 %v1431
    %v1507 = vunpack.c.l.b16 %v1432
    %v1508 = vunpack.c.h.b16 %v1432
    %v1509 = vunpack.c.l.b16 %v1433
    %v1510 = vunpack.c.l.b16 %v1434
    %v1511 = vunpack.c.h.b16 %v1434
    %v1512 = vunpack.c.l.b16 %v1435
    %v1513 = vunpack.c.l.b16 %v1436
    %v1514 = vunpack.c.h.b16 %v1436
    %v1515 = vunpack.c.l.b16 %v1437
    %v1516 = vunpack.c.l.b16 %v1438
    %v1517 = vunpack.c.h.b16 %v1438
    %v1518 = vunpack.c.l.b16 %v1439
    %v1519 = vunpack.c.l.b16 %v1440
    %v1520 = vunpack.c.h.b16 %v1440
    %v1521 = vunpack.c.l.b16 %v1441
    %v1522 = vpack.c.b16 %v1477, %v1474
    %v1523 = vpack.c.b16 %v1478, %v1475
    %v1524 = vpack.c.b16 %v1479, %v1476
    %v1525 = vpack.c.b16 %v1483, %v1480
    %v1526 = vpack.c.b16 %v1484, %v1481
    %v1527 = vpack.c.b16 %v1485, %v1482
    %v1528 = vpack.c.b16 %v1489, %v1486
    %v1529 = vpack.c.b16 %v1490, %v1487
    %v1530 = vpack.c.b16 %v1491, %v1488
    %v1531 = vpack.c.b16 %v1495, %v1492
    %v1532 = vpack.c.b16 %v1496, %v1493
    %v1533 = vpack.c.b16 %v1497, %v1494
    %v1534 = vpack.c.b16 %v1501, %v1498
    %v1535 = vpack.c.b16 %v1502, %v1499
    %v1536 = vpack.c.b16 %v1503, %v1500
    %v1537 = vpack.c.b16 %v1507, %v1504
    %v1538 = vpack.c.b16 %v1508, %v1505
    %v1539 = vpack.c.b16 %v1509, %v1506
    %v1540 = vpack.c.b16 %v1513, %v1510
    %v1541 = vpack.c.b16 %v1514, %v1511
    %v1542 = vpack.c.b16 %v1515, %v1512
    %v1543 = vpack.c.b16 %v1519, %v1516
    %v1544 = vpack.c.b16 %v1520, %v1517
    %v1545 = vpack.c.b16 %v1521, %v1518
    %1570 = vmatprep.subr.bf16.mxu0 %v1523
    %1571 = vmatpush1.bf16.msra.mxu0 %v1522
    %1572 = vmatprep.subr.bf16.mxu0 %v1526
    %1573 = vmatpush1.bf16.msra.mxu0 %v1525
    %1574 = vmatprep.subr.bf16.mxu0 %v1529
    %1575 = vmatpush1.bf16.msra.mxu0 %v1528
    %1576 = vmatprep.subr.bf16.mxu0 %v1532
    %1577 = vmatpush1.bf16.msra.mxu0 %v1531
    %1578 = vmatprep.subr.bf16.mxu0 %v1535
    %1579 = vmatpush1.bf16.msra.mxu0 %v1534
    %1580 = vmatprep.subr.bf16.mxu0 %v1538
    %1581 = vmatpush1.bf16.msra.mxu0 %v1537
    %1582 = vmatprep.subr.bf16.mxu0 %v1541
    %1583 = vmatpush1.bf16.msra.mxu0 %v1540
    %1584 = vmatprep.subr.bf16.mxu0 %v1544
    %1585 = vmatpush1.bf16.msra.mxu0 %v1543
    %1586 = vmatprep.subr.bf16.mxu0 0
    %1587 = vmatpush1.bf16.msra.mxu0 0
    %1588 = vmatprep.subr.bf16.mxu0 0
    %1589 = vmatpush1.bf16.msra.mxu0 0
    %1590 = vmatprep.subr.bf16.mxu0 0
    %1591 = vmatpush1.bf16.msra.mxu0 0
    %1592 = vmatprep.subr.bf16.mxu0 0
    %1593 = vmatpush1.bf16.msra.mxu0 0
    %1594 = vmatprep.subr.bf16.mxu0 0
    %1595 = vmatpush1.bf16.msra.mxu0 0
    %1596 = vmatprep.subr.bf16.mxu0 0
    %1597 = vmatpush1.bf16.msra.mxu0 0
    %1598 = vmatprep.subr.bf16.mxu0 0
    %1599 = vmatpush1.bf16.msra.mxu0 0
    %1600 = vmatprep.subr.bf16.mxu0 0
    %1601 = vmatpush1.bf16.msra.mxu0 0
    %1602 = vmatprep.mubr.bf16.mxu0 0
    %1603 = vmatmul.mubr.bf16.gmra.mrb[0].mxu0 %v1409
    %v1604 = vpop.f32.mrb[0].mxu0
    %v1605 = vadd.f32 0.0, %v1604
    %v1606 = vpop.f32.mrb[0].mxu0
    %v1607 = vadd.f32 0.0, %v1606
    %v1608 = vpop.f32.mrb[0].mxu0
    %v1609 = vpop.f32.mrb[0].mxu0
    %1610 = vdwg.mxu0
    %1611 = vmatprep.subr.bf16.mxu0 0
    %1612 = vmatpush1.bf16.msra.mxu0 %v1524
    %1613 = vmatprep.subr.bf16.mxu0 0
    %1614 = vmatpush1.bf16.msra.mxu0 %v1527
    %1615 = vmatprep.subr.bf16.mxu0 0
    %1616 = vmatpush1.bf16.msra.mxu0 %v1530
    %1617 = vmatprep.subr.bf16.mxu0 0
    %1618 = vmatpush1.bf16.msra.mxu0 %v1533
    %1619 = vmatprep.subr.bf16.mxu0 0
    %1620 = vmatpush1.bf16.msra.mxu0 %v1536
    %1621 = vmatprep.subr.bf16.mxu0 0
    %1622 = vmatpush1.bf16.msra.mxu0 %v1539
    %1623 = vmatprep.subr.bf16.mxu0 0
    %1624 = vmatpush1.bf16.msra.mxu0 %v1542
    %1625 = vmatprep.subr.bf16.mxu0 0
    %1626 = vmatpush1.bf16.msra.mxu0 %v1545
    %1627 = vmatprep.subr.bf16.mxu0 0
    %1628 = vmatpush1.bf16.msra.mxu0 0
    %1629 = vmatprep.subr.bf16.mxu0 0
    %1630 = vmatpush1.bf16.msra.mxu0 0
    %1631 = vmatprep.subr.bf16.mxu0 0
    %1632 = vmatpush1.bf16.msra.mxu0 0
    %1633 = vmatprep.subr.bf16.mxu0 0
    %1634 = vmatpush1.bf16.msra.mxu0 0
    %1635 = vmatprep.subr.bf16.mxu0 0
    %1636 = vmatpush1.bf16.msra.mxu0 0
    %1637 = vmatprep.subr.bf16.mxu0 0
    %1638 = vmatpush1.bf16.msra.mxu0 0
    %1639 = vmatprep.subr.bf16.mxu0 0
    %1640 = vmatpush1.bf16.msra.mxu0 0
    %1641 = vmatprep.subr.bf16.mxu0 0
    %1642 = vmatpush1.bf16.msra.mxu0 0
    %1643 = vmatprep.mubr.bf16.mxu0 0
    %1644 = vmatmul.mubr.bf16.gmra.mrb[0].mxu0 %v1409
    %v1645 = vpop.f32.mrb[0].mxu0
    %v1646 = vadd.f32 0.0, %v1645
    %v1647 = vpop.f32.mrb[0].mxu0
    %v1648 = vpop.f32.mrb[0].mxu0
    %v1649 = vpop.f32.mrb[0].mxu0
    %1650 = vdwg.mxu0
    %v1651 = vadd.f32 %v1406, %v1605
    %v1652 = vxor.u32 %v1651, 2147483648
    %v1653 = vmul.f32 %v1652, 1.442695
    %v1654 = vpow.pop %v1653
    %v1655 = vadd.f32 %v1654, 1.0
    %v1656 = vrcp.pop %v1655
    %v1657 = vmul.f32 1.0, %v1656
    %v1658 = vadd.f32 %v1407, %v1607
    %v1659 = vxor.u32 %v1658, 2147483648
    %v1660 = vmul.f32 %v1659, 1.442695
    %v1661 = vpow.pop %v1660
    %v1662 = vadd.f32 %v1661, 1.0
    %v1663 = vrcp.pop %v1662
    %v1664 = vmul.f32 1.0, %v1663
    %v1665 = vadd.f32 %v1646, %v581
    %v1666 = vmul.f32 %v1657, %v1665
    %v1667 = vadd.f32 %v1408, %v1666
    %v1668 = vtanh.pop %v1667
    %v1669 = vsub.f32 1.0, %v1664
    %v1670 = vmul.f32 %v1669, %v1668
    %v1671 = vmul.f32 %v1664, %v1124
    %v1672 = vadd.f32 %v1670, %v1671
    %s1673 = smul.u32 6, 2
    %s1674 = smul.addr %s1673, 8
    %s1675 = scalar_lea.vmem [#allocation3], %s1674
    %1676 = vst [vmem:[%s1675 + $0x8] sm:$0xff] %v1672
    %s1677 = smul.u32 2, 6
    %s1678 = smul.addr %s1677, 8
    %s1679 = scalar_lea.vmem [#allocation2], %s1678
    %v1680 = vld [vmem:[%s1679] sm:$0xff]
    %v1681 = vld [vmem:[%s1679 + $0x8] sm:$0xff]
    %v1682 = vld [vmem:[%s1679 + $0x10] sm:$0xff]
    %v1683 = vpack.c.bf16 %v1398, %v1398
    %v1684 = vld [vmem:[#allocation8] sm:$0xff]
    %v1685 = vld [vmem:[#allocation8 + $0x8] sm:$0xf]
    %v1686 = vld [vmem:[#allocation8 + $0xc] sm:$0xff]
    %v1687 = vld [vmem:[#allocation8 + $0x14] sm:$0xf]
    %v1688 = vld [vmem:[#allocation8 + $0x18] sm:$0xff]
    %v1689 = vld [vmem:[#allocation8 + $0x20] sm:$0xf]
    %v1690 = vld [vmem:[#allocation8 + $0x24] sm:$0xff]
    %v1691 = vld [vmem:[#allocation8 + $0x2c] sm:$0xf]
    %v1692 = vld [vmem:[#allocation8 + $0x30] sm:$0xff]
    %v1693 = vld [vmem:[#allocation8 + $0x38] sm:$0xf]
    %v1694 = vld [vmem:[#allocation8 + $0x3c] sm:$0xff]
    %v1695 = vld [vmem:[#allocation8 + $0x44] sm:$0xf]
    %v1696 = vld [vmem:[#allocation8 + $0x48] sm:$0xff]
    %v1697 = vld [vmem:[#allocation8 + $0x50] sm:$0xf]
    %v1698 = vld [vmem:[#allocation8 + $0x54] sm:$0xff]
    %v1699 = vld [vmem:[#allocation8 + $0x5c] sm:$0xf]
    %v1700 = vld [vmem:[#allocation8 + $0x60] sm:$0xff]
    %v1701 = vld [vmem:[#allocation8 + $0x68] sm:$0xf]
    %v1702 = vld [vmem:[#allocation8 + $0x6c] sm:$0xff]
    %v1703 = vld [vmem:[#allocation8 + $0x74] sm:$0xf]
    %v1704 = vld [vmem:[#allocation8 + $0x78] sm:$0xff]
    %v1705 = vld [vmem:[#allocation8 + $0x80] sm:$0xf]
    %v1706 = vld [vmem:[#allocation8 + $0x84] sm:$0xff]
    %v1707 = vld [vmem:[#allocation8 + $0x8c] sm:$0xf]
    %v1708 = vld [vmem:[#allocation8 + $0x90] sm:$0xff]
    %v1709 = vld [vmem:[#allocation8 + $0x98] sm:$0xf]
    %v1710 = vld [vmem:[#allocation8 + $0x9c] sm:$0xff]
    %v1711 = vld [vmem:[#allocation8 + $0xa4] sm:$0xf]
    %v1712 = vld [vmem:[#allocation8 + $0xa8] sm:$0xff]
    %v1713 = vld [vmem:[#allocation8 + $0xb0] sm:$0xf]
    %v1714 = vld [vmem:[#allocation8 + $0xb4] sm:$0xff]
    %v1715 = vld [vmem:[#allocation8 + $0xbc] sm:$0xf]
    %v1748 = vunpack.c.l.b16 %v1684
    %v1749 = vunpack.c.h.b16 %v1684
    %v1750 = vunpack.c.l.b16 %v1685
    %v1751 = vunpack.c.l.b16 %v1686
    %v1752 = vunpack.c.h.b16 %v1686
    %v1753 = vunpack.c.l.b16 %v1687
    %v1754 = vunpack.c.l.b16 %v1688
    %v1755 = vunpack.c.h.b16 %v1688
    %v1756 = vunpack.c.l.b16 %v1689
    %v1757 = vunpack.c.l.b16 %v1690
    %v1758 = vunpack.c.h.b16 %v1690
    %v1759 = vunpack.c.l.b16 %v1691
    %v1760 = vunpack.c.l.b16 %v1692
    %v1761 = vunpack.c.h.b16 %v1692
    %v1762 = vunpack.c.l.b16 %v1693
    %v1763 = vunpack.c.l.b16 %v1694
    %v1764 = vunpack.c.h.b16 %v1694
    %v1765 = vunpack.c.l.b16 %v1695
    %v1766 = vunpack.c.l.b16 %v1696
    %v1767 = vunpack.c.h.b16 %v1696
    %v1768 = vunpack.c.l.b16 %v1697
    %v1769 = vunpack.c.l.b16 %v1698
    %v1770 = vunpack.c.h.b16 %v1698
    %v1771 = vunpack.c.l.b16 %v1699
    %v1772 = vunpack.c.l.b16 %v1700
    %v1773 = vunpack.c.h.b16 %v1700
    %v1774 = vunpack.c.l.b16 %v1701
    %v1775 = vunpack.c.l.b16 %v1702
    %v1776 = vunpack.c.h.b16 %v1702
    %v1777 = vunpack.c.l.b16 %v1703
    %v1778 = vunpack.c.l.b16 %v1704
    %v1779 = vunpack.c.h.b16 %v1704
    %v1780 = vunpack.c.l.b16 %v1705
    %v1781 = vunpack.c.l.b16 %v1706
    %v1782 = vunpack.c.h.b16 %v1706
    %v1783 = vunpack.c.l.b16 %v1707
    %v1784 = vunpack.c.l.b16 %v1708
    %v1785 = vunpack.c.h.b16 %v1708
    %v1786 = vunpack.c.l.b16 %v1709
    %v1787 = vunpack.c.l.b16 %v1710
    %v1788 = vunpack.c.h.b16 %v1710
    %v1789 = vunpack.c.l.b16 %v1711
    %v1790 = vunpack.c.l.b16 %v1712
    %v1791 = vunpack.c.h.b16 %v1712
    %v1792 = vunpack.c.l.b16 %v1713
    %v1793 = vunpack.c.l.b16 %v1714
    %v1794 = vunpack.c.h.b16 %v1714
    %v1795 = vunpack.c.l.b16 %v1715
    %v1796 = vpack.c.b16 %v1751, %v1748
    %v1797 = vpack.c.b16 %v1752, %v1749
    %v1798 = vpack.c.b16 %v1753, %v1750
    %v1799 = vpack.c.b16 %v1757, %v1754
    %v1800 = vpack.c.b16 %v1758, %v1755
    %v1801 = vpack.c.b16 %v1759, %v1756
    %v1802 = vpack.c.b16 %v1763, %v1760
    %v1803 = vpack.c.b16 %v1764, %v1761
    %v1804 = vpack.c.b16 %v1765, %v1762
    %v1805 = vpack.c.b16 %v1769, %v1766
    %v1806 = vpack.c.b16 %v1770, %v1767
    %v1807 = vpack.c.b16 %v1771, %v1768
    %v1808 = vpack.c.b16 %v1775, %v1772
    %v1809 = vpack.c.b16 %v1776, %v1773
    %v1810 = vpack.c.b16 %v1777, %v1774
    %v1811 = vpack.c.b16 %v1781, %v1778
    %v1812 = vpack.c.b16 %v1782, %v1779
    %v1813 = vpack.c.b16 %v1783, %v1780
    %v1814 = vpack.c.b16 %v1787, %v1784
    %v1815 = vpack.c.b16 %v1788, %v1785
    %v1816 = vpack.c.b16 %v1789, %v1786
    %v1817 = vpack.c.b16 %v1793, %v1790
    %v1818 = vpack.c.b16 %v1794, %v1791
    %v1819 = vpack.c.b16 %v1795, %v1792
    %1844 = vmatprep.subr.bf16.mxu0 %v1797
    %1845 = vmatpush1.bf16.msra.mxu0 %v1796
    %1846 = vmatprep.subr.bf16.mxu0 %v1800
    %1847 = vmatpush1.bf16.msra.mxu0 %v1799
    %1848 = vmatprep.subr.bf16.mxu0 %v1803
    %1849 = vmatpush1.bf16.msra.mxu0 %v1802
    %1850 = vmatprep.subr.bf16.mxu0 %v1806
    %1851 = vmatpush1.bf16.msra.mxu0 %v1805
    %1852 = vmatprep.subr.bf16.mxu0 %v1809
    %1853 = vmatpush1.bf16.msra.mxu0 %v1808
    %1854 = vmatprep.subr.bf16.mxu0 %v1812
    %1855 = vmatpush1.bf16.msra.mxu0 %v1811
    %1856 = vmatprep.subr.bf16.mxu0 %v1815
    %1857 = vmatpush1.bf16.msra.mxu0 %v1814
    %1858 = vmatprep.subr.bf16.mxu0 %v1818
    %1859 = vmatpush1.bf16.msra.mxu0 %v1817
    %1860 = vmatprep.subr.bf16.mxu0 0
    %1861 = vmatpush1.bf16.msra.mxu0 0
    %1862 = vmatprep.subr.bf16.mxu0 0
    %1863 = vmatpush1.bf16.msra.mxu0 0
    %1864 = vmatprep.subr.bf16.mxu0 0
    %1865 = vmatpush1.bf16.msra.mxu0 0
    %1866 = vmatprep.subr.bf16.mxu0 0
    %1867 = vmatpush1.bf16.msra.mxu0 0
    %1868 = vmatprep.subr.bf16.mxu0 0
    %1869 = vmatpush1.bf16.msra.mxu0 0
    %1870 = vmatprep.subr.bf16.mxu0 0
    %1871 = vmatpush1.bf16.msra.mxu0 0
    %1872 = vmatprep.subr.bf16.mxu0 0
    %1873 = vmatpush1.bf16.msra.mxu0 0
    %1874 = vmatprep.subr.bf16.mxu0 0
    %1875 = vmatpush1.bf16.msra.mxu0 0
    %1876 = vmatprep.mubr.bf16.mxu0 0
    %1877 = vmatmul.mubr.bf16.gmra.mrb[0].mxu0 %v1683
    %v1878 = vpop.f32.mrb[0].mxu0
    %v1879 = vadd.f32 0.0, %v1878
    %v1880 = vpop.f32.mrb[0].mxu0
    %v1881 = vadd.f32 0.0, %v1880
    %v1882 = vpop.f32.mrb[0].mxu0
    %v1883 = vpop.f32.mrb[0].mxu0
    %1884 = vdwg.mxu0
    %1885 = vmatprep.subr.bf16.mxu0 0
    %1886 = vmatpush1.bf16.msra.mxu0 %v1798
    %1887 = vmatprep.subr.bf16.mxu0 0
    %1888 = vmatpush1.bf16.msra.mxu0 %v1801
    %1889 = vmatprep.subr.bf16.mxu0 0
    %1890 = vmatpush1.bf16.msra.mxu0 %v1804
    %1891 = vmatprep.subr.bf16.mxu0 0
    %1892 = vmatpush1.bf16.msra.mxu0 %v1807
    %1893 = vmatprep.subr.bf16.mxu0 0
    %1894 = vmatpush1.bf16.msra.mxu0 %v1810
    %1895 = vmatprep.subr.bf16.mxu0 0
    %1896 = vmatpush1.bf16.msra.mxu0 %v1813
    %1897 = vmatprep.subr.bf16.mxu0 0
    %1898 = vmatpush1.bf16.msra.mxu0 %v1816
    %1899 = vmatprep.subr.bf16.mxu0 0
    %1900 = vmatpush1.bf16.msra.mxu0 %v1819
    %1901 = vmatprep.subr.bf16.mxu0 0
    %1902 = vmatpush1.bf16.msra.mxu0 0
    %1903 = vmatprep.subr.bf16.mxu0 0
    %1904 = vmatpush1.bf16.msra.mxu0 0
    %1905 = vmatprep.subr.bf16.mxu0 0
    %1906 = vmatpush1.bf16.msra.mxu0 0
    %1907 = vmatprep.subr.bf16.mxu0 0
    %1908 = vmatpush1.bf16.msra.mxu0 0
    %1909 = vmatprep.subr.bf16.mxu0 0
    %1910 = vmatpush1.bf16.msra.mxu0 0
    %1911 = vmatprep.subr.bf16.mxu0 0
    %1912 = vmatpush1.bf16.msra.mxu0 0
    %1913 = vmatprep.subr.bf16.mxu0 0
    %1914 = vmatpush1.bf16.msra.mxu0 0
    %1915 = vmatprep.subr.bf16.mxu0 0
    %1916 = vmatpush1.bf16.msra.mxu0 0
    %1917 = vmatprep.mubr.bf16.mxu0 0
    %1918 = vmatmul.mubr.bf16.gmra.mrb[0].mxu0 %v1683
    %v1919 = vpop.f32.mrb[0].mxu0
    %v1920 = vadd.f32 0.0, %v1919
    %v1921 = vpop.f32.mrb[0].mxu0
    %v1922 = vpop.f32.mrb[0].mxu0
    %v1923 = vpop.f32.mrb[0].mxu0
    %1924 = vdwg.mxu0
    %v1925 = vadd.f32 %v1680, %v1879
    %v1926 = vxor.u32 %v1925, 2147483648
    %v1927 = vmul.f32 %v1926, 1.442695
    %v1928 = vpow.pop %v1927
    %v1929 = vadd.f32 %v1928, 1.0
    %v1930 = vrcp.pop %v1929
    %v1931 = vmul.f32 1.0, %v1930
    %v1932 = vadd.f32 %v1681, %v1881
    %v1933 = vxor.u32 %v1932, 2147483648
    %v1934 = vmul.f32 %v1933, 1.442695
    %v1935 = vpow.pop %v1934
    %v1936 = vadd.f32 %v1935, 1.0
    %v1937 = vrcp.pop %v1936
    %v1938 = vmul.f32 1.0, %v1937
    %v1939 = vadd.f32 %v1920, %v574
    %v1940 = vmul.f32 %v1931, %v1939
    %v1941 = vadd.f32 %v1682, %v1940
    %v1942 = vtanh.pop %v1941
    %v1943 = vsub.f32 1.0, %v1938
    %v1944 = vmul.f32 %v1943, %v1942
    %v1945 = vmul.f32 %v1938, %v1398
    %v1946 = vadd.f32 %v1944, %v1945
    %s1947 = smul.u32 2, 2
    %s1948 = smul.addr %s1947, 8
    %s1949 = scalar_lea.vmem [#allocation3], %s1948
    %1950 = vst [vmem:[%s1949] sm:$0xff] %v1946
    %s1951 = smul.u32 5, 6
    %s1952 = smul.addr %s1951, 8
    %s1953 = scalar_lea.vmem [#allocation2], %s1952
    %v1954 = vld [vmem:[%s1953 + $0x18] sm:$0xff]
    %v1955 = vld [vmem:[%s1953 + $0x20] sm:$0xff]
    %v1956 = vld [vmem:[%s1953 + $0x28] sm:$0xff]
    %v1957 = vpack.c.bf16 %v1672, %v1672
    %v1958 = vld [vmem:[%s4] sm:$0xff]
    %v1959 = vld [vmem:[%s4 + $0x8] sm:$0xf]
    %v1960 = vld [vmem:[%s4 + $0xc] sm:$0xff]
    %v1961 = vld [vmem:[%s4 + $0x14] sm:$0xf]
    %v1962 = vld [vmem:[%s4 + $0x18] sm:$0xff]
    %v1963 = vld [vmem:[%s4 + $0x20] sm:$0xf]
    %v1964 = vld [vmem:[%s4 + $0x24] sm:$0xff]
    %v1965 = vld [vmem:[%s4 + $0x2c] sm:$0xf]
    %v1966 = vld [vmem:[%s4 + $0x30] sm:$0xff]
    %v1967 = vld [vmem:[%s4 + $0x38] sm:$0xf]
    %v1968 = vld [vmem:[%s4 + $0x3c] sm:$0xff]
    %v1969 = vld [vmem:[%s4 + $0x44] sm:$0xf]
    %v1970 = vld [vmem:[%s4 + $0x48] sm:$0xff]
    %v1971 = vld [vmem:[%s4 + $0x50] sm:$0xf]
    %v1972 = vld [vmem:[%s4 + $0x54] sm:$0xff]
    %v1973 = vld [vmem:[%s4 + $0x5c] sm:$0xf]
    %v1974 = vld [vmem:[%s4 + $0x60] sm:$0xff]
    %v1975 = vld [vmem:[%s4 + $0x68] sm:$0xf]
    %v1976 = vld [vmem:[%s4 + $0x6c] sm:$0xff]
    %v1977 = vld [vmem:[%s4 + $0x74] sm:$0xf]
    %v1978 = vld [vmem:[%s4 + $0x78] sm:$0xff]
    %v1979 = vld [vmem:[%s4 + $0x80] sm:$0xf]
    %v1980 = vld [vmem:[%s4 + $0x84] sm:$0xff]
    %v1981 = vld [vmem:[%s4 + $0x8c] sm:$0xf]
    %v1982 = vld [vmem:[%s4 + $0x90] sm:$0xff]
    %v1983 = vld [vmem:[%s4 + $0x98] sm:$0xf]
    %v1984 = vld [vmem:[%s4 + $0x9c] sm:$0xff]
    %v1985 = vld [vmem:[%s4 + $0xa4] sm:$0xf]
    %v1986 = vld [vmem:[%s4 + $0xa8] sm:$0xff]
    %v1987 = vld [vmem:[%s4 + $0xb0] sm:$0xf]
    %v1988 = vld [vmem:[%s4 + $0xb4] sm:$0xff]
    %v1989 = vld [vmem:[%s4 + $0xbc] sm:$0xf]
    %v2022 = vunpack.c.l.b16 %v1958
    %v2023 = vunpack.c.h.b16 %v1958
    %v2024 = vunpack.c.l.b16 %v1959
    %v2025 = vunpack.c.l.b16 %v1960
    %v2026 = vunpack.c.h.b16 %v1960
    %v2027 = vunpack.c.l.b16 %v1961
    %v2028 = vunpack.c.l.b16 %v1962
    %v2029 = vunpack.c.h.b16 %v1962
    %v2030 = vunpack.c.l.b16 %v1963
    %v2031 = vunpack.c.l.b16 %v1964
    %v2032 = vunpack.c.h.b16 %v1964
    %v2033 = vunpack.c.l.b16 %v1965
    %v2034 = vunpack.c.l.b16 %v1966
    %v2035 = vunpack.c.h.b16 %v1966
    %v2036 = vunpack.c.l.b16 %v1967
    %v2037 = vunpack.c.l.b16 %v1968
    %v2038 = vunpack.c.h.b16 %v1968
    %v2039 = vunpack.c.l.b16 %v1969
    %v2040 = vunpack.c.l.b16 %v1970
    %v2041 = vunpack.c.h.b16 %v1970
    %v2042 = vunpack.c.l.b16 %v1971
    %v2043 = vunpack.c.l.b16 %v1972
    %v2044 = vunpack.c.h.b16 %v1972
    %v2045 = vunpack.c.l.b16 %v1973
    %v2046 = vunpack.c.l.b16 %v1974
    %v2047 = vunpack.c.h.b16 %v1974
    %v2048 = vunpack.c.l.b16 %v1975
    %v2049 = vunpack.c.l.b16 %v1976
    %v2050 = vunpack.c.h.b16 %v1976
    %v2051 = vunpack.c.l.b16 %v1977
    %v2052 = vunpack.c.l.b16 %v1978
    %v2053 = vunpack.c.h.b16 %v1978
    %v2054 = vunpack.c.l.b16 %v1979
    %v2055 = vunpack.c.l.b16 %v1980
    %v2056 = vunpack.c.h.b16 %v1980
    %v2057 = vunpack.c.l.b16 %v1981
    %v2058 = vunpack.c.l.b16 %v1982
    %v2059 = vunpack.c.h.b16 %v1982
    %v2060 = vunpack.c.l.b16 %v1983
    %v2061 = vunpack.c.l.b16 %v1984
    %v2062 = vunpack.c.h.b16 %v1984
    %v2063 = vunpack.c.l.b16 %v1985
    %v2064 = vunpack.c.l.b16 %v1986
    %v2065 = vunpack.c.h.b16 %v1986
    %v2066 = vunpack.c.l.b16 %v1987
    %v2067 = vunpack.c.l.b16 %v1988
    %v2068 = vunpack.c.h.b16 %v1988
    %v2069 = vunpack.c.l.b16 %v1989
    %v2070 = vpack.c.b16 %v2025, %v2022
    %v2071 = vpack.c.b16 %v2026, %v2023
    %v2072 = vpack.c.b16 %v2027, %v2024
    %v2073 = vpack.c.b16 %v2031, %v2028
    %v2074 = vpack.c.b16 %v2032, %v2029
    %v2075 = vpack.c.b16 %v2033, %v2030
    %v2076 = vpack.c.b16 %v2037, %v2034
    %v2077 = vpack.c.b16 %v2038, %v2035
    %v2078 = vpack.c.b16 %v2039, %v2036
    %v2079 = vpack.c.b16 %v2043, %v2040
    %v2080 = vpack.c.b16 %v2044, %v2041
    %v2081 = vpack.c.b16 %v2045, %v2042
    %v2082 = vpack.c.b16 %v2049, %v2046
    %v2083 = vpack.c.b16 %v2050, %v2047
    %v2084 = vpack.c.b16 %v2051, %v2048
    %v2085 = vpack.c.b16 %v2055, %v2052
    %v2086 = vpack.c.b16 %v2056, %v2053
    %v2087 = vpack.c.b16 %v2057, %v2054
    %v2088 = vpack.c.b16 %v2061, %v2058
    %v2089 = vpack.c.b16 %v2062, %v2059
    %v2090 = vpack.c.b16 %v2063, %v2060
    %v2091 = vpack.c.b16 %v2067, %v2064
    %v2092 = vpack.c.b16 %v2068, %v2065
    %v2093 = vpack.c.b16 %v2069, %v2066
    %2118 = vmatprep.subr.bf16.mxu0 %v2071
    %2119 = vmatpush1.bf16.msra.mxu0 %v2070
    %2120 = vmatprep.subr.bf16.mxu0 %v2074
    %2121 = vmatpush1.bf16.msra.mxu0 %v2073
    %2122 = vmatprep.subr.bf16.mxu0 %v2077
    %2123 = vmatpush1.bf16.msra.mxu0 %v2076
    %2124 = vmatprep.subr.bf16.mxu0 %v2080
    %2125 = vmatpush1.bf16.msra.mxu0 %v2079
    %2126 = vmatprep.subr.bf16.mxu0 %v2083
    %2127 = vmatpush1.bf16.msra.mxu0 %v2082
    %2128 = vmatprep.subr.bf16.mxu0 %v2086
    %2129 = vmatpush1.bf16.msra.mxu0 %v2085
    %2130 = vmatprep.subr.bf16.mxu0 %v2089
    %2131 = vmatpush1.bf16.msra.mxu0 %v2088
    %2132 = vmatprep.subr.bf16.mxu0 %v2092
    %2133 = vmatpush1.bf16.msra.mxu0 %v2091
    %2134 = vmatprep.subr.bf16.mxu0 0
    %2135 = vmatpush1.bf16.msra.mxu0 0
    %2136 = vmatprep.subr.bf16.mxu0 0
    %2137 = vmatpush1.bf16.msra.mxu0 0
    %2138 = vmatprep.subr.bf16.mxu0 0
    %2139 = vmatpush1.bf16.msra.mxu0 0
    %2140 = vmatprep.subr.bf16.mxu0 0
    %2141 = vmatpush1.bf16.msra.mxu0 0
    %2142 = vmatprep.subr.bf16.mxu0 0
    %2143 = vmatpush1.bf16.msra.mxu0 0
    %2144 = vmatprep.subr.bf16.mxu0 0
    %2145 = vmatpush1.bf16.msra.mxu0 0
    %2146 = vmatprep.subr.bf16.mxu0 0
    %2147 = vmatpush1.bf16.msra.mxu0 0
    %2148 = vmatprep.subr.bf16.mxu0 0
    %2149 = vmatpush1.bf16.msra.mxu0 0
    %2150 = vmatprep.mubr.bf16.mxu0 0
    %2151 = vmatmul.mubr.bf16.gmra.mrb[0].mxu0 %v1957
    %v2152 = vpop.f32.mrb[0].mxu0
    %v2153 = vadd.f32 0.0, %v2152
    %v2154 = vpop.f32.mrb[0].mxu0
    %v2155 = vadd.f32 0.0, %v2154
    %v2156 = vpop.f32.mrb[0].mxu0
    %v2157 = vpop.f32.mrb[0].mxu0
    %2158 = vdwg.mxu0
    %2159 = vmatprep.subr.bf16.mxu0 0
    %2160 = vmatpush1.bf16.msra.mxu0 %v2072
    %2161 = vmatprep.subr.bf16.mxu0 0
    %2162 = vmatpush1.bf16.msra.mxu0 %v2075
    %2163 = vmatprep.subr.bf16.mxu0 0
    %2164 = vmatpush1.bf16.msra.mxu0 %v2078
    %2165 = vmatprep.subr.bf16.mxu0 0
    %2166 = vmatpush1.bf16.msra.mxu0 %v2081
    %2167 = vmatprep.subr.bf16.mxu0 0
    %2168 = vmatpush1.bf16.msra.mxu0 %v2084
    %2169 = vmatprep.subr.bf16.mxu0 0
    %2170 = vmatpush1.bf16.msra.mxu0 %v2087
    %2171 = vmatprep.subr.bf16.mxu0 0
    %2172 = vmatpush1.bf16.msra.mxu0 %v2090
    %2173 = vmatprep.subr.bf16.mxu0 0
    %2174 = vmatpush1.bf16.msra.mxu0 %v2093
    %2175 = vmatprep.subr.bf16.mxu0 0
    %2176 = vmatpush1.bf16.msra.mxu0 0
    %2177 = vmatprep.subr.bf16.mxu0 0
    %2178 = vmatpush1.bf16.msra.mxu0 0
    %2179 = vmatprep.subr.bf16.mxu0 0
    %2180 = vmatpush1.bf16.msra.mxu0 0
    %2181 = vmatprep.subr.bf16.mxu0 0
    %2182 = vmatpush1.bf16.msra.mxu0 0
    %2183 = vmatprep.subr.bf16.mxu0 0
    %2184 = vmatpush1.bf16.msra.mxu0 0
    %2185 = vmatprep.subr.bf16.mxu0 0
    %2186 = vmatpush1.bf16.msra.mxu0 0
    %2187 = vmatprep.subr.bf16.mxu0 0
    %2188 = vmatpush1.bf16.msra.mxu0 0
    %2189 = vmatprep.subr.bf16.mxu0 0
    %2190 = vmatpush1.bf16.msra.mxu0 0
    %2191 = vmatprep.mubr.bf16.mxu0 0
    %2192 = vmatmul.mubr.bf16.gmra.mrb[0].mxu0 %v1957
    %v2193 = vpop.f32.mrb[0].mxu0
    %v2194 = vadd.f32 0.0, %v2193
    %v2195 = vpop.f32.mrb[0].mxu0
    %v2196 = vpop.f32.mrb[0].mxu0
    %v2197 = vpop.f32.mrb[0].mxu0
    %2198 = vdwg.mxu0
    %v2199 = vadd.f32 %v1954, %v2153
    %v2200 = vxor.u32 %v2199, 2147483648
    %v2201 = vmul.f32 %v2200, 1.442695
    %v2202 = vpow.pop %v2201
    %v2203 = vadd.f32 %v2202, 1.0
    %v2204 = vrcp.pop %v2203
    %v2205 = vmul.f32 1.0, %v2204
    %v2206 = vadd.f32 %v1955, %v2155
    %v2207 = vxor.u32 %v2206, 2147483648
    %v2208 = vmul.f32 %v2207, 1.442695
    %v2209 = vpow.pop %v2208
    %v2210 = vadd.f32 %v2209, 1.0
    %v2211 = vrcp.pop %v2210
    %v2212 = vmul.f32 1.0, %v2211
    %v2213 = vadd.f32 %v2194, %v581
    %v2214 = vmul.f32 %v2205, %v2213
    %v2215 = vadd.f32 %v1956, %v2214
    %v2216 = vtanh.pop %v2215
    %v2217 = vsub.f32 1.0, %v2212
    %v2218 = vmul.f32 %v2217, %v2216
    %v2219 = vmul.f32 %v2212, %v1672
    %v2220 = vadd.f32 %v2218, %v2219
    %s2221 = smul.u32 5, 2
    %s2222 = smul.addr %s2221, 8
    %s2223 = scalar_lea.vmem [#allocation3], %s2222
    %2224 = vst [vmem:[%s2223 + $0x8] sm:$0xff] %v2220
    %s2225 = smul.u32 3, 6
    %s2226 = smul.addr %s2225, 8
    %s2227 = scalar_lea.vmem [#allocation2], %s2226
    %v2228 = vld [vmem:[%s2227] sm:$0xff]
    %v2229 = vld [vmem:[%s2227 + $0x8] sm:$0xff]
    %v2230 = vld [vmem:[%s2227 + $0x10] sm:$0xff]
    %v2231 = vpack.c.bf16 %v1946, %v1946
    %v2232 = vld [vmem:[#allocation8] sm:$0xff]
    %v2233 = vld [vmem:[#allocation8 + $0x8] sm:$0xf]
    %v2234 = vld [vmem:[#allocation8 + $0xc] sm:$0xff]
    %v2235 = vld [vmem:[#allocation8 + $0x14] sm:$0xf]
    %v2236 = vld [vmem:[#allocation8 + $0x18] sm:$0xff]
    %v2237 = vld [vmem:[#allocation8 + $0x20] sm:$0xf]
    %v2238 = vld [vmem:[#allocation8 + $0x24] sm:$0xff]
    %v2239 = vld [vmem:[#allocation8 + $0x2c] sm:$0xf]
    %v2240 = vld [vmem:[#allocation8 + $0x30] sm:$0xff]
    %v2241 = vld [vmem:[#allocation8 + $0x38] sm:$0xf]
    %v2242 = vld [vmem:[#allocation8 + $0x3c] sm:$0xff]
    %v2243 = vld [vmem:[#allocation8 + $0x44] sm:$0xf]
    %v2244 = vld [vmem:[#allocation8 + $0x48] sm:$0xff]
    %v2245 = vld [vmem:[#allocation8 + $0x50] sm:$0xf]
    %v2246 = vld [vmem:[#allocation8 + $0x54] sm:$0xff]
    %v2247 = vld [vmem:[#allocation8 + $0x5c] sm:$0xf]
    %v2248 = vld [vmem:[#allocation8 + $0x60] sm:$0xff]
    %v2249 = vld [vmem:[#allocation8 + $0x68] sm:$0xf]
    %v2250 = vld [vmem:[#allocation8 + $0x6c] sm:$0xff]
    %v2251 = vld [vmem:[#allocation8 + $0x74] sm:$0xf]
    %v2252 = vld [vmem:[#allocation8 + $0x78] sm:$0xff]
    %v2253 = vld [vmem:[#allocation8 + $0x80] sm:$0xf]
    %v2254 = vld [vmem:[#allocation8 + $0x84] sm:$0xff]
    %v2255 = vld [vmem:[#allocation8 + $0x8c] sm:$0xf]
    %v2256 = vld [vmem:[#allocation8 + $0x90] sm:$0xff]
    %v2257 = vld [vmem:[#allocation8 + $0x98] sm:$0xf]
    %v2258 = vld [vmem:[#allocation8 + $0x9c] sm:$0xff]
    %v2259 = vld [vmem:[#allocation8 + $0xa4] sm:$0xf]
    %v2260 = vld [vmem:[#allocation8 + $0xa8] sm:$0xff]
    %v2261 = vld [vmem:[#allocation8 + $0xb0] sm:$0xf]
    %v2262 = vld [vmem:[#allocation8 + $0xb4] sm:$0xff]
    %v2263 = vld [vmem:[#allocation8 + $0xbc] sm:$0xf]
    %v2296 = vunpack.c.l.b16 %v2232
    %v2297 = vunpack.c.h.b16 %v2232
    %v2298 = vunpack.c.l.b16 %v2233
    %v2299 = vunpack.c.l.b16 %v2234
    %v2300 = vunpack.c.h.b16 %v2234
    %v2301 = vunpack.c.l.b16 %v2235
    %v2302 = vunpack.c.l.b16 %v2236
    %v2303 = vunpack.c.h.b16 %v2236
    %v2304 = vunpack.c.l.b16 %v2237
    %v2305 = vunpack.c.l.b16 %v2238
    %v2306 = vunpack.c.h.b16 %v2238
    %v2307 = vunpack.c.l.b16 %v2239
    %v2308 = vunpack.c.l.b16 %v2240
    %v2309 = vunpack.c.h.b16 %v2240
    %v2310 = vunpack.c.l.b16 %v2241
    %v2311 = vunpack.c.l.b16 %v2242
    %v2312 = vunpack.c.h.b16 %v2242
    %v2313 = vunpack.c.l.b16 %v2243
    %v2314 = vunpack.c.l.b16 %v2244
    %v2315 = vunpack.c.h.b16 %v2244
    %v2316 = vunpack.c.l.b16 %v2245
    %v2317 = vunpack.c.l.b16 %v2246
    %v2318 = vunpack.c.h.b16 %v2246
    %v2319 = vunpack.c.l.b16 %v2247
    %v2320 = vunpack.c.l.b16 %v2248
    %v2321 = vunpack.c.h.b16 %v2248
    %v2322 = vunpack.c.l.b16 %v2249
    %v2323 = vunpack.c.l.b16 %v2250
    %v2324 = vunpack.c.h.b16 %v2250
    %v2325 = vunpack.c.l.b16 %v2251
    %v2326 = vunpack.c.l.b16 %v2252
    %v2327 = vunpack.c.h.b16 %v2252
    %v2328 = vunpack.c.l.b16 %v2253
    %v2329 = vunpack.c.l.b16 %v2254
    %v2330 = vunpack.c.h.b16 %v2254
    %v2331 = vunpack.c.l.b16 %v2255
    %v2332 = vunpack.c.l.b16 %v2256
    %v2333 = vunpack.c.h.b16 %v2256
    %v2334 = vunpack.c.l.b16 %v2257
    %v2335 = vunpack.c.l.b16 %v2258
    %v2336 = vunpack.c.h.b16 %v2258
    %v2337 = vunpack.c.l.b16 %v2259
    %v2338 = vunpack.c.l.b16 %v2260
    %v2339 = vunpack.c.h.b16 %v2260
    %v2340 = vunpack.c.l.b16 %v2261
    %v2341 = vunpack.c.l.b16 %v2262
    %v2342 = vunpack.c.h.b16 %v2262
    %v2343 = vunpack.c.l.b16 %v2263
    %v2344 = vpack.c.b16 %v2299, %v2296
    %v2345 = vpack.c.b16 %v2300, %v2297
    %v2346 = vpack.c.b16 %v2301, %v2298
    %v2347 = vpack.c.b16 %v2305, %v2302
    %v2348 = vpack.c.b16 %v2306, %v2303
    %v2349 = vpack.c.b16 %v2307, %v2304
    %v2350 = vpack.c.b16 %v2311, %v2308
    %v2351 = vpack.c.b16 %v2312, %v2309
    %v2352 = vpack.c.b16 %v2313, %v2310
    %v2353 = vpack.c.b16 %v2317, %v2314
    %v2354 = vpack.c.b16 %v2318, %v2315
    %v2355 = vpack.c.b16 %v2319, %v2316
    %v2356 = vpack.c.b16 %v2323, %v2320
    %v2357 = vpack.c.b16 %v2324, %v2321
    %v2358 = vpack.c.b16 %v2325, %v2322
    %v2359 = vpack.c.b16 %v2329, %v2326
    %v2360 = vpack.c.b16 %v2330, %v2327
    %v2361 = vpack.c.b16 %v2331, %v2328
    %v2362 = vpack.c.b16 %v2335, %v2332
    %v2363 = vpack.c.b16 %v2336, %v2333
    %v2364 = vpack.c.b16 %v2337, %v2334
    %v2365 = vpack.c.b16 %v2341, %v2338
    %v2366 = vpack.c.b16 %v2342, %v2339
    %v2367 = vpack.c.b16 %v2343, %v2340
    %2392 = vmatprep.subr.bf16.mxu0 %v2345
    %2393 = vmatpush1.bf16.msra.mxu0 %v2344
    %2394 = vmatprep.subr.bf16.mxu0 %v2348
    %2395 = vmatpush1.bf16.msra.mxu0 %v2347
    %2396 = vmatprep.subr.bf16.mxu0 %v2351
    %2397 = vmatpush1.bf16.msra.mxu0 %v2350
    %2398 = vmatprep.subr.bf16.mxu0 %v2354
    %2399 = vmatpush1.bf16.msra.mxu0 %v2353
    %2400 = vmatprep.subr.bf16.mxu0 %v2357
    %2401 = vmatpush1.bf16.msra.mxu0 %v2356
    %2402 = vmatprep.subr.bf16.mxu0 %v2360
    %2403 = vmatpush1.bf16.msra.mxu0 %v2359
    %2404 = vmatprep.subr.bf16.mxu0 %v2363
    %2405 = vmatpush1.bf16.msra.mxu0 %v2362
    %2406 = vmatprep.subr.bf16.mxu0 %v2366
    %2407 = vmatpush1.bf16.msra.mxu0 %v2365
    %2408 = vmatprep.subr.bf16.mxu0 0
    %2409 = vmatpush1.bf16.msra.mxu0 0
    %2410 = vmatprep.subr.bf16.mxu0 0
    %2411 = vmatpush1.bf16.msra.mxu0 0
    %2412 = vmatprep.subr.bf16.mxu0 0
    %2413 = vmatpush1.bf16.msra.mxu0 0
    %2414 = vmatprep.subr.bf16.mxu0 0
    %2415 = vmatpush1.bf16.msra.mxu0 0
    %2416 = vmatprep.subr.bf16.mxu0 0
    %2417 = vmatpush1.bf16.msra.mxu0 0
    %2418 = vmatprep.subr.bf16.mxu0 0
    %2419 = vmatpush1.bf16.msra.mxu0 0
    %2420 = vmatprep.subr.bf16.mxu0 0
    %2421 = vmatpush1.bf16.msra.mxu0 0
    %2422 = vmatprep.subr.bf16.mxu0 0
    %2423 = vmatpush1.bf16.msra.mxu0 0
    %2424 = vmatprep.mubr.bf16.mxu0 0
    %2425 = vmatmul.mubr.bf16.gmra.mrb[0].mxu0 %v2231
    %v2426 = vpop.f32.mrb[0].mxu0
    %v2427 = vadd.f32 0.0, %v2426
    %v2428 = vpop.f32.mrb[0].mxu0
    %v2429 = vadd.f32 0.0, %v2428
    %v2430 = vpop.f32.mrb[0].mxu0
    %v2431 = vpop.f32.mrb[0].mxu0
    %2432 = vdwg.mxu0
    %2433 = vmatprep.subr.bf16.mxu0 0
    %2434 = vmatpush1.bf16.msra.mxu0 %v2346
    %2435 = vmatprep.subr.bf16.mxu0 0
    %2436 = vmatpush1.bf16.msra.mxu0 %v2349
    %2437 = vmatprep.subr.bf16.mxu0 0
    %2438 = vmatpush1.bf16.msra.mxu0 %v2352
    %2439 = vmatprep.subr.bf16.mxu0 0
    %2440 = vmatpush1.bf16.msra.mxu0 %v2355
    %2441 = vmatprep.subr.bf16.mxu0 0
    %2442 = vmatpush1.bf16.msra.mxu0 %v2358
    %2443 = vmatprep.subr.bf16.mxu0 0
    %2444 = vmatpush1.bf16.msra.mxu0 %v2361
    %2445 = vmatprep.subr.bf16.mxu0 0
    %2446 = vmatpush1.bf16.msra.mxu0 %v2364
    %2447 = vmatprep.subr.bf16.mxu0 0
    %2448 = vmatpush1.bf16.msra.mxu0 %v2367
    %2449 = vmatprep.subr.bf16.mxu0 0
    %2450 = vmatpush1.bf16.msra.mxu0 0
    %2451 = vmatprep.subr.bf16.mxu0 0
    %2452 = vmatpush1.bf16.msra.mxu0 0
    %2453 = vmatprep.subr.bf16.mxu0 0
    %2454 = vmatpush1.bf16.msra.mxu0 0
    %2455 = vmatprep.subr.bf16.mxu0 0
    %2456 = vmatpush1.bf16.msra.mxu0 0
    %2457 = vmatprep.subr.bf16.mxu0 0
    %2458 = vmatpush1.bf16.msra.mxu0 0
    %2459 = vmatprep.subr.bf16.mxu0 0
    %2460 = vmatpush1.bf16.msra.mxu0 0
    %2461 = vmatprep.subr.bf16.mxu0 0
    %2462 = vmatpush1.bf16.msra.mxu0 0
    %2463 = vmatprep.subr.bf16.mxu0 0
    %2464 = vmatpush1.bf16.msra.mxu0 0
    %2465 = vmatprep.mubr.bf16.mxu0 0
    %2466 = vmatmul.mubr.bf16.gmra.mrb[0].mxu0 %v2231
    %v2467 = vpop.f32.mrb[0].mxu0
    %v2468 = vadd.f32 0.0, %v2467
    %v2469 = vpop.f32.mrb[0].mxu0
    %v2470 = vpop.f32.mrb[0].mxu0
    %v2471 = vpop.f32.mrb[0].mxu0
    %2472 = vdwg.mxu0
    %v2473 = vadd.f32 %v2228, %v2427
    %v2474 = vxor.u32 %v2473, 2147483648
    %v2475 = vmul.f32 %v2474, 1.442695
    %v2476 = vpow.pop %v2475
    %v2477 = vadd.f32 %v2476, 1.0
    %v2478 = vrcp.pop %v2477
    %v2479 = vmul.f32 1.0, %v2478
    %v2480 = vadd.f32 %v2229, %v2429
    %v2481 = vxor.u32 %v2480, 2147483648
    %v2482 = vmul.f32 %v2481, 1.442695
    %v2483 = vpow.pop %v2482
    %v2484 = vadd.f32 %v2483, 1.0
    %v2485 = vrcp.pop %v2484
    %v2486 = vmul.f32 1.0, %v2485
    %v2487 = vadd.f32 %v2468, %v574
    %v2488 = vmul.f32 %v2479, %v2487
    %v2489 = vadd.f32 %v2230, %v2488
    %v2490 = vtanh.pop %v2489
    %v2491 = vsub.f32 1.0, %v2486
    %v2492 = vmul.f32 %v2491, %v2490
    %v2493 = vmul.f32 %v2486, %v1946
    %v2494 = vadd.f32 %v2492, %v2493
    %s2495 = smul.u32 3, 2
    %s2496 = smul.addr %s2495, 8
    %s2497 = scalar_lea.vmem [#allocation3], %s2496
    %2498 = vst [vmem:[%s2497] sm:$0xff] %v2494
    %s2499 = smul.u32 4, 6
    %s2500 = smul.addr %s2499, 8
    %s2501 = scalar_lea.vmem [#allocation2], %s2500
    %v2502 = vld [vmem:[%s2501 + $0x18] sm:$0xff]
    %v2503 = vld [vmem:[%s2501 + $0x20] sm:$0xff]
    %v2504 = vld [vmem:[%s2501 + $0x28] sm:$0xff]
    %v2505 = vpack.c.bf16 %v2220, %v2220
    %v2506 = vld [vmem:[%s4] sm:$0xff]
    %v2507 = vld [vmem:[%s4 + $0x8] sm:$0xf]
    %v2508 = vld [vmem:[%s4 + $0xc] sm:$0xff]
    %v2509 = vld [vmem:[%s4 + $0x14] sm:$0xf]
    %v2510 = vld [vmem:[%s4 + $0x18] sm:$0xff]
    %v2511 = vld [vmem:[%s4 + $0x20] sm:$0xf]
    %v2512 = vld [vmem:[%s4 + $0x24] sm:$0xff]
    %v2513 = vld [vmem:[%s4 + $0x2c] sm:$0xf]
    %v2514 = vld [vmem:[%s4 + $0x30] sm:$0xff]
    %v2515 = vld [vmem:[%s4 + $0x38] sm:$0xf]
    %v2516 = vld [vmem:[%s4 + $0x3c] sm:$0xff]
    %v2517 = vld [vmem:[%s4 + $0x44] sm:$0xf]
    %v2518 = vld [vmem:[%s4 + $0x48] sm:$0xff]
    %v2519 = vld [vmem:[%s4 + $0x50] sm:$0xf]
    %v2520 = vld [vmem:[%s4 + $0x54] sm:$0xff]
    %v2521 = vld [vmem:[%s4 + $0x5c] sm:$0xf]
    %v2522 = vld [vmem:[%s4 + $0x60] sm:$0xff]
    %v2523 = vld [vmem:[%s4 + $0x68] sm:$0xf]
    %v2524 = vld [vmem:[%s4 + $0x6c] sm:$0xff]
    %v2525 = vld [vmem:[%s4 + $0x74] sm:$0xf]
    %v2526 = vld [vmem:[%s4 + $0x78] sm:$0xff]
    %v2527 = vld [vmem:[%s4 + $0x80] sm:$0xf]
    %v2528 = vld [vmem:[%s4 + $0x84] sm:$0xff]
    %v2529 = vld [vmem:[%s4 + $0x8c] sm:$0xf]
    %v2530 = vld [vmem:[%s4 + $0x90] sm:$0xff]
    %v2531 = vld [vmem:[%s4 + $0x98] sm:$0xf]
    %v2532 = vld [vmem:[%s4 + $0x9c] sm:$0xff]
    %v2533 = vld [vmem:[%s4 + $0xa4] sm:$0xf]
    %v2534 = vld [vmem:[%s4 + $0xa8] sm:$0xff]
    %v2535 = vld [vmem:[%s4 + $0xb0] sm:$0xf]
    %v2536 = vld [vmem:[%s4 + $0xb4] sm:$0xff]
    %v2537 = vld [vmem:[%s4 + $0xbc] sm:$0xf]
    %v2570 = vunpack.c.l.b16 %v2506
    %v2571 = vunpack.c.h.b16 %v2506
    %v2572 = vunpack.c.l.b16 %v2507
    %v2573 = vunpack.c.l.b16 %v2508
    %v2574 = vunpack.c.h.b16 %v2508
    %v2575 = vunpack.c.l.b16 %v2509
    %v2576 = vunpack.c.l.b16 %v2510
    %v2577 = vunpack.c.h.b16 %v2510
    %v2578 = vunpack.c.l.b16 %v2511
    %v2579 = vunpack.c.l.b16 %v2512
    %v2580 = vunpack.c.h.b16 %v2512
    %v2581 = vunpack.c.l.b16 %v2513
    %v2582 = vunpack.c.l.b16 %v2514
    %v2583 = vunpack.c.h.b16 %v2514
    %v2584 = vunpack.c.l.b16 %v2515
    %v2585 = vunpack.c.l.b16 %v2516
    %v2586 = vunpack.c.h.b16 %v2516
    %v2587 = vunpack.c.l.b16 %v2517
    %v2588 = vunpack.c.l.b16 %v2518
    %v2589 = vunpack.c.h.b16 %v2518
    %v2590 = vunpack.c.l.b16 %v2519
    %v2591 = vunpack.c.l.b16 %v2520
    %v2592 = vunpack.c.h.b16 %v2520
    %v2593 = vunpack.c.l.b16 %v2521
    %v2594 = vunpack.c.l.b16 %v2522
    %v2595 = vunpack.c.h.b16 %v2522
    %v2596 = vunpack.c.l.b16 %v2523
    %v2597 = vunpack.c.l.b16 %v2524
    %v2598 = vunpack.c.h.b16 %v2524
    %v2599 = vunpack.c.l.b16 %v2525
    %v2600 = vunpack.c.l.b16 %v2526
    %v2601 = vunpack.c.h.b16 %v2526
    %v2602 = vunpack.c.l.b16 %v2527
    %v2603 = vunpack.c.l.b16 %v2528
    %v2604 = vunpack.c.h.b16 %v2528
    %v2605 = vunpack.c.l.b16 %v2529
    %v2606 = vunpack.c.l.b16 %v2530
    %v2607 = vunpack.c.h.b16 %v2530
    %v2608 = vunpack.c.l.b16 %v2531
    %v2609 = vunpack.c.l.b16 %v2532
    %v2610 = vunpack.c.h.b16 %v2532
    %v2611 = vunpack.c.l.b16 %v2533
    %v2612 = vunpack.c.l.b16 %v2534
    %v2613 = vunpack.c.h.b16 %v2534
    %v2614 = vunpack.c.l.b16 %v2535
    %v2615 = vunpack.c.l.b16 %v2536
    %v2616 = vunpack.c.h.b16 %v2536
    %v2617 = vunpack.c.l.b16 %v2537
    %v2618 = vpack.c.b16 %v2573, %v2570
    %v2619 = vpack.c.b16 %v2574, %v2571
    %v2620 = vpack.c.b16 %v2575, %v2572
    %v2621 = vpack.c.b16 %v2579, %v2576
    %v2622 = vpack.c.b16 %v2580, %v2577
    %v2623 = vpack.c.b16 %v2581, %v2578
    %v2624 = vpack.c.b16 %v2585, %v2582
    %v2625 = vpack.c.b16 %v2586, %v2583
    %v2626 = vpack.c.b16 %v2587, %v2584
    %v2627 = vpack.c.b16 %v2591, %v2588
    %v2628 = vpack.c.b16 %v2592, %v2589
    %v2629 = vpack.c.b16 %v2593, %v2590
    %v2630 = vpack.c.b16 %v2597, %v2594
    %v2631 = vpack.c.b16 %v2598, %v2595
    %v2632 = vpack.c.b16 %v2599, %v2596
    %v2633 = vpack.c.b16 %v2603, %v2600
    %v2634 = vpack.c.b16 %v2604, %v2601
    %v2635 = vpack.c.b16 %v2605, %v2602
    %v2636 = vpack.c.b16 %v2609, %v2606
    %v2637 = vpack.c.b16 %v2610, %v2607
    %v2638 = vpack.c.b16 %v2611, %v2608
    %v2639 = vpack.c.b16 %v2615, %v2612
    %v2640 = vpack.c.b16 %v2616, %v2613
    %v2641 = vpack.c.b16 %v2617, %v2614
    %2666 = vmatprep.subr.bf16.mxu0 %v2619
    %2667 = vmatpush1.bf16.msra.mxu0 %v2618
    %2668 = vmatprep.subr.bf16.mxu0 %v2622
    %2669 = vmatpush1.bf16.msra.mxu0 %v2621
    %2670 = vmatprep.subr.bf16.mxu0 %v2625
    %2671 = vmatpush1.bf16.msra.mxu0 %v2624
    %2672 = vmatprep.subr.bf16.mxu0 %v2628
    %2673 = vmatpush1.bf16.msra.mxu0 %v2627
    %2674 = vmatprep.subr.bf16.mxu0 %v2631
    %2675 = vmatpush1.bf16.msra.mxu0 %v2630
    %2676 = vmatprep.subr.bf16.mxu0 %v2634
    %2677 = vmatpush1.bf16.msra.mxu0 %v2633
    %2678 = vmatprep.subr.bf16.mxu0 %v2637
    %2679 = vmatpush1.bf16.msra.mxu0 %v2636
    %2680 = vmatprep.subr.bf16.mxu0 %v2640
    %2681 = vmatpush1.bf16.msra.mxu0 %v2639
    %2682 = vmatprep.subr.bf16.mxu0 0
    %2683 = vmatpush1.bf16.msra.mxu0 0
    %2684 = vmatprep.subr.bf16.mxu0 0
    %2685 = vmatpush1.bf16.msra.mxu0 0
    %2686 = vmatprep.subr.bf16.mxu0 0
    %2687 = vmatpush1.bf16.msra.mxu0 0
    %2688 = vmatprep.subr.bf16.mxu0 0
    %2689 = vmatpush1.bf16.msra.mxu0 0
    %2690 = vmatprep.subr.bf16.mxu0 0
    %2691 = vmatpush1.bf16.msra.mxu0 0
    %2692 = vmatprep.subr.bf16.mxu0 0
    %2693 = vmatpush1.bf16.msra.mxu0 0
    %2694 = vmatprep.subr.bf16.mxu0 0
    %2695 = vmatpush1.bf16.msra.mxu0 0
    %2696 = vmatprep.subr.bf16.mxu0 0
    %2697 = vmatpush1.bf16.msra.mxu0 0
    %2698 = vmatprep.mubr.bf16.mxu0 0
    %2699 = vmatmul.mubr.bf16.gmra.mrb[0].mxu0 %v2505
    %v2700 = vpop.f32.mrb[0].mxu0
    %v2701 = vadd.f32 0.0, %v2700
    %v2702 = vpop.f32.mrb[0].mxu0
    %v2703 = vadd.f32 0.0, %v2702
    %v2704 = vpop.f32.mrb[0].mxu0
    %v2705 = vpop.f32.mrb[0].mxu0
    %2706 = vdwg.mxu0
    %2707 = vmatprep.subr.bf16.mxu0 0
    %2708 = vmatpush1.bf16.msra.mxu0 %v2620
    %2709 = vmatprep.subr.bf16.mxu0 0
    %2710 = vmatpush1.bf16.msra.mxu0 %v2623
    %2711 = vmatprep.subr.bf16.mxu0 0
    %2712 = vmatpush1.bf16.msra.mxu0 %v2626
    %2713 = vmatprep.subr.bf16.mxu0 0
    %2714 = vmatpush1.bf16.msra.mxu0 %v2629
    %2715 = vmatprep.subr.bf16.mxu0 0
    %2716 = vmatpush1.bf16.msra.mxu0 %v2632
    %2717 = vmatprep.subr.bf16.mxu0 0
    %2718 = vmatpush1.bf16.msra.mxu0 %v2635
    %2719 = vmatprep.subr.bf16.mxu0 0
    %2720 = vmatpush1.bf16.msra.mxu0 %v2638
    %2721 = vmatprep.subr.bf16.mxu0 0
    %2722 = vmatpush1.bf16.msra.mxu0 %v2641
    %2723 = vmatprep.subr.bf16.mxu0 0
    %2724 = vmatpush1.bf16.msra.mxu0 0
    %2725 = vmatprep.subr.bf16.mxu0 0
    %2726 = vmatpush1.bf16.msra.mxu0 0
    %2727 = vmatprep.subr.bf16.mxu0 0
    %2728 = vmatpush1.bf16.msra.mxu0 0
    %2729 = vmatprep.subr.bf16.mxu0 0
    %2730 = vmatpush1.bf16.msra.mxu0 0
    %2731 = vmatprep.subr.bf16.mxu0 0
    %2732 = vmatpush1.bf16.msra.mxu0 0
    %2733 = vmatprep.subr.bf16.mxu0 0
    %2734 = vmatpush1.bf16.msra.mxu0 0
    %2735 = vmatprep.subr.bf16.mxu0 0
    %2736 = vmatpush1.bf16.msra.mxu0 0
    %2737 = vmatprep.subr.bf16.mxu0 0
    %2738 = vmatpush1.bf16.msra.mxu0 0
    %2739 = vmatprep.mubr.bf16.mxu0 0
    %2740 = vmatmul.mubr.bf16.gmra.mrb[0].mxu0 %v2505
    %v2741 = vpop.f32.mrb[0].mxu0
    %v2742 = vadd.f32 0.0, %v2741
    %v2743 = vpop.f32.mrb[0].mxu0
    %v2744 = vpop.f32.mrb[0].mxu0
    %v2745 = vpop.f32.mrb[0].mxu0
    %2746 = vdwg.mxu0
    %v2747 = vadd.f32 %v2502, %v2701
    %v2748 = vxor.u32 %v2747, 2147483648
    %v2749 = vmul.f32 %v2748, 1.442695
    %v2750 = vpow.pop %v2749
    %v2751 = vadd.f32 %v2750, 1.0
    %v2752 = vrcp.pop %v2751
    %v2753 = vmul.f32 1.0, %v2752
    %v2754 = vadd.f32 %v2503, %v2703
    %v2755 = vxor.u32 %v2754, 2147483648
    %v2756 = vmul.f32 %v2755, 1.442695
    %v2757 = vpow.pop %v2756
    %v2758 = vadd.f32 %v2757, 1.0
    %v2759 = vrcp.pop %v2758
    %v2760 = vmul.f32 1.0, %v2759
    %v2761 = vadd.f32 %v2742, %v581
    %v2762 = vmul.f32 %v2753, %v2761
    %v2763 = vadd.f32 %v2504, %v2762
    %v2764 = vtanh.pop %v2763
    %v2765 = vsub.f32 1.0, %v2760
    %v2766 = vmul.f32 %v2765, %v2764
    %v2767 = vmul.f32 %v2760, %v2220
    %v2768 = vadd.f32 %v2766, %v2767
    %s2769 = smul.u32 4, 2
    %s2770 = smul.addr %s2769, 8
    %s2771 = scalar_lea.vmem [#allocation3], %s2770
    %2772 = vst [vmem:[%s2771 + $0x8] sm:$0xff] %v2768
    %v2773 = vld [vmem:[%s2501] sm:$0xff]
    %v2774 = vld [vmem:[%s2501 + $0x8] sm:$0xff]
    %v2775 = vld [vmem:[%s2501 + $0x10] sm:$0xff]
    %v2776 = vpack.c.bf16 %v2494, %v2494
    %v2777 = vld [vmem:[#allocation8] sm:$0xff]
    %v2778 = vld [vmem:[#allocation8 + $0x8] sm:$0xf]
    %v2779 = vld [vmem:[#allocation8 + $0xc] sm:$0xff]
    %v2780 = vld [vmem:[#allocation8 + $0x14] sm:$0xf]
    %v2781 = vld [vmem:[#allocation8 + $0x18] sm:$0xff]
    %v2782 = vld [vmem:[#allocation8 + $0x20] sm:$0xf]
    %v2783 = vld [vmem:[#allocation8 + $0x24] sm:$0xff]
    %v2784 = vld [vmem:[#allocation8 + $0x2c] sm:$0xf]
    %v2785 = vld [vmem:[#allocation8 + $0x30] sm:$0xff]
    %v2786 = vld [vmem:[#allocation8 + $0x38] sm:$0xf]
    %v2787 = vld [vmem:[#allocation8 + $0x3c] sm:$0xff]
    %v2788 = vld [vmem:[#allocation8 + $0x44] sm:$0xf]
    %v2789 = vld [vmem:[#allocation8 + $0x48] sm:$0xff]
    %v2790 = vld [vmem:[#allocation8 + $0x50] sm:$0xf]
    %v2791 = vld [vmem:[#allocation8 + $0x54] sm:$0xff]
    %v2792 = vld [vmem:[#allocation8 + $0x5c] sm:$0xf]
    %v2793 = vld [vmem:[#allocation8 + $0x60] sm:$0xff]
    %v2794 = vld [vmem:[#allocation8 + $0x68] sm:$0xf]
    %v2795 = vld [vmem:[#allocation8 + $0x6c] sm:$0xff]
    %v2796 = vld [vmem:[#allocation8 + $0x74] sm:$0xf]
    %v2797 = vld [vmem:[#allocation8 + $0x78] sm:$0xff]
    %v2798 = vld [vmem:[#allocation8 + $0x80] sm:$0xf]
    %v2799 = vld [vmem:[#allocation8 + $0x84] sm:$0xff]
    %v2800 = vld [vmem:[#allocation8 + $0x8c] sm:$0xf]
    %v2801 = vld [vmem:[#allocation8 + $0x90] sm:$0xff]
    %v2802 = vld [vmem:[#allocation8 + $0x98] sm:$0xf]
    %v2803 = vld [vmem:[#allocation8 + $0x9c] sm:$0xff]
    %v2804 = vld [vmem:[#allocation8 + $0xa4] sm:$0xf]
    %v2805 = vld [vmem:[#allocation8 + $0xa8] sm:$0xff]
    %v2806 = vld [vmem:[#allocation8 + $0xb0] sm:$0xf]
    %v2807 = vld [vmem:[#allocation8 + $0xb4] sm:$0xff]
    %v2808 = vld [vmem:[#allocation8 + $0xbc] sm:$0xf]
    %v2841 = vunpack.c.l.b16 %v2777
    %v2842 = vunpack.c.h.b16 %v2777
    %v2843 = vunpack.c.l.b16 %v2778
    %v2844 = vunpack.c.l.b16 %v2779
    %v2845 = vunpack.c.h.b16 %v2779
    %v2846 = vunpack.c.l.b16 %v2780
    %v2847 = vunpack.c.l.b16 %v2781
    %v2848 = vunpack.c.h.b16 %v2781
    %v2849 = vunpack.c.l.b16 %v2782
    %v2850 = vunpack.c.l.b16 %v2783
    %v2851 = vunpack.c.h.b16 %v2783
    %v2852 = vunpack.c.l.b16 %v2784
    %v2853 = vunpack.c.l.b16 %v2785
    %v2854 = vunpack.c.h.b16 %v2785
    %v2855 = vunpack.c.l.b16 %v2786
    %v2856 = vunpack.c.l.b16 %v2787
    %v2857 = vunpack.c.h.b16 %v2787
    %v2858 = vunpack.c.l.b16 %v2788
    %v2859 = vunpack.c.l.b16 %v2789
    %v2860 = vunpack.c.h.b16 %v2789
    %v2861 = vunpack.c.l.b16 %v2790
    %v2862 = vunpack.c.l.b16 %v2791
    %v2863 = vunpack.c.h.b16 %v2791
    %v2864 = vunpack.c.l.b16 %v2792
    %v2865 = vunpack.c.l.b16 %v2793
    %v2866 = vunpack.c.h.b16 %v2793
    %v2867 = vunpack.c.l.b16 %v2794
    %v2868 = vunpack.c.l.b16 %v2795
    %v2869 = vunpack.c.h.b16 %v2795
    %v2870 = vunpack.c.l.b16 %v2796
    %v2871 = vunpack.c.l.b16 %v2797
    %v2872 = vunpack.c.h.b16 %v2797
    %v2873 = vunpack.c.l.b16 %v2798
    %v2874 = vunpack.c.l.b16 %v2799
    %v2875 = vunpack.c.h.b16 %v2799
    %v2876 = vunpack.c.l.b16 %v2800
    %v2877 = vunpack.c.l.b16 %v2801
    %v2878 = vunpack.c.h.b16 %v2801
    %v2879 = vunpack.c.l.b16 %v2802
    %v2880 = vunpack.c.l.b16 %v2803
    %v2881 = vunpack.c.h.b16 %v2803
    %v2882 = vunpack.c.l.b16 %v2804
    %v2883 = vunpack.c.l.b16 %v2805
    %v2884 = vunpack.c.h.b16 %v2805
    %v2885 = vunpack.c.l.b16 %v2806
    %v2886 = vunpack.c.l.b16 %v2807
    %v2887 = vunpack.c.h.b16 %v2807
    %v2888 = vunpack.c.l.b16 %v2808
    %v2889 = vpack.c.b16 %v2844, %v2841
    %v2890 = vpack.c.b16 %v2845, %v2842
    %v2891 = vpack.c.b16 %v2846, %v2843
    %v2892 = vpack.c.b16 %v2850, %v2847
    %v2893 = vpack.c.b16 %v2851, %v2848
    %v2894 = vpack.c.b16 %v2852, %v2849
    %v2895 = vpack.c.b16 %v2856, %v2853
    %v2896 = vpack.c.b16 %v2857, %v2854
    %v2897 = vpack.c.b16 %v2858, %v2855
    %v2898 = vpack.c.b16 %v2862, %v2859
    %v2899 = vpack.c.b16 %v2863, %v2860
    %v2900 = vpack.c.b16 %v2864, %v2861
    %v2901 = vpack.c.b16 %v2868, %v2865
    %v2902 = vpack.c.b16 %v2869, %v2866
    %v2903 = vpack.c.b16 %v2870, %v2867
    %v2904 = vpack.c.b16 %v2874, %v2871
    %v2905 = vpack.c.b16 %v2875, %v2872
    %v2906 = vpack.c.b16 %v2876, %v2873
    %v2907 = vpack.c.b16 %v2880, %v2877
    %v2908 = vpack.c.b16 %v2881, %v2878
    %v2909 = vpack.c.b16 %v2882, %v2879
    %v2910 = vpack.c.b16 %v2886, %v2883
    %v2911 = vpack.c.b16 %v2887, %v2884
    %v2912 = vpack.c.b16 %v2888, %v2885
    %2937 = vmatprep.subr.bf16.mxu0 %v2890
    %2938 = vmatpush1.bf16.msra.mxu0 %v2889
    %2939 = vmatprep.subr.bf16.mxu0 %v2893
    %2940 = vmatpush1.bf16.msra.mxu0 %v2892
    %2941 = vmatprep.subr.bf16.mxu0 %v2896
    %2942 = vmatpush1.bf16.msra.mxu0 %v2895
    %2943 = vmatprep.subr.bf16.mxu0 %v2899
    %2944 = vmatpush1.bf16.msra.mxu0 %v2898
    %2945 = vmatprep.subr.bf16.mxu0 %v2902
    %2946 = vmatpush1.bf16.msra.mxu0 %v2901
    %2947 = vmatprep.subr.bf16.mxu0 %v2905
    %2948 = vmatpush1.bf16.msra.mxu0 %v2904
    %2949 = vmatprep.subr.bf16.mxu0 %v2908
    %2950 = vmatpush1.bf16.msra.mxu0 %v2907
    %2951 = vmatprep.subr.bf16.mxu0 %v2911
    %2952 = vmatpush1.bf16.msra.mxu0 %v2910
    %2953 = vmatprep.subr.bf16.mxu0 0
    %2954 = vmatpush1.bf16.msra.mxu0 0
    %2955 = vmatprep.subr.bf16.mxu0 0
    %2956 = vmatpush1.bf16.msra.mxu0 0
    %2957 = vmatprep.subr.bf16.mxu0 0
    %2958 = vmatpush1.bf16.msra.mxu0 0
    %2959 = vmatprep.subr.bf16.mxu0 0
    %2960 = vmatpush1.bf16.msra.mxu0 0
    %2961 = vmatprep.subr.bf16.mxu0 0
    %2962 = vmatpush1.bf16.msra.mxu0 0
    %2963 = vmatprep.subr.bf16.mxu0 0
    %2964 = vmatpush1.bf16.msra.mxu0 0
    %2965 = vmatprep.subr.bf16.mxu0 0
    %2966 = vmatpush1.bf16.msra.mxu0 0
    %2967 = vmatprep.subr.bf16.mxu0 0
    %2968 = vmatpush1.bf16.msra.mxu0 0
    %2969 = vmatprep.mubr.bf16.mxu0 0
    %2970 = vmatmul.mubr.bf16.gmra.mrb[0].mxu0 %v2776
    %v2971 = vpop.f32.mrb[0].mxu0
    %v2972 = vadd.f32 0.0, %v2971
    %v2973 = vpop.f32.mrb[0].mxu0
    %v2974 = vadd.f32 0.0, %v2973
    %v2975 = vpop.f32.mrb[0].mxu0
    %v2976 = vpop.f32.mrb[0].mxu0
    %2977 = vdwg.mxu0
    %2978 = vmatprep.subr.bf16.mxu0 0
    %2979 = vmatpush1.bf16.msra.mxu0 %v2891
    %2980 = vmatprep.subr.bf16.mxu0 0
    %2981 = vmatpush1.bf16.msra.mxu0 %v2894
    %2982 = vmatprep.subr.bf16.mxu0 0
    %2983 = vmatpush1.bf16.msra.mxu0 %v2897
    %2984 = vmatprep.subr.bf16.mxu0 0
    %2985 = vmatpush1.bf16.msra.mxu0 %v2900
    %2986 = vmatprep.subr.bf16.mxu0 0
    %2987 = vmatpush1.bf16.msra.mxu0 %v2903
    %2988 = vmatprep.subr.bf16.mxu0 0
    %2989 = vmatpush1.bf16.msra.mxu0 %v2906
    %2990 = vmatprep.subr.bf16.mxu0 0
    %2991 = vmatpush1.bf16.msra.mxu0 %v2909
    %2992 = vmatprep.subr.bf16.mxu0 0
    %2993 = vmatpush1.bf16.msra.mxu0 %v2912
    %2994 = vmatprep.subr.bf16.mxu0 0
    %2995 = vmatpush1.bf16.msra.mxu0 0
    %2996 = vmatprep.subr.bf16.mxu0 0
    %2997 = vmatpush1.bf16.msra.mxu0 0
    %2998 = vmatprep.subr.bf16.mxu0 0
    %2999 = vmatpush1.bf16.msra.mxu0 0
    %3000 = vmatprep.subr.bf16.mxu0 0
    %3001 = vmatpush1.bf16.msra.mxu0 0
    %3002 = vmatprep.subr.bf16.mxu0 0
    %3003 = vmatpush1.bf16.msra.mxu0 0
    %3004 = vmatprep.subr.bf16.mxu0 0
    %3005 = vmatpush1.bf16.msra.mxu0 0
    %3006 = vmatprep.subr.bf16.mxu0 0
    %3007 = vmatpush1.bf16.msra.mxu0 0
    %3008 = vmatprep.subr.bf16.mxu0 0
    %3009 = vmatpush1.bf16.msra.mxu0 0
    %3010 = vmatprep.mubr.bf16.mxu0 0
    %3011 = vmatmul.mubr.bf16.gmra.mrb[0].mxu0 %v2776
    %v3012 = vpop.f32.mrb[0].mxu0
    %v3013 = vadd.f32 0.0, %v3012
    %v3014 = vpop.f32.mrb[0].mxu0
    %v3015 = vpop.f32.mrb[0].mxu0
    %v3016 = vpop.f32.mrb[0].mxu0
    %3017 = vdwg.mxu0
    %v3018 = vadd.f32 %v2773, %v2972
    %v3019 = vxor.u32 %v3018, 2147483648
    %v3020 = vmul.f32 %v3019, 1.442695
    %v3021 = vpow.pop %v3020
    %v3022 = vadd.f32 %v3021, 1.0
    %v3023 = vrcp.pop %v3022
    %v3024 = vmul.f32 1.0, %v3023
    %v3025 = vadd.f32 %v2774, %v2974
    %v3026 = vxor.u32 %v3025, 2147483648
    %v3027 = vmul.f32 %v3026, 1.442695
    %v3028 = vpow.pop %v3027
    %v3029 = vadd.f32 %v3028, 1.0
    %v3030 = vrcp.pop %v3029
    %v3031 = vmul.f32 1.0, %v3030
    %v3032 = vadd.f32 %v3013, %v574
    %v3033 = vmul.f32 %v3024, %v3032
    %v3034 = vadd.f32 %v2775, %v3033
    %v3035 = vtanh.pop %v3034
    %v3036 = vsub.f32 1.0, %v3031
    %v3037 = vmul.f32 %v3036, %v3035
    %v3038 = vmul.f32 %v3031, %v2494
    %v3039 = vadd.f32 %v3037, %v3038
    %3040 = vst [vmem:[%s2771] sm:$0xff] %v3039
    %v3041 = vld [vmem:[%s2227 + $0x18] sm:$0xff]
    %v3042 = vld [vmem:[%s2227 + $0x20] sm:$0xff]
    %v3043 = vld [vmem:[%s2227 + $0x28] sm:$0xff]
    %v3044 = vpack.c.bf16 %v2768, %v2768
    %v3045 = vld [vmem:[%s4] sm:$0xff]
    %v3046 = vld [vmem:[%s4 + $0x8] sm:$0xf]
    %v3047 = vld [vmem:[%s4 + $0xc] sm:$0xff]
    %v3048 = vld [vmem:[%s4 + $0x14] sm:$0xf]
    %v3049 = vld [vmem:[%s4 + $0x18] sm:$0xff]
    %v3050 = vld [vmem:[%s4 + $0x20] sm:$0xf]
    %v3051 = vld [vmem:[%s4 + $0x24] sm:$0xff]
    %v3052 = vld [vmem:[%s4 + $0x2c] sm:$0xf]
    %v3053 = vld [vmem:[%s4 + $0x30] sm:$0xff]
    %v3054 = vld [vmem:[%s4 + $0x38] sm:$0xf]
    %v3055 = vld [vmem:[%s4 + $0x3c] sm:$0xff]
    %v3056 = vld [vmem:[%s4 + $0x44] sm:$0xf]
    %v3057 = vld [vmem:[%s4 + $0x48] sm:$0xff]
    %v3058 = vld [vmem:[%s4 + $0x50] sm:$0xf]
    %v3059 = vld [vmem:[%s4 + $0x54] sm:$0xff]
    %v3060 = vld [vmem:[%s4 + $0x5c] sm:$0xf]
    %v3061 = vld [vmem:[%s4 + $0x60] sm:$0xff]
    %v3062 = vld [vmem:[%s4 + $0x68] sm:$0xf]
    %v3063 = vld [vmem:[%s4 + $0x6c] sm:$0xff]
    %v3064 = vld [vmem:[%s4 + $0x74] sm:$0xf]
    %v3065 = vld [vmem:[%s4 + $0x78] sm:$0xff]
    %v3066 = vld [vmem:[%s4 + $0x80] sm:$0xf]
    %v3067 = vld [vmem:[%s4 + $0x84] sm:$0xff]
    %v3068 = vld [vmem:[%s4 + $0x8c] sm:$0xf]
    %v3069 = vld [vmem:[%s4 + $0x90] sm:$0xff]
    %v3070 = vld [vmem:[%s4 + $0x98] sm:$0xf]
    %v3071 = vld [vmem:[%s4 + $0x9c] sm:$0xff]
    %v3072 = vld [vmem:[%s4 + $0xa4] sm:$0xf]
    %v3073 = vld [vmem:[%s4 + $0xa8] sm:$0xff]
    %v3074 = vld [vmem:[%s4 + $0xb0] sm:$0xf]
    %v3075 = vld [vmem:[%s4 + $0xb4] sm:$0xff]
    %v3076 = vld [vmem:[%s4 + $0xbc] sm:$0xf]
    %v3109 = vunpack.c.l.b16 %v3045
    %v3110 = vunpack.c.h.b16 %v3045
    %v3111 = vunpack.c.l.b16 %v3046
    %v3112 = vunpack.c.l.b16 %v3047
    %v3113 = vunpack.c.h.b16 %v3047
    %v3114 = vunpack.c.l.b16 %v3048
    %v3115 = vunpack.c.l.b16 %v3049
    %v3116 = vunpack.c.h.b16 %v3049
    %v3117 = vunpack.c.l.b16 %v3050
    %v3118 = vunpack.c.l.b16 %v3051
    %v3119 = vunpack.c.h.b16 %v3051
    %v3120 = vunpack.c.l.b16 %v3052
    %v3121 = vunpack.c.l.b16 %v3053
    %v3122 = vunpack.c.h.b16 %v3053
    %v3123 = vunpack.c.l.b16 %v3054
    %v3124 = vunpack.c.l.b16 %v3055
    %v3125 = vunpack.c.h.b16 %v3055
    %v3126 = vunpack.c.l.b16 %v3056
    %v3127 = vunpack.c.l.b16 %v3057
    %v3128 = vunpack.c.h.b16 %v3057
    %v3129 = vunpack.c.l.b16 %v3058
    %v3130 = vunpack.c.l.b16 %v3059
    %v3131 = vunpack.c.h.b16 %v3059
    %v3132 = vunpack.c.l.b16 %v3060
    %v3133 = vunpack.c.l.b16 %v3061
    %v3134 = vunpack.c.h.b16 %v3061
    %v3135 = vunpack.c.l.b16 %v3062
    %v3136 = vunpack.c.l.b16 %v3063
    %v3137 = vunpack.c.h.b16 %v3063
    %v3138 = vunpack.c.l.b16 %v3064
    %v3139 = vunpack.c.l.b16 %v3065
    %v3140 = vunpack.c.h.b16 %v3065
    %v3141 = vunpack.c.l.b16 %v3066
    %v3142 = vunpack.c.l.b16 %v3067
    %v3143 = vunpack.c.h.b16 %v3067
    %v3144 = vunpack.c.l.b16 %v3068
    %v3145 = vunpack.c.l.b16 %v3069
    %v3146 = vunpack.c.h.b16 %v3069
    %v3147 = vunpack.c.l.b16 %v3070
    %v3148 = vunpack.c.l.b16 %v3071
    %v3149 = vunpack.c.h.b16 %v3071
    %v3150 = vunpack.c.l.b16 %v3072
    %v3151 = vunpack.c.l.b16 %v3073
    %v3152 = vunpack.c.h.b16 %v3073
    %v3153 = vunpack.c.l.b16 %v3074
    %v3154 = vunpack.c.l.b16 %v3075
    %v3155 = vunpack.c.h.b16 %v3075
    %v3156 = vunpack.c.l.b16 %v3076
    %v3157 = vpack.c.b16 %v3112, %v3109
    %v3158 = vpack.c.b16 %v3113, %v3110
    %v3159 = vpack.c.b16 %v3114, %v3111
    %v3160 = vpack.c.b16 %v3118, %v3115
    %v3161 = vpack.c.b16 %v3119, %v3116
    %v3162 = vpack.c.b16 %v3120, %v3117
    %v3163 = vpack.c.b16 %v3124, %v3121
    %v3164 = vpack.c.b16 %v3125, %v3122
    %v3165 = vpack.c.b16 %v3126, %v3123
    %v3166 = vpack.c.b16 %v3130, %v3127
    %v3167 = vpack.c.b16 %v3131, %v3128
    %v3168 = vpack.c.b16 %v3132, %v3129
    %v3169 = vpack.c.b16 %v3136, %v3133
    %v3170 = vpack.c.b16 %v3137, %v3134
    %v3171 = vpack.c.b16 %v3138, %v3135
    %v3172 = vpack.c.b16 %v3142, %v3139
    %v3173 = vpack.c.b16 %v3143, %v3140
    %v3174 = vpack.c.b16 %v3144, %v3141
    %v3175 = vpack.c.b16 %v3148, %v3145
    %v3176 = vpack.c.b16 %v3149, %v3146
    %v3177 = vpack.c.b16 %v3150, %v3147
    %v3178 = vpack.c.b16 %v3154, %v3151
    %v3179 = vpack.c.b16 %v3155, %v3152
    %v3180 = vpack.c.b16 %v3156, %v3153
    %3205 = vmatprep.subr.bf16.mxu0 %v3158
    %3206 = vmatpush1.bf16.msra.mxu0 %v3157
    %3207 = vmatprep.subr.bf16.mxu0 %v3161
    %3208 = vmatpush1.bf16.msra.mxu0 %v3160
    %3209 = vmatprep.subr.bf16.mxu0 %v3164
    %3210 = vmatpush1.bf16.msra.mxu0 %v3163
    %3211 = vmatprep.subr.bf16.mxu0 %v3167
    %3212 = vmatpush1.bf16.msra.mxu0 %v3166
    %3213 = vmatprep.subr.bf16.mxu0 %v3170
    %3214 = vmatpush1.bf16.msra.mxu0 %v3169
    %3215 = vmatprep.subr.bf16.mxu0 %v3173
    %3216 = vmatpush1.bf16.msra.mxu0 %v3172
    %3217 = vmatprep.subr.bf16.mxu0 %v3176
    %3218 = vmatpush1.bf16.msra.mxu0 %v3175
    %3219 = vmatprep.subr.bf16.mxu0 %v3179
    %3220 = vmatpush1.bf16.msra.mxu0 %v3178
    %3221 = vmatprep.subr.bf16.mxu0 0
    %3222 = vmatpush1.bf16.msra.mxu0 0
    %3223 = vmatprep.subr.bf16.mxu0 0
    %3224 = vmatpush1.bf16.msra.mxu0 0
    %3225 = vmatprep.subr.bf16.mxu0 0
    %3226 = vmatpush1.bf16.msra.mxu0 0
    %3227 = vmatprep.subr.bf16.mxu0 0
    %3228 = vmatpush1.bf16.msra.mxu0 0
    %3229 = vmatprep.subr.bf16.mxu0 0
    %3230 = vmatpush1.bf16.msra.mxu0 0
    %3231 = vmatprep.subr.bf16.mxu0 0
    %3232 = vmatpush1.bf16.msra.mxu0 0
    %3233 = vmatprep.subr.bf16.mxu0 0
    %3234 = vmatpush1.bf16.msra.mxu0 0
    %3235 = vmatprep.subr.bf16.mxu0 0
    %3236 = vmatpush1.bf16.msra.mxu0 0
    %3237 = vmatprep.mubr.bf16.mxu0 0
    %3238 = vmatmul.mubr.bf16.gmra.mrb[0].mxu0 %v3044
    %v3239 = vpop.f32.mrb[0].mxu0
    %v3240 = vadd.f32 0.0, %v3239
    %v3241 = vpop.f32.mrb[0].mxu0
    %v3242 = vadd.f32 0.0, %v3241
    %v3243 = vpop.f32.mrb[0].mxu0
    %v3244 = vpop.f32.mrb[0].mxu0
    %3245 = vdwg.mxu0
    %3246 = vmatprep.subr.bf16.mxu0 0
    %3247 = vmatpush1.bf16.msra.mxu0 %v3159
    %3248 = vmatprep.subr.bf16.mxu0 0
    %3249 = vmatpush1.bf16.msra.mxu0 %v3162
    %3250 = vmatprep.subr.bf16.mxu0 0
    %3251 = vmatpush1.bf16.msra.mxu0 %v3165
    %3252 = vmatprep.subr.bf16.mxu0 0
    %3253 = vmatpush1.bf16.msra.mxu0 %v3168
    %3254 = vmatprep.subr.bf16.mxu0 0
    %3255 = vmatpush1.bf16.msra.mxu0 %v3171
    %3256 = vmatprep.subr.bf16.mxu0 0
    %3257 = vmatpush1.bf16.msra.mxu0 %v3174
    %3258 = vmatprep.subr.bf16.mxu0 0
    %3259 = vmatpush1.bf16.msra.mxu0 %v3177
    %3260 = vmatprep.subr.bf16.mxu0 0
    %3261 = vmatpush1.bf16.msra.mxu0 %v3180
    %3262 = vmatprep.subr.bf16.mxu0 0
    %3263 = vmatpush1.bf16.msra.mxu0 0
    %3264 = vmatprep.subr.bf16.mxu0 0
    %3265 = vmatpush1.bf16.msra.mxu0 0
    %3266 = vmatprep.subr.bf16.mxu0 0
    %3267 = vmatpush1.bf16.msra.mxu0 0
    %3268 = vmatprep.subr.bf16.mxu0 0
    %3269 = vmatpush1.bf16.msra.mxu0 0
    %3270 = vmatprep.subr.bf16.mxu0 0
    %3271 = vmatpush1.bf16.msra.mxu0 0
    %3272 = vmatprep.subr.bf16.mxu0 0
    %3273 = vmatpush1.bf16.msra.mxu0 0
    %3274 = vmatprep.subr.bf16.mxu0 0
    %3275 = vmatpush1.bf16.msra.mxu0 0
    %3276 = vmatprep.subr.bf16.mxu0 0
    %3277 = vmatpush1.bf16.msra.mxu0 0
    %3278 = vmatprep.mubr.bf16.mxu0 0
    %3279 = vmatmul.mubr.bf16.gmra.mrb[0].mxu0 %v3044
    %v3280 = vpop.f32.mrb[0].mxu0
    %v3281 = vadd.f32 0.0, %v3280
    %v3282 = vpop.f32.mrb[0].mxu0
    %v3283 = vpop.f32.mrb[0].mxu0
    %v3284 = vpop.f32.mrb[0].mxu0
    %3285 = vdwg.mxu0
    %v3286 = vadd.f32 %v3041, %v3240
    %v3287 = vxor.u32 %v3286, 2147483648
    %v3288 = vmul.f32 %v3287, 1.442695
    %v3289 = vpow.pop %v3288
    %v3290 = vadd.f32 %v3289, 1.0
    %v3291 = vrcp.pop %v3290
    %v3292 = vmul.f32 1.0, %v3291
    %v3293 = vadd.f32 %v3042, %v3242
    %v3294 = vxor.u32 %v3293, 2147483648
    %v3295 = vmul.f32 %v3294, 1.442695
    %v3296 = vpow.pop %v3295
    %v3297 = vadd.f32 %v3296, 1.0
    %v3298 = vrcp.pop %v3297
    %v3299 = vmul.f32 1.0, %v3298
    %v3300 = vadd.f32 %v3281, %v581
    %v3301 = vmul.f32 %v3292, %v3300
    %v3302 = vadd.f32 %v3043, %v3301
    %v3303 = vtanh.pop %v3302
    %v3304 = vsub.f32 1.0, %v3299
    %v3305 = vmul.f32 %v3304, %v3303
    %v3306 = vmul.f32 %v3299, %v2768
    %v3307 = vadd.f32 %v3305, %v3306
    %3308 = vst [vmem:[%s2497 + $0x8] sm:$0xff] %v3307
    %v3309 = vld [vmem:[%s1953] sm:$0xff]
    %v3310 = vld [vmem:[%s1953 + $0x8] sm:$0xff]
    %v3311 = vld [vmem:[%s1953 + $0x10] sm:$0xff]
    %v3312 = vpack.c.bf16 %v3039, %v3039
    %v3313 = vld [vmem:[#allocation8] sm:$0xff]
    %v3314 = vld [vmem:[#allocation8 + $0x8] sm:$0xf]
    %v3315 = vld [vmem:[#allocation8 + $0xc] sm:$0xff]
    %v3316 = vld [vmem:[#allocation8 + $0x14] sm:$0xf]
    %v3317 = vld [vmem:[#allocation8 + $0x18] sm:$0xff]
    %v3318 = vld [vmem:[#allocation8 + $0x20] sm:$0xf]
    %v3319 = vld [vmem:[#allocation8 + $0x24] sm:$0xff]
    %v3320 = vld [vmem:[#allocation8 + $0x2c] sm:$0xf]
    %v3321 = vld [vmem:[#allocation8 + $0x30] sm:$0xff]
    %v3322 = vld [vmem:[#allocation8 + $0x38] sm:$0xf]
    %v3323 = vld [vmem:[#allocation8 + $0x3c] sm:$0xff]
    %v3324 = vld [vmem:[#allocation8 + $0x44] sm:$0xf]
    %v3325 = vld [vmem:[#allocation8 + $0x48] sm:$0xff]
    %v3326 = vld [vmem:[#allocation8 + $0x50] sm:$0xf]
    %v3327 = vld [vmem:[#allocation8 + $0x54] sm:$0xff]
    %v3328 = vld [vmem:[#allocation8 + $0x5c] sm:$0xf]
    %v3329 = vld [vmem:[#allocation8 + $0x60] sm:$0xff]
    %v3330 = vld [vmem:[#allocation8 + $0x68] sm:$0xf]
    %v3331 = vld [vmem:[#allocation8 + $0x6c] sm:$0xff]
    %v3332 = vld [vmem:[#allocation8 + $0x74] sm:$0xf]
    %v3333 = vld [vmem:[#allocation8 + $0x78] sm:$0xff]
    %v3334 = vld [vmem:[#allocation8 + $0x80] sm:$0xf]
    %v3335 = vld [vmem:[#allocation8 + $0x84] sm:$0xff]
    %v3336 = vld [vmem:[#allocation8 + $0x8c] sm:$0xf]
    %v3337 = vld [vmem:[#allocation8 + $0x90] sm:$0xff]
    %v3338 = vld [vmem:[#allocation8 + $0x98] sm:$0xf]
    %v3339 = vld [vmem:[#allocation8 + $0x9c] sm:$0xff]
    %v3340 = vld [vmem:[#allocation8 + $0xa4] sm:$0xf]
    %v3341 = vld [vmem:[#allocation8 + $0xa8] sm:$0xff]
    %v3342 = vld [vmem:[#allocation8 + $0xb0] sm:$0xf]
    %v3343 = vld [vmem:[#allocation8 + $0xb4] sm:$0xff]
    %v3344 = vld [vmem:[#allocation8 + $0xbc] sm:$0xf]
    %v3377 = vunpack.c.l.b16 %v3313
    %v3378 = vunpack.c.h.b16 %v3313
    %v3379 = vunpack.c.l.b16 %v3314
    %v3380 = vunpack.c.l.b16 %v3315
    %v3381 = vunpack.c.h.b16 %v3315
    %v3382 = vunpack.c.l.b16 %v3316
    %v3383 = vunpack.c.l.b16 %v3317
    %v3384 = vunpack.c.h.b16 %v3317
    %v3385 = vunpack.c.l.b16 %v3318
    %v3386 = vunpack.c.l.b16 %v3319
    %v3387 = vunpack.c.h.b16 %v3319
    %v3388 = vunpack.c.l.b16 %v3320
    %v3389 = vunpack.c.l.b16 %v3321
    %v3390 = vunpack.c.h.b16 %v3321
    %v3391 = vunpack.c.l.b16 %v3322
    %v3392 = vunpack.c.l.b16 %v3323
    %v3393 = vunpack.c.h.b16 %v3323
    %v3394 = vunpack.c.l.b16 %v3324
    %v3395 = vunpack.c.l.b16 %v3325
    %v3396 = vunpack.c.h.b16 %v3325
    %v3397 = vunpack.c.l.b16 %v3326
    %v3398 = vunpack.c.l.b16 %v3327
    %v3399 = vunpack.c.h.b16 %v3327
    %v3400 = vunpack.c.l.b16 %v3328
    %v3401 = vunpack.c.l.b16 %v3329
    %v3402 = vunpack.c.h.b16 %v3329
    %v3403 = vunpack.c.l.b16 %v3330
    %v3404 = vunpack.c.l.b16 %v3331
    %v3405 = vunpack.c.h.b16 %v3331
    %v3406 = vunpack.c.l.b16 %v3332
    %v3407 = vunpack.c.l.b16 %v3333
    %v3408 = vunpack.c.h.b16 %v3333
    %v3409 = vunpack.c.l.b16 %v3334
    %v3410 = vunpack.c.l.b16 %v3335
    %v3411 = vunpack.c.h.b16 %v3335
    %v3412 = vunpack.c.l.b16 %v3336
    %v3413 = vunpack.c.l.b16 %v3337
    %v3414 = vunpack.c.h.b16 %v3337
    %v3415 = vunpack.c.l.b16 %v3338
    %v3416 = vunpack.c.l.b16 %v3339
    %v3417 = vunpack.c.h.b16 %v3339
    %v3418 = vunpack.c.l.b16 %v3340
    %v3419 = vunpack.c.l.b16 %v3341
    %v3420 = vunpack.c.h.b16 %v3341
    %v3421 = vunpack.c.l.b16 %v3342
    %v3422 = vunpack.c.l.b16 %v3343
    %v3423 = vunpack.c.h.b16 %v3343
    %v3424 = vunpack.c.l.b16 %v3344
    %v3425 = vpack.c.b16 %v3380, %v3377
    %v3426 = vpack.c.b16 %v3381, %v3378
    %v3427 = vpack.c.b16 %v3382, %v3379
    %v3428 = vpack.c.b16 %v3386, %v3383
    %v3429 = vpack.c.b16 %v3387, %v3384
    %v3430 = vpack.c.b16 %v3388, %v3385
    %v3431 = vpack.c.b16 %v3392, %v3389
    %v3432 = vpack.c.b16 %v3393, %v3390
    %v3433 = vpack.c.b16 %v3394, %v3391
    %v3434 = vpack.c.b16 %v3398, %v3395
    %v3435 = vpack.c.b16 %v3399, %v3396
    %v3436 = vpack.c.b16 %v3400, %v3397
    %v3437 = vpack.c.b16 %v3404, %v3401
    %v3438 = vpack.c.b16 %v3405, %v3402
    %v3439 = vpack.c.b16 %v3406, %v3403
    %v3440 = vpack.c.b16 %v3410, %v3407
    %v3441 = vpack.c.b16 %v3411, %v3408
    %v3442 = vpack.c.b16 %v3412, %v3409
    %v3443 = vpack.c.b16 %v3416, %v3413
    %v3444 = vpack.c.b16 %v3417, %v3414
    %v3445 = vpack.c.b16 %v3418, %v3415
    %v3446 = vpack.c.b16 %v3422, %v3419
    %v3447 = vpack.c.b16 %v3423, %v3420
    %v3448 = vpack.c.b16 %v3424, %v3421
    %3473 = vmatprep.subr.bf16.mxu0 %v3426
    %3474 = vmatpush1.bf16.msra.mxu0 %v3425
    %3475 = vmatprep.subr.bf16.mxu0 %v3429
    %3476 = vmatpush1.bf16.msra.mxu0 %v3428
    %3477 = vmatprep.subr.bf16.mxu0 %v3432
    %3478 = vmatpush1.bf16.msra.mxu0 %v3431
    %3479 = vmatprep.subr.bf16.mxu0 %v3435
    %3480 = vmatpush1.bf16.msra.mxu0 %v3434
    %3481 = vmatprep.subr.bf16.mxu0 %v3438
    %3482 = vmatpush1.bf16.msra.mxu0 %v3437
    %3483 = vmatprep.subr.bf16.mxu0 %v3441
    %3484 = vmatpush1.bf16.msra.mxu0 %v3440
    %3485 = vmatprep.subr.bf16.mxu0 %v3444
    %3486 = vmatpush1.bf16.msra.mxu0 %v3443
    %3487 = vmatprep.subr.bf16.mxu0 %v3447
    %3488 = vmatpush1.bf16.msra.mxu0 %v3446
    %3489 = vmatprep.subr.bf16.mxu0 0
    %3490 = vmatpush1.bf16.msra.mxu0 0
    %3491 = vmatprep.subr.bf16.mxu0 0
    %3492 = vmatpush1.bf16.msra.mxu0 0
    %3493 = vmatprep.subr.bf16.mxu0 0
    %3494 = vmatpush1.bf16.msra.mxu0 0
    %3495 = vmatprep.subr.bf16.mxu0 0
    %3496 = vmatpush1.bf16.msra.mxu0 0
    %3497 = vmatprep.subr.bf16.mxu0 0
    %3498 = vmatpush1.bf16.msra.mxu0 0
    %3499 = vmatprep.subr.bf16.mxu0 0
    %3500 = vmatpush1.bf16.msra.mxu0 0
    %3501 = vmatprep.subr.bf16.mxu0 0
    %3502 = vmatpush1.bf16.msra.mxu0 0
    %3503 = vmatprep.subr.bf16.mxu0 0
    %3504 = vmatpush1.bf16.msra.mxu0 0
    %3505 = vmatprep.mubr.bf16.mxu0 0
    %3506 = vmatmul.mubr.bf16.gmra.mrb[0].mxu0 %v3312
    %v3507 = vpop.f32.mrb[0].mxu0
    %v3508 = vadd.f32 0.0, %v3507
    %v3509 = vpop.f32.mrb[0].mxu0
    %v3510 = vadd.f32 0.0, %v3509
    %v3511 = vpop.f32.mrb[0].mxu0
    %v3512 = vpop.f32.mrb[0].mxu0
    %3513 = vdwg.mxu0
    %3514 = vmatprep.subr.bf16.mxu0 0
    %3515 = vmatpush1.bf16.msra.mxu0 %v3427
    %3516 = vmatprep.subr.bf16.mxu0 0
    %3517 = vmatpush1.bf16.msra.mxu0 %v3430
    %3518 = vmatprep.subr.bf16.mxu0 0
    %3519 = vmatpush1.bf16.msra.mxu0 %v3433
    %3520 = vmatprep.subr.bf16.mxu0 0
    %3521 = vmatpush1.bf16.msra.mxu0 %v3436
    %3522 = vmatprep.subr.bf16.mxu0 0
    %3523 = vmatpush1.bf16.msra.mxu0 %v3439
    %3524 = vmatprep.subr.bf16.mxu0 0
    %3525 = vmatpush1.bf16.msra.mxu0 %v3442
    %3526 = vmatprep.subr.bf16.mxu0 0
    %3527 = vmatpush1.bf16.msra.mxu0 %v3445
    %3528 = vmatprep.subr.bf16.mxu0 0
    %3529 = vmatpush1.bf16.msra.mxu0 %v3448
    %3530 = vmatprep.subr.bf16.mxu0 0
    %3531 = vmatpush1.bf16.msra.mxu0 0
    %3532 = vmatprep.subr.bf16.mxu0 0
    %3533 = vmatpush1.bf16.msra.mxu0 0
    %3534 = vmatprep.subr.bf16.mxu0 0
    %3535 = vmatpush1.bf16.msra.mxu0 0
    %3536 = vmatprep.subr.bf16.mxu0 0
    %3537 = vmatpush1.bf16.msra.mxu0 0
    %3538 = vmatprep.subr.bf16.mxu0 0
    %3539 = vmatpush1.bf16.msra.mxu0 0
    %3540 = vmatprep.subr.bf16.mxu0 0
    %3541 = vmatpush1.bf16.msra.mxu0 0
    %3542 = vmatprep.subr.bf16.mxu0 0
    %3543 = vmatpush1.bf16.msra.mxu0 0
    %3544 = vmatprep.subr.bf16.mxu0 0
    %3545 = vmatpush1.bf16.msra.mxu0 0
    %3546 = vmatprep.mubr.bf16.mxu0 0
    %3547 = vmatmul.mubr.bf16.gmra.mrb[0].mxu0 %v3312
    %v3548 = vpop.f32.mrb[0].mxu0
    %v3549 = vadd.f32 0.0, %v3548
    %v3550 = vpop.f32.mrb[0].mxu0
    %v3551 = vpop.f32.mrb[0].mxu0
    %v3552 = vpop.f32.mrb[0].mxu0
    %3553 = vdwg.mxu0
    %v3554 = vadd.f32 %v3309, %v3508
    %v3555 = vxor.u32 %v3554, 2147483648
    %v3556 = vmul.f32 %v3555, 1.442695
    %v3557 = vpow.pop %v3556
    %v3558 = vadd.f32 %v3557, 1.0
    %v3559 = vrcp.pop %v3558
    %v3560 = vmul.f32 1.0, %v3559
    %v3561 = vadd.f32 %v3310, %v3510
    %v3562 = vxor.u32 %v3561, 2147483648
    %v3563 = vmul.f32 %v3562, 1.442695
    %v3564 = vpow.pop %v3563
    %v3565 = vadd.f32 %v3564, 1.0
    %v3566 = vrcp.pop %v3565
    %v3567 = vmul.f32 1.0, %v3566
    %v3568 = vadd.f32 %v3549, %v574
    %v3569 = vmul.f32 %v3560, %v3568
    %v3570 = vadd.f32 %v3311, %v3569
    %v3571 = vtanh.pop %v3570
    %v3572 = vsub.f32 1.0, %v3567
    %v3573 = vmul.f32 %v3572, %v3571
    %v3574 = vmul.f32 %v3567, %v3039
    %v3575 = vadd.f32 %v3573, %v3574
    %3576 = vst [vmem:[%s2223] sm:$0xff] %v3575
    %v3577 = vld [vmem:[%s1679 + $0x18] sm:$0xff]
    %v3578 = vld [vmem:[%s1679 + $0x20] sm:$0xff]
    %v3579 = vld [vmem:[%s1679 + $0x28] sm:$0xff]
    %v3580 = vpack.c.bf16 %v3307, %v3307
    %v3581 = vld [vmem:[%s4] sm:$0xff]
    %v3582 = vld [vmem:[%s4 + $0x8] sm:$0xf]
    %v3583 = vld [vmem:[%s4 + $0xc] sm:$0xff]
    %v3584 = vld [vmem:[%s4 + $0x14] sm:$0xf]
    %v3585 = vld [vmem:[%s4 + $0x18] sm:$0xff]
    %v3586 = vld [vmem:[%s4 + $0x20] sm:$0xf]
    %v3587 = vld [vmem:[%s4 + $0x24] sm:$0xff]
    %v3588 = vld [vmem:[%s4 + $0x2c] sm:$0xf]
    %v3589 = vld [vmem:[%s4 + $0x30] sm:$0xff]
    %v3590 = vld [vmem:[%s4 + $0x38] sm:$0xf]
    %v3591 = vld [vmem:[%s4 + $0x3c] sm:$0xff]
    %v3592 = vld [vmem:[%s4 + $0x44] sm:$0xf]
    %v3593 = vld [vmem:[%s4 + $0x48] sm:$0xff]
    %v3594 = vld [vmem:[%s4 + $0x50] sm:$0xf]
    %v3595 = vld [vmem:[%s4 + $0x54] sm:$0xff]
    %v3596 = vld [vmem:[%s4 + $0x5c] sm:$0xf]
    %v3597 = vld [vmem:[%s4 + $0x60] sm:$0xff]
    %v3598 = vld [vmem:[%s4 + $0x68] sm:$0xf]
    %v3599 = vld [vmem:[%s4 + $0x6c] sm:$0xff]
    %v3600 = vld [vmem:[%s4 + $0x74] sm:$0xf]
    %v3601 = vld [vmem:[%s4 + $0x78] sm:$0xff]
    %v3602 = vld [vmem:[%s4 + $0x80] sm:$0xf]
    %v3603 = vld [vmem:[%s4 + $0x84] sm:$0xff]
    %v3604 = vld [vmem:[%s4 + $0x8c] sm:$0xf]
    %v3605 = vld [vmem:[%s4 + $0x90] sm:$0xff]
    %v3606 = vld [vmem:[%s4 + $0x98] sm:$0xf]
    %v3607 = vld [vmem:[%s4 + $0x9c] sm:$0xff]
    %v3608 = vld [vmem:[%s4 + $0xa4] sm:$0xf]
    %v3609 = vld [vmem:[%s4 + $0xa8] sm:$0xff]
    %v3610 = vld [vmem:[%s4 + $0xb0] sm:$0xf]
    %v3611 = vld [vmem:[%s4 + $0xb4] sm:$0xff]
    %v3612 = vld [vmem:[%s4 + $0xbc] sm:$0xf]
    %v3645 = vunpack.c.l.b16 %v3581
    %v3646 = vunpack.c.h.b16 %v3581
    %v3647 = vunpack.c.l.b16 %v3582
    %v3648 = vunpack.c.l.b16 %v3583
    %v3649 = vunpack.c.h.b16 %v3583
    %v3650 = vunpack.c.l.b16 %v3584
    %v3651 = vunpack.c.l.b16 %v3585
    %v3652 = vunpack.c.h.b16 %v3585
    %v3653 = vunpack.c.l.b16 %v3586
    %v3654 = vunpack.c.l.b16 %v3587
    %v3655 = vunpack.c.h.b16 %v3587
    %v3656 = vunpack.c.l.b16 %v3588
    %v3657 = vunpack.c.l.b16 %v3589
    %v3658 = vunpack.c.h.b16 %v3589
    %v3659 = vunpack.c.l.b16 %v3590
    %v3660 = vunpack.c.l.b16 %v3591
    %v3661 = vunpack.c.h.b16 %v3591
    %v3662 = vunpack.c.l.b16 %v3592
    %v3663 = vunpack.c.l.b16 %v3593
    %v3664 = vunpack.c.h.b16 %v3593
    %v3665 = vunpack.c.l.b16 %v3594
    %v3666 = vunpack.c.l.b16 %v3595
    %v3667 = vunpack.c.h.b16 %v3595
    %v3668 = vunpack.c.l.b16 %v3596
    %v3669 = vunpack.c.l.b16 %v3597
    %v3670 = vunpack.c.h.b16 %v3597
    %v3671 = vunpack.c.l.b16 %v3598
    %v3672 = vunpack.c.l.b16 %v3599
    %v3673 = vunpack.c.h.b16 %v3599
    %v3674 = vunpack.c.l.b16 %v3600
    %v3675 = vunpack.c.l.b16 %v3601
    %v3676 = vunpack.c.h.b16 %v3601
    %v3677 = vunpack.c.l.b16 %v3602
    %v3678 = vunpack.c.l.b16 %v3603
    %v3679 = vunpack.c.h.b16 %v3603
    %v3680 = vunpack.c.l.b16 %v3604
    %v3681 = vunpack.c.l.b16 %v3605
    %v3682 = vunpack.c.h.b16 %v3605
    %v3683 = vunpack.c.l.b16 %v3606
    %v3684 = vunpack.c.l.b16 %v3607
    %v3685 = vunpack.c.h.b16 %v3607
    %v3686 = vunpack.c.l.b16 %v3608
    %v3687 = vunpack.c.l.b16 %v3609
    %v3688 = vunpack.c.h.b16 %v3609
    %v3689 = vunpack.c.l.b16 %v3610
    %v3690 = vunpack.c.l.b16 %v3611
    %v3691 = vunpack.c.h.b16 %v3611
    %v3692 = vunpack.c.l.b16 %v3612
    %v3693 = vpack.c.b16 %v3648, %v3645
    %v3694 = vpack.c.b16 %v3649, %v3646
    %v3695 = vpack.c.b16 %v3650, %v3647
    %v3696 = vpack.c.b16 %v3654, %v3651
    %v3697 = vpack.c.b16 %v3655, %v3652
    %v3698 = vpack.c.b16 %v3656, %v3653
    %v3699 = vpack.c.b16 %v3660, %v3657
    %v3700 = vpack.c.b16 %v3661, %v3658
    %v3701 = vpack.c.b16 %v3662, %v3659
    %v3702 = vpack.c.b16 %v3666, %v3663
    %v3703 = vpack.c.b16 %v3667, %v3664
    %v3704 = vpack.c.b16 %v3668, %v3665
    %v3705 = vpack.c.b16 %v3672, %v3669
    %v3706 = vpack.c.b16 %v3673, %v3670
    %v3707 = vpack.c.b16 %v3674, %v3671
    %v3708 = vpack.c.b16 %v3678, %v3675
    %v3709 = vpack.c.b16 %v3679, %v3676
    %v3710 = vpack.c.b16 %v3680, %v3677
    %v3711 = vpack.c.b16 %v3684, %v3681
    %v3712 = vpack.c.b16 %v3685, %v3682
    %v3713 = vpack.c.b16 %v3686, %v3683
    %v3714 = vpack.c.b16 %v3690, %v3687
    %v3715 = vpack.c.b16 %v3691, %v3688
    %v3716 = vpack.c.b16 %v3692, %v3689
    %3741 = vmatprep.subr.bf16.mxu0 %v3694
    %3742 = vmatpush1.bf16.msra.mxu0 %v3693
    %3743 = vmatprep.subr.bf16.mxu0 %v3697
    %3744 = vmatpush1.bf16.msra.mxu0 %v3696
    %3745 = vmatprep.subr.bf16.mxu0 %v3700
    %3746 = vmatpush1.bf16.msra.mxu0 %v3699
    %3747 = vmatprep.subr.bf16.mxu0 %v3703
    %3748 = vmatpush1.bf16.msra.mxu0 %v3702
    %3749 = vmatprep.subr.bf16.mxu0 %v3706
    %3750 = vmatpush1.bf16.msra.mxu0 %v3705
    %3751 = vmatprep.subr.bf16.mxu0 %v3709
    %3752 = vmatpush1.bf16.msra.mxu0 %v3708
    %3753 = vmatprep.subr.bf16.mxu0 %v3712
    %3754 = vmatpush1.bf16.msra.mxu0 %v3711
    %3755 = vmatprep.subr.bf16.mxu0 %v3715
    %3756 = vmatpush1.bf16.msra.mxu0 %v3714
    %3757 = vmatprep.subr.bf16.mxu0 0
    %3758 = vmatpush1.bf16.msra.mxu0 0
    %3759 = vmatprep.subr.bf16.mxu0 0
    %3760 = vmatpush1.bf16.msra.mxu0 0
    %3761 = vmatprep.subr.bf16.mxu0 0
    %3762 = vmatpush1.bf16.msra.mxu0 0
    %3763 = vmatprep.subr.bf16.mxu0 0
    %3764 = vmatpush1.bf16.msra.mxu0 0
    %3765 = vmatprep.subr.bf16.mxu0 0
    %3766 = vmatpush1.bf16.msra.mxu0 0
    %3767 = vmatprep.subr.bf16.mxu0 0
    %3768 = vmatpush1.bf16.msra.mxu0 0
    %3769 = vmatprep.subr.bf16.mxu0 0
    %3770 = vmatpush1.bf16.msra.mxu0 0
    %3771 = vmatprep.subr.bf16.mxu0 0
    %3772 = vmatpush1.bf16.msra.mxu0 0
    %3773 = vmatprep.mubr.bf16.mxu0 0
    %3774 = vmatmul.mubr.bf16.gmra.mrb[0].mxu0 %v3580
    %v3775 = vpop.f32.mrb[0].mxu0
    %v3776 = vadd.f32 0.0, %v3775
    %v3777 = vpop.f32.mrb[0].mxu0
    %v3778 = vadd.f32 0.0, %v3777
    %v3779 = vpop.f32.mrb[0].mxu0
    %v3780 = vpop.f32.mrb[0].mxu0
    %3781 = vdwg.mxu0
    %3782 = vmatprep.subr.bf16.mxu0 0
    %3783 = vmatpush1.bf16.msra.mxu0 %v3695
    %3784 = vmatprep.subr.bf16.mxu0 0
    %3785 = vmatpush1.bf16.msra.mxu0 %v3698
    %3786 = vmatprep.subr.bf16.mxu0 0
    %3787 = vmatpush1.bf16.msra.mxu0 %v3701
    %3788 = vmatprep.subr.bf16.mxu0 0
    %3789 = vmatpush1.bf16.msra.mxu0 %v3704
    %3790 = vmatprep.subr.bf16.mxu0 0
    %3791 = vmatpush1.bf16.msra.mxu0 %v3707
    %3792 = vmatprep.subr.bf16.mxu0 0
    %3793 = vmatpush1.bf16.msra.mxu0 %v3710
    %3794 = vmatprep.subr.bf16.mxu0 0
    %3795 = vmatpush1.bf16.msra.mxu0 %v3713
    %3796 = vmatprep.subr.bf16.mxu0 0
    %3797 = vmatpush1.bf16.msra.mxu0 %v3716
    %3798 = vmatprep.subr.bf16.mxu0 0
    %3799 = vmatpush1.bf16.msra.mxu0 0
    %3800 = vmatprep.subr.bf16.mxu0 0
    %3801 = vmatpush1.bf16.msra.mxu0 0
    %3802 = vmatprep.subr.bf16.mxu0 0
    %3803 = vmatpush1.bf16.msra.mxu0 0
    %3804 = vmatprep.subr.bf16.mxu0 0
    %3805 = vmatpush1.bf16.msra.mxu0 0
    %3806 = vmatprep.subr.bf16.mxu0 0
    %3807 = vmatpush1.bf16.msra.mxu0 0
    %3808 = vmatprep.subr.bf16.mxu0 0
    %3809 = vmatpush1.bf16.msra.mxu0 0
    %3810 = vmatprep.subr.bf16.mxu0 0
    %3811 = vmatpush1.bf16.msra.mxu0 0
    %3812 = vmatprep.subr.bf16.mxu0 0
    %3813 = vmatpush1.bf16.msra.mxu0 0
    %3814 = vmatprep.mubr.bf16.mxu0 0
    %3815 = vmatmul.mubr.bf16.gmra.mrb[0].mxu0 %v3580
    %v3816 = vpop.f32.mrb[0].mxu0
    %v3817 = vadd.f32 0.0, %v3816
    %v3818 = vpop.f32.mrb[0].mxu0
    %v3819 = vpop.f32.mrb[0].mxu0
    %v3820 = vpop.f32.mrb[0].mxu0
    %3821 = vdwg.mxu0
    %v3822 = vadd.f32 %v3577, %v3776
    %v3823 = vxor.u32 %v3822, 2147483648
    %v3824 = vmul.f32 %v3823, 1.442695
    %v3825 = vpow.pop %v3824
    %v3826 = vadd.f32 %v3825, 1.0
    %v3827 = vrcp.pop %v3826
    %v3828 = vmul.f32 1.0, %v3827
    %v3829 = vadd.f32 %v3578, %v3778
    %v3830 = vxor.u32 %v3829, 2147483648
    %v3831 = vmul.f32 %v3830, 1.442695
    %v3832 = vpow.pop %v3831
    %v3833 = vadd.f32 %v3832, 1.0
    %v3834 = vrcp.pop %v3833
    %v3835 = vmul.f32 1.0, %v3834
    %v3836 = vadd.f32 %v3817, %v581
    %v3837 = vmul.f32 %v3828, %v3836
    %v3838 = vadd.f32 %v3579, %v3837
    %v3839 = vtanh.pop %v3838
    %v3840 = vsub.f32 1.0, %v3835
    %v3841 = vmul.f32 %v3840, %v3839
    %v3842 = vmul.f32 %v3835, %v3307
    %v3843 = vadd.f32 %v3841, %v3842
    %3844 = vst [vmem:[%s1949 + $0x8] sm:$0xff] %v3843
    %v3845 = vld [vmem:[%s1405] sm:$0xff]
    %v3846 = vld [vmem:[%s1405 + $0x8] sm:$0xff]
    %v3847 = vld [vmem:[%s1405 + $0x10] sm:$0xff]
    %v3848 = vpack.c.bf16 %v3575, %v3575
    %v3849 = vld [vmem:[#allocation8] sm:$0xff]
    %v3850 = vld [vmem:[#allocation8 + $0x8] sm:$0xf]
    %v3851 = vld [vmem:[#allocation8 + $0xc] sm:$0xff]
    %v3852 = vld [vmem:[#allocation8 + $0x14] sm:$0xf]
    %v3853 = vld [vmem:[#allocation8 + $0x18] sm:$0xff]
    %v3854 = vld [vmem:[#allocation8 + $0x20] sm:$0xf]
    %v3855 = vld [vmem:[#allocation8 + $0x24] sm:$0xff]
    %v3856 = vld [vmem:[#allocation8 + $0x2c] sm:$0xf]
    %v3857 = vld [vmem:[#allocation8 + $0x30] sm:$0xff]
    %v3858 = vld [vmem:[#allocation8 + $0x38] sm:$0xf]
    %v3859 = vld [vmem:[#allocation8 + $0x3c] sm:$0xff]
    %v3860 = vld [vmem:[#allocation8 + $0x44] sm:$0xf]
    %v3861 = vld [vmem:[#allocation8 + $0x48] sm:$0xff]
    %v3862 = vld [vmem:[#allocation8 + $0x50] sm:$0xf]
    %v3863 = vld [vmem:[#allocation8 + $0x54] sm:$0xff]
    %v3864 = vld [vmem:[#allocation8 + $0x5c] sm:$0xf]
    %v3865 = vld [vmem:[#allocation8 + $0x60] sm:$0xff]
    %v3866 = vld [vmem:[#allocation8 + $0x68] sm:$0xf]
    %v3867 = vld [vmem:[#allocation8 + $0x6c] sm:$0xff]
    %v3868 = vld [vmem:[#allocation8 + $0x74] sm:$0xf]
    %v3869 = vld [vmem:[#allocation8 + $0x78] sm:$0xff]
    %v3870 = vld [vmem:[#allocation8 + $0x80] sm:$0xf]
    %v3871 = vld [vmem:[#allocation8 + $0x84] sm:$0xff]
    %v3872 = vld [vmem:[#allocation8 + $0x8c] sm:$0xf]
    %v3873 = vld [vmem:[#allocation8 + $0x90] sm:$0xff]
    %v3874 = vld [vmem:[#allocation8 + $0x98] sm:$0xf]
    %v3875 = vld [vmem:[#allocation8 + $0x9c] sm:$0xff]
    %v3876 = vld [vmem:[#allocation8 + $0xa4] sm:$0xf]
    %v3877 = vld [vmem:[#allocation8 + $0xa8] sm:$0xff]
    %v3878 = vld [vmem:[#allocation8 + $0xb0] sm:$0xf]
    %v3879 = vld [vmem:[#allocation8 + $0xb4] sm:$0xff]
    %v3880 = vld [vmem:[#allocation8 + $0xbc] sm:$0xf]
    %v3913 = vunpack.c.l.b16 %v3849
    %v3914 = vunpack.c.h.b16 %v3849
    %v3915 = vunpack.c.l.b16 %v3850
    %v3916 = vunpack.c.l.b16 %v3851
    %v3917 = vunpack.c.h.b16 %v3851
    %v3918 = vunpack.c.l.b16 %v3852
    %v3919 = vunpack.c.l.b16 %v3853
    %v3920 = vunpack.c.h.b16 %v3853
    %v3921 = vunpack.c.l.b16 %v3854
    %v3922 = vunpack.c.l.b16 %v3855
    %v3923 = vunpack.c.h.b16 %v3855
    %v3924 = vunpack.c.l.b16 %v3856
    %v3925 = vunpack.c.l.b16 %v3857
    %v3926 = vunpack.c.h.b16 %v3857
    %v3927 = vunpack.c.l.b16 %v3858
    %v3928 = vunpack.c.l.b16 %v3859
    %v3929 = vunpack.c.h.b16 %v3859
    %v3930 = vunpack.c.l.b16 %v3860
    %v3931 = vunpack.c.l.b16 %v3861
    %v3932 = vunpack.c.h.b16 %v3861
    %v3933 = vunpack.c.l.b16 %v3862
    %v3934 = vunpack.c.l.b16 %v3863
    %v3935 = vunpack.c.h.b16 %v3863
    %v3936 = vunpack.c.l.b16 %v3864
    %v3937 = vunpack.c.l.b16 %v3865
    %v3938 = vunpack.c.h.b16 %v3865
    %v3939 = vunpack.c.l.b16 %v3866
    %v3940 = vunpack.c.l.b16 %v3867
    %v3941 = vunpack.c.h.b16 %v3867
    %v3942 = vunpack.c.l.b16 %v3868
    %v3943 = vunpack.c.l.b16 %v3869
    %v3944 = vunpack.c.h.b16 %v3869
    %v3945 = vunpack.c.l.b16 %v3870
    %v3946 = vunpack.c.l.b16 %v3871
    %v3947 = vunpack.c.h.b16 %v3871
    %v3948 = vunpack.c.l.b16 %v3872
    %v3949 = vunpack.c.l.b16 %v3873
    %v3950 = vunpack.c.h.b16 %v3873
    %v3951 = vunpack.c.l.b16 %v3874
    %v3952 = vunpack.c.l.b16 %v3875
    %v3953 = vunpack.c.h.b16 %v3875
    %v3954 = vunpack.c.l.b16 %v3876
    %v3955 = vunpack.c.l.b16 %v3877
    %v3956 = vunpack.c.h.b16 %v3877
    %v3957 = vunpack.c.l.b16 %v3878
    %v3958 = vunpack.c.l.b16 %v3879
    %v3959 = vunpack.c.h.b16 %v3879
    %v3960 = vunpack.c.l.b16 %v3880
    %v3961 = vpack.c.b16 %v3916, %v3913
    %v3962 = vpack.c.b16 %v3917, %v3914
    %v3963 = vpack.c.b16 %v3918, %v3915
    %v3964 = vpack.c.b16 %v3922, %v3919
    %v3965 = vpack.c.b16 %v3923, %v3920
    %v3966 = vpack.c.b16 %v3924, %v3921
    %v3967 = vpack.c.b16 %v3928, %v3925
    %v3968 = vpack.c.b16 %v3929, %v3926
    %v3969 = vpack.c.b16 %v3930, %v3927
    %v3970 = vpack.c.b16 %v3934, %v3931
    %v3971 = vpack.c.b16 %v3935, %v3932
    %v3972 = vpack.c.b16 %v3936, %v3933
    %v3973 = vpack.c.b16 %v3940, %v3937
    %v3974 = vpack.c.b16 %v3941, %v3938
    %v3975 = vpack.c.b16 %v3942, %v3939
    %v3976 = vpack.c.b16 %v3946, %v3943
    %v3977 = vpack.c.b16 %v3947, %v3944
    %v3978 = vpack.c.b16 %v3948, %v3945
    %v3979 = vpack.c.b16 %v3952, %v3949
    %v3980 = vpack.c.b16 %v3953, %v3950
    %v3981 = vpack.c.b16 %v3954, %v3951
    %v3982 = vpack.c.b16 %v3958, %v3955
    %v3983 = vpack.c.b16 %v3959, %v3956
    %v3984 = vpack.c.b16 %v3960, %v3957
    %4009 = vmatprep.subr.bf16.mxu0 %v3962
    %4010 = vmatpush1.bf16.msra.mxu0 %v3961
    %4011 = vmatprep.subr.bf16.mxu0 %v3965
    %4012 = vmatpush1.bf16.msra.mxu0 %v3964
    %4013 = vmatprep.subr.bf16.mxu0 %v3968
    %4014 = vmatpush1.bf16.msra.mxu0 %v3967
    %4015 = vmatprep.subr.bf16.mxu0 %v3971
    %4016 = vmatpush1.bf16.msra.mxu0 %v3970
    %4017 = vmatprep.subr.bf16.mxu0 %v3974
    %4018 = vmatpush1.bf16.msra.mxu0 %v3973
    %4019 = vmatprep.subr.bf16.mxu0 %v3977
    %4020 = vmatpush1.bf16.msra.mxu0 %v3976
    %4021 = vmatprep.subr.bf16.mxu0 %v3980
    %4022 = vmatpush1.bf16.msra.mxu0 %v3979
    %4023 = vmatprep.subr.bf16.mxu0 %v3983
    %4024 = vmatpush1.bf16.msra.mxu0 %v3982
    %4025 = vmatprep.subr.bf16.mxu0 0
    %4026 = vmatpush1.bf16.msra.mxu0 0
    %4027 = vmatprep.subr.bf16.mxu0 0
    %4028 = vmatpush1.bf16.msra.mxu0 0
    %4029 = vmatprep.subr.bf16.mxu0 0
    %4030 = vmatpush1.bf16.msra.mxu0 0
    %4031 = vmatprep.subr.bf16.mxu0 0
    %4032 = vmatpush1.bf16.msra.mxu0 0
    %4033 = vmatprep.subr.bf16.mxu0 0
    %4034 = vmatpush1.bf16.msra.mxu0 0
    %4035 = vmatprep.subr.bf16.mxu0 0
    %4036 = vmatpush1.bf16.msra.mxu0 0
    %4037 = vmatprep.subr.bf16.mxu0 0
    %4038 = vmatpush1.bf16.msra.mxu0 0
    %4039 = vmatprep.subr.bf16.mxu0 0
    %4040 = vmatpush1.bf16.msra.mxu0 0
    %4041 = vmatprep.mubr.bf16.mxu0 0
    %4042 = vmatmul.mubr.bf16.gmra.mrb[0].mxu0 %v3848
    %v4043 = vpop.f32.mrb[0].mxu0
    %v4044 = vadd.f32 0.0, %v4043
    %v4045 = vpop.f32.mrb[0].mxu0
    %v4046 = vadd.f32 0.0, %v4045
    %v4047 = vpop.f32.mrb[0].mxu0
    %v4048 = vpop.f32.mrb[0].mxu0
    %4049 = vdwg.mxu0
    %4050 = vmatprep.subr.bf16.mxu0 0
    %4051 = vmatpush1.bf16.msra.mxu0 %v3963
    %4052 = vmatprep.subr.bf16.mxu0 0
    %4053 = vmatpush1.bf16.msra.mxu0 %v3966
    %4054 = vmatprep.subr.bf16.mxu0 0
    %4055 = vmatpush1.bf16.msra.mxu0 %v3969
    %4056 = vmatprep.subr.bf16.mxu0 0
    %4057 = vmatpush1.bf16.msra.mxu0 %v3972
    %4058 = vmatprep.subr.bf16.mxu0 0
    %4059 = vmatpush1.bf16.msra.mxu0 %v3975
    %4060 = vmatprep.subr.bf16.mxu0 0
    %4061 = vmatpush1.bf16.msra.mxu0 %v3978
    %4062 = vmatprep.subr.bf16.mxu0 0
    %4063 = vmatpush1.bf16.msra.mxu0 %v3981
    %4064 = vmatprep.subr.bf16.mxu0 0
    %4065 = vmatpush1.bf16.msra.mxu0 %v3984
    %4066 = vmatprep.subr.bf16.mxu0 0
    %4067 = vmatpush1.bf16.msra.mxu0 0
    %4068 = vmatprep.subr.bf16.mxu0 0
    %4069 = vmatpush1.bf16.msra.mxu0 0
    %4070 = vmatprep.subr.bf16.mxu0 0
    %4071 = vmatpush1.bf16.msra.mxu0 0
    %4072 = vmatprep.subr.bf16.mxu0 0
    %4073 = vmatpush1.bf16.msra.mxu0 0
    %4074 = vmatprep.subr.bf16.mxu0 0
    %4075 = vmatpush1.bf16.msra.mxu0 0
    %4076 = vmatprep.subr.bf16.mxu0 0
    %4077 = vmatpush1.bf16.msra.mxu0 0
    %4078 = vmatprep.subr.bf16.mxu0 0
    %4079 = vmatpush1.bf16.msra.mxu0 0
    %4080 = vmatprep.subr.bf16.mxu0 0
    %4081 = vmatpush1.bf16.msra.mxu0 0
    %4082 = vmatprep.mubr.bf16.mxu0 0
    %4083 = vmatmul.mubr.bf16.gmra.mrb[0].mxu0 %v3848
    %v4084 = vpop.f32.mrb[0].mxu0
    %v4085 = vadd.f32 0.0, %v4084
    %v4086 = vpop.f32.mrb[0].mxu0
    %v4087 = vpop.f32.mrb[0].mxu0
    %v4088 = vpop.f32.mrb[0].mxu0
    %4089 = vdwg.mxu0
    %v4090 = vadd.f32 %v3845, %v4044
    %v4091 = vxor.u32 %v4090, 2147483648
    %v4092 = vmul.f32 %v4091, 1.442695
    %v4093 = vpow.pop %v4092
    %v4094 = vadd.f32 %v4093, 1.0
    %v4095 = vrcp.pop %v4094
    %v4096 = vmul.f32 1.0, %v4095
    %v4097 = vadd.f32 %v3846, %v4046
    %v4098 = vxor.u32 %v4097, 2147483648
    %v4099 = vmul.f32 %v4098, 1.442695
    %v4100 = vpow.pop %v4099
    %v4101 = vadd.f32 %v4100, 1.0
    %v4102 = vrcp.pop %v4101
    %v4103 = vmul.f32 1.0, %v4102
    %v4104 = vadd.f32 %v4085, %v574
    %v4105 = vmul.f32 %v4096, %v4104
    %v4106 = vadd.f32 %v3847, %v4105
    %v4107 = vtanh.pop %v4106
    %v4108 = vsub.f32 1.0, %v4103
    %v4109 = vmul.f32 %v4108, %v4107
    %v4110 = vmul.f32 %v4103, %v3575
    %v4111 = vadd.f32 %v4109, %v4110
    %4112 = vst [vmem:[%s1675] sm:$0xff] %v4111
    %v4113 = vld [vmem:[%s1131 + $0x18] sm:$0xff]
    %v4114 = vld [vmem:[%s1131 + $0x20] sm:$0xff]
    %v4115 = vld [vmem:[%s1131 + $0x28] sm:$0xff]
    %v4116 = vpack.c.bf16 %v3843, %v3843
    %v4117 = vld [vmem:[%s4] sm:$0xff]
    %v4118 = vld [vmem:[%s4 + $0x8] sm:$0xf]
    %v4119 = vld [vmem:[%s4 + $0xc] sm:$0xff]
    %v4120 = vld [vmem:[%s4 + $0x14] sm:$0xf]
    %v4121 = vld [vmem:[%s4 + $0x18] sm:$0xff]
    %v4122 = vld [vmem:[%s4 + $0x20] sm:$0xf]
    %v4123 = vld [vmem:[%s4 + $0x24] sm:$0xff]
    %v4124 = vld [vmem:[%s4 + $0x2c] sm:$0xf]
    %v4125 = vld [vmem:[%s4 + $0x30] sm:$0xff]
    %v4126 = vld [vmem:[%s4 + $0x38] sm:$0xf]
    %v4127 = vld [vmem:[%s4 + $0x3c] sm:$0xff]
    %v4128 = vld [vmem:[%s4 + $0x44] sm:$0xf]
    %v4129 = vld [vmem:[%s4 + $0x48] sm:$0xff]
    %v4130 = vld [vmem:[%s4 + $0x50] sm:$0xf]
    %v4131 = vld [vmem:[%s4 + $0x54] sm:$0xff]
    %v4132 = vld [vmem:[%s4 + $0x5c] sm:$0xf]
    %v4133 = vld [vmem:[%s4 + $0x60] sm:$0xff]
    %v4134 = vld [vmem:[%s4 + $0x68] sm:$0xf]
    %v4135 = vld [vmem:[%s4 + $0x6c] sm:$0xff]
    %v4136 = vld [vmem:[%s4 + $0x74] sm:$0xf]
    %v4137 = vld [vmem:[%s4 + $0x78] sm:$0xff]
    %v4138 = vld [vmem:[%s4 + $0x80] sm:$0xf]
    %v4139 = vld [vmem:[%s4 + $0x84] sm:$0xff]
    %v4140 = vld [vmem:[%s4 + $0x8c] sm:$0xf]
    %v4141 = vld [vmem:[%s4 + $0x90] sm:$0xff]
    %v4142 = vld [vmem:[%s4 + $0x98] sm:$0xf]
    %v4143 = vld [vmem:[%s4 + $0x9c] sm:$0xff]
    %v4144 = vld [vmem:[%s4 + $0xa4] sm:$0xf]
    %v4145 = vld [vmem:[%s4 + $0xa8] sm:$0xff]
    %v4146 = vld [vmem:[%s4 + $0xb0] sm:$0xf]
    %v4147 = vld [vmem:[%s4 + $0xb4] sm:$0xff]
    %v4148 = vld [vmem:[%s4 + $0xbc] sm:$0xf]
    %v4181 = vunpack.c.l.b16 %v4117
    %v4182 = vunpack.c.h.b16 %v4117
    %v4183 = vunpack.c.l.b16 %v4118
    %v4184 = vunpack.c.l.b16 %v4119
    %v4185 = vunpack.c.h.b16 %v4119
    %v4186 = vunpack.c.l.b16 %v4120
    %v4187 = vunpack.c.l.b16 %v4121
    %v4188 = vunpack.c.h.b16 %v4121
    %v4189 = vunpack.c.l.b16 %v4122
    %v4190 = vunpack.c.l.b16 %v4123
    %v4191 = vunpack.c.h.b16 %v4123
    %v4192 = vunpack.c.l.b16 %v4124
    %v4193 = vunpack.c.l.b16 %v4125
    %v4194 = vunpack.c.h.b16 %v4125
    %v4195 = vunpack.c.l.b16 %v4126
    %v4196 = vunpack.c.l.b16 %v4127
    %v4197 = vunpack.c.h.b16 %v4127
    %v4198 = vunpack.c.l.b16 %v4128
    %v4199 = vunpack.c.l.b16 %v4129
    %v4200 = vunpack.c.h.b16 %v4129
    %v4201 = vunpack.c.l.b16 %v4130
    %v4202 = vunpack.c.l.b16 %v4131
    %v4203 = vunpack.c.h.b16 %v4131
    %v4204 = vunpack.c.l.b16 %v4132
    %v4205 = vunpack.c.l.b16 %v4133
    %v4206 = vunpack.c.h.b16 %v4133
    %v4207 = vunpack.c.l.b16 %v4134
    %v4208 = vunpack.c.l.b16 %v4135
    %v4209 = vunpack.c.h.b16 %v4135
    %v4210 = vunpack.c.l.b16 %v4136
    %v4211 = vunpack.c.l.b16 %v4137
    %v4212 = vunpack.c.h.b16 %v4137
    %v4213 = vunpack.c.l.b16 %v4138
    %v4214 = vunpack.c.l.b16 %v4139
    %v4215 = vunpack.c.h.b16 %v4139
    %v4216 = vunpack.c.l.b16 %v4140
    %v4217 = vunpack.c.l.b16 %v4141
    %v4218 = vunpack.c.h.b16 %v4141
    %v4219 = vunpack.c.l.b16 %v4142
    %v4220 = vunpack.c.l.b16 %v4143
    %v4221 = vunpack.c.h.b16 %v4143
    %v4222 = vunpack.c.l.b16 %v4144
    %v4223 = vunpack.c.l.b16 %v4145
    %v4224 = vunpack.c.h.b16 %v4145
    %v4225 = vunpack.c.l.b16 %v4146
    %v4226 = vunpack.c.l.b16 %v4147
    %v4227 = vunpack.c.h.b16 %v4147
    %v4228 = vunpack.c.l.b16 %v4148
    %v4229 = vpack.c.b16 %v4184, %v4181
    %v4230 = vpack.c.b16 %v4185, %v4182
    %v4231 = vpack.c.b16 %v4186, %v4183
    %v4232 = vpack.c.b16 %v4190, %v4187
    %v4233 = vpack.c.b16 %v4191, %v4188
    %v4234 = vpack.c.b16 %v4192, %v4189
    %v4235 = vpack.c.b16 %v4196, %v4193
    %v4236 = vpack.c.b16 %v4197, %v4194
    %v4237 = vpack.c.b16 %v4198, %v4195
    %v4238 = vpack.c.b16 %v4202, %v4199
    %v4239 = vpack.c.b16 %v4203, %v4200
    %v4240 = vpack.c.b16 %v4204, %v4201
    %v4241 = vpack.c.b16 %v4208, %v4205
    %v4242 = vpack.c.b16 %v4209, %v4206
    %v4243 = vpack.c.b16 %v4210, %v4207
    %v4244 = vpack.c.b16 %v4214, %v4211
    %v4245 = vpack.c.b16 %v4215, %v4212
    %v4246 = vpack.c.b16 %v4216, %v4213
    %v4247 = vpack.c.b16 %v4220, %v4217
    %v4248 = vpack.c.b16 %v4221, %v4218
    %v4249 = vpack.c.b16 %v4222, %v4219
    %v4250 = vpack.c.b16 %v4226, %v4223
    %v4251 = vpack.c.b16 %v4227, %v4224
    %v4252 = vpack.c.b16 %v4228, %v4225
    %4277 = vmatprep.subr.bf16.mxu0 %v4230
    %4278 = vmatpush1.bf16.msra.mxu0 %v4229
    %4279 = vmatprep.subr.bf16.mxu0 %v4233
    %4280 = vmatpush1.bf16.msra.mxu0 %v4232
    %4281 = vmatprep.subr.bf16.mxu0 %v4236
    %4282 = vmatpush1.bf16.msra.mxu0 %v4235
    %4283 = vmatprep.subr.bf16.mxu0 %v4239
    %4284 = vmatpush1.bf16.msra.mxu0 %v4238
    %4285 = vmatprep.subr.bf16.mxu0 %v4242
    %4286 = vmatpush1.bf16.msra.mxu0 %v4241
    %4287 = vmatprep.subr.bf16.mxu0 %v4245
    %4288 = vmatpush1.bf16.msra.mxu0 %v4244
    %4289 = vmatprep.subr.bf16.mxu0 %v4248
    %4290 = vmatpush1.bf16.msra.mxu0 %v4247
    %4291 = vmatprep.subr.bf16.mxu0 %v4251
    %4292 = vmatpush1.bf16.msra.mxu0 %v4250
    %4293 = vmatprep.subr.bf16.mxu0 0
    %4294 = vmatpush1.bf16.msra.mxu0 0
    %4295 = vmatprep.subr.bf16.mxu0 0
    %4296 = vmatpush1.bf16.msra.mxu0 0
    %4297 = vmatprep.subr.bf16.mxu0 0
    %4298 = vmatpush1.bf16.msra.mxu0 0
    %4299 = vmatprep.subr.bf16.mxu0 0
    %4300 = vmatpush1.bf16.msra.mxu0 0
    %4301 = vmatprep.subr.bf16.mxu0 0
    %4302 = vmatpush1.bf16.msra.mxu0 0
    %4303 = vmatprep.subr.bf16.mxu0 0
    %4304 = vmatpush1.bf16.msra.mxu0 0
    %4305 = vmatprep.subr.bf16.mxu0 0
    %4306 = vmatpush1.bf16.msra.mxu0 0
    %4307 = vmatprep.subr.bf16.mxu0 0
    %4308 = vmatpush1.bf16.msra.mxu0 0
    %4309 = vmatprep.mubr.bf16.mxu0 0
    %4310 = vmatmul.mubr.bf16.gmra.mrb[0].mxu0 %v4116
    %v4311 = vpop.f32.mrb[0].mxu0
    %v4312 = vadd.f32 0.0, %v4311
    %v4313 = vpop.f32.mrb[0].mxu0
    %v4314 = vadd.f32 0.0, %v4313
    %v4315 = vpop.f32.mrb[0].mxu0
    %v4316 = vpop.f32.mrb[0].mxu0
    %4317 = vdwg.mxu0
    %4318 = vmatprep.subr.bf16.mxu0 0
    %4319 = vmatpush1.bf16.msra.mxu0 %v4231
    %4320 = vmatprep.subr.bf16.mxu0 0
    %4321 = vmatpush1.bf16.msra.mxu0 %v4234
    %4322 = vmatprep.subr.bf16.mxu0 0
    %4323 = vmatpush1.bf16.msra.mxu0 %v4237
    %4324 = vmatprep.subr.bf16.mxu0 0
    %4325 = vmatpush1.bf16.msra.mxu0 %v4240
    %4326 = vmatprep.subr.bf16.mxu0 0
    %4327 = vmatpush1.bf16.msra.mxu0 %v4243
    %4328 = vmatprep.subr.bf16.mxu0 0
    %4329 = vmatpush1.bf16.msra.mxu0 %v4246
    %4330 = vmatprep.subr.bf16.mxu0 0
    %4331 = vmatpush1.bf16.msra.mxu0 %v4249
    %4332 = vmatprep.subr.bf16.mxu0 0
    %4333 = vmatpush1.bf16.msra.mxu0 %v4252
    %4334 = vmatprep.subr.bf16.mxu0 0
    %4335 = vmatpush1.bf16.msra.mxu0 0
    %4336 = vmatprep.subr.bf16.mxu0 0
    %4337 = vmatpush1.bf16.msra.mxu0 0
    %4338 = vmatprep.subr.bf16.mxu0 0
    %4339 = vmatpush1.bf16.msra.mxu0 0
    %4340 = vmatprep.subr.bf16.mxu0 0
    %4341 = vmatpush1.bf16.msra.mxu0 0
    %4342 = vmatprep.subr.bf16.mxu0 0
    %4343 = vmatpush1.bf16.msra.mxu0 0
    %4344 = vmatprep.subr.bf16.mxu0 0
    %4345 = vmatpush1.bf16.msra.mxu0 0
    %4346 = vmatprep.subr.bf16.mxu0 0
    %4347 = vmatpush1.bf16.msra.mxu0 0
    %4348 = vmatprep.subr.bf16.mxu0 0
    %4349 = vmatpush1.bf16.msra.mxu0 0
    %4350 = vmatprep.mubr.bf16.mxu0 0
    %4351 = vmatmul.mubr.bf16.gmra.mrb[0].mxu0 %v4116
    %v4352 = vpop.f32.mrb[0].mxu0
    %v4353 = vadd.f32 0.0, %v4352
    %v4354 = vpop.f32.mrb[0].mxu0
    %v4355 = vpop.f32.mrb[0].mxu0
    %v4356 = vpop.f32.mrb[0].mxu0
    %4357 = vdwg.mxu0
    %v4358 = vadd.f32 %v4113, %v4312
    %v4359 = vxor.u32 %v4358, 2147483648
    %v4360 = vmul.f32 %v4359, 1.442695
    %v4361 = vpow.pop %v4360
    %v4362 = vadd.f32 %v4361, 1.0
    %v4363 = vrcp.pop %v4362
    %v4364 = vmul.f32 1.0, %v4363
    %v4365 = vadd.f32 %v4114, %v4314
    %v4366 = vxor.u32 %v4365, 2147483648
    %v4367 = vmul.f32 %v4366, 1.442695
    %v4368 = vpow.pop %v4367
    %v4369 = vadd.f32 %v4368, 1.0
    %v4370 = vrcp.pop %v4369
    %v4371 = vmul.f32 1.0, %v4370
    %v4372 = vadd.f32 %v4353, %v581
    %v4373 = vmul.f32 %v4364, %v4372
    %v4374 = vadd.f32 %v4115, %v4373
    %v4375 = vtanh.pop %v4374
    %v4376 = vsub.f32 1.0, %v4371
    %v4377 = vmul.f32 %v4376, %v4375
    %v4378 = vmul.f32 %v4371, %v3843
    %v4379 = vadd.f32 %v4377, %v4378
    %4380 = vst [vmem:[%s1401 + $0x8] sm:$0xff] %v4379
    %v4381 = vld [vmem:[%s858] sm:$0xff]
    %v4382 = vld [vmem:[%s858 + $0x8] sm:$0xff]
    %v4383 = vld [vmem:[%s858 + $0x10] sm:$0xff]
    %v4384 = vpack.c.bf16 %v4111, %v4111
    %v4385 = vld [vmem:[#allocation8] sm:$0xff]
    %v4386 = vld [vmem:[#allocation8 + $0x8] sm:$0xf]
    %v4387 = vld [vmem:[#allocation8 + $0xc] sm:$0xff]
    %v4388 = vld [vmem:[#allocation8 + $0x14] sm:$0xf]
    %v4389 = vld [vmem:[#allocation8 + $0x18] sm:$0xff]
    %v4390 = vld [vmem:[#allocation8 + $0x20] sm:$0xf]
    %v4391 = vld [vmem:[#allocation8 + $0x24] sm:$0xff]
    %v4392 = vld [vmem:[#allocation8 + $0x2c] sm:$0xf]
    %v4393 = vld [vmem:[#allocation8 + $0x30] sm:$0xff]
    %v4394 = vld [vmem:[#allocation8 + $0x38] sm:$0xf]
    %v4395 = vld [vmem:[#allocation8 + $0x3c] sm:$0xff]
    %v4396 = vld [vmem:[#allocation8 + $0x44] sm:$0xf]
    %v4397 = vld [vmem:[#allocation8 + $0x48] sm:$0xff]
    %v4398 = vld [vmem:[#allocation8 + $0x50] sm:$0xf]
    %v4399 = vld [vmem:[#allocation8 + $0x54] sm:$0xff]
    %v4400 = vld [vmem:[#allocation8 + $0x5c] sm:$0xf]
    %v4401 = vld [vmem:[#allocation8 + $0x60] sm:$0xff]
    %v4402 = vld [vmem:[#allocation8 + $0x68] sm:$0xf]
    %v4403 = vld [vmem:[#allocation8 + $0x6c] sm:$0xff]
    %v4404 = vld [vmem:[#allocation8 + $0x74] sm:$0xf]
    %v4405 = vld [vmem:[#allocation8 + $0x78] sm:$0xff]
    %v4406 = vld [vmem:[#allocation8 + $0x80] sm:$0xf]
    %v4407 = vld [vmem:[#allocation8 + $0x84] sm:$0xff]
    %v4408 = vld [vmem:[#allocation8 + $0x8c] sm:$0xf]
    %v4409 = vld [vmem:[#allocation8 + $0x90] sm:$0xff]
    %v4410 = vld [vmem:[#allocation8 + $0x98] sm:$0xf]
    %v4411 = vld [vmem:[#allocation8 + $0x9c] sm:$0xff]
    %v4412 = vld [vmem:[#allocation8 + $0xa4] sm:$0xf]
    %v4413 = vld [vmem:[#allocation8 + $0xa8] sm:$0xff]
    %v4414 = vld [vmem:[#allocation8 + $0xb0] sm:$0xf]
    %v4415 = vld [vmem:[#allocation8 + $0xb4] sm:$0xff]
    %v4416 = vld [vmem:[#allocation8 + $0xbc] sm:$0xf]
    %v4449 = vunpack.c.l.b16 %v4385
    %v4450 = vunpack.c.h.b16 %v4385
    %v4451 = vunpack.c.l.b16 %v4386
    %v4452 = vunpack.c.l.b16 %v4387
    %v4453 = vunpack.c.h.b16 %v4387
    %v4454 = vunpack.c.l.b16 %v4388
    %v4455 = vunpack.c.l.b16 %v4389
    %v4456 = vunpack.c.h.b16 %v4389
    %v4457 = vunpack.c.l.b16 %v4390
    %v4458 = vunpack.c.l.b16 %v4391
    %v4459 = vunpack.c.h.b16 %v4391
    %v4460 = vunpack.c.l.b16 %v4392
    %v4461 = vunpack.c.l.b16 %v4393
    %v4462 = vunpack.c.h.b16 %v4393
    %v4463 = vunpack.c.l.b16 %v4394
    %v4464 = vunpack.c.l.b16 %v4395
    %v4465 = vunpack.c.h.b16 %v4395
    %v4466 = vunpack.c.l.b16 %v4396
    %v4467 = vunpack.c.l.b16 %v4397
    %v4468 = vunpack.c.h.b16 %v4397
    %v4469 = vunpack.c.l.b16 %v4398
    %v4470 = vunpack.c.l.b16 %v4399
    %v4471 = vunpack.c.h.b16 %v4399
    %v4472 = vunpack.c.l.b16 %v4400
    %v4473 = vunpack.c.l.b16 %v4401
    %v4474 = vunpack.c.h.b16 %v4401
    %v4475 = vunpack.c.l.b16 %v4402
    %v4476 = vunpack.c.l.b16 %v4403
    %v4477 = vunpack.c.h.b16 %v4403
    %v4478 = vunpack.c.l.b16 %v4404
    %v4479 = vunpack.c.l.b16 %v4405
    %v4480 = vunpack.c.h.b16 %v4405
    %v4481 = vunpack.c.l.b16 %v4406
    %v4482 = vunpack.c.l.b16 %v4407
    %v4483 = vunpack.c.h.b16 %v4407
    %v4484 = vunpack.c.l.b16 %v4408
    %v4485 = vunpack.c.l.b16 %v4409
    %v4486 = vunpack.c.h.b16 %v4409
    %v4487 = vunpack.c.l.b16 %v4410
    %v4488 = vunpack.c.l.b16 %v4411
    %v4489 = vunpack.c.h.b16 %v4411
    %v4490 = vunpack.c.l.b16 %v4412
    %v4491 = vunpack.c.l.b16 %v4413
    %v4492 = vunpack.c.h.b16 %v4413
    %v4493 = vunpack.c.l.b16 %v4414
    %v4494 = vunpack.c.l.b16 %v4415
    %v4495 = vunpack.c.h.b16 %v4415
    %v4496 = vunpack.c.l.b16 %v4416
    %v4497 = vpack.c.b16 %v4452, %v4449
    %v4498 = vpack.c.b16 %v4453, %v4450
    %v4499 = vpack.c.b16 %v4454, %v4451
    %v4500 = vpack.c.b16 %v4458, %v4455
    %v4501 = vpack.c.b16 %v4459, %v4456
    %v4502 = vpack.c.b16 %v4460, %v4457
    %v4503 = vpack.c.b16 %v4464, %v4461
    %v4504 = vpack.c.b16 %v4465, %v4462
    %v4505 = vpack.c.b16 %v4466, %v4463
    %v4506 = vpack.c.b16 %v4470, %v4467
    %v4507 = vpack.c.b16 %v4471, %v4468
    %v4508 = vpack.c.b16 %v4472, %v4469
    %v4509 = vpack.c.b16 %v4476, %v4473
    %v4510 = vpack.c.b16 %v4477, %v4474
    %v4511 = vpack.c.b16 %v4478, %v4475
    %v4512 = vpack.c.b16 %v4482, %v4479
    %v4513 = vpack.c.b16 %v4483, %v4480
    %v4514 = vpack.c.b16 %v4484, %v4481
    %v4515 = vpack.c.b16 %v4488, %v4485
    %v4516 = vpack.c.b16 %v4489, %v4486
    %v4517 = vpack.c.b16 %v4490, %v4487
    %v4518 = vpack.c.b16 %v4494, %v4491
    %v4519 = vpack.c.b16 %v4495, %v4492
    %v4520 = vpack.c.b16 %v4496, %v4493
    %4545 = vmatprep.subr.bf16.mxu0 %v4498
    %4546 = vmatpush1.bf16.msra.mxu0 %v4497
    %4547 = vmatprep.subr.bf16.mxu0 %v4501
    %4548 = vmatpush1.bf16.msra.mxu0 %v4500
    %4549 = vmatprep.subr.bf16.mxu0 %v4504
    %4550 = vmatpush1.bf16.msra.mxu0 %v4503
    %4551 = vmatprep.subr.bf16.mxu0 %v4507
    %4552 = vmatpush1.bf16.msra.mxu0 %v4506
    %4553 = vmatprep.subr.bf16.mxu0 %v4510
    %4554 = vmatpush1.bf16.msra.mxu0 %v4509
    %4555 = vmatprep.subr.bf16.mxu0 %v4513
    %4556 = vmatpush1.bf16.msra.mxu0 %v4512
    %4557 = vmatprep.subr.bf16.mxu0 %v4516
    %4558 = vmatpush1.bf16.msra.mxu0 %v4515
    %4559 = vmatprep.subr.bf16.mxu0 %v4519
    %4560 = vmatpush1.bf16.msra.mxu0 %v4518
    %4561 = vmatprep.subr.bf16.mxu0 0
    %4562 = vmatpush1.bf16.msra.mxu0 0
    %4563 = vmatprep.subr.bf16.mxu0 0
    %4564 = vmatpush1.bf16.msra.mxu0 0
    %4565 = vmatprep.subr.bf16.mxu0 0
    %4566 = vmatpush1.bf16.msra.mxu0 0
    %4567 = vmatprep.subr.bf16.mxu0 0
    %4568 = vmatpush1.bf16.msra.mxu0 0
    %4569 = vmatprep.subr.bf16.mxu0 0
    %4570 = vmatpush1.bf16.msra.mxu0 0
    %4571 = vmatprep.subr.bf16.mxu0 0
    %4572 = vmatpush1.bf16.msra.mxu0 0
    %4573 = vmatprep.subr.bf16.mxu0 0
    %4574 = vmatpush1.bf16.msra.mxu0 0
    %4575 = vmatprep.subr.bf16.mxu0 0
    %4576 = vmatpush1.bf16.msra.mxu0 0
    %4577 = vmatprep.mubr.bf16.mxu0 0
    %4578 = vmatmul.mubr.bf16.gmra.mrb[0].mxu0 %v4384
    %v4579 = vpop.f32.mrb[0].mxu0
    %v4580 = vadd.f32 0.0, %v4579
    %v4581 = vpop.f32.mrb[0].mxu0
    %v4582 = vadd.f32 0.0, %v4581
    %v4583 = vpop.f32.mrb[0].mxu0
    %v4584 = vpop.f32.mrb[0].mxu0
    %4585 = vdwg.mxu0
    %4586 = vmatprep.subr.bf16.mxu0 0
    %4587 = vmatpush1.bf16.msra.mxu0 %v4499
    %4588 = vmatprep.subr.bf16.mxu0 0
    %4589 = vmatpush1.bf16.msra.mxu0 %v4502
    %4590 = vmatprep.subr.bf16.mxu0 0
    %4591 = vmatpush1.bf16.msra.mxu0 %v4505
    %4592 = vmatprep.subr.bf16.mxu0 0
    %4593 = vmatpush1.bf16.msra.mxu0 %v4508
    %4594 = vmatprep.subr.bf16.mxu0 0
    %4595 = vmatpush1.bf16.msra.mxu0 %v4511
    %4596 = vmatprep.subr.bf16.mxu0 0
    %4597 = vmatpush1.bf16.msra.mxu0 %v4514
    %4598 = vmatprep.subr.bf16.mxu0 0
    %4599 = vmatpush1.bf16.msra.mxu0 %v4517
    %4600 = vmatprep.subr.bf16.mxu0 0
    %4601 = vmatpush1.bf16.msra.mxu0 %v4520
    %4602 = vmatprep.subr.bf16.mxu0 0
    %4603 = vmatpush1.bf16.msra.mxu0 0
    %4604 = vmatprep.subr.bf16.mxu0 0
    %4605 = vmatpush1.bf16.msra.mxu0 0
    %4606 = vmatprep.subr.bf16.mxu0 0
    %4607 = vmatpush1.bf16.msra.mxu0 0
    %4608 = vmatprep.subr.bf16.mxu0 0
    %4609 = vmatpush1.bf16.msra.mxu0 0
    %4610 = vmatprep.subr.bf16.mxu0 0
    %4611 = vmatpush1.bf16.msra.mxu0 0
    %4612 = vmatprep.subr.bf16.mxu0 0
    %4613 = vmatpush1.bf16.msra.mxu0 0
    %4614 = vmatprep.subr.bf16.mxu0 0
    %4615 = vmatpush1.bf16.msra.mxu0 0
    %4616 = vmatprep.subr.bf16.mxu0 0
    %4617 = vmatpush1.bf16.msra.mxu0 0
    %4618 = vmatprep.mubr.bf16.mxu0 0
    %4619 = vmatmul.mubr.bf16.gmra.mrb[0].mxu0 %v4384
    %v4620 = vpop.f32.mrb[0].mxu0
    %v4621 = vadd.f32 0.0, %v4620
    %v4622 = vpop.f32.mrb[0].mxu0
    %v4623 = vpop.f32.mrb[0].mxu0
    %v4624 = vpop.f32.mrb[0].mxu0
    %4625 = vdwg.mxu0
    %v4626 = vadd.f32 %v4381, %v4580
    %v4627 = vxor.u32 %v4626, 2147483648
    %v4628 = vmul.f32 %v4627, 1.442695
    %v4629 = vpow.pop %v4628
    %v4630 = vadd.f32 %v4629, 1.0
    %v4631 = vrcp.pop %v4630
    %v4632 = vmul.f32 1.0, %v4631
    %v4633 = vadd.f32 %v4382, %v4582
    %v4634 = vxor.u32 %v4633, 2147483648
    %v4635 = vmul.f32 %v4634, 1.442695
    %v4636 = vpow.pop %v4635
    %v4637 = vadd.f32 %v4636, 1.0
    %v4638 = vrcp.pop %v4637
    %v4639 = vmul.f32 1.0, %v4638
    %v4640 = vadd.f32 %v4621, %v574
    %v4641 = vmul.f32 %v4632, %v4640
    %v4642 = vadd.f32 %v4383, %v4641
    %v4643 = vtanh.pop %v4642
    %v4644 = vsub.f32 1.0, %v4639
    %v4645 = vmul.f32 %v4644, %v4643
    %v4646 = vmul.f32 %v4639, %v4111
    %v4647 = vadd.f32 %v4645, %v4646
    %4648 = vst [vmem:[%s1127] sm:$0xff] %v4647
    %v4649 = vld [vmem:[%s585 + $0x18] sm:$0xff]
    %v4650 = vld [vmem:[%s585 + $0x20] sm:$0xff]
    %v4651 = vld [vmem:[%s585 + $0x28] sm:$0xff]
    %v4652 = vpack.c.bf16 %v4379, %v4379
    %v4653 = vld [vmem:[%s4] sm:$0xff]
    %v4654 = vld [vmem:[%s4 + $0x8] sm:$0xf]
    %v4655 = vld [vmem:[%s4 + $0xc] sm:$0xff]
    %v4656 = vld [vmem:[%s4 + $0x14] sm:$0xf]
    %v4657 = vld [vmem:[%s4 + $0x18] sm:$0xff]
    %v4658 = vld [vmem:[%s4 + $0x20] sm:$0xf]
    %v4659 = vld [vmem:[%s4 + $0x24] sm:$0xff]
    %v4660 = vld [vmem:[%s4 + $0x2c] sm:$0xf]
    %v4661 = vld [vmem:[%s4 + $0x30] sm:$0xff]
    %v4662 = vld [vmem:[%s4 + $0x38] sm:$0xf]
    %v4663 = vld [vmem:[%s4 + $0x3c] sm:$0xff]
    %v4664 = vld [vmem:[%s4 + $0x44] sm:$0xf]
    %v4665 = vld [vmem:[%s4 + $0x48] sm:$0xff]
    %v4666 = vld [vmem:[%s4 + $0x50] sm:$0xf]
    %v4667 = vld [vmem:[%s4 + $0x54] sm:$0xff]
    %v4668 = vld [vmem:[%s4 + $0x5c] sm:$0xf]
    %v4669 = vld [vmem:[%s4 + $0x60] sm:$0xff]
    %v4670 = vld [vmem:[%s4 + $0x68] sm:$0xf]
    %v4671 = vld [vmem:[%s4 + $0x6c] sm:$0xff]
    %v4672 = vld [vmem:[%s4 + $0x74] sm:$0xf]
    %v4673 = vld [vmem:[%s4 + $0x78] sm:$0xff]
    %v4674 = vld [vmem:[%s4 + $0x80] sm:$0xf]
    %v4675 = vld [vmem:[%s4 + $0x84] sm:$0xff]
    %v4676 = vld [vmem:[%s4 + $0x8c] sm:$0xf]
    %v4677 = vld [vmem:[%s4 + $0x90] sm:$0xff]
    %v4678 = vld [vmem:[%s4 + $0x98] sm:$0xf]
    %v4679 = vld [vmem:[%s4 + $0x9c] sm:$0xff]
    %v4680 = vld [vmem:[%s4 + $0xa4] sm:$0xf]
    %v4681 = vld [vmem:[%s4 + $0xa8] sm:$0xff]
    %v4682 = vld [vmem:[%s4 + $0xb0] sm:$0xf]
    %v4683 = vld [vmem:[%s4 + $0xb4] sm:$0xff]
    %v4684 = vld [vmem:[%s4 + $0xbc] sm:$0xf]
    %v4717 = vunpack.c.l.b16 %v4653
    %v4718 = vunpack.c.h.b16 %v4653
    %v4719 = vunpack.c.l.b16 %v4654
    %v4720 = vunpack.c.l.b16 %v4655
    %v4721 = vunpack.c.h.b16 %v4655
    %v4722 = vunpack.c.l.b16 %v4656
    %v4723 = vunpack.c.l.b16 %v4657
    %v4724 = vunpack.c.h.b16 %v4657
    %v4725 = vunpack.c.l.b16 %v4658
    %v4726 = vunpack.c.l.b16 %v4659
    %v4727 = vunpack.c.h.b16 %v4659
    %v4728 = vunpack.c.l.b16 %v4660
    %v4729 = vunpack.c.l.b16 %v4661
    %v4730 = vunpack.c.h.b16 %v4661
    %v4731 = vunpack.c.l.b16 %v4662
    %v4732 = vunpack.c.l.b16 %v4663
    %v4733 = vunpack.c.h.b16 %v4663
    %v4734 = vunpack.c.l.b16 %v4664
    %v4735 = vunpack.c.l.b16 %v4665
    %v4736 = vunpack.c.h.b16 %v4665
    %v4737 = vunpack.c.l.b16 %v4666
    %v4738 = vunpack.c.l.b16 %v4667
    %v4739 = vunpack.c.h.b16 %v4667
    %v4740 = vunpack.c.l.b16 %v4668
    %v4741 = vunpack.c.l.b16 %v4669
    %v4742 = vunpack.c.h.b16 %v4669
    %v4743 = vunpack.c.l.b16 %v4670
    %v4744 = vunpack.c.l.b16 %v4671
    %v4745 = vunpack.c.h.b16 %v4671
    %v4746 = vunpack.c.l.b16 %v4672
    %v4747 = vunpack.c.l.b16 %v4673
    %v4748 = vunpack.c.h.b16 %v4673
    %v4749 = vunpack.c.l.b16 %v4674
    %v4750 = vunpack.c.l.b16 %v4675
    %v4751 = vunpack.c.h.b16 %v4675
    %v4752 = vunpack.c.l.b16 %v4676
    %v4753 = vunpack.c.l.b16 %v4677
    %v4754 = vunpack.c.h.b16 %v4677
    %v4755 = vunpack.c.l.b16 %v4678
    %v4756 = vunpack.c.l.b16 %v4679
    %v4757 = vunpack.c.h.b16 %v4679
    %v4758 = vunpack.c.l.b16 %v4680
    %v4759 = vunpack.c.l.b16 %v4681
    %v4760 = vunpack.c.h.b16 %v4681
    %v4761 = vunpack.c.l.b16 %v4682
    %v4762 = vunpack.c.l.b16 %v4683
    %v4763 = vunpack.c.h.b16 %v4683
    %v4764 = vunpack.c.l.b16 %v4684
    %v4765 = vpack.c.b16 %v4720, %v4717
    %v4766 = vpack.c.b16 %v4721, %v4718
    %v4767 = vpack.c.b16 %v4722, %v4719
    %v4768 = vpack.c.b16 %v4726, %v4723
    %v4769 = vpack.c.b16 %v4727, %v4724
    %v4770 = vpack.c.b16 %v4728, %v4725
    %v4771 = vpack.c.b16 %v4732, %v4729
    %v4772 = vpack.c.b16 %v4733, %v4730
    %v4773 = vpack.c.b16 %v4734, %v4731
    %v4774 = vpack.c.b16 %v4738, %v4735
    %v4775 = vpack.c.b16 %v4739, %v4736
    %v4776 = vpack.c.b16 %v4740, %v4737
    %v4777 = vpack.c.b16 %v4744, %v4741
    %v4778 = vpack.c.b16 %v4745, %v4742
    %v4779 = vpack.c.b16 %v4746, %v4743
    %v4780 = vpack.c.b16 %v4750, %v4747
    %v4781 = vpack.c.b16 %v4751, %v4748
    %v4782 = vpack.c.b16 %v4752, %v4749
    %v4783 = vpack.c.b16 %v4756, %v4753
    %v4784 = vpack.c.b16 %v4757, %v4754
    %v4785 = vpack.c.b16 %v4758, %v4755
    %v4786 = vpack.c.b16 %v4762, %v4759
    %v4787 = vpack.c.b16 %v4763, %v4760
    %v4788 = vpack.c.b16 %v4764, %v4761
    %4813 = vmatprep.subr.bf16.mxu0 %v4766
    %4814 = vmatpush1.bf16.msra.mxu0 %v4765
    %4815 = vmatprep.subr.bf16.mxu0 %v4769
    %4816 = vmatpush1.bf16.msra.mxu0 %v4768
    %4817 = vmatprep.subr.bf16.mxu0 %v4772
    %4818 = vmatpush1.bf16.msra.mxu0 %v4771
    %4819 = vmatprep.subr.bf16.mxu0 %v4775
    %4820 = vmatpush1.bf16.msra.mxu0 %v4774
    %4821 = vmatprep.subr.bf16.mxu0 %v4778
    %4822 = vmatpush1.bf16.msra.mxu0 %v4777
    %4823 = vmatprep.subr.bf16.mxu0 %v4781
    %4824 = vmatpush1.bf16.msra.mxu0 %v4780
    %4825 = vmatprep.subr.bf16.mxu0 %v4784
    %4826 = vmatpush1.bf16.msra.mxu0 %v4783
    %4827 = vmatprep.subr.bf16.mxu0 %v4787
    %4828 = vmatpush1.bf16.msra.mxu0 %v4786
    %4829 = vmatprep.subr.bf16.mxu0 0
    %4830 = vmatpush1.bf16.msra.mxu0 0
    %4831 = vmatprep.subr.bf16.mxu0 0
    %4832 = vmatpush1.bf16.msra.mxu0 0
    %4833 = vmatprep.subr.bf16.mxu0 0
    %4834 = vmatpush1.bf16.msra.mxu0 0
    %4835 = vmatprep.subr.bf16.mxu0 0
    %4836 = vmatpush1.bf16.msra.mxu0 0
    %4837 = vmatprep.subr.bf16.mxu0 0
    %4838 = vmatpush1.bf16.msra.mxu0 0
    %4839 = vmatprep.subr.bf16.mxu0 0
    %4840 = vmatpush1.bf16.msra.mxu0 0
    %4841 = vmatprep.subr.bf16.mxu0 0
    %4842 = vmatpush1.bf16.msra.mxu0 0
    %4843 = vmatprep.subr.bf16.mxu0 0
    %4844 = vmatpush1.bf16.msra.mxu0 0
    %4845 = vmatprep.mubr.bf16.mxu0 0
    %4846 = vmatmul.mubr.bf16.gmra.mrb[0].mxu0 %v4652
    %v4847 = vpop.f32.mrb[0].mxu0
    %v4848 = vadd.f32 0.0, %v4847
    %v4849 = vpop.f32.mrb[0].mxu0
    %v4850 = vadd.f32 0.0, %v4849
    %v4851 = vpop.f32.mrb[0].mxu0
    %v4852 = vpop.f32.mrb[0].mxu0
    %4853 = vdwg.mxu0
    %4854 = vmatprep.subr.bf16.mxu0 0
    %4855 = vmatpush1.bf16.msra.mxu0 %v4767
    %4856 = vmatprep.subr.bf16.mxu0 0
    %4857 = vmatpush1.bf16.msra.mxu0 %v4770
    %4858 = vmatprep.subr.bf16.mxu0 0
    %4859 = vmatpush1.bf16.msra.mxu0 %v4773
    %4860 = vmatprep.subr.bf16.mxu0 0
    %4861 = vmatpush1.bf16.msra.mxu0 %v4776
    %4862 = vmatprep.subr.bf16.mxu0 0
    %4863 = vmatpush1.bf16.msra.mxu0 %v4779
    %4864 = vmatprep.subr.bf16.mxu0 0
    %4865 = vmatpush1.bf16.msra.mxu0 %v4782
    %4866 = vmatprep.subr.bf16.mxu0 0
    %4867 = vmatpush1.bf16.msra.mxu0 %v4785
    %4868 = vmatprep.subr.bf16.mxu0 0
    %4869 = vmatpush1.bf16.msra.mxu0 %v4788
    %4870 = vmatprep.subr.bf16.mxu0 0
    %4871 = vmatpush1.bf16.msra.mxu0 0
    %4872 = vmatprep.subr.bf16.mxu0 0
    %4873 = vmatpush1.bf16.msra.mxu0 0
    %4874 = vmatprep.subr.bf16.mxu0 0
    %4875 = vmatpush1.bf16.msra.mxu0 0
    %4876 = vmatprep.subr.bf16.mxu0 0
    %4877 = vmatpush1.bf16.msra.mxu0 0
    %4878 = vmatprep.subr.bf16.mxu0 0
    %4879 = vmatpush1.bf16.msra.mxu0 0
    %4880 = vmatprep.subr.bf16.mxu0 0
    %4881 = vmatpush1.bf16.msra.mxu0 0
    %4882 = vmatprep.subr.bf16.mxu0 0
    %4883 = vmatpush1.bf16.msra.mxu0 0
    %4884 = vmatprep.subr.bf16.mxu0 0
    %4885 = vmatpush1.bf16.msra.mxu0 0
    %4886 = vmatprep.mubr.bf16.mxu0 0
    %4887 = vmatmul.mubr.bf16.gmra.mrb[0].mxu0 %v4652
    %v4888 = vpop.f32.mrb[0].mxu0
    %v4889 = vadd.f32 0.0, %v4888
    %v4890 = vpop.f32.mrb[0].mxu0
    %v4891 = vpop.f32.mrb[0].mxu0
    %v4892 = vpop.f32.mrb[0].mxu0
    %4893 = vdwg.mxu0
    %v4894 = vadd.f32 %v4649, %v4848
    %v4895 = vxor.u32 %v4894, 2147483648
    %v4896 = vmul.f32 %v4895, 1.442695
    %v4897 = vpow.pop %v4896
    %v4898 = vadd.f32 %v4897, 1.0
    %v4899 = vrcp.pop %v4898
    %v4900 = vmul.f32 1.0, %v4899
    %v4901 = vadd.f32 %v4650, %v4850
    %v4902 = vxor.u32 %v4901, 2147483648
    %v4903 = vmul.f32 %v4902, 1.442695
    %v4904 = vpow.pop %v4903
    %v4905 = vadd.f32 %v4904, 1.0
    %v4906 = vrcp.pop %v4905
    %v4907 = vmul.f32 1.0, %v4906
    %v4908 = vadd.f32 %v4889, %v581
    %v4909 = vmul.f32 %v4900, %v4908
    %v4910 = vadd.f32 %v4651, %v4909
    %v4911 = vtanh.pop %v4910
    %v4912 = vsub.f32 1.0, %v4907
    %v4913 = vmul.f32 %v4912, %v4911
    %v4914 = vmul.f32 %v4907, %v4379
    %v4915 = vadd.f32 %v4913, %v4914
    %4916 = vst [vmem:[%s854 + $0x8] sm:$0xff] %v4915
    %v4917 = vld [vmem:[#allocation3] sm:$0xff]
    %v4918 = vld [vmem:[#allocation3 + $0x8] sm:$0xff]
    %v4919 = vld [vmem:[#allocation3 + $0x10] sm:$0xff]
    %v4920 = vld [vmem:[#allocation3 + $0x18] sm:$0xff]
    %v4921 = vld [vmem:[#allocation3 + $0x20] sm:$0xff]
    %v4922 = vld [vmem:[#allocation3 + $0x28] sm:$0xff]
    %v4923 = vld [vmem:[#allocation3 + $0x30] sm:$0xff]
    %v4924 = vld [vmem:[#allocation3 + $0x38] sm:$0xff]
    %v4925 = vld [vmem:[#allocation3 + $0x40] sm:$0xff]
    %v4926 = vld [vmem:[#allocation3 + $0x48] sm:$0xff]
    %v4927 = vld [vmem:[#allocation3 + $0x50] sm:$0xff]
    %v4928 = vld [vmem:[#allocation3 + $0x58] sm:$0xff]
    %v4929 = vld [vmem:[#allocation3 + $0x60] sm:$0xff]
    %v4930 = vld [vmem:[#allocation3 + $0x68] sm:$0xff]
    %v4931 = vld [vmem:[#allocation3 + $0x70] sm:$0xff]
    %v4932 = vld [vmem:[#allocation3 + $0x78] sm:$0xff]
    %v4933 = vpack.c.bf16 %v4919, %v4917
    %v4934 = vpack.c.bf16 %v4920, %v4918
    %v4935 = vpack.c.bf16 %v4923, %v4921
    %v4936 = vpack.c.bf16 %v4924, %v4922
    %v4937 = vpack.c.bf16 %v4927, %v4925
    %v4938 = vpack.c.bf16 %v4928, %v4926
    %v4939 = vpack.c.bf16 %v4931, %v4929
    %v4940 = vpack.c.bf16 %v4932, %v4930
    %v4941 = vld [vmem:[#allocation12] sm:$0xff]
    %v4942 = vld [vmem:[#allocation12 + $0x8] sm:$0xff]
    %v4943 = vld [vmem:[#allocation12 + $0x10] sm:$0xff]
    %v4944 = vld [vmem:[#allocation12 + $0x18] sm:$0xff]
    %v4945 = vld [vmem:[#allocation12 + $0x20] sm:$0xff]
    %v4946 = vld [vmem:[#allocation12 + $0x28] sm:$0xff]
    %v4947 = vld [vmem:[#allocation12 + $0x30] sm:$0xff]
    %v4948 = vld [vmem:[#allocation12 + $0x38] sm:$0xff]
    %v4949 = vld [vmem:[#allocation12 + $0x40] sm:$0xff]
    %v4950 = vld [vmem:[#allocation12 + $0x48] sm:$0xff]
    %v4951 = vld [vmem:[#allocation12 + $0x50] sm:$0xff]
    %v4952 = vld [vmem:[#allocation12 + $0x58] sm:$0xff]
    %v4953 = vld [vmem:[#allocation12 + $0x60] sm:$0xff]
    %v4954 = vld [vmem:[#allocation12 + $0x68] sm:$0xff]
    %v4955 = vld [vmem:[#allocation12 + $0x70] sm:$0xff]
    %v4956 = vld [vmem:[#allocation12 + $0x78] sm:$0xff]
    %v4957 = vld [vmem:[#allocation12 + $0x80] sm:$0xff]
    %v4958 = vld [vmem:[#allocation12 + $0x88] sm:$0xff]
    %v4959 = vld [vmem:[#allocation12 + $0x90] sm:$0xff]
    %v4960 = vld [vmem:[#allocation12 + $0x98] sm:$0xff]
    %v4961 = vld [vmem:[#allocation12 + $0xa0] sm:$0xff]
    %v4962 = vld [vmem:[#allocation12 + $0xa8] sm:$0xff]
    %v4963 = vld [vmem:[#allocation12 + $0xb0] sm:$0xff]
    %v4964 = vld [vmem:[#allocation12 + $0xb8] sm:$0xff]
    %v4965 = vld [vmem:[#allocation12 + $0xc0] sm:$0xff]
    %v4966 = vld [vmem:[#allocation12 + $0xc8] sm:$0xff]
    %v4967 = vld [vmem:[#allocation12 + $0xd0] sm:$0xff]
    %v4968 = vld [vmem:[#allocation12 + $0xd8] sm:$0xff]
    %v4969 = vld [vmem:[#allocation12 + $0xe0] sm:$0xff]
    %v4970 = vld [vmem:[#allocation12 + $0xe8] sm:$0xff]
    %v4971 = vld [vmem:[#allocation12 + $0xf0] sm:$0xff]
    %v4972 = vld [vmem:[#allocation12 + $0xf8] sm:$0xff]
    %v4973 = vld [vmem:[#allocation12 + $0x100] sm:$0xff]
    %v4974 = vld [vmem:[#allocation12 + $0x108] sm:$0xff]
    %v4975 = vld [vmem:[#allocation12 + $0x110] sm:$0xff]
    %v4976 = vld [vmem:[#allocation12 + $0x118] sm:$0xff]
    %v4977 = vld [vmem:[#allocation12 + $0x120] sm:$0xff]
    %v4978 = vld [vmem:[#allocation12 + $0x128] sm:$0xff]
    %v4979 = vld [vmem:[#allocation12 + $0x130] sm:$0xff]
    %v4980 = vld [vmem:[#allocation12 + $0x138] sm:$0xff]
    %v4981 = vld [vmem:[#allocation12 + $0x140] sm:$0xff]
    %v4982 = vld [vmem:[#allocation12 + $0x148] sm:$0xff]
    %v4983 = vld [vmem:[#allocation12 + $0x150] sm:$0xff]
    %v4984 = vld [vmem:[#allocation12 + $0x158] sm:$0xff]
    %v4985 = vld [vmem:[#allocation12 + $0x160] sm:$0xff]
    %v4986 = vld [vmem:[#allocation12 + $0x168] sm:$0xff]
    %v4987 = vld [vmem:[#allocation12 + $0x170] sm:$0xff]
    %v4988 = vld [vmem:[#allocation12 + $0x178] sm:$0xff]
    %v4989 = vld [vmem:[#allocation12 + $0x180] sm:$0xff]
    %v4990 = vld [vmem:[#allocation12 + $0x188] sm:$0xff]
    %v4991 = vld [vmem:[#allocation12 + $0x190] sm:$0xff]
    %v4992 = vld [vmem:[#allocation12 + $0x198] sm:$0xff]
    %v4993 = vld [vmem:[#allocation12 + $0x1a0] sm:$0xff]
    %v4994 = vld [vmem:[#allocation12 + $0x1a8] sm:$0xff]
    %v4995 = vld [vmem:[#allocation12 + $0x1b0] sm:$0xff]
    %v4996 = vld [vmem:[#allocation12 + $0x1b8] sm:$0xff]
    %v4997 = vld [vmem:[#allocation12 + $0x1c0] sm:$0xff]
    %v4998 = vld [vmem:[#allocation12 + $0x1c8] sm:$0xff]
    %v4999 = vld [vmem:[#allocation12 + $0x1d0] sm:$0xff]
    %v5000 = vld [vmem:[#allocation12 + $0x1d8] sm:$0xff]
    %v5001 = vld [vmem:[#allocation12 + $0x1e0] sm:$0xff]
    %v5002 = vld [vmem:[#allocation12 + $0x1e8] sm:$0xff]
    %v5003 = vld [vmem:[#allocation12 + $0x1f0] sm:$0xff]
    %v5004 = vld [vmem:[#allocation12 + $0x1f8] sm:$0xff]
    %v5005 = vld [vmem:[#allocation12 + $0x200] sm:$0xff]
    %v5006 = vld [vmem:[#allocation12 + $0x208] sm:$0xff]
    %v5007 = vld [vmem:[#allocation12 + $0x210] sm:$0xff]
    %v5008 = vld [vmem:[#allocation12 + $0x218] sm:$0xff]
    %v5009 = vld [vmem:[#allocation12 + $0x220] sm:$0xff]
    %v5010 = vld [vmem:[#allocation12 + $0x228] sm:$0xff]
    %v5011 = vld [vmem:[#allocation12 + $0x230] sm:$0xff]
    %v5012 = vld [vmem:[#allocation12 + $0x238] sm:$0xff]
    %v5013 = vld [vmem:[#allocation12 + $0x240] sm:$0xff]
    %v5014 = vld [vmem:[#allocation12 + $0x248] sm:$0xff]
    %v5015 = vld [vmem:[#allocation12 + $0x250] sm:$0xff]
    %v5016 = vld [vmem:[#allocation12 + $0x258] sm:$0xff]
    %v5017 = vld [vmem:[#allocation12 + $0x260] sm:$0xff]
    %v5018 = vld [vmem:[#allocation12 + $0x268] sm:$0xff]
    %v5019 = vld [vmem:[#allocation12 + $0x270] sm:$0xff]
    %v5020 = vld [vmem:[#allocation12 + $0x278] sm:$0xff]
    %v5021 = vld [vmem:[#allocation12 + $0x280] sm:$0xff]
    %v5022 = vld [vmem:[#allocation12 + $0x288] sm:$0xff]
    %v5023 = vld [vmem:[#allocation12 + $0x290] sm:$0xff]
    %v5024 = vld [vmem:[#allocation12 + $0x298] sm:$0xff]
    %v5025 = vld [vmem:[#allocation12 + $0x2a0] sm:$0xff]
    %v5026 = vld [vmem:[#allocation12 + $0x2a8] sm:$0xff]
    %v5027 = vld [vmem:[#allocation12 + $0x2b0] sm:$0xff]
    %v5028 = vld [vmem:[#allocation12 + $0x2b8] sm:$0xff]
    %v5029 = vld [vmem:[#allocation12 + $0x2c0] sm:$0xff]
    %v5030 = vld [vmem:[#allocation12 + $0x2c8] sm:$0xff]
    %v5031 = vld [vmem:[#allocation12 + $0x2d0] sm:$0xff]
    %v5032 = vld [vmem:[#allocation12 + $0x2d8] sm:$0xff]
    %v5033 = vld [vmem:[#allocation12 + $0x2e0] sm:$0xff]
    %v5034 = vld [vmem:[#allocation12 + $0x2e8] sm:$0xff]
    %v5035 = vld [vmem:[#allocation12 + $0x2f0] sm:$0xff]
    %v5036 = vld [vmem:[#allocation12 + $0x2f8] sm:$0xff]
    %v5037 = vld [vmem:[%s8] sm:$0x3f]
    %v5039 = vlaneseq
    %v5040 = vshrl.u32 %v5039, 7
    %v5041 = vsub.s32 0, %v5040
    %v5042 = vrot.slane %v5037, %v5041
    %v5043 = vlaneseq
    %v5044 = vshrl.u32 %v5043, 7
    %v5045 = vsub.s32 1, %v5044
    %v5046 = vrot.slane %v5037, %v5045
    %v5047 = vlaneseq
    %v5048 = vshrl.u32 %v5047, 7
    %v5049 = vsub.s32 2, %v5048
    %v5050 = vrot.slane %v5037, %v5049
    %v5051 = vlaneseq
    %v5052 = vshrl.u32 %v5051, 7
    %v5053 = vsub.s32 3, %v5052
    %v5054 = vrot.slane %v5037, %v5053
    %v5055 = vlaneseq
    %v5056 = vshrl.u32 %v5055, 7
    %v5057 = vsub.s32 4, %v5056
    %v5058 = vrot.slane %v5037, %v5057
    %v5059 = vlaneseq
    %v5060 = vshrl.u32 %v5059, 7
    %v5061 = vsub.s32 5, %v5060
    %v5062 = vrot.slane %v5037, %v5061
    %v5165 = vunpack.c.l.b16 %v4941
    %v5166 = vunpack.c.h.b16 %v4941
    %v5167 = vunpack.c.l.b16 %v4942
    %v5168 = vunpack.c.h.b16 %v4942
    %v5169 = vunpack.c.l.b16 %v4943
    %v5170 = vunpack.c.h.b16 %v4943
    %v5171 = vunpack.c.l.b16 %v4944
    %v5172 = vunpack.c.h.b16 %v4944
    %v5173 = vunpack.c.l.b16 %v4945
    %v5174 = vunpack.c.h.b16 %v4945
    %v5175 = vunpack.c.l.b16 %v4946
    %v5176 = vunpack.c.h.b16 %v4946
    %v5177 = vunpack.c.l.b16 %v4947
    %v5178 = vunpack.c.h.b16 %v4947
    %v5179 = vunpack.c.l.b16 %v4948
    %v5180 = vunpack.c.h.b16 %v4948
    %v5181 = vunpack.c.l.b16 %v4949
    %v5182 = vunpack.c.h.b16 %v4949
    %v5183 = vunpack.c.l.b16 %v4950
    %v5184 = vunpack.c.h.b16 %v4950
    %v5185 = vunpack.c.l.b16 %v4951
    %v5186 = vunpack.c.h.b16 %v4951
    %v5187 = vunpack.c.l.b16 %v4952
    %v5188 = vunpack.c.h.b16 %v4952
    %v5189 = vunpack.c.l.b16 %v4953
    %v5190 = vunpack.c.h.b16 %v4953
    %v5191 = vunpack.c.l.b16 %v4954
    %v5192 = vunpack.c.h.b16 %v4954
    %v5193 = vunpack.c.l.b16 %v4955
    %v5194 = vunpack.c.h.b16 %v4955
    %v5195 = vunpack.c.l.b16 %v4956
    %v5196 = vunpack.c.h.b16 %v4956
    %v5197 = vunpack.c.l.b16 %v4957
    %v5198 = vunpack.c.h.b16 %v4957
    %v5199 = vunpack.c.l.b16 %v4958
    %v5200 = vunpack.c.h.b16 %v4958
    %v5201 = vunpack.c.l.b16 %v4959
    %v5202 = vunpack.c.h.b16 %v4959
    %v5203 = vunpack.c.l.b16 %v4960
    %v5204 = vunpack.c.h.b16 %v4960
    %v5205 = vunpack.c.l.b16 %v4961
    %v5206 = vunpack.c.h.b16 %v4961
    %v5207 = vunpack.c.l.b16 %v4962
    %v5208 = vunpack.c.h.b16 %v4962
    %v5209 = vunpack.c.l.b16 %v4963
    %v5210 = vunpack.c.h.b16 %v4963
    %v5211 = vunpack.c.l.b16 %v4964
    %v5212 = vunpack.c.h.b16 %v4964
    %v5213 = vunpack.c.l.b16 %v4965
    %v5214 = vunpack.c.h.b16 %v4965
    %v5215 = vunpack.c.l.b16 %v4966
    %v5216 = vunpack.c.h.b16 %v4966
    %v5217 = vunpack.c.l.b16 %v4967
    %v5218 = vunpack.c.h.b16 %v4967
    %v5219 = vunpack.c.l.b16 %v4968
    %v5220 = vunpack.c.h.b16 %v4968
    %v5221 = vunpack.c.l.b16 %v4969
    %v5222 = vunpack.c.h.b16 %v4969
    %v5223 = vunpack.c.l.b16 %v4970
    %v5224 = vunpack.c.h.b16 %v4970
    %v5225 = vunpack.c.l.b16 %v4971
    %v5226 = vunpack.c.h.b16 %v4971
    %v5227 = vunpack.c.l.b16 %v4972
    %v5228 = vunpack.c.h.b16 %v4972
    %v5229 = vunpack.c.l.b16 %v4973
    %v5230 = vunpack.c.h.b16 %v4973
    %v5231 = vunpack.c.l.b16 %v4974
    %v5232 = vunpack.c.h.b16 %v4974
    %v5233 = vunpack.c.l.b16 %v4975
    %v5234 = vunpack.c.h.b16 %v4975
    %v5235 = vunpack.c.l.b16 %v4976
    %v5236 = vunpack.c.h.b16 %v4976
    %v5237 = vunpack.c.l.b16 %v4977
    %v5238 = vunpack.c.h.b16 %v4977
    %v5239 = vunpack.c.l.b16 %v4978
    %v5240 = vunpack.c.h.b16 %v4978
    %v5241 = vunpack.c.l.b16 %v4979
    %v5242 = vunpack.c.h.b16 %v4979
    %v5243 = vunpack.c.l.b16 %v4980
    %v5244 = vunpack.c.h.b16 %v4980
    %v5245 = vunpack.c.l.b16 %v4981
    %v5246 = vunpack.c.h.b16 %v4981
    %v5247 = vunpack.c.l.b16 %v4982
    %v5248 = vunpack.c.h.b16 %v4982
    %v5249 = vunpack.c.l.b16 %v4983
    %v5250 = vunpack.c.h.b16 %v4983
    %v5251 = vunpack.c.l.b16 %v4984
    %v5252 = vunpack.c.h.b16 %v4984
    %v5253 = vunpack.c.l.b16 %v4985
    %v5254 = vunpack.c.h.b16 %v4985
    %v5255 = vunpack.c.l.b16 %v4986
    %v5256 = vunpack.c.h.b16 %v4986
    %v5257 = vunpack.c.l.b16 %v4987
    %v5258 = vunpack.c.h.b16 %v4987
    %v5259 = vunpack.c.l.b16 %v4988
    %v5260 = vunpack.c.h.b16 %v4988
    %v5261 = vunpack.c.l.b16 %v4989
    %v5262 = vunpack.c.h.b16 %v4989
    %v5263 = vunpack.c.l.b16 %v4990
    %v5264 = vunpack.c.h.b16 %v4990
    %v5265 = vunpack.c.l.b16 %v4991
    %v5266 = vunpack.c.h.b16 %v4991
    %v5267 = vunpack.c.l.b16 %v4992
    %v5268 = vunpack.c.h.b16 %v4992
    %v5269 = vunpack.c.l.b16 %v4993
    %v5270 = vunpack.c.h.b16 %v4993
    %v5271 = vunpack.c.l.b16 %v4994
    %v5272 = vunpack.c.h.b16 %v4994
    %v5273 = vunpack.c.l.b16 %v4995
    %v5274 = vunpack.c.h.b16 %v4995
    %v5275 = vunpack.c.l.b16 %v4996
    %v5276 = vunpack.c.h.b16 %v4996
    %v5277 = vunpack.c.l.b16 %v4997
    %v5278 = vunpack.c.h.b16 %v4997
    %v5279 = vunpack.c.l.b16 %v4998
    %v5280 = vunpack.c.h.b16 %v4998
    %v5281 = vunpack.c.l.b16 %v4999
    %v5282 = vunpack.c.h.b16 %v4999
    %v5283 = vunpack.c.l.b16 %v5000
    %v5284 = vunpack.c.h.b16 %v5000
    %v5285 = vunpack.c.l.b16 %v5001
    %v5286 = vunpack.c.h.b16 %v5001
    %v5287 = vunpack.c.l.b16 %v5002
    %v5288 = vunpack.c.h.b16 %v5002
    %v5289 = vunpack.c.l.b16 %v5003
    %v5290 = vunpack.c.h.b16 %v5003
    %v5291 = vunpack.c.l.b16 %v5004
    %v5292 = vunpack.c.h.b16 %v5004
    %v5293 = vunpack.c.l.b16 %v5005
    %v5294 = vunpack.c.h.b16 %v5005
    %v5295 = vunpack.c.l.b16 %v5006
    %v5296 = vunpack.c.h.b16 %v5006
    %v5297 = vunpack.c.l.b16 %v5007
    %v5298 = vunpack.c.h.b16 %v5007
    %v5299 = vunpack.c.l.b16 %v5008
    %v5300 = vunpack.c.h.b16 %v5008
    %v5301 = vunpack.c.l.b16 %v5009
    %v5302 = vunpack.c.h.b16 %v5009
    %v5303 = vunpack.c.l.b16 %v5010
    %v5304 = vunpack.c.h.b16 %v5010
    %v5305 = vunpack.c.l.b16 %v5011
    %v5306 = vunpack.c.h.b16 %v5011
    %v5307 = vunpack.c.l.b16 %v5012
    %v5308 = vunpack.c.h.b16 %v5012
    %v5309 = vunpack.c.l.b16 %v5013
    %v5310 = vunpack.c.h.b16 %v5013
    %v5311 = vunpack.c.l.b16 %v5014
    %v5312 = vunpack.c.h.b16 %v5014
    %v5313 = vunpack.c.l.b16 %v5015
    %v5314 = vunpack.c.h.b16 %v5015
    %v5315 = vunpack.c.l.b16 %v5016
    %v5316 = vunpack.c.h.b16 %v5016
    %v5317 = vunpack.c.l.b16 %v5017
    %v5318 = vunpack.c.h.b16 %v5017
    %v5319 = vunpack.c.l.b16 %v5018
    %v5320 = vunpack.c.h.b16 %v5018
    %v5321 = vunpack.c.l.b16 %v5019
    %v5322 = vunpack.c.h.b16 %v5019
    %v5323 = vunpack.c.l.b16 %v5020
    %v5324 = vunpack.c.h.b16 %v5020
    %v5325 = vunpack.c.l.b16 %v5021
    %v5326 = vunpack.c.h.b16 %v5021
    %v5327 = vunpack.c.l.b16 %v5022
    %v5328 = vunpack.c.h.b16 %v5022
    %v5329 = vunpack.c.l.b16 %v5023
    %v5330 = vunpack.c.h.b16 %v5023
    %v5331 = vunpack.c.l.b16 %v5024
    %v5332 = vunpack.c.h.b16 %v5024
    %v5333 = vunpack.c.l.b16 %v5025
    %v5334 = vunpack.c.h.b16 %v5025
    %v5335 = vunpack.c.l.b16 %v5026
    %v5336 = vunpack.c.h.b16 %v5026
    %v5337 = vunpack.c.l.b16 %v5027
    %v5338 = vunpack.c.h.b16 %v5027
    %v5339 = vunpack.c.l.b16 %v5028
    %v5340 = vunpack.c.h.b16 %v5028
    %v5341 = vunpack.c.l.b16 %v5029
    %v5342 = vunpack.c.h.b16 %v5029
    %v5343 = vunpack.c.l.b16 %v5030
    %v5344 = vunpack.c.h.b16 %v5030
    %v5345 = vunpack.c.l.b16 %v5031
    %v5346 = vunpack.c.h.b16 %v5031
    %v5347 = vunpack.c.l.b16 %v5032
    %v5348 = vunpack.c.h.b16 %v5032
    %v5349 = vunpack.c.l.b16 %v5033
    %v5350 = vunpack.c.h.b16 %v5033
    %v5351 = vunpack.c.l.b16 %v5034
    %v5352 = vunpack.c.h.b16 %v5034
    %v5353 = vunpack.c.l.b16 %v5035
    %v5354 = vunpack.c.h.b16 %v5035
    %v5355 = vunpack.c.l.b16 %v5036
    %v5356 = vunpack.c.h.b16 %v5036
    %v5357 = vpack.c.b16 %v5171, %v5165
    %v5358 = vpack.c.b16 %v5172, %v5166
    %v5359 = vpack.c.b16 %v5173, %v5167
    %v5360 = vpack.c.b16 %v5174, %v5168
    %v5361 = vpack.c.b16 %v5175, %v5169
    %v5362 = vpack.c.b16 %v5176, %v5170
    %v5363 = vpack.c.b16 %v5183, %v5177
    %v5364 = vpack.c.b16 %v5184, %v5178
    %v5365 = vpack.c.b16 %v5185, %v5179
    %v5366 = vpack.c.b16 %v5186, %v5180
    %v5367 = vpack.c.b16 %v5187, %v5181
    %v5368 = vpack.c.b16 %v5188, %v5182
    %v5369 = vpack.c.b16 %v5195, %v5189
    %v5370 = vpack.c.b16 %v5196, %v5190
    %v5371 = vpack.c.b16 %v5197, %v5191
    %v5372 = vpack.c.b16 %v5198, %v5192
    %v5373 = vpack.c.b16 %v5199, %v5193
    %v5374 = vpack.c.b16 %v5200, %v5194
    %v5375 = vpack.c.b16 %v5207, %v5201
    %v5376 = vpack.c.b16 %v5208, %v5202
    %v5377 = vpack.c.b16 %v5209, %v5203
    %v5378 = vpack.c.b16 %v5210, %v5204
    %v5379 = vpack.c.b16 %v5211, %v5205
    %v5380 = vpack.c.b16 %v5212, %v5206
    %v5381 = vpack.c.b16 %v5219, %v5213
    %v5382 = vpack.c.b16 %v5220, %v5214
    %v5383 = vpack.c.b16 %v5221, %v5215
    %v5384 = vpack.c.b16 %v5222, %v5216
    %v5385 = vpack.c.b16 %v5223, %v5217
    %v5386 = vpack.c.b16 %v5224, %v5218
    %v5387 = vpack.c.b16 %v5231, %v5225
    %v5388 = vpack.c.b16 %v5232, %v5226
    %v5389 = vpack.c.b16 %v5233, %v5227
    %v5390 = vpack.c.b16 %v5234, %v5228
    %v5391 = vpack.c.b16 %v5235, %v5229
    %v5392 = vpack.c.b16 %v5236, %v5230
    %v5393 = vpack.c.b16 %v5243, %v5237
    %v5394 = vpack.c.b16 %v5244, %v5238
    %v5395 = vpack.c.b16 %v5245, %v5239
    %v5396 = vpack.c.b16 %v5246, %v5240
    %v5397 = vpack.c.b16 %v5247, %v5241
    %v5398 = vpack.c.b16 %v5248, %v5242
    %v5399 = vpack.c.b16 %v5255, %v5249
    %v5400 = vpack.c.b16 %v5256, %v5250
    %v5401 = vpack.c.b16 %v5257, %v5251
    %v5402 = vpack.c.b16 %v5258, %v5252
    %v5403 = vpack.c.b16 %v5259, %v5253
    %v5404 = vpack.c.b16 %v5260, %v5254
    %v5405 = vpack.c.b16 %v5267, %v5261
    %v5406 = vpack.c.b16 %v5268, %v5262
    %v5407 = vpack.c.b16 %v5269, %v5263
    %v5408 = vpack.c.b16 %v5270, %v5264
    %v5409 = vpack.c.b16 %v5271, %v5265
    %v5410 = vpack.c.b16 %v5272, %v5266
    %v5411 = vpack.c.b16 %v5279, %v5273
    %v5412 = vpack.c.b16 %v5280, %v5274
    %v5413 = vpack.c.b16 %v5281, %v5275
    %v5414 = vpack.c.b16 %v5282, %v5276
    %v5415 = vpack.c.b16 %v5283, %v5277
    %v5416 = vpack.c.b16 %v5284, %v5278
    %v5417 = vpack.c.b16 %v5291, %v5285
    %v5418 = vpack.c.b16 %v5292, %v5286
    %v5419 = vpack.c.b16 %v5293, %v5287
    %v5420 = vpack.c.b16 %v5294, %v5288
    %v5421 = vpack.c.b16 %v5295, %v5289
    %v5422 = vpack.c.b16 %v5296, %v5290
    %v5423 = vpack.c.b16 %v5303, %v5297
    %v5424 = vpack.c.b16 %v5304, %v5298
    %v5425 = vpack.c.b16 %v5305, %v5299
    %v5426 = vpack.c.b16 %v5306, %v5300
    %v5427 = vpack.c.b16 %v5307, %v5301
    %v5428 = vpack.c.b16 %v5308, %v5302
    %v5429 = vpack.c.b16 %v5315, %v5309
    %v5430 = vpack.c.b16 %v5316, %v5310
    %v5431 = vpack.c.b16 %v5317, %v5311
    %v5432 = vpack.c.b16 %v5318, %v5312
    %v5433 = vpack.c.b16 %v5319, %v5313
    %v5434 = vpack.c.b16 %v5320, %v5314
    %v5435 = vpack.c.b16 %v5327, %v5321
    %v5436 = vpack.c.b16 %v5328, %v5322
    %v5437 = vpack.c.b16 %v5329, %v5323
    %v5438 = vpack.c.b16 %v5330, %v5324
    %v5439 = vpack.c.b16 %v5331, %v5325
    %v5440 = vpack.c.b16 %v5332, %v5326
    %v5441 = vpack.c.b16 %v5339, %v5333
    %v5442 = vpack.c.b16 %v5340, %v5334
    %v5443 = vpack.c.b16 %v5341, %v5335
    %v5444 = vpack.c.b16 %v5342, %v5336
    %v5445 = vpack.c.b16 %v5343, %v5337
    %v5446 = vpack.c.b16 %v5344, %v5338
    %v5447 = vpack.c.b16 %v5351, %v5345
    %v5448 = vpack.c.b16 %v5352, %v5346
    %v5449 = vpack.c.b16 %v5353, %v5347
    %v5450 = vpack.c.b16 %v5354, %v5348
    %v5451 = vpack.c.b16 %v5355, %v5349
    %v5452 = vpack.c.b16 %v5356, %v5350
    %5549 = vmatprep.subr.bf16.mxu0 %v5358
    %5550 = vmatpush1.bf16.msra.mxu0 %v5357
    %5551 = vmatprep.subr.bf16.mxu0 %v5364
    %5552 = vmatpush1.bf16.msra.mxu0 %v5363
    %5553 = vmatprep.subr.bf16.mxu0 %v5370
    %5554 = vmatpush1.bf16.msra.mxu0 %v5369
    %5555 = vmatprep.subr.bf16.mxu0 %v5376
    %5556 = vmatpush1.bf16.msra.mxu0 %v5375
    %5557 = vmatprep.subr.bf16.mxu0 %v5382
    %5558 = vmatpush1.bf16.msra.mxu0 %v5381
    %5559 = vmatprep.subr.bf16.mxu0 %v5388
    %5560 = vmatpush1.bf16.msra.mxu0 %v5387
    %5561 = vmatprep.subr.bf16.mxu0 %v5394
    %5562 = vmatpush1.bf16.msra.mxu0 %v5393
    %5563 = vmatprep.subr.bf16.mxu0 %v5400
    %5564 = vmatpush1.bf16.msra.mxu0 %v5399
    %5565 = vmatprep.subr.bf16.mxu0 %v5406
    %5566 = vmatpush1.bf16.msra.mxu0 %v5405
    %5567 = vmatprep.subr.bf16.mxu0 %v5412
    %5568 = vmatpush1.bf16.msra.mxu0 %v5411
    %5569 = vmatprep.subr.bf16.mxu0 %v5418
    %5570 = vmatpush1.bf16.msra.mxu0 %v5417
    %5571 = vmatprep.subr.bf16.mxu0 %v5424
    %5572 = vmatpush1.bf16.msra.mxu0 %v5423
    %5573 = vmatprep.subr.bf16.mxu0 %v5430
    %5574 = vmatpush1.bf16.msra.mxu0 %v5429
    %5575 = vmatprep.subr.bf16.mxu0 %v5436
    %5576 = vmatpush1.bf16.msra.mxu0 %v5435
    %5577 = vmatprep.subr.bf16.mxu0 %v5442
    %5578 = vmatpush1.bf16.msra.mxu0 %v5441
    %5579 = vmatprep.subr.bf16.mxu0 %v5448
    %5580 = vmatpush1.bf16.msra.mxu0 %v5447
    %5581 = vmatprep.mubr.bf16.mxu0 %v4934
    %5582 = vmatmul.mubr.bf16.gmra.mrb[0].mxu0 %v4933
    %v5583 = vpop.f32.mrb[0].mxu0
    %v5584 = vadd.f32 %v5042, %v5583
    %v5585 = vpop.f32.mrb[0].mxu0
    %v5586 = vadd.f32 %v5046, %v5585
    %v5587 = vpop.f32.mrb[0].mxu0
    %v5588 = vadd.f32 %v5042, %v5587
    %v5589 = vpop.f32.mrb[0].mxu0
    %v5590 = vadd.f32 %v5046, %v5589
    %5591 = vmatprep.mubr.bf16.mxu0 %v4936
    %5592 = vmatmul.mubr.bf16.gmra.mrb[0].mxu0 %v4935
    %v5593 = vpop.f32.mrb[0].mxu0
    %v5594 = vadd.f32 %v5042, %v5593
    %v5595 = vpop.f32.mrb[0].mxu0
    %v5596 = vadd.f32 %v5046, %v5595
    %v5597 = vpop.f32.mrb[0].mxu0
    %v5598 = vadd.f32 %v5042, %v5597
    %v5599 = vpop.f32.mrb[0].mxu0
    %v5600 = vadd.f32 %v5046, %v5599
    %5601 = vmatprep.mubr.bf16.mxu0 %v4938
    %5602 = vmatmul.mubr.bf16.gmra.mrb[0].mxu0 %v4937
    %v5603 = vpop.f32.mrb[0].mxu0
    %v5604 = vadd.f32 %v5042, %v5603
    %v5605 = vpop.f32.mrb[0].mxu0
    %v5606 = vadd.f32 %v5046, %v5605
    %v5607 = vpop.f32.mrb[0].mxu0
    %v5608 = vadd.f32 %v5042, %v5607
    %v5609 = vpop.f32.mrb[0].mxu0
    %v5610 = vadd.f32 %v5046, %v5609
    %5611 = vmatprep.mubr.bf16.mxu0 %v4940
    %5612 = vmatmul.mubr.bf16.gmra.mrb[0].mxu0 %v4939
    %v5613 = vpop.f32.mrb[0].mxu0
    %v5614 = vadd.f32 %v5042, %v5613
    %v5615 = vpop.f32.mrb[0].mxu0
    %v5616 = vadd.f32 %v5046, %v5615
    %v5617 = vpop.f32.mrb[0].mxu0
    %v5618 = vadd.f32 %v5042, %v5617
    %v5619 = vpop.f32.mrb[0].mxu0
    %v5620 = vadd.f32 %v5046, %v5619
    %5621 = vdwg.mxu0
    %5622 = vmatprep.subr.bf16.mxu0 %v5360
    %5623 = vmatpush1.bf16.msra.mxu0 %v5359
    %5624 = vmatprep.subr.bf16.mxu0 %v5366
    %5625 = vmatpush1.bf16.msra.mxu0 %v5365
    %5626 = vmatprep.subr.bf16.mxu0 %v5372
    %5627 = vmatpush1.bf16.msra.mxu0 %v5371
    %5628 = vmatprep.subr.bf16.mxu0 %v5378
    %5629 = vmatpush1.bf16.msra.mxu0 %v5377
    %5630 = vmatprep.subr.bf16.mxu0 %v5384
    %5631 = vmatpush1.bf16.msra.mxu0 %v5383
    %5632 = vmatprep.subr.bf16.mxu0 %v5390
    %5633 = vmatpush1.bf16.msra.mxu0 %v5389
    %5634 = vmatprep.subr.bf16.mxu0 %v5396
    %5635 = vmatpush1.bf16.msra.mxu0 %v5395
    %5636 = vmatprep.subr.bf16.mxu0 %v5402
    %5637 = vmatpush1.bf16.msra.mxu0 %v5401
    %5638 = vmatprep.subr.bf16.mxu0 %v5408
    %5639 = vmatpush1.bf16.msra.mxu0 %v5407
    %5640 = vmatprep.subr.bf16.mxu0 %v5414
    %5641 = vmatpush1.bf16.msra.mxu0 %v5413
    %5642 = vmatprep.subr.bf16.mxu0 %v5420
    %5643 = vmatpush1.bf16.msra.mxu0 %v5419
    %5644 = vmatprep.subr.bf16.mxu0 %v5426
    %5645 = vmatpush1.bf16.msra.mxu0 %v5425
    %5646 = vmatprep.subr.bf16.mxu0 %v5432
    %5647 = vmatpush1.bf16.msra.mxu0 %v5431
    %5648 = vmatprep.subr.bf16.mxu0 %v5438
    %5649 = vmatpush1.bf16.msra.mxu0 %v5437
    %5650 = vmatprep.subr.bf16.mxu0 %v5444
    %5651 = vmatpush1.bf16.msra.mxu0 %v5443
    %5652 = vmatprep.subr.bf16.mxu0 %v5450
    %5653 = vmatpush1.bf16.msra.mxu0 %v5449
    %5654 = vmatprep.mubr.bf16.mxu0 %v4934
    %5655 = vmatmul.mubr.bf16.gmra.mrb[0].mxu0 %v4933
    %v5656 = vpop.f32.mrb[0].mxu0
    %v5657 = vadd.f32 %v5050, %v5656
    %v5658 = vpop.f32.mrb[0].mxu0
    %v5659 = vadd.f32 %v5054, %v5658
    %v5660 = vpop.f32.mrb[0].mxu0
    %v5661 = vadd.f32 %v5050, %v5660
    %v5662 = vpop.f32.mrb[0].mxu0
    %v5663 = vadd.f32 %v5054, %v5662
    %5664 = vmatprep.mubr.bf16.mxu0 %v4936
    %5665 = vmatmul.mubr.bf16.gmra.mrb[0].mxu0 %v4935
    %v5666 = vpop.f32.mrb[0].mxu0
    %v5667 = vadd.f32 %v5050, %v5666
    %v5668 = vpop.f32.mrb[0].mxu0
    %v5669 = vadd.f32 %v5054, %v5668
    %v5670 = vpop.f32.mrb[0].mxu0
    %v5671 = vadd.f32 %v5050, %v5670
    %v5672 = vpop.f32.mrb[0].mxu0
    %v5673 = vadd.f32 %v5054, %v5672
    %5674 = vmatprep.mubr.bf16.mxu0 %v4938
    %5675 = vmatmul.mubr.bf16.gmra.mrb[0].mxu0 %v4937
    %v5676 = vpop.f32.mrb[0].mxu0
    %v5677 = vadd.f32 %v5050, %v5676
    %v5678 = vpop.f32.mrb[0].mxu0
    %v5679 = vadd.f32 %v5054, %v5678
    %v5680 = vpop.f32.mrb[0].mxu0
    %v5681 = vadd.f32 %v5050, %v5680
    %v5682 = vpop.f32.mrb[0].mxu0
    %v5683 = vadd.f32 %v5054, %v5682
    %5684 = vmatprep.mubr.bf16.mxu0 %v4940
    %5685 = vmatmul.mubr.bf16.gmra.mrb[0].mxu0 %v4939
    %v5686 = vpop.f32.mrb[0].mxu0
    %v5687 = vadd.f32 %v5050, %v5686
    %v5688 = vpop.f32.mrb[0].mxu0
    %v5689 = vadd.f32 %v5054, %v5688
    %v5690 = vpop.f32.mrb[0].mxu0
    %v5691 = vadd.f32 %v5050, %v5690
    %v5692 = vpop.f32.mrb[0].mxu0
    %v5693 = vadd.f32 %v5054, %v5692
    %5694 = vdwg.mxu0
    %5695 = vmatprep.subr.bf16.mxu0 %v5362
    %5696 = vmatpush1.bf16.msra.mxu0 %v5361
    %5697 = vmatprep.subr.bf16.mxu0 %v5368
    %5698 = vmatpush1.bf16.msra.mxu0 %v5367
    %5699 = vmatprep.subr.bf16.mxu0 %v5374
    %5700 = vmatpush1.bf16.msra.mxu0 %v5373
    %5701 = vmatprep.subr.bf16.mxu0 %v5380
    %5702 = vmatpush1.bf16.msra.mxu0 %v5379
    %5703 = vmatprep.subr.bf16.mxu0 %v5386
    %5704 = vmatpush1.bf16.msra.mxu0 %v5385
    %5705 = vmatprep.subr.bf16.mxu0 %v5392
    %5706 = vmatpush1.bf16.msra.mxu0 %v5391
    %5707 = vmatprep.subr.bf16.mxu0 %v5398
    %5708 = vmatpush1.bf16.msra.mxu0 %v5397
    %5709 = vmatprep.subr.bf16.mxu0 %v5404
    %5710 = vmatpush1.bf16.msra.mxu0 %v5403
    %5711 = vmatprep.subr.bf16.mxu0 %v5410
    %5712 = vmatpush1.bf16.msra.mxu0 %v5409
    %5713 = vmatprep.subr.bf16.mxu0 %v5416
    %5714 = vmatpush1.bf16.msra.mxu0 %v5415
    %5715 = vmatprep.subr.bf16.mxu0 %v5422
    %5716 = vmatpush1.bf16.msra.mxu0 %v5421
    %5717 = vmatprep.subr.bf16.mxu0 %v5428
    %5718 = vmatpush1.bf16.msra.mxu0 %v5427
    %5719 = vmatprep.subr.bf16.mxu0 %v5434
    %5720 = vmatpush1.bf16.msra.mxu0 %v5433
    %5721 = vmatprep.subr.bf16.mxu0 %v5440
    %5722 = vmatpush1.bf16.msra.mxu0 %v5439
    %5723 = vmatprep.subr.bf16.mxu0 %v5446
    %5724 = vmatpush1.bf16.msra.mxu0 %v5445
    %5725 = vmatprep.subr.bf16.mxu0 %v5452
    %5726 = vmatpush1.bf16.msra.mxu0 %v5451
    %5727 = vmatprep.mubr.bf16.mxu0 %v4934
    %5728 = vmatmul.mubr.bf16.gmra.mrb[0].mxu0 %v4933
    %v5729 = vpop.f32.mrb[0].mxu0
    %v5730 = vadd.f32 %v5058, %v5729
    %v5731 = vpop.f32.mrb[0].mxu0
    %v5732 = vadd.f32 %v5062, %v5731
    %v5733 = vpop.f32.mrb[0].mxu0
    %v5734 = vadd.f32 %v5058, %v5733
    %v5735 = vpop.f32.mrb[0].mxu0
    %v5736 = vadd.f32 %v5062, %v5735
    %5737 = vmatprep.mubr.bf16.mxu0 %v4936
    %5738 = vmatmul.mubr.bf16.gmra.mrb[0].mxu0 %v4935
    %v5739 = vpop.f32.mrb[0].mxu0
    %v5740 = vadd.f32 %v5058, %v5739
    %v5741 = vpop.f32.mrb[0].mxu0
    %v5742 = vadd.f32 %v5062, %v5741
    %v5743 = vpop.f32.mrb[0].mxu0
    %v5744 = vadd.f32 %v5058, %v5743
    %v5745 = vpop.f32.mrb[0].mxu0
    %v5746 = vadd.f32 %v5062, %v5745
    %5747 = vmatprep.mubr.bf16.mxu0 %v4938
    %5748 = vmatmul.mubr.bf16.gmra.mrb[0].mxu0 %v4937
    %v5749 = vpop.f32.mrb[0].mxu0
    %v5750 = vadd.f32 %v5058, %v5749
    %v5751 = vpop.f32.mrb[0].mxu0
    %v5752 = vadd.f32 %v5062, %v5751
    %v5753 = vpop.f32.mrb[0].mxu0
    %v5754 = vadd.f32 %v5058, %v5753
    %v5755 = vpop.f32.mrb[0].mxu0
    %v5756 = vadd.f32 %v5062, %v5755
    %5757 = vmatprep.mubr.bf16.mxu0 %v4940
    %5758 = vmatmul.mubr.bf16.gmra.mrb[0].mxu0 %v4939
    %v5759 = vpop.f32.mrb[0].mxu0
    %v5760 = vadd.f32 %v5058, %v5759
    %v5761 = vpop.f32.mrb[0].mxu0
    %v5762 = vadd.f32 %v5062, %v5761
    %v5763 = vpop.f32.mrb[0].mxu0
    %v5764 = vadd.f32 %v5058, %v5763
    %v5765 = vpop.f32.mrb[0].mxu0
    %v5766 = vadd.f32 %v5062, %v5765
    %5767 = vdwg.mxu0
    %5768 = vst [vmem:[#allocation2] sm:$0xff] %v5584
    %5769 = vst [vmem:[#allocation2 + $0x8] sm:$0xff] %v5586
    %5770 = vst [vmem:[#allocation2 + $0x10] sm:$0xff] %v5657
    %5771 = vst [vmem:[#allocation2 + $0x18] sm:$0xff] %v5659
    %5772 = vst [vmem:[#allocation2 + $0x20] sm:$0xff] %v5730
    %5773 = vst [vmem:[#allocation2 + $0x28] sm:$0xff] %v5732
    %5774 = vst [vmem:[#allocation2 + $0x30] sm:$0xff] %v5588
    %5775 = vst [vmem:[#allocation2 + $0x38] sm:$0xff] %v5590
    %5776 = vst [vmem:[#allocation2 + $0x40] sm:$0xff] %v5661
    %5777 = vst [vmem:[#allocation2 + $0x48] sm:$0xff] %v5663
    %5778 = vst [vmem:[#allocation2 + $0x50] sm:$0xff] %v5734
    %5779 = vst [vmem:[#allocation2 + $0x58] sm:$0xff] %v5736
    %5780 = vst [vmem:[#allocation2 + $0x60] sm:$0xff] %v5594
    %5781 = vst [vmem:[#allocation2 + $0x68] sm:$0xff] %v5596
    %5782 = vst [vmem:[#allocation2 + $0x70] sm:$0xff] %v5667
    %5783 = vst [vmem:[#allocation2 + $0x78] sm:$0xff] %v5669
    %5784 = vst [vmem:[#allocation2 + $0x80] sm:$0xff] %v5740
    %5785 = vst [vmem:[#allocation2 + $0x88] sm:$0xff] %v5742
    %5786 = vst [vmem:[#allocation2 + $0x90] sm:$0xff] %v5598
    %5787 = vst [vmem:[#allocation2 + $0x98] sm:$0xff] %v5600
    %5788 = vst [vmem:[#allocation2 + $0xa0] sm:$0xff] %v5671
    %5789 = vst [vmem:[#allocation2 + $0xa8] sm:$0xff] %v5673
    %5790 = vst [vmem:[#allocation2 + $0xb0] sm:$0xff] %v5744
    %5791 = vst [vmem:[#allocation2 + $0xb8] sm:$0xff] %v5746
    %5792 = vst [vmem:[#allocation2 + $0xc0] sm:$0xff] %v5604
    %5793 = vst [vmem:[#allocation2 + $0xc8] sm:$0xff] %v5606
    %5794 = vst [vmem:[#allocation2 + $0xd0] sm:$0xff] %v5677
    %5795 = vst [vmem:[#allocation2 + $0xd8] sm:$0xff] %v5679
    %5796 = vst [vmem:[#allocation2 + $0xe0] sm:$0xff] %v5750
    %5797 = vst [vmem:[#allocation2 + $0xe8] sm:$0xff] %v5752
    %5798 = vst [vmem:[#allocation2 + $0xf0] sm:$0xff] %v5608
    %5799 = vst [vmem:[#allocation2 + $0xf8] sm:$0xff] %v5610
    %5800 = vst [vmem:[#allocation2 + $0x100] sm:$0xff] %v5681
    %5801 = vst [vmem:[#allocation2 + $0x108] sm:$0xff] %v5683
    %5802 = vst [vmem:[#allocation2 + $0x110] sm:$0xff] %v5754
    %5803 = vst [vmem:[#allocation2 + $0x118] sm:$0xff] %v5756
    %5804 = vst [vmem:[#allocation2 + $0x120] sm:$0xff] %v5614
    %5805 = vst [vmem:[#allocation2 + $0x128] sm:$0xff] %v5616
    %5806 = vst [vmem:[#allocation2 + $0x130] sm:$0xff] %v5687
    %5807 = vst [vmem:[#allocation2 + $0x138] sm:$0xff] %v5689
    %5808 = vst [vmem:[#allocation2 + $0x140] sm:$0xff] %v5760
    %5809 = vst [vmem:[#allocation2 + $0x148] sm:$0xff] %v5762
    %5810 = vst [vmem:[#allocation2 + $0x150] sm:$0xff] %v5618
    %5811 = vst [vmem:[#allocation2 + $0x158] sm:$0xff] %v5620
    %5812 = vst [vmem:[#allocation2 + $0x160] sm:$0xff] %v5691
    %5813 = vst [vmem:[#allocation2 + $0x168] sm:$0xff] %v5693
    %5814 = vst [vmem:[#allocation2 + $0x170] sm:$0xff] %v5764
    %5815 = vst [vmem:[#allocation2 + $0x178] sm:$0xff] %v5766
    %v5816 = vld [vmem:[%s11] sm:$0x1]
    %v5818 = vlaneseq
    %v5819 = vshrl.u32 %v5818, 7
    %v5820 = vsub.s32 0, %v5819
    %v5821 = vrot.slane %v5816, %v5820
    %v5823 = vld [vmem:[%s12] sm:$0x1]
    %v5825 = vlaneseq
    %v5826 = vshrl.u32 %v5825, 7
    %v5827 = vsub.s32 0, %v5826
    %v5828 = vrot.slane %v5823, %v5827
    %v5830 = vld [vmem:[%s585] sm:$0xff]
    %v5831 = vld [vmem:[%s585 + $0x8] sm:$0xff]
    %v5832 = vld [vmem:[%s585 + $0x10] sm:$0xff]
    %v5833 = vld [vmem:[#allocation14] sm:$0xff]
    %v5834 = vld [vmem:[#allocation14 + $0x8] sm:$0xf]
    %v5835 = vld [vmem:[#allocation14 + $0xc] sm:$0xff]
    %v5836 = vld [vmem:[#allocation14 + $0x14] sm:$0xf]
    %v5837 = vld [vmem:[#allocation14 + $0x18] sm:$0xff]
    %v5838 = vld [vmem:[#allocation14 + $0x20] sm:$0xf]
    %v5839 = vld [vmem:[#allocation14 + $0x24] sm:$0xff]
    %v5840 = vld [vmem:[#allocation14 + $0x2c] sm:$0xf]
    %v5841 = vld [vmem:[#allocation14 + $0x30] sm:$0xff]
    %v5842 = vld [vmem:[#allocation14 + $0x38] sm:$0xf]
    %v5843 = vld [vmem:[#allocation14 + $0x3c] sm:$0xff]
    %v5844 = vld [vmem:[#allocation14 + $0x44] sm:$0xf]
    %v5845 = vld [vmem:[#allocation14 + $0x48] sm:$0xff]
    %v5846 = vld [vmem:[#allocation14 + $0x50] sm:$0xf]
    %v5847 = vld [vmem:[#allocation14 + $0x54] sm:$0xff]
    %v5848 = vld [vmem:[#allocation14 + $0x5c] sm:$0xf]
    %v5849 = vld [vmem:[#allocation14 + $0x60] sm:$0xff]
    %v5850 = vld [vmem:[#allocation14 + $0x68] sm:$0xf]
    %v5851 = vld [vmem:[#allocation14 + $0x6c] sm:$0xff]
    %v5852 = vld [vmem:[#allocation14 + $0x74] sm:$0xf]
    %v5853 = vld [vmem:[#allocation14 + $0x78] sm:$0xff]
    %v5854 = vld [vmem:[#allocation14 + $0x80] sm:$0xf]
    %v5855 = vld [vmem:[#allocation14 + $0x84] sm:$0xff]
    %v5856 = vld [vmem:[#allocation14 + $0x8c] sm:$0xf]
    %v5857 = vld [vmem:[#allocation14 + $0x90] sm:$0xff]
    %v5858 = vld [vmem:[#allocation14 + $0x98] sm:$0xf]
    %v5859 = vld [vmem:[#allocation14 + $0x9c] sm:$0xff]
    %v5860 = vld [vmem:[#allocation14 + $0xa4] sm:$0xf]
    %v5861 = vld [vmem:[#allocation14 + $0xa8] sm:$0xff]
    %v5862 = vld [vmem:[#allocation14 + $0xb0] sm:$0xf]
    %v5863 = vld [vmem:[#allocation14 + $0xb4] sm:$0xff]
    %v5864 = vld [vmem:[#allocation14 + $0xbc] sm:$0xf]
    %v5897 = vunpack.c.l.b16 %v5833
    %v5898 = vunpack.c.h.b16 %v5833
    %v5899 = vunpack.c.l.b16 %v5834
    %v5900 = vunpack.c.l.b16 %v5835
    %v5901 = vunpack.c.h.b16 %v5835
    %v5902 = vunpack.c.l.b16 %v5836
    %v5903 = vunpack.c.l.b16 %v5837
    %v5904 = vunpack.c.h.b16 %v5837
    %v5905 = vunpack.c.l.b16 %v5838
    %v5906 = vunpack.c.l.b16 %v5839
    %v5907 = vunpack.c.h.b16 %v5839
    %v5908 = vunpack.c.l.b16 %v5840
    %v5909 = vunpack.c.l.b16 %v5841
    %v5910 = vunpack.c.h.b16 %v5841
    %v5911 = vunpack.c.l.b16 %v5842
    %v5912 = vunpack.c.l.b16 %v5843
    %v5913 = vunpack.c.h.b16 %v5843
    %v5914 = vunpack.c.l.b16 %v5844
    %v5915 = vunpack.c.l.b16 %v5845
    %v5916 = vunpack.c.h.b16 %v5845
    %v5917 = vunpack.c.l.b16 %v5846
    %v5918 = vunpack.c.l.b16 %v5847
    %v5919 = vunpack.c.h.b16 %v5847
    %v5920 = vunpack.c.l.b16 %v5848
    %v5921 = vunpack.c.l.b16 %v5849
    %v5922 = vunpack.c.h.b16 %v5849
    %v5923 = vunpack.c.l.b16 %v5850
    %v5924 = vunpack.c.l.b16 %v5851
    %v5925 = vunpack.c.h.b16 %v5851
    %v5926 = vunpack.c.l.b16 %v5852
    %v5927 = vunpack.c.l.b16 %v5853
    %v5928 = vunpack.c.h.b16 %v5853
    %v5929 = vunpack.c.l.b16 %v5854
    %v5930 = vunpack.c.l.b16 %v5855
    %v5931 = vunpack.c.h.b16 %v5855
    %v5932 = vunpack.c.l.b16 %v5856
    %v5933 = vunpack.c.l.b16 %v5857
    %v5934 = vunpack.c.h.b16 %v5857
    %v5935 = vunpack.c.l.b16 %v5858
    %v5936 = vunpack.c.l.b16 %v5859
    %v5937 = vunpack.c.h.b16 %v5859
    %v5938 = vunpack.c.l.b16 %v5860
    %v5939 = vunpack.c.l.b16 %v5861
    %v5940 = vunpack.c.h.b16 %v5861
    %v5941 = vunpack.c.l.b16 %v5862
    %v5942 = vunpack.c.l.b16 %v5863
    %v5943 = vunpack.c.h.b16 %v5863
    %v5944 = vunpack.c.l.b16 %v5864
    %v5945 = vpack.c.b16 %v5900, %v5897
    %v5946 = vpack.c.b16 %v5901, %v5898
    %v5947 = vpack.c.b16 %v5902, %v5899
    %v5948 = vpack.c.b16 %v5906, %v5903
    %v5949 = vpack.c.b16 %v5907, %v5904
    %v5950 = vpack.c.b16 %v5908, %v5905
    %v5951 = vpack.c.b16 %v5912, %v5909
    %v5952 = vpack.c.b16 %v5913, %v5910
    %v5953 = vpack.c.b16 %v5914, %v5911
    %v5954 = vpack.c.b16 %v5918, %v5915
    %v5955 = vpack.c.b16 %v5919, %v5916
    %v5956 = vpack.c.b16 %v5920, %v5917
    %v5957 = vpack.c.b16 %v5924, %v5921
    %v5958 = vpack.c.b16 %v5925, %v5922
    %v5959 = vpack.c.b16 %v5926, %v5923
    %v5960 = vpack.c.b16 %v5930, %v5927
    %v5961 = vpack.c.b16 %v5931, %v5928
    %v5962 = vpack.c.b16 %v5932, %v5929
    %v5963 = vpack.c.b16 %v5936, %v5933
    %v5964 = vpack.c.b16 %v5937, %v5934
    %v5965 = vpack.c.b16 %v5938, %v5935
    %v5966 = vpack.c.b16 %v5942, %v5939
    %v5967 = vpack.c.b16 %v5943, %v5940
    %v5968 = vpack.c.b16 %v5944, %v5941
    %5993 = vmatprep.subr.bf16.mxu0 %v5946
    %5994 = vmatpush1.bf16.msra.mxu0 %v5945
    %5995 = vmatprep.subr.bf16.mxu0 %v5949
    %5996 = vmatpush1.bf16.msra.mxu0 %v5948
    %5997 = vmatprep.subr.bf16.mxu0 %v5952
    %5998 = vmatpush1.bf16.msra.mxu0 %v5951
    %5999 = vmatprep.subr.bf16.mxu0 %v5955
    %6000 = vmatpush1.bf16.msra.mxu0 %v5954
    %6001 = vmatprep.subr.bf16.mxu0 %v5958
    %6002 = vmatpush1.bf16.msra.mxu0 %v5957
    %6003 = vmatprep.subr.bf16.mxu0 %v5961
    %6004 = vmatpush1.bf16.msra.mxu0 %v5960
    %6005 = vmatprep.subr.bf16.mxu0 %v5964
    %6006 = vmatpush1.bf16.msra.mxu0 %v5963
    %6007 = vmatprep.subr.bf16.mxu0 %v5967
    %6008 = vmatpush1.bf16.msra.mxu0 %v5966
    %6009 = vmatprep.subr.bf16.mxu0 0
    %6010 = vmatpush1.bf16.msra.mxu0 0
    %6011 = vmatprep.subr.bf16.mxu0 0
    %6012 = vmatpush1.bf16.msra.mxu0 0
    %6013 = vmatprep.subr.bf16.mxu0 0
    %6014 = vmatpush1.bf16.msra.mxu0 0
    %6015 = vmatprep.subr.bf16.mxu0 0
    %6016 = vmatpush1.bf16.msra.mxu0 0
    %6017 = vmatprep.subr.bf16.mxu0 0
    %6018 = vmatpush1.bf16.msra.mxu0 0
    %6019 = vmatprep.subr.bf16.mxu0 0
    %6020 = vmatpush1.bf16.msra.mxu0 0
    %6021 = vmatprep.subr.bf16.mxu0 0
    %6022 = vmatpush1.bf16.msra.mxu0 0
    %6023 = vmatprep.subr.bf16.mxu0 0
    %6024 = vmatpush1.bf16.msra.mxu0 0
    %6025 = vmatprep.mubr.bf16.mxu0 0
    %6026 = vmatmul.mubr.bf16.gmra.mrb[0].mxu0 0
    %v6027 = vpop.f32.mrb[0].mxu0
    %v6028 = vadd.f32 0.0, %v6027
    %v6029 = vpop.f32.mrb[0].mxu0
    %v6030 = vadd.f32 0.0, %v6029
    %v6031 = vpop.f32.mrb[0].mxu0
    %v6032 = vpop.f32.mrb[0].mxu0
    %6033 = vdwg.mxu0
    %6034 = vmatprep.subr.bf16.mxu0 0
    %6035 = vmatpush1.bf16.msra.mxu0 %v5947
    %6036 = vmatprep.subr.bf16.mxu0 0
    %6037 = vmatpush1.bf16.msra.mxu0 %v5950
    %6038 = vmatprep.subr.bf16.mxu0 0
    %6039 = vmatpush1.bf16.msra.mxu0 %v5953
    %6040 = vmatprep.subr.bf16.mxu0 0
    %6041 = vmatpush1.bf16.msra.mxu0 %v5956
    %6042 = vmatprep.subr.bf16.mxu0 0
    %6043 = vmatpush1.bf16.msra.mxu0 %v5959
    %6044 = vmatprep.subr.bf16.mxu0 0
    %6045 = vmatpush1.bf16.msra.mxu0 %v5962
    %6046 = vmatprep.subr.bf16.mxu0 0
    %6047 = vmatpush1.bf16.msra.mxu0 %v5965
    %6048 = vmatprep.subr.bf16.mxu0 0
    %6049 = vmatpush1.bf16.msra.mxu0 %v5968
    %6050 = vmatprep.subr.bf16.mxu0 0
    %6051 = vmatpush1.bf16.msra.mxu0 0
    %6052 = vmatprep.subr.bf16.mxu0 0
    %6053 = vmatpush1.bf16.msra.mxu0 0
    %6054 = vmatprep.subr.bf16.mxu0 0
    %6055 = vmatpush1.bf16.msra.mxu0 0
    %6056 = vmatprep.subr.bf16.mxu0 0
    %6057 = vmatpush1.bf16.msra.mxu0 0
    %6058 = vmatprep.subr.bf16.mxu0 0
    %6059 = vmatpush1.bf16.msra.mxu0 0
    %6060 = vmatprep.subr.bf16.mxu0 0
    %6061 = vmatpush1.bf16.msra.mxu0 0
    %6062 = vmatprep.subr.bf16.mxu0 0
    %6063 = vmatpush1.bf16.msra.mxu0 0
    %6064 = vmatprep.subr.bf16.mxu0 0
    %6065 = vmatpush1.bf16.msra.mxu0 0
    %6066 = vmatprep.mubr.bf16.mxu0 0
    %6067 = vmatmul.mubr.bf16.gmra.mrb[0].mxu0 0
    %v6068 = vpop.f32.mrb[0].mxu0
    %v6069 = vadd.f32 0.0, %v6068
    %v6070 = vpop.f32.mrb[0].mxu0
    %v6071 = vpop.f32.mrb[0].mxu0
    %v6072 = vpop.f32.mrb[0].mxu0
    %6073 = vdwg.mxu0
    %v6074 = vadd.f32 %v5830, %v6028
    %v6075 = vxor.u32 %v6074, 2147483648
    %v6076 = vmul.f32 %v6075, 1.442695
    %v6077 = vpow.pop %v6076
    %v6078 = vadd.f32 %v6077, 1.0
    %v6079 = vrcp.pop %v6078
    %v6080 = vmul.f32 1.0, %v6079
    %v6081 = vadd.f32 %v5831, %v6030
    %v6082 = vxor.u32 %v6081, 2147483648
    %v6083 = vmul.f32 %v6082, 1.442695
    %v6084 = vpow.pop %v6083
    %v6085 = vadd.f32 %v6084, 1.0
    %v6086 = vrcp.pop %v6085
    %v6087 = vmul.f32 1.0, %v6086
    %v6088 = vadd.f32 %v6069, %v5821
    %v6089 = vmul.f32 %v6080, %v6088
    %v6090 = vadd.f32 %v5832, %v6089
    %v6091 = vtanh.pop %v6090
    %v6092 = vsub.f32 1.0, %v6087
    %v6093 = vmul.f32 %v6092, %v6091
    %v6094 = vmul.f32 %v6087, 0.0
    %v6095 = vadd.f32 %v6093, %v6094
    %v6096 = vld [vmem:[%s858 + $0x18] sm:$0xff]
    %v6097 = vld [vmem:[%s858 + $0x20] sm:$0xff]
    %v6098 = vld [vmem:[%s858 + $0x28] sm:$0xff]
    %v6099 = vld [vmem:[#allocation15] sm:$0xff]
    %v6100 = vld [vmem:[#allocation15 + $0x8] sm:$0xf]
    %v6101 = vld [vmem:[#allocation15 + $0xc] sm:$0xff]
    %v6102 = vld [vmem:[#allocation15 + $0x14] sm:$0xf]
    %v6103 = vld [vmem:[#allocation15 + $0x18] sm:$0xff]
    %v6104 = vld [vmem:[#allocation15 + $0x20] sm:$0xf]
    %v6105 = vld [vmem:[#allocation15 + $0x24] sm:$0xff]
    %v6106 = vld [vmem:[#allocation15 + $0x2c] sm:$0xf]
    %v6107 = vld [vmem:[#allocation15 + $0x30] sm:$0xff]
    %v6108 = vld [vmem:[#allocation15 + $0x38] sm:$0xf]
    %v6109 = vld [vmem:[#allocation15 + $0x3c] sm:$0xff]
    %v6110 = vld [vmem:[#allocation15 + $0x44] sm:$0xf]
    %v6111 = vld [vmem:[#allocation15 + $0x48] sm:$0xff]
    %v6112 = vld [vmem:[#allocation15 + $0x50] sm:$0xf]
    %v6113 = vld [vmem:[#allocation15 + $0x54] sm:$0xff]
    %v6114 = vld [vmem:[#allocation15 + $0x5c] sm:$0xf]
    %v6115 = vld [vmem:[#allocation15 + $0x60] sm:$0xff]
    %v6116 = vld [vmem:[#allocation15 + $0x68] sm:$0xf]
    %v6117 = vld [vmem:[#allocation15 + $0x6c] sm:$0xff]
    %v6118 = vld [vmem:[#allocation15 + $0x74] sm:$0xf]
    %v6119 = vld [vmem:[#allocation15 + $0x78] sm:$0xff]
    %v6120 = vld [vmem:[#allocation15 + $0x80] sm:$0xf]
    %v6121 = vld [vmem:[#allocation15 + $0x84] sm:$0xff]
    %v6122 = vld [vmem:[#allocation15 + $0x8c] sm:$0xf]
    %v6123 = vld [vmem:[#allocation15 + $0x90] sm:$0xff]
    %v6124 = vld [vmem:[#allocation15 + $0x98] sm:$0xf]
    %v6125 = vld [vmem:[#allocation15 + $0x9c] sm:$0xff]
    %v6126 = vld [vmem:[#allocation15 + $0xa4] sm:$0xf]
    %v6127 = vld [vmem:[#allocation15 + $0xa8] sm:$0xff]
    %v6128 = vld [vmem:[#allocation15 + $0xb0] sm:$0xf]
    %v6129 = vld [vmem:[#allocation15 + $0xb4] sm:$0xff]
    %v6130 = vld [vmem:[#allocation15 + $0xbc] sm:$0xf]
    %v6163 = vunpack.c.l.b16 %v6099
    %v6164 = vunpack.c.h.b16 %v6099
    %v6165 = vunpack.c.l.b16 %v6100
    %v6166 = vunpack.c.l.b16 %v6101
    %v6167 = vunpack.c.h.b16 %v6101
    %v6168 = vunpack.c.l.b16 %v6102
    %v6169 = vunpack.c.l.b16 %v6103
    %v6170 = vunpack.c.h.b16 %v6103
    %v6171 = vunpack.c.l.b16 %v6104
    %v6172 = vunpack.c.l.b16 %v6105
    %v6173 = vunpack.c.h.b16 %v6105
    %v6174 = vunpack.c.l.b16 %v6106
    %v6175 = vunpack.c.l.b16 %v6107
    %v6176 = vunpack.c.h.b16 %v6107
    %v6177 = vunpack.c.l.b16 %v6108
    %v6178 = vunpack.c.l.b16 %v6109
    %v6179 = vunpack.c.h.b16 %v6109
    %v6180 = vunpack.c.l.b16 %v6110
    %v6181 = vunpack.c.l.b16 %v6111
    %v6182 = vunpack.c.h.b16 %v6111
    %v6183 = vunpack.c.l.b16 %v6112
    %v6184 = vunpack.c.l.b16 %v6113
    %v6185 = vunpack.c.h.b16 %v6113
    %v6186 = vunpack.c.l.b16 %v6114
    %v6187 = vunpack.c.l.b16 %v6115
    %v6188 = vunpack.c.h.b16 %v6115
    %v6189 = vunpack.c.l.b16 %v6116
    %v6190 = vunpack.c.l.b16 %v6117
    %v6191 = vunpack.c.h.b16 %v6117
    %v6192 = vunpack.c.l.b16 %v6118
    %v6193 = vunpack.c.l.b16 %v6119
    %v6194 = vunpack.c.h.b16 %v6119
    %v6195 = vunpack.c.l.b16 %v6120
    %v6196 = vunpack.c.l.b16 %v6121
    %v6197 = vunpack.c.h.b16 %v6121
    %v6198 = vunpack.c.l.b16 %v6122
    %v6199 = vunpack.c.l.b16 %v6123
    %v6200 = vunpack.c.h.b16 %v6123
    %v6201 = vunpack.c.l.b16 %v6124
    %v6202 = vunpack.c.l.b16 %v6125
    %v6203 = vunpack.c.h.b16 %v6125
    %v6204 = vunpack.c.l.b16 %v6126
    %v6205 = vunpack.c.l.b16 %v6127
    %v6206 = vunpack.c.h.b16 %v6127
    %v6207 = vunpack.c.l.b16 %v6128
    %v6208 = vunpack.c.l.b16 %v6129
    %v6209 = vunpack.c.h.b16 %v6129
    %v6210 = vunpack.c.l.b16 %v6130
    %v6211 = vpack.c.b16 %v6166, %v6163
    %v6212 = vpack.c.b16 %v6167, %v6164
    %v6213 = vpack.c.b16 %v6168, %v6165
    %v6214 = vpack.c.b16 %v6172, %v6169
    %v6215 = vpack.c.b16 %v6173, %v6170
    %v6216 = vpack.c.b16 %v6174, %v6171
    %v6217 = vpack.c.b16 %v6178, %v6175
    %v6218 = vpack.c.b16 %v6179, %v6176
    %v6219 = vpack.c.b16 %v6180, %v6177
    %v6220 = vpack.c.b16 %v6184, %v6181
    %v6221 = vpack.c.b16 %v6185, %v6182
    %v6222 = vpack.c.b16 %v6186, %v6183
    %v6223 = vpack.c.b16 %v6190, %v6187
    %v6224 = vpack.c.b16 %v6191, %v6188
    %v6225 = vpack.c.b16 %v6192, %v6189
    %v6226 = vpack.c.b16 %v6196, %v6193
    %v6227 = vpack.c.b16 %v6197, %v6194
    %v6228 = vpack.c.b16 %v6198, %v6195
    %v6229 = vpack.c.b16 %v6202, %v6199
    %v6230 = vpack.c.b16 %v6203, %v6200
    %v6231 = vpack.c.b16 %v6204, %v6201
    %v6232 = vpack.c.b16 %v6208, %v6205
    %v6233 = vpack.c.b16 %v6209, %v6206
    %v6234 = vpack.c.b16 %v6210, %v6207
    %6259 = vmatprep.subr.bf16.mxu0 %v6212
    %6260 = vmatpush1.bf16.msra.mxu0 %v6211
    %6261 = vmatprep.subr.bf16.mxu0 %v6215
    %6262 = vmatpush1.bf16.msra.mxu0 %v6214
    %6263 = vmatprep.subr.bf16.mxu0 %v6218
    %6264 = vmatpush1.bf16.msra.mxu0 %v6217
    %6265 = vmatprep.subr.bf16.mxu0 %v6221
    %6266 = vmatpush1.bf16.msra.mxu0 %v6220
    %6267 = vmatprep.subr.bf16.mxu0 %v6224
    %6268 = vmatpush1.bf16.msra.mxu0 %v6223
    %6269 = vmatprep.subr.bf16.mxu0 %v6227
    %6270 = vmatpush1.bf16.msra.mxu0 %v6226
    %6271 = vmatprep.subr.bf16.mxu0 %v6230
    %6272 = vmatpush1.bf16.msra.mxu0 %v6229
    %6273 = vmatprep.subr.bf16.mxu0 %v6233
    %6274 = vmatpush1.bf16.msra.mxu0 %v6232
    %6275 = vmatprep.subr.bf16.mxu0 0
    %6276 = vmatpush1.bf16.msra.mxu0 0
    %6277 = vmatprep.subr.bf16.mxu0 0
    %6278 = vmatpush1.bf16.msra.mxu0 0
    %6279 = vmatprep.subr.bf16.mxu0 0
    %6280 = vmatpush1.bf16.msra.mxu0 0
    %6281 = vmatprep.subr.bf16.mxu0 0
    %6282 = vmatpush1.bf16.msra.mxu0 0
    %6283 = vmatprep.subr.bf16.mxu0 0
    %6284 = vmatpush1.bf16.msra.mxu0 0
    %6285 = vmatprep.subr.bf16.mxu0 0
    %6286 = vmatpush1.bf16.msra.mxu0 0
    %6287 = vmatprep.subr.bf16.mxu0 0
    %6288 = vmatpush1.bf16.msra.mxu0 0
    %6289 = vmatprep.subr.bf16.mxu0 0
    %6290 = vmatpush1.bf16.msra.mxu0 0
    %6291 = vmatprep.mubr.bf16.mxu0 0
    %6292 = vmatmul.mubr.bf16.gmra.mrb[0].mxu0 0
    %v6293 = vpop.f32.mrb[0].mxu0
    %v6294 = vadd.f32 0.0, %v6293
    %v6295 = vpop.f32.mrb[0].mxu0
    %v6296 = vadd.f32 0.0, %v6295
    %v6297 = vpop.f32.mrb[0].mxu0
    %v6298 = vpop.f32.mrb[0].mxu0
    %6299 = vdwg.mxu0
    %6300 = vmatprep.subr.bf16.mxu0 0
    %6301 = vmatpush1.bf16.msra.mxu0 %v6213
    %6302 = vmatprep.subr.bf16.mxu0 0
    %6303 = vmatpush1.bf16.msra.mxu0 %v6216
    %6304 = vmatprep.subr.bf16.mxu0 0
    %6305 = vmatpush1.bf16.msra.mxu0 %v6219
    %6306 = vmatprep.subr.bf16.mxu0 0
    %6307 = vmatpush1.bf16.msra.mxu0 %v6222
    %6308 = vmatprep.subr.bf16.mxu0 0
    %6309 = vmatpush1.bf16.msra.mxu0 %v6225
    %6310 = vmatprep.subr.bf16.mxu0 0
    %6311 = vmatpush1.bf16.msra.mxu0 %v6228
    %6312 = vmatprep.subr.bf16.mxu0 0
    %6313 = vmatpush1.bf16.msra.mxu0 %v6231
    %6314 = vmatprep.subr.bf16.mxu0 0
    %6315 = vmatpush1.bf16.msra.mxu0 %v6234
    %6316 = vmatprep.subr.bf16.mxu0 0
    %6317 = vmatpush1.bf16.msra.mxu0 0
    %6318 = vmatprep.subr.bf16.mxu0 0
    %6319 = vmatpush1.bf16.msra.mxu0 0
    %6320 = vmatprep.subr.bf16.mxu0 0
    %6321 = vmatpush1.bf16.msra.mxu0 0
    %6322 = vmatprep.subr.bf16.mxu0 0
    %6323 = vmatpush1.bf16.msra.mxu0 0
    %6324 = vmatprep.subr.bf16.mxu0 0
    %6325 = vmatpush1.bf16.msra.mxu0 0
    %6326 = vmatprep.subr.bf16.mxu0 0
    %6327 = vmatpush1.bf16.msra.mxu0 0
    %6328 = vmatprep.subr.bf16.mxu0 0
    %6329 = vmatpush1.bf16.msra.mxu0 0
    %6330 = vmatprep.subr.bf16.mxu0 0
    %6331 = vmatpush1.bf16.msra.mxu0 0
    %6332 = vmatprep.mubr.bf16.mxu0 0
    %6333 = vmatmul.mubr.bf16.gmra.mrb[0].mxu0 0
    %v6334 = vpop.f32.mrb[0].mxu0
    %v6335 = vadd.f32 0.0, %v6334
    %v6336 = vpop.f32.mrb[0].mxu0
    %v6337 = vpop.f32.mrb[0].mxu0
    %v6338 = vpop.f32.mrb[0].mxu0
    %6339 = vdwg.mxu0
    %v6340 = vadd.f32 %v6096, %v6294
    %v6341 = vxor.u32 %v6340, 2147483648
    %v6342 = vmul.f32 %v6341, 1.442695
    %v6343 = vpow.pop %v6342
    %v6344 = vadd.f32 %v6343, 1.0
    %v6345 = vrcp.pop %v6344
    %v6346 = vmul.f32 1.0, %v6345
    %v6347 = vadd.f32 %v6097, %v6296
    %v6348 = vxor.u32 %v6347, 2147483648
    %v6349 = vmul.f32 %v6348, 1.442695
    %v6350 = vpow.pop %v6349
    %v6351 = vadd.f32 %v6350, 1.0
    %v6352 = vrcp.pop %v6351
    %v6353 = vmul.f32 1.0, %v6352
    %v6354 = vadd.f32 %v6335, %v5828
    %v6355 = vmul.f32 %v6346, %v6354
    %v6356 = vadd.f32 %v6098, %v6355
    %v6357 = vtanh.pop %v6356
    %v6358 = vsub.f32 1.0, %v6353
    %v6359 = vmul.f32 %v6358, %v6357
    %v6360 = vmul.f32 %v6353, 0.0
    %v6361 = vadd.f32 %v6359, %v6360
    %v6362 = vld [vmem:[%s1131] sm:$0xff]
    %v6363 = vld [vmem:[%s1131 + $0x8] sm:$0xff]
    %v6364 = vld [vmem:[%s1131 + $0x10] sm:$0xff]
    %v6365 = vpack.c.bf16 %v6095, %v6095
    %6366 = vmatprep.subr.bf16.mxu0 %v5946
    %6367 = vmatpush1.bf16.msra.mxu0 %v5945
    %6368 = vmatprep.subr.bf16.mxu0 %v5949
    %6369 = vmatpush1.bf16.msra.mxu0 %v5948
    %6370 = vmatprep.subr.bf16.mxu0 %v5952
    %6371 = vmatpush1.bf16.msra.mxu0 %v5951
    %6372 = vmatprep.subr.bf16.mxu0 %v5955
    %6373 = vmatpush1.bf16.msra.mxu0 %v5954
    %6374 = vmatprep.subr.bf16.mxu0 %v5958
    %6375 = vmatpush1.bf16.msra.mxu0 %v5957
    %6376 = vmatprep.subr.bf16.mxu0 %v5961
    %6377 = vmatpush1.bf16.msra.mxu0 %v5960
    %6378 = vmatprep.subr.bf16.mxu0 %v5964
    %6379 = vmatpush1.bf16.msra.mxu0 %v5963
    %6380 = vmatprep.subr.bf16.mxu0 %v5967
    %6381 = vmatpush1.bf16.msra.mxu0 %v5966
    %6382 = vmatprep.subr.bf16.mxu0 0
    %6383 = vmatpush1.bf16.msra.mxu0 0
    %6384 = vmatprep.subr.bf16.mxu0 0
    %6385 = vmatpush1.bf16.msra.mxu0 0
    %6386 = vmatprep.subr.bf16.mxu0 0
    %6387 = vmatpush1.bf16.msra.mxu0 0
    %6388 = vmatprep.subr.bf16.mxu0 0
    %6389 = vmatpush1.bf16.msra.mxu0 0
    %6390 = vmatprep.subr.bf16.mxu0 0
    %6391 = vmatpush1.bf16.msra.mxu0 0
    %6392 = vmatprep.subr.bf16.mxu0 0
    %6393 = vmatpush1.bf16.msra.mxu0 0
    %6394 = vmatprep.subr.bf16.mxu0 0
    %6395 = vmatpush1.bf16.msra.mxu0 0
    %6396 = vmatprep.subr.bf16.mxu0 0
    %6397 = vmatpush1.bf16.msra.mxu0 0
    %6398 = vmatprep.mubr.bf16.mxu0 0
    %6399 = vmatmul.mubr.bf16.gmra.mrb[0].mxu0 %v6365
    %v6400 = vpop.f32.mrb[0].mxu0
    %v6401 = vadd.f32 0.0, %v6400
    %v6402 = vpop.f32.mrb[0].mxu0
    %v6403 = vadd.f32 0.0, %v6402
    %v6404 = vpop.f32.mrb[0].mxu0
    %v6405 = vpop.f32.mrb[0].mxu0
    %6406 = vdwg.mxu0
    %6407 = vmatprep.subr.bf16.mxu0 0
    %6408 = vmatpush1.bf16.msra.mxu0 %v5947
    %6409 = vmatprep.subr.bf16.mxu0 0
    %6410 = vmatpush1.bf16.msra.mxu0 %v5950
    %6411 = vmatprep.subr.bf16.mxu0 0
    %6412 = vmatpush1.bf16.msra.mxu0 %v5953
    %6413 = vmatprep.subr.bf16.mxu0 0
    %6414 = vmatpush1.bf16.msra.mxu0 %v5956
    %6415 = vmatprep.subr.bf16.mxu0 0
    %6416 = vmatpush1.bf16.msra.mxu0 %v5959
    %6417 = vmatprep.subr.bf16.mxu0 0
    %6418 = vmatpush1.bf16.msra.mxu0 %v5962
    %6419 = vmatprep.subr.bf16.mxu0 0
    %6420 = vmatpush1.bf16.msra.mxu0 %v5965
    %6421 = vmatprep.subr.bf16.mxu0 0
    %6422 = vmatpush1.bf16.msra.mxu0 %v5968
    %6423 = vmatprep.subr.bf16.mxu0 0
    %6424 = vmatpush1.bf16.msra.mxu0 0
    %6425 = vmatprep.subr.bf16.mxu0 0
    %6426 = vmatpush1.bf16.msra.mxu0 0
    %6427 = vmatprep.subr.bf16.mxu0 0
    %6428 = vmatpush1.bf16.msra.mxu0 0
    %6429 = vmatprep.subr.bf16.mxu0 0
    %6430 = vmatpush1.bf16.msra.mxu0 0
    %6431 = vmatprep.subr.bf16.mxu0 0
    %6432 = vmatpush1.bf16.msra.mxu0 0
    %6433 = vmatprep.subr.bf16.mxu0 0
    %6434 = vmatpush1.bf16.msra.mxu0 0
    %6435 = vmatprep.subr.bf16.mxu0 0
    %6436 = vmatpush1.bf16.msra.mxu0 0
    %6437 = vmatprep.subr.bf16.mxu0 0
    %6438 = vmatpush1.bf16.msra.mxu0 0
    %6439 = vmatprep.mubr.bf16.mxu0 0
    %6440 = vmatmul.mubr.bf16.gmra.mrb[0].mxu0 %v6365
    %v6441 = vpop.f32.mrb[0].mxu0
    %v6442 = vadd.f32 0.0, %v6441
    %v6443 = vpop.f32.mrb[0].mxu0
    %v6444 = vpop.f32.mrb[0].mxu0
    %v6445 = vpop.f32.mrb[0].mxu0
    %6446 = vdwg.mxu0
    %v6447 = vadd.f32 %v6362, %v6401
    %v6448 = vxor.u32 %v6447, 2147483648
    %v6449 = vmul.f32 %v6448, 1.442695
    %v6450 = vpow.pop %v6449
    %v6451 = vadd.f32 %v6450, 1.0
    %v6452 = vrcp.pop %v6451
    %v6453 = vmul.f32 1.0, %v6452
    %v6454 = vadd.f32 %v6363, %v6403
    %v6455 = vxor.u32 %v6454, 2147483648
    %v6456 = vmul.f32 %v6455, 1.442695
    %v6457 = vpow.pop %v6456
    %v6458 = vadd.f32 %v6457, 1.0
    %v6459 = vrcp.pop %v6458
    %v6460 = vmul.f32 1.0, %v6459
    %v6461 = vadd.f32 %v6442, %v5821
    %v6462 = vmul.f32 %v6453, %v6461
    %v6463 = vadd.f32 %v6364, %v6462
    %v6464 = vtanh.pop %v6463
    %v6465 = vsub.f32 1.0, %v6460
    %v6466 = vmul.f32 %v6465, %v6464
    %v6467 = vmul.f32 %v6460, %v6095
    %v6468 = vadd.f32 %v6466, %v6467
    %v6469 = vld [vmem:[%s1405 + $0x18] sm:$0xff]
    %v6470 = vld [vmem:[%s1405 + $0x20] sm:$0xff]
    %v6471 = vld [vmem:[%s1405 + $0x28] sm:$0xff]
    %v6472 = vpack.c.bf16 %v6361, %v6361
    %6473 = vmatprep.subr.bf16.mxu0 %v6212
    %6474 = vmatpush1.bf16.msra.mxu0 %v6211
    %6475 = vmatprep.subr.bf16.mxu0 %v6215
    %6476 = vmatpush1.bf16.msra.mxu0 %v6214
    %6477 = vmatprep.subr.bf16.mxu0 %v6218
    %6478 = vmatpush1.bf16.msra.mxu0 %v6217
    %6479 = vmatprep.subr.bf16.mxu0 %v6221
    %6480 = vmatpush1.bf16.msra.mxu0 %v6220
    %6481 = vmatprep.subr.bf16.mxu0 %v6224
    %6482 = vmatpush1.bf16.msra.mxu0 %v6223
    %6483 = vmatprep.subr.bf16.mxu0 %v6227
    %6484 = vmatpush1.bf16.msra.mxu0 %v6226
    %6485 = vmatprep.subr.bf16.mxu0 %v6230
    %6486 = vmatpush1.bf16.msra.mxu0 %v6229
    %6487 = vmatprep.subr.bf16.mxu0 %v6233
    %6488 = vmatpush1.bf16.msra.mxu0 %v6232
    %6489 = vmatprep.subr.bf16.mxu0 0
    %6490 = vmatpush1.bf16.msra.mxu0 0
    %6491 = vmatprep.subr.bf16.mxu0 0
    %6492 = vmatpush1.bf16.msra.mxu0 0
    %6493 = vmatprep.subr.bf16.mxu0 0
    %6494 = vmatpush1.bf16.msra.mxu0 0
    %6495 = vmatprep.subr.bf16.mxu0 0
    %6496 = vmatpush1.bf16.msra.mxu0 0
    %6497 = vmatprep.subr.bf16.mxu0 0
    %6498 = vmatpush1.bf16.msra.mxu0 0
    %6499 = vmatprep.subr.bf16.mxu0 0
    %6500 = vmatpush1.bf16.msra.mxu0 0
    %6501 = vmatprep.subr.bf16.mxu0 0
    %6502 = vmatpush1.bf16.msra.mxu0 0
    %6503 = vmatprep.subr.bf16.mxu0 0
    %6504 = vmatpush1.bf16.msra.mxu0 0
    %6505 = vmatprep.mubr.bf16.mxu0 0
    %6506 = vmatmul.mubr.bf16.gmra.mrb[0].mxu0 %v6472
    %v6507 = vpop.f32.mrb[0].mxu0
    %v6508 = vadd.f32 0.0, %v6507
    %v6509 = vpop.f32.mrb[0].mxu0
    %v6510 = vadd.f32 0.0, %v6509
    %v6511 = vpop.f32.mrb[0].mxu0
    %v6512 = vpop.f32.mrb[0].mxu0
    %6513 = vdwg.mxu0
    %6514 = vmatprep.subr.bf16.mxu0 0
    %6515 = vmatpush1.bf16.msra.mxu0 %v6213
    %6516 = vmatprep.subr.bf16.mxu0 0
    %6517 = vmatpush1.bf16.msra.mxu0 %v6216
    %6518 = vmatprep.subr.bf16.mxu0 0
    %6519 = vmatpush1.bf16.msra.mxu0 %v6219
    %6520 = vmatprep.subr.bf16.mxu0 0
    %6521 = vmatpush1.bf16.msra.mxu0 %v6222
    %6522 = vmatprep.subr.bf16.mxu0 0
    %6523 = vmatpush1.bf16.msra.mxu0 %v6225
    %6524 = vmatprep.subr.bf16.mxu0 0
    %6525 = vmatpush1.bf16.msra.mxu0 %v6228
    %6526 = vmatprep.subr.bf16.mxu0 0
    %6527 = vmatpush1.bf16.msra.mxu0 %v6231
    %6528 = vmatprep.subr.bf16.mxu0 0
    %6529 = vmatpush1.bf16.msra.mxu0 %v6234
    %6530 = vmatprep.subr.bf16.mxu0 0
    %6531 = vmatpush1.bf16.msra.mxu0 0
    %6532 = vmatprep.subr.bf16.mxu0 0
    %6533 = vmatpush1.bf16.msra.mxu0 0
    %6534 = vmatprep.subr.bf16.mxu0 0
    %6535 = vmatpush1.bf16.msra.mxu0 0
    %6536 = vmatprep.subr.bf16.mxu0 0
    %6537 = vmatpush1.bf16.msra.mxu0 0
    %6538 = vmatprep.subr.bf16.mxu0 0
    %6539 = vmatpush1.bf16.msra.mxu0 0
    %6540 = vmatprep.subr.bf16.mxu0 0
    %6541 = vmatpush1.bf16.msra.mxu0 0
    %6542 = vmatprep.subr.bf16.mxu0 0
    %6543 = vmatpush1.bf16.msra.mxu0 0
    %6544 = vmatprep.subr.bf16.mxu0 0
    %6545 = vmatpush1.bf16.msra.mxu0 0
    %6546 = vmatprep.mubr.bf16.mxu0 0
    %6547 = vmatmul.mubr.bf16.gmra.mrb[0].mxu0 %v6472
    %v6548 = vpop.f32.mrb[0].mxu0
    %v6549 = vadd.f32 0.0, %v6548
    %v6550 = vpop.f32.mrb[0].mxu0
    %v6551 = vpop.f32.mrb[0].mxu0
    %v6552 = vpop.f32.mrb[0].mxu0
    %6553 = vdwg.mxu0
    %v6554 = vadd.f32 %v6469, %v6508
    %v6555 = vxor.u32 %v6554, 2147483648
    %v6556 = vmul.f32 %v6555, 1.442695
    %v6557 = vpow.pop %v6556
    %v6558 = vadd.f32 %v6557, 1.0
    %v6559 = vrcp.pop %v6558
    %v6560 = vmul.f32 1.0, %v6559
    %v6561 = vadd.f32 %v6470, %v6510
    %v6562 = vxor.u32 %v6561, 2147483648
    %v6563 = vmul.f32 %v6562, 1.442695
    %v6564 = vpow.pop %v6563
    %v6565 = vadd.f32 %v6564, 1.0
    %v6566 = vrcp.pop %v6565
    %v6567 = vmul.f32 1.0, %v6566
    %v6568 = vadd.f32 %v6549, %v5828
    %v6569 = vmul.f32 %v6560, %v6568
    %v6570 = vadd.f32 %v6471, %v6569
    %v6571 = vtanh.pop %v6570
    %v6572 = vsub.f32 1.0, %v6567
    %v6573 = vmul.f32 %v6572, %v6571
    %v6574 = vmul.f32 %v6567, %v6361
    %v6575 = vadd.f32 %v6573, %v6574
    %v6576 = vld [vmem:[%s1679] sm:$0xff]
    %v6577 = vld [vmem:[%s1679 + $0x8] sm:$0xff]
    %v6578 = vld [vmem:[%s1679 + $0x10] sm:$0xff]
    %v6579 = vpack.c.bf16 %v6468, %v6468
    %6580 = vmatprep.subr.bf16.mxu0 %v5946
    %6581 = vmatpush1.bf16.msra.mxu0 %v5945
    %6582 = vmatprep.subr.bf16.mxu0 %v5949
    %6583 = vmatpush1.bf16.msra.mxu0 %v5948
    %6584 = vmatprep.subr.bf16.mxu0 %v5952
    %6585 = vmatpush1.bf16.msra.mxu0 %v5951
    %6586 = vmatprep.subr.bf16.mxu0 %v5955
    %6587 = vmatpush1.bf16.msra.mxu0 %v5954
    %6588 = vmatprep.subr.bf16.mxu0 %v5958
    %6589 = vmatpush1.bf16.msra.mxu0 %v5957
    %6590 = vmatprep.subr.bf16.mxu0 %v5961
    %6591 = vmatpush1.bf16.msra.mxu0 %v5960
    %6592 = vmatprep.subr.bf16.mxu0 %v5964
    %6593 = vmatpush1.bf16.msra.mxu0 %v5963
    %6594 = vmatprep.subr.bf16.mxu0 %v5967
    %6595 = vmatpush1.bf16.msra.mxu0 %v5966
    %6596 = vmatprep.subr.bf16.mxu0 0
    %6597 = vmatpush1.bf16.msra.mxu0 0
    %6598 = vmatprep.subr.bf16.mxu0 0
    %6599 = vmatpush1.bf16.msra.mxu0 0
    %6600 = vmatprep.subr.bf16.mxu0 0
    %6601 = vmatpush1.bf16.msra.mxu0 0
    %6602 = vmatprep.subr.bf16.mxu0 0
    %6603 = vmatpush1.bf16.msra.mxu0 0
    %6604 = vmatprep.subr.bf16.mxu0 0
    %6605 = vmatpush1.bf16.msra.mxu0 0
    %6606 = vmatprep.subr.bf16.mxu0 0
    %6607 = vmatpush1.bf16.msra.mxu0 0
    %6608 = vmatprep.subr.bf16.mxu0 0
    %6609 = vmatpush1.bf16.msra.mxu0 0
    %6610 = vmatprep.subr.bf16.mxu0 0
    %6611 = vmatpush1.bf16.msra.mxu0 0
    %6612 = vmatprep.mubr.bf16.mxu0 0
    %6613 = vmatmul.mubr.bf16.gmra.mrb[0].mxu0 %v6579
    %v6614 = vpop.f32.mrb[0].mxu0
    %v6615 = vadd.f32 0.0, %v6614
    %v6616 = vpop.f32.mrb[0].mxu0
    %v6617 = vadd.f32 0.0, %v6616
    %v6618 = vpop.f32.mrb[0].mxu0
    %v6619 = vpop.f32.mrb[0].mxu0
    %6620 = vdwg.mxu0
    %6621 = vmatprep.subr.bf16.mxu0 0
    %6622 = vmatpush1.bf16.msra.mxu0 %v5947
    %6623 = vmatprep.subr.bf16.mxu0 0
    %6624 = vmatpush1.bf16.msra.mxu0 %v5950
    %6625 = vmatprep.subr.bf16.mxu0 0
    %6626 = vmatpush1.bf16.msra.mxu0 %v5953
    %6627 = vmatprep.subr.bf16.mxu0 0
    %6628 = vmatpush1.bf16.msra.mxu0 %v5956
    %6629 = vmatprep.subr.bf16.mxu0 0
    %6630 = vmatpush1.bf16.msra.mxu0 %v5959
    %6631 = vmatprep.subr.bf16.mxu0 0
    %6632 = vmatpush1.bf16.msra.mxu0 %v5962
    %6633 = vmatprep.subr.bf16.mxu0 0
    %6634 = vmatpush1.bf16.msra.mxu0 %v5965
    %6635 = vmatprep.subr.bf16.mxu0 0
    %6636 = vmatpush1.bf16.msra.mxu0 %v5968
    %6637 = vmatprep.subr.bf16.mxu0 0
    %6638 = vmatpush1.bf16.msra.mxu0 0
    %6639 = vmatprep.subr.bf16.mxu0 0
    %6640 = vmatpush1.bf16.msra.mxu0 0
    %6641 = vmatprep.subr.bf16.mxu0 0
    %6642 = vmatpush1.bf16.msra.mxu0 0
    %6643 = vmatprep.subr.bf16.mxu0 0
    %6644 = vmatpush1.bf16.msra.mxu0 0
    %6645 = vmatprep.subr.bf16.mxu0 0
    %6646 = vmatpush1.bf16.msra.mxu0 0
    %6647 = vmatprep.subr.bf16.mxu0 0
    %6648 = vmatpush1.bf16.msra.mxu0 0
    %6649 = vmatprep.subr.bf16.mxu0 0
    %6650 = vmatpush1.bf16.msra.mxu0 0
    %6651 = vmatprep.subr.bf16.mxu0 0
    %6652 = vmatpush1.bf16.msra.mxu0 0
    %6653 = vmatprep.mubr.bf16.mxu0 0
    %6654 = vmatmul.mubr.bf16.gmra.mrb[0].mxu0 %v6579
    %v6655 = vpop.f32.mrb[0].mxu0
    %v6656 = vadd.f32 0.0, %v6655
    %v6657 = vpop.f32.mrb[0].mxu0
    %v6658 = vpop.f32.mrb[0].mxu0
    %v6659 = vpop.f32.mrb[0].mxu0
    %6660 = vdwg.mxu0
    %v6661 = vadd.f32 %v6576, %v6615
    %v6662 = vxor.u32 %v6661, 2147483648
    %v6663 = vmul.f32 %v6662, 1.442695
    %v6664 = vpow.pop %v6663
    %v6665 = vadd.f32 %v6664, 1.0
    %v6666 = vrcp.pop %v6665
    %v6667 = vmul.f32 1.0, %v6666
    %v6668 = vadd.f32 %v6577, %v6617
    %v6669 = vxor.u32 %v6668, 2147483648
    %v6670 = vmul.f32 %v6669, 1.442695
    %v6671 = vpow.pop %v6670
    %v6672 = vadd.f32 %v6671, 1.0
    %v6673 = vrcp.pop %v6672
    %v6674 = vmul.f32 1.0, %v6673
    %v6675 = vadd.f32 %v6656, %v5821
    %v6676 = vmul.f32 %v6667, %v6675
    %v6677 = vadd.f32 %v6578, %v6676
    %v6678 = vtanh.pop %v6677
    %v6679 = vsub.f32 1.0, %v6674
    %v6680 = vmul.f32 %v6679, %v6678
    %v6681 = vmul.f32 %v6674, %v6468
    %v6682 = vadd.f32 %v6680, %v6681
    %v6683 = vld [vmem:[%s1953 + $0x18] sm:$0xff]
    %v6684 = vld [vmem:[%s1953 + $0x20] sm:$0xff]
    %v6685 = vld [vmem:[%s1953 + $0x28] sm:$0xff]
    %v6686 = vpack.c.bf16 %v6575, %v6575
    %6687 = vmatprep.subr.bf16.mxu0 %v6212
    %6688 = vmatpush1.bf16.msra.mxu0 %v6211
    %6689 = vmatprep.subr.bf16.mxu0 %v6215
    %6690 = vmatpush1.bf16.msra.mxu0 %v6214
    %6691 = vmatprep.subr.bf16.mxu0 %v6218
    %6692 = vmatpush1.bf16.msra.mxu0 %v6217
    %6693 = vmatprep.subr.bf16.mxu0 %v6221
    %6694 = vmatpush1.bf16.msra.mxu0 %v6220
    %6695 = vmatprep.subr.bf16.mxu0 %v6224
    %6696 = vmatpush1.bf16.msra.mxu0 %v6223
    %6697 = vmatprep.subr.bf16.mxu0 %v6227
    %6698 = vmatpush1.bf16.msra.mxu0 %v6226
    %6699 = vmatprep.subr.bf16.mxu0 %v6230
    %6700 = vmatpush1.bf16.msra.mxu0 %v6229
    %6701 = vmatprep.subr.bf16.mxu0 %v6233
    %6702 = vmatpush1.bf16.msra.mxu0 %v6232
    %6703 = vmatprep.subr.bf16.mxu0 0
    %6704 = vmatpush1.bf16.msra.mxu0 0
    %6705 = vmatprep.subr.bf16.mxu0 0
    %6706 = vmatpush1.bf16.msra.mxu0 0
    %6707 = vmatprep.subr.bf16.mxu0 0
    %6708 = vmatpush1.bf16.msra.mxu0 0
    %6709 = vmatprep.subr.bf16.mxu0 0
    %6710 = vmatpush1.bf16.msra.mxu0 0
    %6711 = vmatprep.subr.bf16.mxu0 0
    %6712 = vmatpush1.bf16.msra.mxu0 0
    %6713 = vmatprep.subr.bf16.mxu0 0
    %6714 = vmatpush1.bf16.msra.mxu0 0
    %6715 = vmatprep.subr.bf16.mxu0 0
    %6716 = vmatpush1.bf16.msra.mxu0 0
    %6717 = vmatprep.subr.bf16.mxu0 0
    %6718 = vmatpush1.bf16.msra.mxu0 0
    %6719 = vmatprep.mubr.bf16.mxu0 0
    %6720 = vmatmul.mubr.bf16.gmra.mrb[0].mxu0 %v6686
    %v6721 = vpop.f32.mrb[0].mxu0
    %v6722 = vadd.f32 0.0, %v6721
    %v6723 = vpop.f32.mrb[0].mxu0
    %v6724 = vadd.f32 0.0, %v6723
    %v6725 = vpop.f32.mrb[0].mxu0
    %v6726 = vpop.f32.mrb[0].mxu0
    %6727 = vdwg.mxu0
    %6728 = vmatprep.subr.bf16.mxu0 0
    %6729 = vmatpush1.bf16.msra.mxu0 %v6213
    %6730 = vmatprep.subr.bf16.mxu0 0
    %6731 = vmatpush1.bf16.msra.mxu0 %v6216
    %6732 = vmatprep.subr.bf16.mxu0 0
    %6733 = vmatpush1.bf16.msra.mxu0 %v6219
    %6734 = vmatprep.subr.bf16.mxu0 0
    %6735 = vmatpush1.bf16.msra.mxu0 %v6222
    %6736 = vmatprep.subr.bf16.mxu0 0
    %6737 = vmatpush1.bf16.msra.mxu0 %v6225
    %6738 = vmatprep.subr.bf16.mxu0 0
    %6739 = vmatpush1.bf16.msra.mxu0 %v6228
    %6740 = vmatprep.subr.bf16.mxu0 0
    %6741 = vmatpush1.bf16.msra.mxu0 %v6231
    %6742 = vmatprep.subr.bf16.mxu0 0
    %6743 = vmatpush1.bf16.msra.mxu0 %v6234
    %6744 = vmatprep.subr.bf16.mxu0 0
    %6745 = vmatpush1.bf16.msra.mxu0 0
    %6746 = vmatprep.subr.bf16.mxu0 0
    %6747 = vmatpush1.bf16.msra.mxu0 0
    %6748 = vmatprep.subr.bf16.mxu0 0
    %6749 = vmatpush1.bf16.msra.mxu0 0
    %6750 = vmatprep.subr.bf16.mxu0 0
    %6751 = vmatpush1.bf16.msra.mxu0 0
    %6752 = vmatprep.subr.bf16.mxu0 0
    %6753 = vmatpush1.bf16.msra.mxu0 0
    %6754 = vmatprep.subr.bf16.mxu0 0
    %6755 = vmatpush1.bf16.msra.mxu0 0
    %6756 = vmatprep.subr.bf16.mxu0 0
    %6757 = vmatpush1.bf16.msra.mxu0 0
    %6758 = vmatprep.subr.bf16.mxu0 0
    %6759 = vmatpush1.bf16.msra.mxu0 0
    %6760 = vmatprep.mubr.bf16.mxu0 0
    %6761 = vmatmul.mubr.bf16.gmra.mrb[0].mxu0 %v6686
    %v6762 = vpop.f32.mrb[0].mxu0
    %v6763 = vadd.f32 0.0, %v6762
    %v6764 = vpop.f32.mrb[0].mxu0
    %v6765 = vpop.f32.mrb[0].mxu0
    %v6766 = vpop.f32.mrb[0].mxu0
    %6767 = vdwg.mxu0
    %v6768 = vadd.f32 %v6683, %v6722
    %v6769 = vxor.u32 %v6768, 2147483648
    %v6770 = vmul.f32 %v6769, 1.442695
    %v6771 = vpow.pop %v6770
    %v6772 = vadd.f32 %v6771, 1.0
    %v6773 = vrcp.pop %v6772
    %v6774 = vmul.f32 1.0, %v6773
    %v6775 = vadd.f32 %v6684, %v6724
    %v6776 = vxor.u32 %v6775, 2147483648
    %v6777 = vmul.f32 %v6776, 1.442695
    %v6778 = vpow.pop %v6777
    %v6779 = vadd.f32 %v6778, 1.0
    %v6780 = vrcp.pop %v6779
    %v6781 = vmul.f32 1.0, %v6780
    %v6782 = vadd.f32 %v6763, %v5828
    %v6783 = vmul.f32 %v6774, %v6782
    %v6784 = vadd.f32 %v6685, %v6783
    %v6785 = vtanh.pop %v6784
    %v6786 = vsub.f32 1.0, %v6781
    %v6787 = vmul.f32 %v6786, %v6785
    %v6788 = vmul.f32 %v6781, %v6575
    %v6789 = vadd.f32 %v6787, %v6788
    %v6790 = vld [vmem:[%s2227] sm:$0xff]
    %v6791 = vld [vmem:[%s2227 + $0x8] sm:$0xff]
    %v6792 = vld [vmem:[%s2227 + $0x10] sm:$0xff]
    %v6793 = vpack.c.bf16 %v6682, %v6682
    %6794 = vmatprep.subr.bf16.mxu0 %v5946
    %6795 = vmatpush1.bf16.msra.mxu0 %v5945
    %6796 = vmatprep.subr.bf16.mxu0 %v5949
    %6797 = vmatpush1.bf16.msra.mxu0 %v5948
    %6798 = vmatprep.subr.bf16.mxu0 %v5952
    %6799 = vmatpush1.bf16.msra.mxu0 %v5951
    %6800 = vmatprep.subr.bf16.mxu0 %v5955
    %6801 = vmatpush1.bf16.msra.mxu0 %v5954
    %6802 = vmatprep.subr.bf16.mxu0 %v5958
    %6803 = vmatpush1.bf16.msra.mxu0 %v5957
    %6804 = vmatprep.subr.bf16.mxu0 %v5961
    %6805 = vmatpush1.bf16.msra.mxu0 %v5960
    %6806 = vmatprep.subr.bf16.mxu0 %v5964
    %6807 = vmatpush1.bf16.msra.mxu0 %v5963
    %6808 = vmatprep.subr.bf16.mxu0 %v5967
    %6809 = vmatpush1.bf16.msra.mxu0 %v5966
    %6810 = vmatprep.subr.bf16.mxu0 0
    %6811 = vmatpush1.bf16.msra.mxu0 0
    %6812 = vmatprep.subr.bf16.mxu0 0
    %6813 = vmatpush1.bf16.msra.mxu0 0
    %6814 = vmatprep.subr.bf16.mxu0 0
    %6815 = vmatpush1.bf16.msra.mxu0 0
    %6816 = vmatprep.subr.bf16.mxu0 0
    %6817 = vmatpush1.bf16.msra.mxu0 0
    %6818 = vmatprep.subr.bf16.mxu0 0
    %6819 = vmatpush1.bf16.msra.mxu0 0
    %6820 = vmatprep.subr.bf16.mxu0 0
    %6821 = vmatpush1.bf16.msra.mxu0 0
    %6822 = vmatprep.subr.bf16.mxu0 0
    %6823 = vmatpush1.bf16.msra.mxu0 0
    %6824 = vmatprep.subr.bf16.mxu0 0
    %6825 = vmatpush1.bf16.msra.mxu0 0
    %6826 = vmatprep.mubr.bf16.mxu0 0
    %6827 = vmatmul.mubr.bf16.gmra.mrb[0].mxu0 %v6793
    %v6828 = vpop.f32.mrb[0].mxu0
    %v6829 = vadd.f32 0.0, %v6828
    %v6830 = vpop.f32.mrb[0].mxu0
    %v6831 = vadd.f32 0.0, %v6830
    %v6832 = vpop.f32.mrb[0].mxu0
    %v6833 = vpop.f32.mrb[0].mxu0
    %6834 = vdwg.mxu0
    %6835 = vmatprep.subr.bf16.mxu0 0
    %6836 = vmatpush1.bf16.msra.mxu0 %v5947
    %6837 = vmatprep.subr.bf16.mxu0 0
    %6838 = vmatpush1.bf16.msra.mxu0 %v5950
    %6839 = vmatprep.subr.bf16.mxu0 0
    %6840 = vmatpush1.bf16.msra.mxu0 %v5953
    %6841 = vmatprep.subr.bf16.mxu0 0
    %6842 = vmatpush1.bf16.msra.mxu0 %v5956
    %6843 = vmatprep.subr.bf16.mxu0 0
    %6844 = vmatpush1.bf16.msra.mxu0 %v5959
    %6845 = vmatprep.subr.bf16.mxu0 0
    %6846 = vmatpush1.bf16.msra.mxu0 %v5962
    %6847 = vmatprep.subr.bf16.mxu0 0
    %6848 = vmatpush1.bf16.msra.mxu0 %v5965
    %6849 = vmatprep.subr.bf16.mxu0 0
    %6850 = vmatpush1.bf16.msra.mxu0 %v5968
    %6851 = vmatprep.subr.bf16.mxu0 0
    %6852 = vmatpush1.bf16.msra.mxu0 0
    %6853 = vmatprep.subr.bf16.mxu0 0
    %6854 = vmatpush1.bf16.msra.mxu0 0
    %6855 = vmatprep.subr.bf16.mxu0 0
    %6856 = vmatpush1.bf16.msra.mxu0 0
    %6857 = vmatprep.subr.bf16.mxu0 0
    %6858 = vmatpush1.bf16.msra.mxu0 0
    %6859 = vmatprep.subr.bf16.mxu0 0
    %6860 = vmatpush1.bf16.msra.mxu0 0
    %6861 = vmatprep.subr.bf16.mxu0 0
    %6862 = vmatpush1.bf16.msra.mxu0 0
    %6863 = vmatprep.subr.bf16.mxu0 0
    %6864 = vmatpush1.bf16.msra.mxu0 0
    %6865 = vmatprep.subr.bf16.mxu0 0
    %6866 = vmatpush1.bf16.msra.mxu0 0
    %6867 = vmatprep.mubr.bf16.mxu0 0
    %6868 = vmatmul.mubr.bf16.gmra.mrb[0].mxu0 %v6793
    %v6869 = vpop.f32.mrb[0].mxu0
    %v6870 = vadd.f32 0.0, %v6869
    %v6871 = vpop.f32.mrb[0].mxu0
    %v6872 = vpop.f32.mrb[0].mxu0
    %v6873 = vpop.f32.mrb[0].mxu0
    %6874 = vdwg.mxu0
    %v6875 = vadd.f32 %v6790, %v6829
    %v6876 = vxor.u32 %v6875, 2147483648
    %v6877 = vmul.f32 %v6876, 1.442695
    %v6878 = vpow.pop %v6877
    %v6879 = vadd.f32 %v6878, 1.0
    %v6880 = vrcp.pop %v6879
    %v6881 = vmul.f32 1.0, %v6880
    %v6882 = vadd.f32 %v6791, %v6831
    %v6883 = vxor.u32 %v6882, 2147483648
    %v6884 = vmul.f32 %v6883, 1.442695
    %v6885 = vpow.pop %v6884
    %v6886 = vadd.f32 %v6885, 1.0
    %v6887 = vrcp.pop %v6886
    %v6888 = vmul.f32 1.0, %v6887
    %v6889 = vadd.f32 %v6870, %v5821
    %v6890 = vmul.f32 %v6881, %v6889
    %v6891 = vadd.f32 %v6792, %v6890
    %v6892 = vtanh.pop %v6891
    %v6893 = vsub.f32 1.0, %v6888
    %v6894 = vmul.f32 %v6893, %v6892
    %v6895 = vmul.f32 %v6888, %v6682
    %v6896 = vadd.f32 %v6894, %v6895
    %v6897 = vld [vmem:[%s2501 + $0x18] sm:$0xff]
    %v6898 = vld [vmem:[%s2501 + $0x20] sm:$0xff]
    %v6899 = vld [vmem:[%s2501 + $0x28] sm:$0xff]
    %v6900 = vpack.c.bf16 %v6789, %v6789
    %6901 = vmatprep.subr.bf16.mxu0 %v6212
    %6902 = vmatpush1.bf16.msra.mxu0 %v6211
    %6903 = vmatprep.subr.bf16.mxu0 %v6215
    %6904 = vmatpush1.bf16.msra.mxu0 %v6214
    %6905 = vmatprep.subr.bf16.mxu0 %v6218
    %6906 = vmatpush1.bf16.msra.mxu0 %v6217
    %6907 = vmatprep.subr.bf16.mxu0 %v6221
    %6908 = vmatpush1.bf16.msra.mxu0 %v6220
    %6909 = vmatprep.subr.bf16.mxu0 %v6224
    %6910 = vmatpush1.bf16.msra.mxu0 %v6223
    %6911 = vmatprep.subr.bf16.mxu0 %v6227
    %6912 = vmatpush1.bf16.msra.mxu0 %v6226
    %6913 = vmatprep.subr.bf16.mxu0 %v6230
    %6914 = vmatpush1.bf16.msra.mxu0 %v6229
    %6915 = vmatprep.subr.bf16.mxu0 %v6233
    %6916 = vmatpush1.bf16.msra.mxu0 %v6232
    %6917 = vmatprep.subr.bf16.mxu0 0
    %6918 = vmatpush1.bf16.msra.mxu0 0
    %6919 = vmatprep.subr.bf16.mxu0 0
    %6920 = vmatpush1.bf16.msra.mxu0 0
    %6921 = vmatprep.subr.bf16.mxu0 0
    %6922 = vmatpush1.bf16.msra.mxu0 0
    %6923 = vmatprep.subr.bf16.mxu0 0
    %6924 = vmatpush1.bf16.msra.mxu0 0
    %6925 = vmatprep.subr.bf16.mxu0 0
    %6926 = vmatpush1.bf16.msra.mxu0 0
    %6927 = vmatprep.subr.bf16.mxu0 0
    %6928 = vmatpush1.bf16.msra.mxu0 0
    %6929 = vmatprep.subr.bf16.mxu0 0
    %6930 = vmatpush1.bf16.msra.mxu0 0
    %6931 = vmatprep.subr.bf16.mxu0 0
    %6932 = vmatpush1.bf16.msra.mxu0 0
    %6933 = vmatprep.mubr.bf16.mxu0 0
    %6934 = vmatmul.mubr.bf16.gmra.mrb[0].mxu0 %v6900
    %v6935 = vpop.f32.mrb[0].mxu0
    %v6936 = vadd.f32 0.0, %v6935
    %v6937 = vpop.f32.mrb[0].mxu0
    %v6938 = vadd.f32 0.0, %v6937
    %v6939 = vpop.f32.mrb[0].mxu0
    %v6940 = vpop.f32.mrb[0].mxu0
    %6941 = vdwg.mxu0
    %6942 = vmatprep.subr.bf16.mxu0 0
    %6943 = vmatpush1.bf16.msra.mxu0 %v6213
    %6944 = vmatprep.subr.bf16.mxu0 0
    %6945 = vmatpush1.bf16.msra.mxu0 %v6216
    %6946 = vmatprep.subr.bf16.mxu0 0
    %6947 = vmatpush1.bf16.msra.mxu0 %v6219
    %6948 = vmatprep.subr.bf16.mxu0 0
    %6949 = vmatpush1.bf16.msra.mxu0 %v6222
    %6950 = vmatprep.subr.bf16.mxu0 0
    %6951 = vmatpush1.bf16.msra.mxu0 %v6225
    %6952 = vmatprep.subr.bf16.mxu0 0
    %6953 = vmatpush1.bf16.msra.mxu0 %v6228
    %6954 = vmatprep.subr.bf16.mxu0 0
    %6955 = vmatpush1.bf16.msra.mxu0 %v6231
    %6956 = vmatprep.subr.bf16.mxu0 0
    %6957 = vmatpush1.bf16.msra.mxu0 %v6234
    %6958 = vmatprep.subr.bf16.mxu0 0
    %6959 = vmatpush1.bf16.msra.mxu0 0
    %6960 = vmatprep.subr.bf16.mxu0 0
    %6961 = vmatpush1.bf16.msra.mxu0 0
    %6962 = vmatprep.subr.bf16.mxu0 0
    %6963 = vmatpush1.bf16.msra.mxu0 0
    %6964 = vmatprep.subr.bf16.mxu0 0
    %6965 = vmatpush1.bf16.msra.mxu0 0
    %6966 = vmatprep.subr.bf16.mxu0 0
    %6967 = vmatpush1.bf16.msra.mxu0 0
    %6968 = vmatprep.subr.bf16.mxu0 0
    %6969 = vmatpush1.bf16.msra.mxu0 0
    %6970 = vmatprep.subr.bf16.mxu0 0
    %6971 = vmatpush1.bf16.msra.mxu0 0
    %6972 = vmatprep.subr.bf16.mxu0 0
    %6973 = vmatpush1.bf16.msra.mxu0 0
    %6974 = vmatprep.mubr.bf16.mxu0 0
    %6975 = vmatmul.mubr.bf16.gmra.mrb[0].mxu0 %v6900
    %v6976 = vpop.f32.mrb[0].mxu0
    %v6977 = vadd.f32 0.0, %v6976
    %v6978 = vpop.f32.mrb[0].mxu0
    %v6979 = vpop.f32.mrb[0].mxu0
    %v6980 = vpop.f32.mrb[0].mxu0
    %6981 = vdwg.mxu0
    %v6982 = vadd.f32 %v6897, %v6936
    %v6983 = vxor.u32 %v6982, 2147483648
    %v6984 = vmul.f32 %v6983, 1.442695
    %v6985 = vpow.pop %v6984
    %v6986 = vadd.f32 %v6985, 1.0
    %v6987 = vrcp.pop %v6986
    %v6988 = vmul.f32 1.0, %v6987
    %v6989 = vadd.f32 %v6898, %v6938
    %v6990 = vxor.u32 %v6989, 2147483648
    %v6991 = vmul.f32 %v6990, 1.442695
    %v6992 = vpow.pop %v6991
    %v6993 = vadd.f32 %v6992, 1.0
    %v6994 = vrcp.pop %v6993
    %v6995 = vmul.f32 1.0, %v6994
    %v6996 = vadd.f32 %v6977, %v5828
    %v6997 = vmul.f32 %v6988, %v6996
    %v6998 = vadd.f32 %v6899, %v6997
    %v6999 = vtanh.pop %v6998
    %v7000 = vsub.f32 1.0, %v6995
    %v7001 = vmul.f32 %v7000, %v6999
    %v7002 = vmul.f32 %v6995, %v6789
    %v7003 = vadd.f32 %v7001, %v7002
    %v7004 = vld [vmem:[%s2501] sm:$0xff]
    %v7005 = vld [vmem:[%s2501 + $0x8] sm:$0xff]
    %v7006 = vld [vmem:[%s2501 + $0x10] sm:$0xff]
    %v7007 = vpack.c.bf16 %v6896, %v6896
    %7008 = vmatprep.subr.bf16.mxu0 %v5946
    %7009 = vmatpush1.bf16.msra.mxu0 %v5945
    %7010 = vmatprep.subr.bf16.mxu0 %v5949
    %7011 = vmatpush1.bf16.msra.mxu0 %v5948
    %7012 = vmatprep.subr.bf16.mxu0 %v5952
    %7013 = vmatpush1.bf16.msra.mxu0 %v5951
    %7014 = vmatprep.subr.bf16.mxu0 %v5955
    %7015 = vmatpush1.bf16.msra.mxu0 %v5954
    %7016 = vmatprep.subr.bf16.mxu0 %v5958
    %7017 = vmatpush1.bf16.msra.mxu0 %v5957
    %7018 = vmatprep.subr.bf16.mxu0 %v5961
    %7019 = vmatpush1.bf16.msra.mxu0 %v5960
    %7020 = vmatprep.subr.bf16.mxu0 %v5964
    %7021 = vmatpush1.bf16.msra.mxu0 %v5963
    %7022 = vmatprep.subr.bf16.mxu0 %v5967
    %7023 = vmatpush1.bf16.msra.mxu0 %v5966
    %7024 = vmatprep.subr.bf16.mxu0 0
    %7025 = vmatpush1.bf16.msra.mxu0 0
    %7026 = vmatprep.subr.bf16.mxu0 0
    %7027 = vmatpush1.bf16.msra.mxu0 0
    %7028 = vmatprep.subr.bf16.mxu0 0
    %7029 = vmatpush1.bf16.msra.mxu0 0
    %7030 = vmatprep.subr.bf16.mxu0 0
    %7031 = vmatpush1.bf16.msra.mxu0 0
    %7032 = vmatprep.subr.bf16.mxu0 0
    %7033 = vmatpush1.bf16.msra.mxu0 0
    %7034 = vmatprep.subr.bf16.mxu0 0
    %7035 = vmatpush1.bf16.msra.mxu0 0
    %7036 = vmatprep.subr.bf16.mxu0 0
    %7037 = vmatpush1.bf16.msra.mxu0 0
    %7038 = vmatprep.subr.bf16.mxu0 0
    %7039 = vmatpush1.bf16.msra.mxu0 0
    %7040 = vmatprep.mubr.bf16.mxu0 0
    %7041 = vmatmul.mubr.bf16.gmra.mrb[0].mxu0 %v7007
    %v7042 = vpop.f32.mrb[0].mxu0
    %v7043 = vadd.f32 0.0, %v7042
    %v7044 = vpop.f32.mrb[0].mxu0
    %v7045 = vadd.f32 0.0, %v7044
    %v7046 = vpop.f32.mrb[0].mxu0
    %v7047 = vpop.f32.mrb[0].mxu0
    %7048 = vdwg.mxu0
    %7049 = vmatprep.subr.bf16.mxu0 0
    %7050 = vmatpush1.bf16.msra.mxu0 %v5947
    %7051 = vmatprep.subr.bf16.mxu0 0
    %7052 = vmatpush1.bf16.msra.mxu0 %v5950
    %7053 = vmatprep.subr.bf16.mxu0 0
    %7054 = vmatpush1.bf16.msra.mxu0 %v5953
    %7055 = vmatprep.subr.bf16.mxu0 0
    %7056 = vmatpush1.bf16.msra.mxu0 %v5956
    %7057 = vmatprep.subr.bf16.mxu0 0
    %7058 = vmatpush1.bf16.msra.mxu0 %v5959
    %7059 = vmatprep.subr.bf16.mxu0 0
    %7060 = vmatpush1.bf16.msra.mxu0 %v5962
    %7061 = vmatprep.subr.bf16.mxu0 0
    %7062 = vmatpush1.bf16.msra.mxu0 %v5965
    %7063 = vmatprep.subr.bf16.mxu0 0
    %7064 = vmatpush1.bf16.msra.mxu0 %v5968
    %7065 = vmatprep.subr.bf16.mxu0 0
    %7066 = vmatpush1.bf16.msra.mxu0 0
    %7067 = vmatprep.subr.bf16.mxu0 0
    %7068 = vmatpush1.bf16.msra.mxu0 0
    %7069 = vmatprep.subr.bf16.mxu0 0
    %7070 = vmatpush1.bf16.msra.mxu0 0
    %7071 = vmatprep.subr.bf16.mxu0 0
    %7072 = vmatpush1.bf16.msra.mxu0 0
    %7073 = vmatprep.subr.bf16.mxu0 0
    %7074 = vmatpush1.bf16.msra.mxu0 0
    %7075 = vmatprep.subr.bf16.mxu0 0
    %7076 = vmatpush1.bf16.msra.mxu0 0
    %7077 = vmatprep.subr.bf16.mxu0 0
    %7078 = vmatpush1.bf16.msra.mxu0 0
    %7079 = vmatprep.subr.bf16.mxu0 0
    %7080 = vmatpush1.bf16.msra.mxu0 0
    %7081 = vmatprep.mubr.bf16.mxu0 0
    %7082 = vmatmul.mubr.bf16.gmra.mrb[0].mxu0 %v7007
    %v7083 = vpop.f32.mrb[0].mxu0
    %v7084 = vadd.f32 0.0, %v7083
    %v7085 = vpop.f32.mrb[0].mxu0
    %v7086 = vpop.f32.mrb[0].mxu0
    %v7087 = vpop.f32.mrb[0].mxu0
    %7088 = vdwg.mxu0
    %v7089 = vadd.f32 %v7004, %v7043
    %v7090 = vxor.u32 %v7089, 2147483648
    %v7091 = vmul.f32 %v7090, 1.442695
    %v7092 = vpow.pop %v7091
    %v7093 = vadd.f32 %v7092, 1.0
    %v7094 = vrcp.pop %v7093
    %v7095 = vmul.f32 1.0, %v7094
    %v7096 = vadd.f32 %v7005, %v7045
    %v7097 = vxor.u32 %v7096, 2147483648
    %v7098 = vmul.f32 %v7097, 1.442695
    %v7099 = vpow.pop %v7098
    %v7100 = vadd.f32 %v7099, 1.0
    %v7101 = vrcp.pop %v7100
    %v7102 = vmul.f32 1.0, %v7101
    %v7103 = vadd.f32 %v7084, %v5821
    %v7104 = vmul.f32 %v7095, %v7103
    %v7105 = vadd.f32 %v7006, %v7104
    %v7106 = vtanh.pop %v7105
    %v7107 = vsub.f32 1.0, %v7102
    %v7108 = vmul.f32 %v7107, %v7106
    %v7109 = vmul.f32 %v7102, %v6896
    %v7110 = vadd.f32 %v7108, %v7109
    %v7111 = vld [vmem:[%s2227 + $0x18] sm:$0xff]
    %v7112 = vld [vmem:[%s2227 + $0x20] sm:$0xff]
    %v7113 = vld [vmem:[%s2227 + $0x28] sm:$0xff]
    %v7114 = vpack.c.bf16 %v7003, %v7003
    %7115 = vmatprep.subr.bf16.mxu0 %v6212
    %7116 = vmatpush1.bf16.msra.mxu0 %v6211
    %7117 = vmatprep.subr.bf16.mxu0 %v6215
    %7118 = vmatpush1.bf16.msra.mxu0 %v6214
    %7119 = vmatprep.subr.bf16.mxu0 %v6218
    %7120 = vmatpush1.bf16.msra.mxu0 %v6217
    %7121 = vmatprep.subr.bf16.mxu0 %v6221
    %7122 = vmatpush1.bf16.msra.mxu0 %v6220
    %7123 = vmatprep.subr.bf16.mxu0 %v6224
    %7124 = vmatpush1.bf16.msra.mxu0 %v6223
    %7125 = vmatprep.subr.bf16.mxu0 %v6227
    %7126 = vmatpush1.bf16.msra.mxu0 %v6226
    %7127 = vmatprep.subr.bf16.mxu0 %v6230
    %7128 = vmatpush1.bf16.msra.mxu0 %v6229
    %7129 = vmatprep.subr.bf16.mxu0 %v6233
    %7130 = vmatpush1.bf16.msra.mxu0 %v6232
    %7131 = vmatprep.subr.bf16.mxu0 0
    %7132 = vmatpush1.bf16.msra.mxu0 0
    %7133 = vmatprep.subr.bf16.mxu0 0
    %7134 = vmatpush1.bf16.msra.mxu0 0
    %7135 = vmatprep.subr.bf16.mxu0 0
    %7136 = vmatpush1.bf16.msra.mxu0 0
    %7137 = vmatprep.subr.bf16.mxu0 0
    %7138 = vmatpush1.bf16.msra.mxu0 0
    %7139 = vmatprep.subr.bf16.mxu0 0
    %7140 = vmatpush1.bf16.msra.mxu0 0
    %7141 = vmatprep.subr.bf16.mxu0 0
    %7142 = vmatpush1.bf16.msra.mxu0 0
    %7143 = vmatprep.subr.bf16.mxu0 0
    %7144 = vmatpush1.bf16.msra.mxu0 0
    %7145 = vmatprep.subr.bf16.mxu0 0
    %7146 = vmatpush1.bf16.msra.mxu0 0
    %7147 = vmatprep.mubr.bf16.mxu0 0
    %7148 = vmatmul.mubr.bf16.gmra.mrb[0].mxu0 %v7114
    %v7149 = vpop.f32.mrb[0].mxu0
    %v7150 = vadd.f32 0.0, %v7149
    %v7151 = vpop.f32.mrb[0].mxu0
    %v7152 = vadd.f32 0.0, %v7151
    %v7153 = vpop.f32.mrb[0].mxu0
    %v7154 = vpop.f32.mrb[0].mxu0
    %7155 = vdwg.mxu0
    %7156 = vmatprep.subr.bf16.mxu0 0
    %7157 = vmatpush1.bf16.msra.mxu0 %v6213
    %7158 = vmatprep.subr.bf16.mxu0 0
    %7159 = vmatpush1.bf16.msra.mxu0 %v6216
    %7160 = vmatprep.subr.bf16.mxu0 0
    %7161 = vmatpush1.bf16.msra.mxu0 %v6219
    %7162 = vmatprep.subr.bf16.mxu0 0
    %7163 = vmatpush1.bf16.msra.mxu0 %v6222
    %7164 = vmatprep.subr.bf16.mxu0 0
    %7165 = vmatpush1.bf16.msra.mxu0 %v6225
    %7166 = vmatprep.subr.bf16.mxu0 0
    %7167 = vmatpush1.bf16.msra.mxu0 %v6228
    %7168 = vmatprep.subr.bf16.mxu0 0
    %7169 = vmatpush1.bf16.msra.mxu0 %v6231
    %7170 = vmatprep.subr.bf16.mxu0 0
    %7171 = vmatpush1.bf16.msra.mxu0 %v6234
    %7172 = vmatprep.subr.bf16.mxu0 0
    %7173 = vmatpush1.bf16.msra.mxu0 0
    %7174 = vmatprep.subr.bf16.mxu0 0
    %7175 = vmatpush1.bf16.msra.mxu0 0
    %7176 = vmatprep.subr.bf16.mxu0 0
    %7177 = vmatpush1.bf16.msra.mxu0 0
    %7178 = vmatprep.subr.bf16.mxu0 0
    %7179 = vmatpush1.bf16.msra.mxu0 0
    %7180 = vmatprep.subr.bf16.mxu0 0
    %7181 = vmatpush1.bf16.msra.mxu0 0
    %7182 = vmatprep.subr.bf16.mxu0 0
    %7183 = vmatpush1.bf16.msra.mxu0 0
    %7184 = vmatprep.subr.bf16.mxu0 0
    %7185 = vmatpush1.bf16.msra.mxu0 0
    %7186 = vmatprep.subr.bf16.mxu0 0
    %7187 = vmatpush1.bf16.msra.mxu0 0
    %7188 = vmatprep.mubr.bf16.mxu0 0
    %7189 = vmatmul.mubr.bf16.gmra.mrb[0].mxu0 %v7114
    %v7190 = vpop.f32.mrb[0].mxu0
    %v7191 = vadd.f32 0.0, %v7190
    %v7192 = vpop.f32.mrb[0].mxu0
    %v7193 = vpop.f32.mrb[0].mxu0
    %v7194 = vpop.f32.mrb[0].mxu0
    %7195 = vdwg.mxu0
    %v7196 = vadd.f32 %v7111, %v7150
    %v7197 = vxor.u32 %v7196, 2147483648
    %v7198 = vmul.f32 %v7197, 1.442695
    %v7199 = vpow.pop %v7198
    %v7200 = vadd.f32 %v7199, 1.0
    %v7201 = vrcp.pop %v7200
    %v7202 = vmul.f32 1.0, %v7201
    %v7203 = vadd.f32 %v7112, %v7152
    %v7204 = vxor.u32 %v7203, 2147483648
    %v7205 = vmul.f32 %v7204, 1.442695
    %v7206 = vpow.pop %v7205
    %v7207 = vadd.f32 %v7206, 1.0
    %v7208 = vrcp.pop %v7207
    %v7209 = vmul.f32 1.0, %v7208
    %v7210 = vadd.f32 %v7191, %v5828
    %v7211 = vmul.f32 %v7202, %v7210
    %v7212 = vadd.f32 %v7113, %v7211
    %v7213 = vtanh.pop %v7212
    %v7214 = vsub.f32 1.0, %v7209
    %v7215 = vmul.f32 %v7214, %v7213
    %v7216 = vmul.f32 %v7209, %v7003
    %v7217 = vadd.f32 %v7215, %v7216
    %v7218 = vld [vmem:[%s1953] sm:$0xff]
    %v7219 = vld [vmem:[%s1953 + $0x8] sm:$0xff]
    %v7220 = vld [vmem:[%s1953 + $0x10] sm:$0xff]
    %v7221 = vpack.c.bf16 %v7110, %v7110
    %7222 = vmatprep.subr.bf16.mxu0 %v5946
    %7223 = vmatpush1.bf16.msra.mxu0 %v5945
    %7224 = vmatprep.subr.bf16.mxu0 %v5949
    %7225 = vmatpush1.bf16.msra.mxu0 %v5948
    %7226 = vmatprep.subr.bf16.mxu0 %v5952
    %7227 = vmatpush1.bf16.msra.mxu0 %v5951
    %7228 = vmatprep.subr.bf16.mxu0 %v5955
    %7229 = vmatpush1.bf16.msra.mxu0 %v5954
    %7230 = vmatprep.subr.bf16.mxu0 %v5958
    %7231 = vmatpush1.bf16.msra.mxu0 %v5957
    %7232 = vmatprep.subr.bf16.mxu0 %v5961
    %7233 = vmatpush1.bf16.msra.mxu0 %v5960
    %7234 = vmatprep.subr.bf16.mxu0 %v5964
    %7235 = vmatpush1.bf16.msra.mxu0 %v5963
    %7236 = vmatprep.subr.bf16.mxu0 %v5967
    %7237 = vmatpush1.bf16.msra.mxu0 %v5966
    %7238 = vmatprep.subr.bf16.mxu0 0
    %7239 = vmatpush1.bf16.msra.mxu0 0
    %7240 = vmatprep.subr.bf16.mxu0 0
    %7241 = vmatpush1.bf16.msra.mxu0 0
    %7242 = vmatprep.subr.bf16.mxu0 0
    %7243 = vmatpush1.bf16.msra.mxu0 0
    %7244 = vmatprep.subr.bf16.mxu0 0
    %7245 = vmatpush1.bf16.msra.mxu0 0
    %7246 = vmatprep.subr.bf16.mxu0 0
    %7247 = vmatpush1.bf16.msra.mxu0 0
    %7248 = vmatprep.subr.bf16.mxu0 0
    %7249 = vmatpush1.bf16.msra.mxu0 0
    %7250 = vmatprep.subr.bf16.mxu0 0
    %7251 = vmatpush1.bf16.msra.mxu0 0
    %7252 = vmatprep.subr.bf16.mxu0 0
    %7253 = vmatpush1.bf16.msra.mxu0 0
    %7254 = vmatprep.mubr.bf16.mxu0 0
    %7255 = vmatmul.mubr.bf16.gmra.mrb[0].mxu0 %v7221
    %v7256 = vpop.f32.mrb[0].mxu0
    %v7257 = vadd.f32 0.0, %v7256
    %v7258 = vpop.f32.mrb[0].mxu0
    %v7259 = vadd.f32 0.0, %v7258
    %v7260 = vpop.f32.mrb[0].mxu0
    %v7261 = vpop.f32.mrb[0].mxu0
    %7262 = vdwg.mxu0
    %7263 = vmatprep.subr.bf16.mxu0 0
    %7264 = vmatpush1.bf16.msra.mxu0 %v5947
    %7265 = vmatprep.subr.bf16.mxu0 0
    %7266 = vmatpush1.bf16.msra.mxu0 %v5950
    %7267 = vmatprep.subr.bf16.mxu0 0
    %7268 = vmatpush1.bf16.msra.mxu0 %v5953
    %7269 = vmatprep.subr.bf16.mxu0 0
    %7270 = vmatpush1.bf16.msra.mxu0 %v5956
    %7271 = vmatprep.subr.bf16.mxu0 0
    %7272 = vmatpush1.bf16.msra.mxu0 %v5959
    %7273 = vmatprep.subr.bf16.mxu0 0
    %7274 = vmatpush1.bf16.msra.mxu0 %v5962
    %7275 = vmatprep.subr.bf16.mxu0 0
    %7276 = vmatpush1.bf16.msra.mxu0 %v5965
    %7277 = vmatprep.subr.bf16.mxu0 0
    %7278 = vmatpush1.bf16.msra.mxu0 %v5968
    %7279 = vmatprep.subr.bf16.mxu0 0
    %7280 = vmatpush1.bf16.msra.mxu0 0
    %7281 = vmatprep.subr.bf16.mxu0 0
    %7282 = vmatpush1.bf16.msra.mxu0 0
    %7283 = vmatprep.subr.bf16.mxu0 0
    %7284 = vmatpush1.bf16.msra.mxu0 0
    %7285 = vmatprep.subr.bf16.mxu0 0
    %7286 = vmatpush1.bf16.msra.mxu0 0
    %7287 = vmatprep.subr.bf16.mxu0 0
    %7288 = vmatpush1.bf16.msra.mxu0 0
    %7289 = vmatprep.subr.bf16.mxu0 0
    %7290 = vmatpush1.bf16.msra.mxu0 0
    %7291 = vmatprep.subr.bf16.mxu0 0
    %7292 = vmatpush1.bf16.msra.mxu0 0
    %7293 = vmatprep.subr.bf16.mxu0 0
    %7294 = vmatpush1.bf16.msra.mxu0 0
    %7295 = vmatprep.mubr.bf16.mxu0 0
    %7296 = vmatmul.mubr.bf16.gmra.mrb[0].mxu0 %v7221
    %v7297 = vpop.f32.mrb[0].mxu0
    %v7298 = vadd.f32 0.0, %v7297
    %v7299 = vpop.f32.mrb[0].mxu0
    %v7300 = vpop.f32.mrb[0].mxu0
    %v7301 = vpop.f32.mrb[0].mxu0
    %7302 = vdwg.mxu0
    %v7303 = vadd.f32 %v7218, %v7257
    %v7304 = vxor.u32 %v7303, 2147483648
    %v7305 = vmul.f32 %v7304, 1.442695
    %v7306 = vpow.pop %v7305
    %v7307 = vadd.f32 %v7306, 1.0
    %v7308 = vrcp.pop %v7307
    %v7309 = vmul.f32 1.0, %v7308
    %v7310 = vadd.f32 %v7219, %v7259
    %v7311 = vxor.u32 %v7310, 2147483648
    %v7312 = vmul.f32 %v7311, 1.442695
    %v7313 = vpow.pop %v7312
    %v7314 = vadd.f32 %v7313, 1.0
    %v7315 = vrcp.pop %v7314
    %v7316 = vmul.f32 1.0, %v7315
    %v7317 = vadd.f32 %v7298, %v5821
    %v7318 = vmul.f32 %v7309, %v7317
    %v7319 = vadd.f32 %v7220, %v7318
    %v7320 = vtanh.pop %v7319
    %v7321 = vsub.f32 1.0, %v7316
    %v7322 = vmul.f32 %v7321, %v7320
    %v7323 = vmul.f32 %v7316, %v7110
    %v7324 = vadd.f32 %v7322, %v7323
    %v7325 = vld [vmem:[%s1679 + $0x18] sm:$0xff]
    %v7326 = vld [vmem:[%s1679 + $0x20] sm:$0xff]
    %v7327 = vld [vmem:[%s1679 + $0x28] sm:$0xff]
    %v7328 = vpack.c.bf16 %v7217, %v7217
    %7329 = vmatprep.subr.bf16.mxu0 %v6212
    %7330 = vmatpush1.bf16.msra.mxu0 %v6211
    %7331 = vmatprep.subr.bf16.mxu0 %v6215
    %7332 = vmatpush1.bf16.msra.mxu0 %v6214
    %7333 = vmatprep.subr.bf16.mxu0 %v6218
    %7334 = vmatpush1.bf16.msra.mxu0 %v6217
    %7335 = vmatprep.subr.bf16.mxu0 %v6221
    %7336 = vmatpush1.bf16.msra.mxu0 %v6220
    %7337 = vmatprep.subr.bf16.mxu0 %v6224
    %7338 = vmatpush1.bf16.msra.mxu0 %v6223
    %7339 = vmatprep.subr.bf16.mxu0 %v6227
    %7340 = vmatpush1.bf16.msra.mxu0 %v6226
    %7341 = vmatprep.subr.bf16.mxu0 %v6230
    %7342 = vmatpush1.bf16.msra.mxu0 %v6229
    %7343 = vmatprep.subr.bf16.mxu0 %v6233
    %7344 = vmatpush1.bf16.msra.mxu0 %v6232
    %7345 = vmatprep.subr.bf16.mxu0 0
    %7346 = vmatpush1.bf16.msra.mxu0 0
    %7347 = vmatprep.subr.bf16.mxu0 0
    %7348 = vmatpush1.bf16.msra.mxu0 0
    %7349 = vmatprep.subr.bf16.mxu0 0
    %7350 = vmatpush1.bf16.msra.mxu0 0
    %7351 = vmatprep.subr.bf16.mxu0 0
    %7352 = vmatpush1.bf16.msra.mxu0 0
    %7353 = vmatprep.subr.bf16.mxu0 0
    %7354 = vmatpush1.bf16.msra.mxu0 0
    %7355 = vmatprep.subr.bf16.mxu0 0
    %7356 = vmatpush1.bf16.msra.mxu0 0
    %7357 = vmatprep.subr.bf16.mxu0 0
    %7358 = vmatpush1.bf16.msra.mxu0 0
    %7359 = vmatprep.subr.bf16.mxu0 0
    %7360 = vmatpush1.bf16.msra.mxu0 0
    %7361 = vmatprep.mubr.bf16.mxu0 0
    %7362 = vmatmul.mubr.bf16.gmra.mrb[0].mxu0 %v7328
    %v7363 = vpop.f32.mrb[0].mxu0
    %v7364 = vadd.f32 0.0, %v7363
    %v7365 = vpop.f32.mrb[0].mxu0
    %v7366 = vadd.f32 0.0, %v7365
    %v7367 = vpop.f32.mrb[0].mxu0
    %v7368 = vpop.f32.mrb[0].mxu0
    %7369 = vdwg.mxu0
    %7370 = vmatprep.subr.bf16.mxu0 0
    %7371 = vmatpush1.bf16.msra.mxu0 %v6213
    %7372 = vmatprep.subr.bf16.mxu0 0
    %7373 = vmatpush1.bf16.msra.mxu0 %v6216
    %7374 = vmatprep.subr.bf16.mxu0 0
    %7375 = vmatpush1.bf16.msra.mxu0 %v6219
    %7376 = vmatprep.subr.bf16.mxu0 0
    %7377 = vmatpush1.bf16.msra.mxu0 %v6222
    %7378 = vmatprep.subr.bf16.mxu0 0
    %7379 = vmatpush1.bf16.msra.mxu0 %v6225
    %7380 = vmatprep.subr.bf16.mxu0 0
    %7381 = vmatpush1.bf16.msra.mxu0 %v6228
    %7382 = vmatprep.subr.bf16.mxu0 0
    %7383 = vmatpush1.bf16.msra.mxu0 %v6231
    %7384 = vmatprep.subr.bf16.mxu0 0
    %7385 = vmatpush1.bf16.msra.mxu0 %v6234
    %7386 = vmatprep.subr.bf16.mxu0 0
    %7387 = vmatpush1.bf16.msra.mxu0 0
    %7388 = vmatprep.subr.bf16.mxu0 0
    %7389 = vmatpush1.bf16.msra.mxu0 0
    %7390 = vmatprep.subr.bf16.mxu0 0
    %7391 = vmatpush1.bf16.msra.mxu0 0
    %7392 = vmatprep.subr.bf16.mxu0 0
    %7393 = vmatpush1.bf16.msra.mxu0 0
    %7394 = vmatprep.subr.bf16.mxu0 0
    %7395 = vmatpush1.bf16.msra.mxu0 0
    %7396 = vmatprep.subr.bf16.mxu0 0
    %7397 = vmatpush1.bf16.msra.mxu0 0
    %7398 = vmatprep.subr.bf16.mxu0 0
    %7399 = vmatpush1.bf16.msra.mxu0 0
    %7400 = vmatprep.subr.bf16.mxu0 0
    %7401 = vmatpush1.bf16.msra.mxu0 0
    %7402 = vmatprep.mubr.bf16.mxu0 0
    %7403 = vmatmul.mubr.bf16.gmra.mrb[0].mxu0 %v7328
    %v7404 = vpop.f32.mrb[0].mxu0
    %v7405 = vadd.f32 0.0, %v7404
    %v7406 = vpop.f32.mrb[0].mxu0
    %v7407 = vpop.f32.mrb[0].mxu0
    %v7408 = vpop.f32.mrb[0].mxu0
    %7409 = vdwg.mxu0
    %v7410 = vadd.f32 %v7325, %v7364
    %v7411 = vxor.u32 %v7410, 2147483648
    %v7412 = vmul.f32 %v7411, 1.442695
    %v7413 = vpow.pop %v7412
    %v7414 = vadd.f32 %v7413, 1.0
    %v7415 = vrcp.pop %v7414
    %v7416 = vmul.f32 1.0, %v7415
    %v7417 = vadd.f32 %v7326, %v7366
    %v7418 = vxor.u32 %v7417, 2147483648
    %v7419 = vmul.f32 %v7418, 1.442695
    %v7420 = vpow.pop %v7419
    %v7421 = vadd.f32 %v7420, 1.0
    %v7422 = vrcp.pop %v7421
    %v7423 = vmul.f32 1.0, %v7422
    %v7424 = vadd.f32 %v7405, %v5828
    %v7425 = vmul.f32 %v7416, %v7424
    %v7426 = vadd.f32 %v7327, %v7425
    %v7427 = vtanh.pop %v7426
    %v7428 = vsub.f32 1.0, %v7423
    %v7429 = vmul.f32 %v7428, %v7427
    %v7430 = vmul.f32 %v7423, %v7217
    %v7431 = vadd.f32 %v7429, %v7430
    %v7432 = vld [vmem:[%s1405] sm:$0xff]
    %v7433 = vld [vmem:[%s1405 + $0x8] sm:$0xff]
    %v7434 = vld [vmem:[%s1405 + $0x10] sm:$0xff]
    %v7435 = vpack.c.bf16 %v7324, %v7324
    %7436 = vmatprep.subr.bf16.mxu0 %v5946
    %7437 = vmatpush1.bf16.msra.mxu0 %v5945
    %7438 = vmatprep.subr.bf16.mxu0 %v5949
    %7439 = vmatpush1.bf16.msra.mxu0 %v5948
    %7440 = vmatprep.subr.bf16.mxu0 %v5952
    %7441 = vmatpush1.bf16.msra.mxu0 %v5951
    %7442 = vmatprep.subr.bf16.mxu0 %v5955
    %7443 = vmatpush1.bf16.msra.mxu0 %v5954
    %7444 = vmatprep.subr.bf16.mxu0 %v5958
    %7445 = vmatpush1.bf16.msra.mxu0 %v5957
    %7446 = vmatprep.subr.bf16.mxu0 %v5961
    %7447 = vmatpush1.bf16.msra.mxu0 %v5960
    %7448 = vmatprep.subr.bf16.mxu0 %v5964
    %7449 = vmatpush1.bf16.msra.mxu0 %v5963
    %7450 = vmatprep.subr.bf16.mxu0 %v5967
    %7451 = vmatpush1.bf16.msra.mxu0 %v5966
    %7452 = vmatprep.subr.bf16.mxu0 0
    %7453 = vmatpush1.bf16.msra.mxu0 0
    %7454 = vmatprep.subr.bf16.mxu0 0
    %7455 = vmatpush1.bf16.msra.mxu0 0
    %7456 = vmatprep.subr.bf16.mxu0 0
    %7457 = vmatpush1.bf16.msra.mxu0 0
    %7458 = vmatprep.subr.bf16.mxu0 0
    %7459 = vmatpush1.bf16.msra.mxu0 0
    %7460 = vmatprep.subr.bf16.mxu0 0
    %7461 = vmatpush1.bf16.msra.mxu0 0
    %7462 = vmatprep.subr.bf16.mxu0 0
    %7463 = vmatpush1.bf16.msra.mxu0 0
    %7464 = vmatprep.subr.bf16.mxu0 0
    %7465 = vmatpush1.bf16.msra.mxu0 0
    %7466 = vmatprep.subr.bf16.mxu0 0
    %7467 = vmatpush1.bf16.msra.mxu0 0
    %7468 = vmatprep.mubr.bf16.mxu0 0
    %7469 = vmatmul.mubr.bf16.gmra.mrb[0].mxu0 %v7435
    %v7470 = vpop.f32.mrb[0].mxu0
    %v7471 = vadd.f32 0.0, %v7470
    %v7472 = vpop.f32.mrb[0].mxu0
    %v7473 = vadd.f32 0.0, %v7472
    %v7474 = vpop.f32.mrb[0].mxu0
    %v7475 = vpop.f32.mrb[0].mxu0
    %7476 = vdwg.mxu0
    %7477 = vmatprep.subr.bf16.mxu0 0
    %7478 = vmatpush1.bf16.msra.mxu0 %v5947
    %7479 = vmatprep.subr.bf16.mxu0 0
    %7480 = vmatpush1.bf16.msra.mxu0 %v5950
    %7481 = vmatprep.subr.bf16.mxu0 0
    %7482 = vmatpush1.bf16.msra.mxu0 %v5953
    %7483 = vmatprep.subr.bf16.mxu0 0
    %7484 = vmatpush1.bf16.msra.mxu0 %v5956
    %7485 = vmatprep.subr.bf16.mxu0 0
    %7486 = vmatpush1.bf16.msra.mxu0 %v5959
    %7487 = vmatprep.subr.bf16.mxu0 0
    %7488 = vmatpush1.bf16.msra.mxu0 %v5962
    %7489 = vmatprep.subr.bf16.mxu0 0
    %7490 = vmatpush1.bf16.msra.mxu0 %v5965
    %7491 = vmatprep.subr.bf16.mxu0 0
    %7492 = vmatpush1.bf16.msra.mxu0 %v5968
    %7493 = vmatprep.subr.bf16.mxu0 0
    %7494 = vmatpush1.bf16.msra.mxu0 0
    %7495 = vmatprep.subr.bf16.mxu0 0
    %7496 = vmatpush1.bf16.msra.mxu0 0
    %7497 = vmatprep.subr.bf16.mxu0 0
    %7498 = vmatpush1.bf16.msra.mxu0 0
    %7499 = vmatprep.subr.bf16.mxu0 0
    %7500 = vmatpush1.bf16.msra.mxu0 0
    %7501 = vmatprep.subr.bf16.mxu0 0
    %7502 = vmatpush1.bf16.msra.mxu0 0
    %7503 = vmatprep.subr.bf16.mxu0 0
    %7504 = vmatpush1.bf16.msra.mxu0 0
    %7505 = vmatprep.subr.bf16.mxu0 0
    %7506 = vmatpush1.bf16.msra.mxu0 0
    %7507 = vmatprep.subr.bf16.mxu0 0
    %7508 = vmatpush1.bf16.msra.mxu0 0
    %7509 = vmatprep.mubr.bf16.mxu0 0
    %7510 = vmatmul.mubr.bf16.gmra.mrb[0].mxu0 %v7435
    %v7511 = vpop.f32.mrb[0].mxu0
    %v7512 = vadd.f32 0.0, %v7511
    %v7513 = vpop.f32.mrb[0].mxu0
    %v7514 = vpop.f32.mrb[0].mxu0
    %v7515 = vpop.f32.mrb[0].mxu0
    %7516 = vdwg.mxu0
    %v7517 = vadd.f32 %v7432, %v7471
    %v7518 = vxor.u32 %v7517, 2147483648
    %v7519 = vmul.f32 %v7518, 1.442695
    %v7520 = vpow.pop %v7519
    %v7521 = vadd.f32 %v7520, 1.0
    %v7522 = vrcp.pop %v7521
    %v7523 = vmul.f32 1.0, %v7522
    %v7524 = vadd.f32 %v7433, %v7473
    %v7525 = vxor.u32 %v7524, 2147483648
    %v7526 = vmul.f32 %v7525, 1.442695
    %v7527 = vpow.pop %v7526
    %v7528 = vadd.f32 %v7527, 1.0
    %v7529 = vrcp.pop %v7528
    %v7530 = vmul.f32 1.0, %v7529
    %v7531 = vadd.f32 %v7512, %v5821
    %v7532 = vmul.f32 %v7523, %v7531
    %v7533 = vadd.f32 %v7434, %v7532
    %v7534 = vtanh.pop %v7533
    %v7535 = vsub.f32 1.0, %v7530
    %v7536 = vmul.f32 %v7535, %v7534
    %v7537 = vmul.f32 %v7530, %v7324
    %v7538 = vadd.f32 %v7536, %v7537
    %v7539 = vld [vmem:[%s1131 + $0x18] sm:$0xff]
    %v7540 = vld [vmem:[%s1131 + $0x20] sm:$0xff]
    %v7541 = vld [vmem:[%s1131 + $0x28] sm:$0xff]
    %v7542 = vpack.c.bf16 %v7431, %v7431
    %7543 = vmatprep.subr.bf16.mxu0 %v6212
    %7544 = vmatpush1.bf16.msra.mxu0 %v6211
    %7545 = vmatprep.subr.bf16.mxu0 %v6215
    %7546 = vmatpush1.bf16.msra.mxu0 %v6214
    %7547 = vmatprep.subr.bf16.mxu0 %v6218
    %7548 = vmatpush1.bf16.msra.mxu0 %v6217
    %7549 = vmatprep.subr.bf16.mxu0 %v6221
    %7550 = vmatpush1.bf16.msra.mxu0 %v6220
    %7551 = vmatprep.subr.bf16.mxu0 %v6224
    %7552 = vmatpush1.bf16.msra.mxu0 %v6223
    %7553 = vmatprep.subr.bf16.mxu0 %v6227
    %7554 = vmatpush1.bf16.msra.mxu0 %v6226
    %7555 = vmatprep.subr.bf16.mxu0 %v6230
    %7556 = vmatpush1.bf16.msra.mxu0 %v6229
    %7557 = vmatprep.subr.bf16.mxu0 %v6233
    %7558 = vmatpush1.bf16.msra.mxu0 %v6232
    %7559 = vmatprep.subr.bf16.mxu0 0
    %7560 = vmatpush1.bf16.msra.mxu0 0
    %7561 = vmatprep.subr.bf16.mxu0 0
    %7562 = vmatpush1.bf16.msra.mxu0 0
    %7563 = vmatprep.subr.bf16.mxu0 0
    %7564 = vmatpush1.bf16.msra.mxu0 0
    %7565 = vmatprep.subr.bf16.mxu0 0
    %7566 = vmatpush1.bf16.msra.mxu0 0
    %7567 = vmatprep.subr.bf16.mxu0 0
    %7568 = vmatpush1.bf16.msra.mxu0 0
    %7569 = vmatprep.subr.bf16.mxu0 0
    %7570 = vmatpush1.bf16.msra.mxu0 0
    %7571 = vmatprep.subr.bf16.mxu0 0
    %7572 = vmatpush1.bf16.msra.mxu0 0
    %7573 = vmatprep.subr.bf16.mxu0 0
    %7574 = vmatpush1.bf16.msra.mxu0 0
    %7575 = vmatprep.mubr.bf16.mxu0 0
    %7576 = vmatmul.mubr.bf16.gmra.mrb[0].mxu0 %v7542
    %v7577 = vpop.f32.mrb[0].mxu0
    %v7578 = vadd.f32 0.0, %v7577
    %v7579 = vpop.f32.mrb[0].mxu0
    %v7580 = vadd.f32 0.0, %v7579
    %v7581 = vpop.f32.mrb[0].mxu0
    %v7582 = vpop.f32.mrb[0].mxu0
    %7583 = vdwg.mxu0
    %7584 = vmatprep.subr.bf16.mxu0 0
    %7585 = vmatpush1.bf16.msra.mxu0 %v6213
    %7586 = vmatprep.subr.bf16.mxu0 0
    %7587 = vmatpush1.bf16.msra.mxu0 %v6216
    %7588 = vmatprep.subr.bf16.mxu0 0
    %7589 = vmatpush1.bf16.msra.mxu0 %v6219
    %7590 = vmatprep.subr.bf16.mxu0 0
    %7591 = vmatpush1.bf16.msra.mxu0 %v6222
    %7592 = vmatprep.subr.bf16.mxu0 0
    %7593 = vmatpush1.bf16.msra.mxu0 %v6225
    %7594 = vmatprep.subr.bf16.mxu0 0
    %7595 = vmatpush1.bf16.msra.mxu0 %v6228
    %7596 = vmatprep.subr.bf16.mxu0 0
    %7597 = vmatpush1.bf16.msra.mxu0 %v6231
    %7598 = vmatprep.subr.bf16.mxu0 0
    %7599 = vmatpush1.bf16.msra.mxu0 %v6234
    %7600 = vmatprep.subr.bf16.mxu0 0
    %7601 = vmatpush1.bf16.msra.mxu0 0
    %7602 = vmatprep.subr.bf16.mxu0 0
    %7603 = vmatpush1.bf16.msra.mxu0 0
    %7604 = vmatprep.subr.bf16.mxu0 0
    %7605 = vmatpush1.bf16.msra.mxu0 0
    %7606 = vmatprep.subr.bf16.mxu0 0
    %7607 = vmatpush1.bf16.msra.mxu0 0
    %7608 = vmatprep.subr.bf16.mxu0 0
    %7609 = vmatpush1.bf16.msra.mxu0 0
    %7610 = vmatprep.subr.bf16.mxu0 0
    %7611 = vmatpush1.bf16.msra.mxu0 0
    %7612 = vmatprep.subr.bf16.mxu0 0
    %7613 = vmatpush1.bf16.msra.mxu0 0
    %7614 = vmatprep.subr.bf16.mxu0 0
    %7615 = vmatpush1.bf16.msra.mxu0 0
    %7616 = vmatprep.mubr.bf16.mxu0 0
    %7617 = vmatmul.mubr.bf16.gmra.mrb[0].mxu0 %v7542
    %v7618 = vpop.f32.mrb[0].mxu0
    %v7619 = vadd.f32 0.0, %v7618
    %v7620 = vpop.f32.mrb[0].mxu0
    %v7621 = vpop.f32.mrb[0].mxu0
    %v7622 = vpop.f32.mrb[0].mxu0
    %7623 = vdwg.mxu0
    %v7624 = vadd.f32 %v7539, %v7578
    %v7625 = vxor.u32 %v7624, 2147483648
    %v7626 = vmul.f32 %v7625, 1.442695
    %v7627 = vpow.pop %v7626
    %v7628 = vadd.f32 %v7627, 1.0
    %v7629 = vrcp.pop %v7628
    %v7630 = vmul.f32 1.0, %v7629
    %v7631 = vadd.f32 %v7540, %v7580
    %v7632 = vxor.u32 %v7631, 2147483648
    %v7633 = vmul.f32 %v7632, 1.442695
    %v7634 = vpow.pop %v7633
    %v7635 = vadd.f32 %v7634, 1.0
    %v7636 = vrcp.pop %v7635
    %v7637 = vmul.f32 1.0, %v7636
    %v7638 = vadd.f32 %v7619, %v5828
    %v7639 = vmul.f32 %v7630, %v7638
    %v7640 = vadd.f32 %v7541, %v7639
    %v7641 = vtanh.pop %v7640
    %v7642 = vsub.f32 1.0, %v7637
    %v7643 = vmul.f32 %v7642, %v7641
    %v7644 = vmul.f32 %v7637, %v7431
    %v7645 = vadd.f32 %v7643, %v7644
    %v7646 = vld [vmem:[%s858] sm:$0xff]
    %v7647 = vld [vmem:[%s858 + $0x8] sm:$0xff]
    %v7648 = vld [vmem:[%s858 + $0x10] sm:$0xff]
    %v7649 = vpack.c.bf16 %v7538, %v7538
    %7650 = vmatprep.subr.bf16.mxu0 %v5946
    %7651 = vmatpush1.bf16.msra.mxu0 %v5945
    %7652 = vmatprep.subr.bf16.mxu0 %v5949
    %7653 = vmatpush1.bf16.msra.mxu0 %v5948
    %7654 = vmatprep.subr.bf16.mxu0 %v5952
    %7655 = vmatpush1.bf16.msra.mxu0 %v5951
    %7656 = vmatprep.subr.bf16.mxu0 %v5955
    %7657 = vmatpush1.bf16.msra.mxu0 %v5954
    %7658 = vmatprep.subr.bf16.mxu0 %v5958
    %7659 = vmatpush1.bf16.msra.mxu0 %v5957
    %7660 = vmatprep.subr.bf16.mxu0 %v5961
    %7661 = vmatpush1.bf16.msra.mxu0 %v5960
    %7662 = vmatprep.subr.bf16.mxu0 %v5964
    %7663 = vmatpush1.bf16.msra.mxu0 %v5963
    %7664 = vmatprep.subr.bf16.mxu0 %v5967
    %7665 = vmatpush1.bf16.msra.mxu0 %v5966
    %7666 = vmatprep.subr.bf16.mxu0 0
    %7667 = vmatpush1.bf16.msra.mxu0 0
    %7668 = vmatprep.subr.bf16.mxu0 0
    %7669 = vmatpush1.bf16.msra.mxu0 0
    %7670 = vmatprep.subr.bf16.mxu0 0
    %7671 = vmatpush1.bf16.msra.mxu0 0
    %7672 = vmatprep.subr.bf16.mxu0 0
    %7673 = vmatpush1.bf16.msra.mxu0 0
    %7674 = vmatprep.subr.bf16.mxu0 0
    %7675 = vmatpush1.bf16.msra.mxu0 0
    %7676 = vmatprep.subr.bf16.mxu0 0
    %7677 = vmatpush1.bf16.msra.mxu0 0
    %7678 = vmatprep.subr.bf16.mxu0 0
    %7679 = vmatpush1.bf16.msra.mxu0 0
    %7680 = vmatprep.subr.bf16.mxu0 0
    %7681 = vmatpush1.bf16.msra.mxu0 0
    %7682 = vmatprep.mubr.bf16.mxu0 0
    %7683 = vmatmul.mubr.bf16.gmra.mrb[0].mxu0 %v7649
    %v7684 = vpop.f32.mrb[0].mxu0
    %v7685 = vadd.f32 0.0, %v7684
    %v7686 = vpop.f32.mrb[0].mxu0
    %v7687 = vadd.f32 0.0, %v7686
    %v7688 = vpop.f32.mrb[0].mxu0
    %v7689 = vpop.f32.mrb[0].mxu0
    %7690 = vdwg.mxu0
    %7691 = vmatprep.subr.bf16.mxu0 0
    %7692 = vmatpush1.bf16.msra.mxu0 %v5947
    %7693 = vmatprep.subr.bf16.mxu0 0
    %7694 = vmatpush1.bf16.msra.mxu0 %v5950
    %7695 = vmatprep.subr.bf16.mxu0 0
    %7696 = vmatpush1.bf16.msra.mxu0 %v5953
    %7697 = vmatprep.subr.bf16.mxu0 0
    %7698 = vmatpush1.bf16.msra.mxu0 %v5956
    %7699 = vmatprep.subr.bf16.mxu0 0
    %7700 = vmatpush1.bf16.msra.mxu0 %v5959
    %7701 = vmatprep.subr.bf16.mxu0 0
    %7702 = vmatpush1.bf16.msra.mxu0 %v5962
    %7703 = vmatprep.subr.bf16.mxu0 0
    %7704 = vmatpush1.bf16.msra.mxu0 %v5965
    %7705 = vmatprep.subr.bf16.mxu0 0
    %7706 = vmatpush1.bf16.msra.mxu0 %v5968
    %7707 = vmatprep.subr.bf16.mxu0 0
    %7708 = vmatpush1.bf16.msra.mxu0 0
    %7709 = vmatprep.subr.bf16.mxu0 0
    %7710 = vmatpush1.bf16.msra.mxu0 0
    %7711 = vmatprep.subr.bf16.mxu0 0
    %7712 = vmatpush1.bf16.msra.mxu0 0
    %7713 = vmatprep.subr.bf16.mxu0 0
    %7714 = vmatpush1.bf16.msra.mxu0 0
    %7715 = vmatprep.subr.bf16.mxu0 0
    %7716 = vmatpush1.bf16.msra.mxu0 0
    %7717 = vmatprep.subr.bf16.mxu0 0
    %7718 = vmatpush1.bf16.msra.mxu0 0
    %7719 = vmatprep.subr.bf16.mxu0 0
    %7720 = vmatpush1.bf16.msra.mxu0 0
    %7721 = vmatprep.subr.bf16.mxu0 0
    %7722 = vmatpush1.bf16.msra.mxu0 0
    %7723 = vmatprep.mubr.bf16.mxu0 0
    %7724 = vmatmul.mubr.bf16.gmra.mrb[0].mxu0 %v7649
    %v7725 = vpop.f32.mrb[0].mxu0
    %v7726 = vadd.f32 0.0, %v7725
    %v7727 = vpop.f32.mrb[0].mxu0
    %v7728 = vpop.f32.mrb[0].mxu0
    %v7729 = vpop.f32.mrb[0].mxu0
    %7730 = vdwg.mxu0
    %v7731 = vadd.f32 %v7646, %v7685
    %v7732 = vxor.u32 %v7731, 2147483648
    %v7733 = vmul.f32 %v7732, 1.442695
    %v7734 = vpow.pop %v7733
    %v7735 = vadd.f32 %v7734, 1.0
    %v7736 = vrcp.pop %v7735
    %v7737 = vmul.f32 1.0, %v7736
    %v7738 = vadd.f32 %v7647, %v7687
    %v7739 = vxor.u32 %v7738, 2147483648
    %v7740 = vmul.f32 %v7739, 1.442695
    %v7741 = vpow.pop %v7740
    %v7742 = vadd.f32 %v7741, 1.0
    %v7743 = vrcp.pop %v7742
    %v7744 = vmul.f32 1.0, %v7743
    %v7745 = vadd.f32 %v7726, %v5821
    %v7746 = vmul.f32 %v7737, %v7745
    %v7747 = vadd.f32 %v7648, %v7746
    %v7748 = vtanh.pop %v7747
    %v7749 = vsub.f32 1.0, %v7744
    %v7750 = vmul.f32 %v7749, %v7748
    %v7751 = vmul.f32 %v7744, %v7538
    %v7752 = vadd.f32 %v7750, %v7751
    %v7753 = vld [vmem:[%s585 + $0x18] sm:$0xff]
    %v7754 = vld [vmem:[%s585 + $0x20] sm:$0xff]
    %v7755 = vld [vmem:[%s585 + $0x28] sm:$0xff]
    %v7756 = vpack.c.bf16 %v7645, %v7645
    %7757 = vmatprep.subr.bf16.mxu0 %v6212
    %7758 = vmatpush1.bf16.msra.mxu0 %v6211
    %7759 = vmatprep.subr.bf16.mxu0 %v6215
    %7760 = vmatpush1.bf16.msra.mxu0 %v6214
    %7761 = vmatprep.subr.bf16.mxu0 %v6218
    %7762 = vmatpush1.bf16.msra.mxu0 %v6217
    %7763 = vmatprep.subr.bf16.mxu0 %v6221
    %7764 = vmatpush1.bf16.msra.mxu0 %v6220
    %7765 = vmatprep.subr.bf16.mxu0 %v6224
    %7766 = vmatpush1.bf16.msra.mxu0 %v6223
    %7767 = vmatprep.subr.bf16.mxu0 %v6227
    %7768 = vmatpush1.bf16.msra.mxu0 %v6226
    %7769 = vmatprep.subr.bf16.mxu0 %v6230
    %7770 = vmatpush1.bf16.msra.mxu0 %v6229
    %7771 = vmatprep.subr.bf16.mxu0 %v6233
    %7772 = vmatpush1.bf16.msra.mxu0 %v6232
    %7773 = vmatprep.subr.bf16.mxu0 0
    %7774 = vmatpush1.bf16.msra.mxu0 0
    %7775 = vmatprep.subr.bf16.mxu0 0
    %7776 = vmatpush1.bf16.msra.mxu0 0
    %7777 = vmatprep.subr.bf16.mxu0 0
    %7778 = vmatpush1.bf16.msra.mxu0 0
    %7779 = vmatprep.subr.bf16.mxu0 0
    %7780 = vmatpush1.bf16.msra.mxu0 0
    %7781 = vmatprep.subr.bf16.mxu0 0
    %7782 = vmatpush1.bf16.msra.mxu0 0
    %7783 = vmatprep.subr.bf16.mxu0 0
    %7784 = vmatpush1.bf16.msra.mxu0 0
    %7785 = vmatprep.subr.bf16.mxu0 0
    %7786 = vmatpush1.bf16.msra.mxu0 0
    %7787 = vmatprep.subr.bf16.mxu0 0
    %7788 = vmatpush1.bf16.msra.mxu0 0
    %7789 = vmatprep.mubr.bf16.mxu0 0
    %7790 = vmatmul.mubr.bf16.gmra.mrb[0].mxu0 %v7756
    %v7791 = vpop.f32.mrb[0].mxu0
    %v7792 = vadd.f32 0.0, %v7791
    %v7793 = vpop.f32.mrb[0].mxu0
    %v7794 = vadd.f32 0.0, %v7793
    %v7795 = vpop.f32.mrb[0].mxu0
    %v7796 = vpop.f32.mrb[0].mxu0
    %7797 = vdwg.mxu0
    %7798 = vmatprep.subr.bf16.mxu0 0
    %7799 = vmatpush1.bf16.msra.mxu0 %v6213
    %7800 = vmatprep.subr.bf16.mxu0 0
    %7801 = vmatpush1.bf16.msra.mxu0 %v6216
    %7802 = vmatprep.subr.bf16.mxu0 0
    %7803 = vmatpush1.bf16.msra.mxu0 %v6219
    %7804 = vmatprep.subr.bf16.mxu0 0
    %7805 = vmatpush1.bf16.msra.mxu0 %v6222
    %7806 = vmatprep.subr.bf16.mxu0 0
    %7807 = vmatpush1.bf16.msra.mxu0 %v6225
    %7808 = vmatprep.subr.bf16.mxu0 0
    %7809 = vmatpush1.bf16.msra.mxu0 %v6228
    %7810 = vmatprep.subr.bf16.mxu0 0
    %7811 = vmatpush1.bf16.msra.mxu0 %v6231
    %7812 = vmatprep.subr.bf16.mxu0 0
    %7813 = vmatpush1.bf16.msra.mxu0 %v6234
    %7814 = vmatprep.subr.bf16.mxu0 0
    %7815 = vmatpush1.bf16.msra.mxu0 0
    %7816 = vmatprep.subr.bf16.mxu0 0
    %7817 = vmatpush1.bf16.msra.mxu0 0
    %7818 = vmatprep.subr.bf16.mxu0 0
    %7819 = vmatpush1.bf16.msra.mxu0 0
    %7820 = vmatprep.subr.bf16.mxu0 0
    %7821 = vmatpush1.bf16.msra.mxu0 0
    %7822 = vmatprep.subr.bf16.mxu0 0
    %7823 = vmatpush1.bf16.msra.mxu0 0
    %7824 = vmatprep.subr.bf16.mxu0 0
    %7825 = vmatpush1.bf16.msra.mxu0 0
    %7826 = vmatprep.subr.bf16.mxu0 0
    %7827 = vmatpush1.bf16.msra.mxu0 0
    %7828 = vmatprep.subr.bf16.mxu0 0
    %7829 = vmatpush1.bf16.msra.mxu0 0
    %7830 = vmatprep.mubr.bf16.mxu0 0
    %7831 = vmatmul.mubr.bf16.gmra.mrb[0].mxu0 %v7756
    %v7832 = vpop.f32.mrb[0].mxu0
    %v7833 = vadd.f32 0.0, %v7832
    %v7834 = vpop.f32.mrb[0].mxu0
    %v7835 = vpop.f32.mrb[0].mxu0
    %v7836 = vpop.f32.mrb[0].mxu0
    %7837 = vdwg.mxu0
    %v7838 = vadd.f32 %v7753, %v7792
    %v7839 = vxor.u32 %v7838, 2147483648
    %v7840 = vmul.f32 %v7839, 1.442695
    %v7841 = vpow.pop %v7840
    %v7842 = vadd.f32 %v7841, 1.0
    %v7843 = vrcp.pop %v7842
    %v7844 = vmul.f32 1.0, %v7843
    %v7845 = vadd.f32 %v7754, %v7794
    %v7846 = vxor.u32 %v7845, 2147483648
    %v7847 = vmul.f32 %v7846, 1.442695
    %v7848 = vpow.pop %v7847
    %v7849 = vadd.f32 %v7848, 1.0
    %v7850 = vrcp.pop %v7849
    %v7851 = vmul.f32 1.0, %v7850
    %v7852 = vadd.f32 %v7833, %v5828
    %v7853 = vmul.f32 %v7844, %v7852
    %v7854 = vadd.f32 %v7755, %v7853
    %v7855 = vtanh.pop %v7854
    %v7856 = vsub.f32 1.0, %v7851
    %v7857 = vmul.f32 %v7856, %v7855
    %v7858 = vmul.f32 %v7851, %v7645
    %v7859 = vadd.f32 %v7857, %v7858
    %v7860 = vpack.c.bf16 %v7752, %v7752
    %v7861 = vld [vmem:[%s13] sm:$0xf]
    %v7862 = vld [vmem:[%s13 + $0x4] sm:$0xf]
    %v7863 = vld [vmem:[%s13 + $0x8] sm:$0xf]
    %v7864 = vld [vmem:[%s13 + $0xc] sm:$0xf]
    %v7865 = vld [vmem:[%s13 + $0x10] sm:$0xf]
    %v7866 = vld [vmem:[%s13 + $0x14] sm:$0xf]
    %v7867 = vld [vmem:[%s13 + $0x18] sm:$0xf]
    %v7868 = vld [vmem:[%s13 + $0x1c] sm:$0xf]
    %v7869 = vld [vmem:[%s13 + $0x20] sm:$0xf]
    %v7870 = vld [vmem:[%s13 + $0x24] sm:$0xf]
    %v7871 = vld [vmem:[%s13 + $0x28] sm:$0xf]
    %v7872 = vld [vmem:[%s13 + $0x2c] sm:$0xf]
    %v7873 = vld [vmem:[%s13 + $0x30] sm:$0xf]
    %v7874 = vld [vmem:[%s13 + $0x34] sm:$0xf]
    %v7875 = vld [vmem:[%s13 + $0x38] sm:$0xf]
    %v7876 = vld [vmem:[%s13 + $0x3c] sm:$0xf]
    %v7877 = vpack.c.bf16 %v7859, %v7859
    %v7878 = vld [vmem:[%s14] sm:$0xf]
    %v7879 = vld [vmem:[%s14 + $0x4] sm:$0xf]
    %v7880 = vld [vmem:[%s14 + $0x8] sm:$0xf]
    %v7881 = vld [vmem:[%s14 + $0xc] sm:$0xf]
    %v7882 = vld [vmem:[%s14 + $0x10] sm:$0xf]
    %v7883 = vld [vmem:[%s14 + $0x14] sm:$0xf]
    %v7884 = vld [vmem:[%s14 + $0x18] sm:$0xf]
    %v7885 = vld [vmem:[%s14 + $0x1c] sm:$0xf]
    %v7886 = vld [vmem:[%s14 + $0x20] sm:$0xf]
    %v7887 = vld [vmem:[%s14 + $0x24] sm:$0xf]
    %v7888 = vld [vmem:[%s14 + $0x28] sm:$0xf]
    %v7889 = vld [vmem:[%s14 + $0x2c] sm:$0xf]
    %v7890 = vld [vmem:[%s14 + $0x30] sm:$0xf]
    %v7891 = vld [vmem:[%s14 + $0x34] sm:$0xf]
    %v7892 = vld [vmem:[%s14 + $0x38] sm:$0xf]
    %v7893 = vld [vmem:[%s14 + $0x3c] sm:$0xf]
    %v7910 = vunpack.c.l.b16 %v7878
    %v7911 = vunpack.c.l.b16 %v7879
    %v7912 = vunpack.c.l.b16 %v7880
    %v7913 = vunpack.c.l.b16 %v7881
    %v7914 = vunpack.c.l.b16 %v7882
    %v7915 = vunpack.c.l.b16 %v7883
    %v7916 = vunpack.c.l.b16 %v7884
    %v7917 = vunpack.c.l.b16 %v7885
    %v7918 = vunpack.c.l.b16 %v7886
    %v7919 = vunpack.c.l.b16 %v7887
    %v7920 = vunpack.c.l.b16 %v7888
    %v7921 = vunpack.c.l.b16 %v7889
    %v7922 = vunpack.c.l.b16 %v7890
    %v7923 = vunpack.c.l.b16 %v7891
    %v7924 = vunpack.c.l.b16 %v7892
    %v7925 = vunpack.c.l.b16 %v7893
    %v7926 = vpack.c.b16 %v7911, %v7910
    %v7927 = vpack.c.b16 %v7913, %v7912
    %v7928 = vpack.c.b16 %v7915, %v7914
    %v7929 = vpack.c.b16 %v7917, %v7916
    %v7930 = vpack.c.b16 %v7919, %v7918
    %v7931 = vpack.c.b16 %v7921, %v7920
    %v7932 = vpack.c.b16 %v7923, %v7922
    %v7933 = vpack.c.b16 %v7925, %v7924
    %7942 = vmatprep.subr.bf16.mxu0 0
    %7943 = vmatpush1.bf16.msra.mxu0 %v7926
    %7944 = vmatprep.subr.bf16.mxu0 0
    %7945 = vmatpush1.bf16.msra.mxu0 %v7927
    %7946 = vmatprep.subr.bf16.mxu0 0
    %7947 = vmatpush1.bf16.msra.mxu0 %v7928
    %7948 = vmatprep.subr.bf16.mxu0 0
    %7949 = vmatpush1.bf16.msra.mxu0 %v7929
    %7950 = vmatprep.subr.bf16.mxu0 0
    %7951 = vmatpush1.bf16.msra.mxu0 %v7930
    %7952 = vmatprep.subr.bf16.mxu0 0
    %7953 = vmatpush1.bf16.msra.mxu0 %v7931
    %7954 = vmatprep.subr.bf16.mxu0 0
    %7955 = vmatpush1.bf16.msra.mxu0 %v7932
    %7956 = vmatprep.subr.bf16.mxu0 0
    %7957 = vmatpush1.bf16.msra.mxu0 %v7933
    %7958 = vmatprep.subr.bf16.mxu0 0
    %7959 = vmatpush1.bf16.msra.mxu0 0
    %7960 = vmatprep.subr.bf16.mxu0 0
    %7961 = vmatpush1.bf16.msra.mxu0 0
    %7962 = vmatprep.subr.bf16.mxu0 0
    %7963 = vmatpush1.bf16.msra.mxu0 0
    %7964 = vmatprep.subr.bf16.mxu0 0
    %7965 = vmatpush1.bf16.msra.mxu0 0
    %7966 = vmatprep.subr.bf16.mxu0 0
    %7967 = vmatpush1.bf16.msra.mxu0 0
    %7968 = vmatprep.subr.bf16.mxu0 0
    %7969 = vmatpush1.bf16.msra.mxu0 0
    %7970 = vmatprep.subr.bf16.mxu0 0
    %7971 = vmatpush1.bf16.msra.mxu0 0
    %7972 = vmatprep.subr.bf16.mxu0 0
    %7973 = vmatpush1.bf16.msra.mxu0 0
    %7974 = vmatprep.mubr.bf16.mxu0 0
    %7975 = vmatmul.mubr.bf16.gmra.mrb[0].mxu0 %v7877
    %v7976 = vpop.f32.mrb[0].mxu0
    %v7977 = vadd.f32 0.0, %v7976
    %v7978 = vpop.f32.mrb[0].mxu0
    %v7979 = vpop.f32.mrb[0].mxu0
    %v7980 = vpop.f32.mrb[0].mxu0
    %7981 = vdwg.mxu0
    %v7998 = vunpack.c.l.b16 %v7861
    %v7999 = vunpack.c.l.b16 %v7862
    %v8000 = vunpack.c.l.b16 %v7863
    %v8001 = vunpack.c.l.b16 %v7864
    %v8002 = vunpack.c.l.b16 %v7865
    %v8003 = vunpack.c.l.b16 %v7866
    %v8004 = vunpack.c.l.b16 %v7867
    %v8005 = vunpack.c.l.b16 %v7868
    %v8006 = vunpack.c.l.b16 %v7869
    %v8007 = vunpack.c.l.b16 %v7870
    %v8008 = vunpack.c.l.b16 %v7871
    %v8009 = vunpack.c.l.b16 %v7872
    %v8010 = vunpack.c.l.b16 %v7873
    %v8011 = vunpack.c.l.b16 %v7874
    %v8012 = vunpack.c.l.b16 %v7875
    %v8013 = vunpack.c.l.b16 %v7876
    %v8014 = vpack.c.b16 %v7999, %v7998
    %v8015 = vpack.c.b16 %v8001, %v8000
    %v8016 = vpack.c.b16 %v8003, %v8002
    %v8017 = vpack.c.b16 %v8005, %v8004
    %v8018 = vpack.c.b16 %v8007, %v8006
    %v8019 = vpack.c.b16 %v8009, %v8008
    %v8020 = vpack.c.b16 %v8011, %v8010
    %v8021 = vpack.c.b16 %v8013, %v8012
    %8030 = vmatprep.subr.bf16.mxu0 0
    %8031 = vmatpush1.bf16.msra.mxu0 %v8014
    %8032 = vmatprep.subr.bf16.mxu0 0
    %8033 = vmatpush1.bf16.msra.mxu0 %v8015
    %8034 = vmatprep.subr.bf16.mxu0 0
    %8035 = vmatpush1.bf16.msra.mxu0 %v8016
    %8036 = vmatprep.subr.bf16.mxu0 0
    %8037 = vmatpush1.bf16.msra.mxu0 %v8017
    %8038 = vmatprep.subr.bf16.mxu0 0
    %8039 = vmatpush1.bf16.msra.mxu0 %v8018
    %8040 = vmatprep.subr.bf16.mxu0 0
    %8041 = vmatpush1.bf16.msra.mxu0 %v8019
    %8042 = vmatprep.subr.bf16.mxu0 0
    %8043 = vmatpush1.bf16.msra.mxu0 %v8020
    %8044 = vmatprep.subr.bf16.mxu0 0
    %8045 = vmatpush1.bf16.msra.mxu0 %v8021
    %8046 = vmatprep.subr.bf16.mxu0 0
    %8047 = vmatpush1.bf16.msra.mxu0 0
    %8048 = vmatprep.subr.bf16.mxu0 0
    %8049 = vmatpush1.bf16.msra.mxu0 0
    %8050 = vmatprep.subr.bf16.mxu0 0
    %8051 = vmatpush1.bf16.msra.mxu0 0
    %8052 = vmatprep.subr.bf16.mxu0 0
    %8053 = vmatpush1.bf16.msra.mxu0 0
    %8054 = vmatprep.subr.bf16.mxu0 0
    %8055 = vmatpush1.bf16.msra.mxu0 0
    %8056 = vmatprep.subr.bf16.mxu0 0
    %8057 = vmatpush1.bf16.msra.mxu0 0
    %8058 = vmatprep.subr.bf16.mxu0 0
    %8059 = vmatpush1.bf16.msra.mxu0 0
    %8060 = vmatprep.subr.bf16.mxu0 0
    %8061 = vmatpush1.bf16.msra.mxu0 0
    %8062 = vmatprep.mubr.bf16.mxu0 0
    %8063 = vmatmul.mubr.bf16.gmra.mrb[0].mxu0 %v7860
    %v8064 = vpop.f32.mrb[0].mxu0
    %v8065 = vadd.f32 %v7977, %v8064
    %v8066 = vpop.f32.mrb[0].mxu0
    %v8067 = vpop.f32.mrb[0].mxu0
    %v8068 = vpop.f32.mrb[0].mxu0
    %8069 = vdwg.mxu0
    %v8070 = vld [vmem:[%s15] sm:$0x1]
    %v8072 = vlaneseq
    %v8073 = vshrl.u32 %v8072, 7
    %v8074 = vsub.s32 0, %v8073
    %v8075 = vrot.slane %v8070, %v8074
    %v8077 = vadd.f32 %v8065, %v8075
    %vm8078 = vcmask 15360
    %8079 = vst.msk [vmem:[%s16] sm:$0xff] %vm8078, %v8077
    // Predicated region
    $region98: #{tpu_custom_call.1} parent=1 // pred_check
      _
    $region99: #{tpu_custom_call.1} parent=1 // pred_check_branch
      %8081 = sbr.rel (0) target = $region101
    $region100: #{tpu_custom_call.1} parent=1 // pred_region
      _
    $region101: #{tpu_custom_call.1} parent=1 // pred_fallthru
      _
    // Predicated region
    $region102: #{tpu_custom_call.1} parent=1 // pred_check
      _
    $region103: #{tpu_custom_call.1} parent=1 // pred_check_branch
      %8083 = sbr.rel (0) target = $region105
    $region104: #{tpu_custom_call.1} parent=1 // pred_region
      _
    $region105: #{tpu_custom_call.1} parent=1 // pred_fallthru
      _
    %8084 = vsyncpa [#allocation5], 1
    %8085 = vsyncpa [#allocation7], 1
    %8086 = vsyncpa [#allocation10], 1
    %8087 = vsyncpa [#allocation13], 1
    %8088 = vsyncpa [#allocation16], 1

</llo_original>
